<compile_context>
chip_gen: v7x
topology: tpu7x:2x2x1
jax: 0.10.0
libtpu: 0.0.40
codegen_flags: <defaults>
</compile_context>

<pallas_src>
import jax
import jax.numpy as jnp
from jax import lax
from jax.experimental import pallas as pl
from jax.experimental.pallas import tpu as pltpu

# ---------------- hyperparameters (hp.*), small & mutually consistent ----------------
NUM_MELS = 8                  # hp.dsp.num_mels
NUM_AUDIO_FEATURES = 4        # hp.dsp.num_audio_features
INPUT_CHANNELS = 3            # hp.model.encoder.input_channels (x has 2*3 = 6 channels, split L/R)
EXPAND_CHANNELS = 16          # hp.model.encoder.expand_channels (GroupNorm groups = 16 // 16 = 1)
ENCODING_DIMS = 32            # hp.model.encoder.encoding_dims
LSTM_HIDDEN = 16              # hp.model.encoder.lstm_hidden_dims
LSTM_LAYERS = 2               # hp.model.encoder.lstm_num_layers
MIN_VOL = -40.0               # hp.dsp.min_vol
MAX_VOL = 0.0                 # hp.dsp.max_vol

B = 1                         # Encoder `h.view(1, -1)` + fc requires batch == 1
T = 16                        # number of frames = inputs.shape[-1] (also decoder target_length)
GN_EPS = 1e-5

D_IN0 = 2 * NUM_MELS + 2 * NUM_AUDIO_FEATURES   # encoder LSTM layer-0 input width (24)
H4 = 4 * LSTM_HIDDEN                            # per-direction packed gate width (64)
H8 = 8 * LSTM_HIDDEN                            # both directions packed gate width (128)


def vmem_spec():
    return pl.BlockSpec(memory_space=pltpu.MemorySpace.VMEM)


# ---------------------------------------------------------------------------------------------
# Single fused kernel: in_conv(L & R) -> bi-LSTM(2 layers) -> fc -> LSTMCell rollout -> fc
#                      -> sigmoid -> minmax rescale.
# ---------------------------------------------------------------------------------------------
def autoencoder_kernel(x48_ref, af_ref, w1b_ref, gam_ref, bet_ref, w2b_ref,
                       wih0_ref, whh0_ref, b0_ref, wih1_ref, whh1_ref, b1_ref,
                       efcw_ref, efcb_ref, dw_ref, db_ref, dfcw_ref, dfcb_ref,
                       y_ref, enc_ref, seq01_ref, xproj_ref, dseq_ref):
    H = LSTM_HIDDEN
    E = ENCODING_DIMS
    Tn = T
    CeM = EXPAND_CHANNELS * NUM_MELS                  # rows per side after conv1 (= 128)

    # ---------------- in_conv for L and R fused (channels on sublanes, time on lanes) -------
    # x48 rows: side*24 + c*8 + mel ; conv1 via kron-expanded block-diagonal weights.
    y = jnp.dot(w1b_ref[...], x48_ref[...], preferred_element_type=jnp.float32)   # [2*CeM, T]
    yL = y[0:CeM, :]
    yR = y[CeM:2 * CeM, :]
    # GroupNorm(num_groups=1) over (Ce, num_mels, T) per side (B == 1)
    mL = jnp.mean(yL)
    vL = jnp.mean((yL - mL) ** 2)
    mR = jnp.mean(yR)
    vR = jnp.mean((yR - mR) ** 2)
    nL = (yL - mL) * lax.rsqrt(vL + GN_EPS)
    nR = (yR - mR) * lax.rsqrt(vR + GN_EPS)
    z = jnp.concatenate([nL, nR], axis=0) * gam_ref[...] + bet_ref[...]
    z = jnp.maximum(z, 0.0)                                                        # ReLU
    feats_mt = jnp.dot(w2b_ref[...], z, preferred_element_type=jnp.float32)        # [2*nm, T]

    # LSTM layer-0 input sequence: features on rows, time on lanes -> transpose once.
    s_ft = jnp.concatenate([feats_mt, af_ref[...]], axis=0)                        # [D_IN0, T]
    seq0 = jnp.transpose(s_ft)                                                     # [T, D_IN0]

    # -------------------------- bidirectional LSTM layer (both dirs in one loop) ------------
    def bilstm_layer(seq_x, wih_ref_, whh_ref_, brow_ref_, store):
        # Hoisted input projection (+ combined biases); fwd gates lanes 0:4H, bwd lanes 4H:8H.
        xproj_ref[...] = (jnp.dot(seq_x, wih_ref_[...],
                                  preferred_element_type=jnp.float32) + brow_ref_[...])
        h = jnp.zeros((2, H), jnp.float32)     # row 0 = forward, row 1 = backward
        c = jnp.zeros((2, H), jnp.float32)
        for t in range(Tn):                    # fully unrolled, static indices
            tb = Tn - 1 - t
            xp_f = xproj_ref[t:t + 1, 0:H4]
            xp_b = xproj_ref[tb:tb + 1, H4:H8]
            xp = jnp.concatenate([xp_f, xp_b], axis=0)                             # [2, 4H]
            # single lane-dense recurrent push: [2,H] @ [H,8H]
            hh = jnp.dot(h, whh_ref_[...], preferred_element_type=jnp.float32)     # [2, 8H]
            pre = xp + jnp.concatenate([hh[0:1, 0:H4], hh[1:2, H4:H8]], axis=0)    # [2, 4H]
            sg = jax.nn.sigmoid(pre[:, 0:3 * H])                                   # i | f | o
            gg = jnp.tanh(pre[:, 3 * H:4 * H])                                     # g
            c = sg[:, H:2 * H] * c + sg[:, 0:H] * gg
            h = sg[:, 2 * H:3 * H] * jnp.tanh(c)
            if store:
                seq01_ref[t:t + 1, 0:H] = h[0:1, :]                  # fwd output at time t
                seq01_ref[tb:tb + 1, H:2 * H] = h[1:2, :]            # bwd output at time tb
        return h                                                      # final (h_fwd, h_bwd)

    h0 = bilstm_layer(seq0, wih0_ref, whh0_ref, b0_ref, store=True)
    h1 = bilstm_layer(seq01_ref[...], wih1_ref, whh1_ref, b1_ref, store=False)

    # h.view(1, -1) ordering: (layer0 fwd, layer0 bwd, layer1 fwd, layer1 bwd)
    h_all = jnp.concatenate([h0[0:1, :], h0[1:2, :], h1[0:1, :], h1[1:2, :]], axis=1)  # [1, 4H]
    encoding = (jnp.dot(h_all, efcw_ref[...], preferred_element_type=jnp.float32)
                + efcb_ref[...])                                                   # [1, E]
    enc_ref[...] = encoding

    # ------------------------------------ Decoder -------------------------------------------
    h = encoding
    c = jnp.zeros((1, E), jnp.float32)
    inp = jnp.zeros((1, E), jnp.float32)
    for t in range(Tn):                        # fully unrolled rollout
        xin = jnp.concatenate([inp, h], axis=1)                                    # [1, 2E]
        pre = (jnp.dot(xin, dw_ref[...], preferred_element_type=jnp.float32)
               + db_ref[...])                                                      # [1, 4E]
        sg = jax.nn.sigmoid(pre[:, 0:3 * E])                                       # i | f | o
        gg = jnp.tanh(pre[:, 3 * E:4 * E])                                         # g
        c = sg[:, E:2 * E] * c + sg[:, 0:E] * gg
        h = sg[:, 2 * E:3 * E] * jnp.tanh(c)
        inp = h
        dseq_ref[t:t + 1, :] = h

    outs = dseq_ref[...]                                                           # [T, E]
    y_tm = jax.nn.sigmoid(jnp.dot(outs, dfcw_ref[...],
                                  preferred_element_type=jnp.float32) + dfcb_ref[...])  # [T, nm]
    # minmax_scale from [0, 1] to [MIN_VOL, MAX_VOL], then transpose to [num_mels, T]
    y_ref[...] = jnp.transpose(y_tm * (MAX_VOL - MIN_VOL) + MIN_VOL)


# ---------------------------------------------------------------------------------------------
# Wrapper: only free contiguous reshapes on the host, one pallas_call.
# ---------------------------------------------------------------------------------------------
def autoencoder_forward(inputs, features, p):
    assert inputs.shape == (B, 2 * INPUT_CHANNELS, NUM_MELS, T)
    assert features.shape == (B, 2 * NUM_AUDIO_FEATURES, T)
    assert EXPAND_CHANNELS // 16 == 1, "kernel implements GroupNorm with a single group"

    x48 = inputs.reshape(2 * INPUT_CHANNELS * NUM_MELS, T)        # contiguous reshape (free)
    af = features.reshape(2 * NUM_AUDIO_FEATURES, T)              # contiguous reshape (free)

    y_mt, encoding = pl.pallas_call(
        autoencoder_kernel,
        out_shape=(jax.ShapeDtypeStruct((NUM_MELS, T), jnp.float32),
                   jax.ShapeDtypeStruct((1, ENCODING_DIMS), jnp.float32)),
        in_specs=[vmem_spec()] * 18,
        out_specs=(vmem_spec(), vmem_spec()),
        scratch_shapes=[
            pltpu.VMEM((T, 2 * LSTM_HIDDEN), jnp.float32),   # layer-0 fwd|bwd output sequence
            pltpu.VMEM((T, H8), jnp.float32),                # hoisted input projections (reused)
            pltpu.VMEM((T, ENCODING_DIMS), jnp.float32),     # decoder hidden-state sequence
        ],
    )(x48, af,
      p["w1big"], p["gn_gamma_big"], p["gn_beta_big"], p["w2big"],
      p["enc_wih0"], p["enc_whh0"], p["enc_b0"],
      p["enc_wih1"], p["enc_whh1"], p["enc_b1"],
      p["enc_fcw"], p["enc_fcb"],
      p["dec_w"], p["dec_b"], p["dec_fcw"], p["dec_fcb"])

    return y_mt[None], encoding                                    # [1, num_mels, T], [1, E]


# ---------------------------------------------------------------------------------------------
# Deterministic synthetic parameters, created directly in the packed kernel layout
# (done once at init, outside the jitted forward path).
# ---------------------------------------------------------------------------------------------
def _block_diag2(a, b):
    r1, c1 = a.shape
    r2, c2 = b.shape
    top = jnp.concatenate([a, jnp.zeros((r1, c2), a.dtype)], axis=1)
    bot = jnp.concatenate([jnp.zeros((r2, c1), b.dtype), b], axis=1)
    return jnp.concatenate([top, bot], axis=0)


def init_params(key):
    ks = jax.random.split(key, 14)
    s = 0.1
    H, E, nm, Ce, Cin = LSTM_HIDDEN, ENCODING_DIMS, NUM_MELS, EXPAND_CHANNELS, INPUT_CHANNELS
    eye = jnp.eye(nm, dtype=jnp.float32)

    w1 = s * jax.random.normal(ks[0], (Ce, Cin), jnp.float32)      # conv1 weight [out, in] (no bias)
    w2 = s * jax.random.normal(ks[1], (Ce,), jnp.float32)          # conv2 weight [1, Ce]   (no bias)
    gamma = jnp.ones((Ce,), jnp.float32)
    beta = jnp.zeros((Ce,), jnp.float32)

    k1 = jnp.kron(w1, eye)                       # [Ce*nm, Cin*nm]
    k2 = jnp.kron(w2.reshape(1, Ce), eye)        # [nm, Ce*nm]

    p = {
        # fused L/R 1x1 convs (block-diagonal, kron-expanded so mels stay on their own rows)
        "w1big": _block_diag2(k1, k1),                                        # [2*Ce*nm, 2*Cin*nm]
        "w2big": _block_diag2(k2, k2),                                        # [2*nm, 2*Ce*nm]
        "gn_gamma_big": jnp.tile(jnp.repeat(gamma, nm), 2).reshape(-1, 1),    # [2*Ce*nm, 1]
        "gn_beta_big": jnp.tile(jnp.repeat(beta, nm), 2).reshape(-1, 1),      # [2*Ce*nm, 1]
        # encoder bi-LSTM, packed: gate order (i,f,o,g); fwd gates cols 0:4H, bwd cols 4H:8H;
        # Whh is [H, 8H] = [Whh_fwd | Whh_bwd]; bias = bias_ih + bias_hh folded into b*row.
        "enc_wih0": s * jax.random.normal(ks[2], (D_IN0, H8), jnp.float32),
        "enc_whh0": s * jax.random.normal(ks[3], (H, H8), jnp.float32),
        "enc_b0":   s * jax.random.normal(ks[4], (1, H8), jnp.float32),
        "enc_wih1": s * jax.random.normal(ks[5], (2 * H, H8), jnp.float32),
        "enc_whh1": s * jax.random.normal(ks[6], (H, H8), jnp.float32),
        "enc_b1":   s * jax.random.normal(ks[7], (1, H8), jnp.float32),
        "enc_fcw":  s * jax.random.normal(ks[8], (2 * LSTM_LAYERS * H, E), jnp.float32),
        "enc_fcb":  s * jax.random.normal(ks[9], (1, E), jnp.float32),
        # decoder LSTMCell: rows 0:E = Wih^T, rows E:2E = Whh^T (gate order i,f,o,g) + fc
        "dec_w":   s * jax.random.normal(ks[10], (2 * E, 4 * E), jnp.float32),
        "dec_b":   s * jax.random.normal(ks[11], (1, 4 * E), jnp.float32),
        "dec_fcw": s * jax.random.normal(ks[12], (E, nm), jnp.float32),
        "dec_fcb": s * jax.random.normal(ks[13], (1, nm), jnp.float32),
    }
    return p


if __name__ == "__main__":
    key = jax.random.PRNGKey(0)
    kp, kx, kf = jax.random.split(key, 3)
    params = init_params(kp)

    # inputs: NCHW [B, 2*input_channels, num_mels, T]; features: [B, 2*num_audio_features, T]
    inputs = jax.random.normal(kx, (B, 2 * INPUT_CHANNELS, NUM_MELS, T), jnp.float32)
    features = jax.random.normal(kf, (B, 2 * NUM_AUDIO_FEATURES, T), jnp.float32)

    y, encoding = jax.jit(lambda i, f: autoencoder_forward(i, f, params))(inputs, features)
    jax.block_until_ready((y, encoding))

    assert y.shape == (B, NUM_MELS, T)
    assert encoding.shape == (1, ENCODING_DIMS)
    assert bool(jnp.all(jnp.isfinite(y))) and bool(jnp.all(jnp.isfinite(encoding)))
    assert bool(jnp.all(y >= MIN_VOL - 1e-4)) and bool(jnp.all(y <= MAX_VOL + 1e-4))
    print("KERNEL_OK")
</pallas_src>

<mosaic_0001>
module attributes {stable_mosaic.version = 11 : i64} {
  func.func @autoencoder_kernel(%arg0: memref<48x16xf32, #tpu.memory_space<vmem>>, %arg1: memref<8x16xf32, #tpu.memory_space<vmem>>, %arg2: memref<256x48xf32, #tpu.memory_space<vmem>>, %arg3: memref<256x1xf32, #tpu.memory_space<vmem>>, %arg4: memref<256x1xf32, #tpu.memory_space<vmem>>, %arg5: memref<16x256xf32, #tpu.memory_space<vmem>>, %arg6: memref<24x128xf32, #tpu.memory_space<vmem>>, %arg7: memref<16x128xf32, #tpu.memory_space<vmem>>, %arg8: memref<1x128xf32, #tpu.memory_space<vmem>>, %arg9: memref<32x128xf32, #tpu.memory_space<vmem>>, %arg10: memref<16x128xf32, #tpu.memory_space<vmem>>, %arg11: memref<1x128xf32, #tpu.memory_space<vmem>>, %arg12: memref<64x32xf32, #tpu.memory_space<vmem>>, %arg13: memref<1x32xf32, #tpu.memory_space<vmem>>, %arg14: memref<64x128xf32, #tpu.memory_space<vmem>>, %arg15: memref<1x128xf32, #tpu.memory_space<vmem>>, %arg16: memref<32x8xf32, #tpu.memory_space<vmem>>, %arg17: memref<1x8xf32, #tpu.memory_space<vmem>>, %arg18: memref<8x16xf32, #tpu.memory_space<vmem>>, %arg19: memref<1x32xf32, #tpu.memory_space<vmem>>, %arg20: memref<16x32xf32, #tpu.memory_space<vmem>>, %arg21: memref<16x128xf32, #tpu.memory_space<vmem>>, %arg22: memref<16x32xf32, #tpu.memory_space<vmem>>) attributes {dimension_semantics = [], scalar_prefetch = 0 : i64, scratch_operands = 3 : i64, tpu.core_type = #tpu.core_type<tc>} {
    %c0 = arith.constant 0 : index
    %c0_0 = arith.constant 0 : index
    %0 = vector.load %arg2[%c0, %c0_0] : memref<256x48xf32, #tpu.memory_space<vmem>>, vector<256x48xf32>
    %c0_1 = arith.constant 0 : index
    %c0_2 = arith.constant 0 : index
    %1 = vector.load %arg0[%c0_1, %c0_2] : memref<48x16xf32, #tpu.memory_space<vmem>>, vector<48x16xf32>
    %cst = arith.constant dense<0.000000e+00> : vector<256x16xf32>
    %2 = tpu.matmul %0, %1, %cst {dimension_numbers = #tpu.dot_dimension_numbers<[1], [0], [0], [1], [0, 0, 1, 1], [], []>} : vector<256x48xf32>, vector<48x16xf32>, vector<256x16xf32> -> vector<256x16xf32>
    %3 = vector.extract_strided_slice %2 {offsets = [0, 0], sizes = [128, 16], strides = [1, 1]} : vector<256x16xf32> to vector<128x16xf32>
    %4 = vector.extract_strided_slice %2 {offsets = [128, 0], sizes = [128, 16], strides = [1, 1]} : vector<256x16xf32> to vector<128x16xf32>
    %5 = vector.shape_cast %3 : vector<128x16xf32> to vector<1x128x16xf32>
    %cst_3 = arith.constant dense<0.000000e+00> : vector<1xf32>
    %6 = vector.multi_reduction <add>, %5, %cst_3 [1, 2] : vector<1x128x16xf32> to vector<1xf32>
    %7 = vector.shape_cast %6 : vector<1xf32> to vector<1x1x1xf32>
    %8 = vector.extract %7[0, 0, 0] : f32 from vector<1x1x1xf32>
    %cst_4 = arith.constant 2.048000e+03 : f32
    %9 = arith.divf %8, %cst_4 : f32
    %10 = vector.broadcast %9 : f32 to vector<128x16xf32>
    %11 = arith.subf %3, %10 : vector<128x16xf32>
    %12 = arith.mulf %11, %11 : vector<128x16xf32>
    %13 = vector.shape_cast %12 : vector<128x16xf32> to vector<1x128x16xf32>
    %cst_5 = arith.constant dense<0.000000e+00> : vector<1xf32>
    %14 = vector.multi_reduction <add>, %13, %cst_5 [1, 2] : vector<1x128x16xf32> to vector<1xf32>
    %15 = vector.shape_cast %14 : vector<1xf32> to vector<1x1x1xf32>
    %16 = vector.extract %15[0, 0, 0] : f32 from vector<1x1x1xf32>
    %cst_6 = arith.constant 2.048000e+03 : f32
    %17 = arith.divf %16, %cst_6 : f32
    %18 = vector.shape_cast %4 : vector<128x16xf32> to vector<1x128x16xf32>
    %cst_7 = arith.constant dense<0.000000e+00> : vector<1xf32>
    %19 = vector.multi_reduction <add>, %18, %cst_7 [1, 2] : vector<1x128x16xf32> to vector<1xf32>
    %20 = vector.shape_cast %19 : vector<1xf32> to vector<1x1x1xf32>
    %21 = vector.extract %20[0, 0, 0] : f32 from vector<1x1x1xf32>
    %cst_8 = arith.constant 2.048000e+03 : f32
    %22 = arith.divf %21, %cst_8 : f32
    %23 = vector.broadcast %22 : f32 to vector<128x16xf32>
    %24 = arith.subf %4, %23 : vector<128x16xf32>
    %25 = arith.mulf %24, %24 : vector<128x16xf32>
    %26 = vector.shape_cast %25 : vector<128x16xf32> to vector<1x128x16xf32>
    %cst_9 = arith.constant dense<0.000000e+00> : vector<1xf32>
    %27 = vector.multi_reduction <add>, %26, %cst_9 [1, 2] : vector<1x128x16xf32> to vector<1xf32>
    %28 = vector.shape_cast %27 : vector<1xf32> to vector<1x1x1xf32>
    %29 = vector.extract %28[0, 0, 0] : f32 from vector<1x1x1xf32>
    %cst_10 = arith.constant 2.048000e+03 : f32
    %30 = arith.divf %29, %cst_10 : f32
    %31 = vector.broadcast %9 : f32 to vector<128x16xf32>
    %32 = arith.subf %3, %31 : vector<128x16xf32>
    %cst_11 = arith.constant 9.99999974E-6 : f32
    %33 = arith.addf %17, %cst_11 : f32
    %34 = math.rsqrt %33 : f32
    %35 = vector.broadcast %34 : f32 to vector<128x16xf32>
    %36 = arith.mulf %32, %35 : vector<128x16xf32>
    %37 = vector.broadcast %22 : f32 to vector<128x16xf32>
    %38 = arith.subf %4, %37 : vector<128x16xf32>
    %cst_12 = arith.constant 9.99999974E-6 : f32
    %39 = arith.addf %30, %cst_12 : f32
    %40 = math.rsqrt %39 : f32
    %41 = vector.broadcast %40 : f32 to vector<128x16xf32>
    %42 = arith.mulf %38, %41 : vector<128x16xf32>
    %43 = tpu.concatenate %36, %42 in 0 : vector<128x16xf32>, vector<128x16xf32> -> vector<256x16xf32>
    %c0_13 = arith.constant 0 : index
    %c0_14 = arith.constant 0 : index
    %44 = vector.load %arg3[%c0_13, %c0_14] : memref<256x1xf32, #tpu.memory_space<vmem>>, vector<256x1xf32>
    %45 = vector.broadcast %44 : vector<256x1xf32> to vector<256x16xf32>
    %46 = arith.mulf %43, %45 : vector<256x16xf32>
    %c0_15 = arith.constant 0 : index
    %c0_16 = arith.constant 0 : index
    %47 = vector.load %arg4[%c0_15, %c0_16] : memref<256x1xf32, #tpu.memory_space<vmem>>, vector<256x1xf32>
    %48 = vector.broadcast %47 : vector<256x1xf32> to vector<256x16xf32>
    %49 = arith.addf %46, %48 : vector<256x16xf32>
    %cst_17 = arith.constant 0.000000e+00 : f32
    %50 = vector.broadcast %cst_17 : f32 to vector<256x16xf32>
    %51 = arith.maximumf %49, %50 : vector<256x16xf32>
    %c0_18 = arith.constant 0 : index
    %c0_19 = arith.constant 0 : index
    %52 = vector.load %arg5[%c0_18, %c0_19] : memref<16x256xf32, #tpu.memory_space<vmem>>, vector<16x256xf32>
    %cst_20 = arith.constant dense<0.000000e+00> : vector<16x16xf32>
    %53 = tpu.matmul %52, %51, %cst_20 {dimension_numbers = #tpu.dot_dimension_numbers<[1], [0], [0], [1], [0, 0, 1, 1], [], []>} : vector<16x256xf32>, vector<256x16xf32>, vector<16x16xf32> -> vector<16x16xf32>
    %c0_21 = arith.constant 0 : index
    %c0_22 = arith.constant 0 : index
    %54 = vector.load %arg1[%c0_21, %c0_22] : memref<8x16xf32, #tpu.memory_space<vmem>>, vector<8x16xf32>
    %55 = tpu.concatenate %53, %54 in 0 : vector<16x16xf32>, vector<8x16xf32> -> vector<24x16xf32>
    %56 = tpu.transpose %55, [1, 0] : vector<24x16xf32> -> vector<16x24xf32>
    %c0_23 = arith.constant 0 : index
    %c0_24 = arith.constant 0 : index
    %57 = vector.load %arg6[%c0_23, %c0_24] : memref<24x128xf32, #tpu.memory_space<vmem>>, vector<24x128xf32>
    %cst_25 = arith.constant dense<0.000000e+00> : vector<16x128xf32>
    %58 = tpu.matmul %56, %57, %cst_25 {dimension_numbers = #tpu.dot_dimension_numbers<[1], [0], [0], [1], [0, 0, 1, 1], [], []>} : vector<16x24xf32>, vector<24x128xf32>, vector<16x128xf32> -> vector<16x128xf32>
    %c0_26 = arith.constant 0 : index
    %c0_27 = arith.constant 0 : index
    %59 = vector.load %arg8[%c0_26, %c0_27] : memref<1x128xf32, #tpu.memory_space<vmem>>, vector<1x128xf32>
    %60 = vector.broadcast %59 : vector<1x128xf32> to vector<16x128xf32>
    %61 = arith.addf %58, %60 : vector<16x128xf32>
    %c0_28 = arith.constant 0 : index
    %c0_29 = arith.constant 0 : index
    %62 = vector.load %arg21[%c0_28, %c0_29] : memref<16x128xf32, #tpu.memory_space<vmem>>, vector<16x128xf32>
    tpu.vector_store %arg21[%c0_28, %c0_29], %61 {strides = array<i32>} : memref<16x128xf32, #tpu.memory_space<vmem>>, vector<16x128xf32>,
    %cst_30 = arith.constant 0.000000e+00 : f32
    %63 = vector.broadcast %cst_30 : f32 to vector<2x16xf32>
    %cst_31 = arith.constant 0.000000e+00 : f32
    %64 = vector.broadcast %cst_31 : f32 to vector<2x16xf32>
    %c0_32 = arith.constant 0 : index
    %c0_33 = arith.constant 0 : index
    %65 = vector.load %arg21[%c0_32, %c0_33] : memref<16x128xf32, #tpu.memory_space<vmem>>, vector<1x64xf32>
    %c15 = arith.constant 15 : index
    %c64 = arith.constant 64 : index
    %66 = vector.load %arg21[%c15, %c64] : memref<16x128xf32, #tpu.memory_space<vmem>>, vector<1x64xf32>
    %67 = tpu.concatenate %65, %66 in 0 : vector<1x64xf32>, vector<1x64xf32> -> vector<2x64xf32>
    %c0_34 = arith.constant 0 : index
    %c0_35 = arith.constant 0 : index
    %68 = vector.load %arg7[%c0_34, %c0_35] : memref<16x128xf32, #tpu.memory_space<vmem>>, vector<16x128xf32>
    %cst_36 = arith.constant dense<0.000000e+00> : vector<2x128xf32>
    %69 = tpu.matmul %63, %68, %cst_36 {dimension_numbers = #tpu.dot_dimension_numbers<[1], [0], [0], [1], [0, 0, 1, 1], [], []>} : vector<2x16xf32>, vector<16x128xf32>, vector<2x128xf32> -> vector<2x128xf32>
    %70 = vector.extract_strided_slice %69 {offsets = [0, 0], sizes = [1, 64], strides = [1, 1]} : vector<2x128xf32> to vector<1x64xf32>
    %71 = vector.extract_strided_slice %69 {offsets = [1, 64], sizes = [1, 64], strides = [1, 1]} : vector<2x128xf32> to vector<1x64xf32>
    %72 = tpu.concatenate %70, %71 in 0 : vector<1x64xf32>, vector<1x64xf32> -> vector<2x64xf32>
    %73 = arith.addf %67, %72 : vector<2x64xf32>
    %74 = vector.extract_strided_slice %73 {offsets = [0, 0], sizes = [2, 48], strides = [1, 1]} : vector<2x64xf32> to vector<2x48xf32>
    %75 = arith.negf %74 : vector<2x48xf32>
    %76 = math.exp %75 : vector<2x48xf32>
    %cst_37 = arith.constant 1.000000e+00 : f32
    %77 = vector.broadcast %cst_37 : f32 to vector<2x48xf32>
    %78 = arith.addf %77, %76 : vector<2x48xf32>
    %79 = arith.divf %77, %78 : vector<2x48xf32>
    %80 = vector.extract_strided_slice %73 {offsets = [0, 48], sizes = [2, 16], strides = [1, 1]} : vector<2x64xf32> to vector<2x16xf32>
    %81 = math.tanh %80 : vector<2x16xf32>
    %82 = vector.extract_strided_slice %79 {offsets = [0, 16], sizes = [2, 16], strides = [1, 1]} : vector<2x48xf32> to vector<2x16xf32>
    %83 = arith.mulf %82, %64 : vector<2x16xf32>
    %84 = vector.extract_strided_slice %79 {offsets = [0, 0], sizes = [2, 16], strides = [1, 1]} : vector<2x48xf32> to vector<2x16xf32>
    %85 = arith.mulf %84, %81 : vector<2x16xf32>
    %86 = arith.addf %83, %85 : vector<2x16xf32>
    %87 = vector.extract_strided_slice %79 {offsets = [0, 32], sizes = [2, 16], strides = [1, 1]} : vector<2x48xf32> to vector<2x16xf32>
    %88 = math.tanh %86 : vector<2x16xf32>
    %89 = arith.mulf %87, %88 : vector<2x16xf32>
    %90 = vector.extract_strided_slice %89 {offsets = [0, 0], sizes = [1, 16], strides = [1, 1]} : vector<2x16xf32> to vector<1x16xf32>
    %c0_38 = arith.constant 0 : index
    %c0_39 = arith.constant 0 : index
    %91 = vector.load %arg20[%c0_38, %c0_39] : memref<16x32xf32, #tpu.memory_space<vmem>>, vector<1x16xf32>
    tpu.vector_store %arg20[%c0_38, %c0_39], %90 {strides = array<i32>} : memref<16x32xf32, #tpu.memory_space<vmem>>, vector<1x16xf32>,
    %92 = vector.extract_strided_slice %89 {offsets = [1, 0], sizes = [1, 16], strides = [1, 1]} : vector<2x16xf32> to vector<1x16xf32>
    %c15_40 = arith.constant 15 : index
    %c16 = arith.constant 16 : index
    %93 = vector.load %arg20[%c15_40, %c16] : memref<16x32xf32, #tpu.memory_space<vmem>>, vector<1x16xf32>
    tpu.vector_store %arg20[%c15_40, %c16], %92 {strides = array<i32>} : memref<16x32xf32, #tpu.memory_space<vmem>>, vector<1x16xf32>,
    %c1 = arith.constant 1 : index
    %c0_41 = arith.constant 0 : index
    %94 = vector.load %arg21[%c1, %c0_41] : memref<16x128xf32, #tpu.memory_space<vmem>>, vector<1x64xf32>
    %c14 = arith.constant 14 : index
    %c64_42 = arith.constant 64 : index
    %95 = vector.load %arg21[%c14, %c64_42] : memref<16x128xf32, #tpu.memory_space<vmem>>, vector<1x64xf32>
    %96 = tpu.concatenate %94, %95 in 0 : vector<1x64xf32>, vector<1x64xf32> -> vector<2x64xf32>
    %c0_43 = arith.constant 0 : index
    %c0_44 = arith.constant 0 : index
    %97 = vector.load %arg7[%c0_43, %c0_44] : memref<16x128xf32, #tpu.memory_space<vmem>>, vector<16x128xf32>
    %cst_45 = arith.constant dense<0.000000e+00> : vector<2x128xf32>
    %98 = tpu.matmul %89, %97, %cst_45 {dimension_numbers = #tpu.dot_dimension_numbers<[1], [0], [0], [1], [0, 0, 1, 1], [], []>} : vector<2x16xf32>, vector<16x128xf32>, vector<2x128xf32> -> vector<2x128xf32>
    %99 = vector.extract_strided_slice %98 {offsets = [0, 0], sizes = [1, 64], strides = [1, 1]} : vector<2x128xf32> to vector<1x64xf32>
    %100 = vector.extract_strided_slice %98 {offsets = [1, 64], sizes = [1, 64], strides = [1, 1]} : vector<2x128xf32> to vector<1x64xf32>
    %101 = tpu.concatenate %99, %100 in 0 : vector<1x64xf32>, vector<1x64xf32> -> vector<2x64xf32>
    %102 = arith.addf %96, %101 : vector<2x64xf32>
    %103 = vector.extract_strided_slice %102 {offsets = [0, 0], sizes = [2, 48], strides = [1, 1]} : vector<2x64xf32> to vector<2x48xf32>
    %104 = arith.negf %103 : vector<2x48xf32>
    %105 = math.exp %104 : vector<2x48xf32>
    %cst_46 = arith.constant 1.000000e+00 : f32
    %106 = vector.broadcast %cst_46 : f32 to vector<2x48xf32>
    %107 = arith.addf %106, %105 : vector<2x48xf32>
    %108 = arith.divf %106, %107 : vector<2x48xf32>
    %109 = vector.extract_strided_slice %102 {offsets = [0, 48], sizes = [2, 16], strides = [1, 1]} : vector<2x64xf32> to vector<2x16xf32>
    %110 = math.tanh %109 : vector<2x16xf32>
    %111 = vector.extract_strided_slice %108 {offsets = [0, 16], sizes = [2, 16], strides = [1, 1]} : vector<2x48xf32> to vector<2x16xf32>
    %112 = arith.mulf %111, %86 : vector<2x16xf32>
    %113 = vector.extract_strided_slice %108 {offsets = [0, 0], sizes = [2, 16], strides = [1, 1]} : vector<2x48xf32> to vector<2x16xf32>
    %114 = arith.mulf %113, %110 : vector<2x16xf32>
    %115 = arith.addf %112, %114 : vector<2x16xf32>
    %116 = vector.extract_strided_slice %108 {offsets = [0, 32], sizes = [2, 16], strides = [1, 1]} : vector<2x48xf32> to vector<2x16xf32>
    %117 = math.tanh %115 : vector<2x16xf32>
    %118 = arith.mulf %116, %117 : vector<2x16xf32>
    %119 = vector.extract_strided_slice %118 {offsets = [0, 0], sizes = [1, 16], strides = [1, 1]} : vector<2x16xf32> to vector<1x16xf32>
    %c1_47 = arith.constant 1 : index
    %c0_48 = arith.constant 0 : index
    %120 = vector.load %arg20[%c1_47, %c0_48] : memref<16x32xf32, #tpu.memory_space<vmem>>, vector<1x16xf32>
    tpu.vector_store %arg20[%c1_47, %c0_48], %119 {strides = array<i32>} : memref<16x32xf32, #tpu.memory_space<vmem>>, vector<1x16xf32>,
    %121 = vector.extract_strided_slice %118 {offsets = [1, 0], sizes = [1, 16], strides = [1, 1]} : vector<2x16xf32> to vector<1x16xf32>
    %c14_49 = arith.constant 14 : index
    %c16_50 = arith.constant 16 : index
    %122 = vector.load %arg20[%c14_49, %c16_50] : memref<16x32xf32, #tpu.memory_space<vmem>>, vector<1x16xf32>
    tpu.vector_store %arg20[%c14_49, %c16_50], %121 {strides = array<i32>} : memref<16x32xf32, #tpu.memory_space<vmem>>, vector<1x16xf32>,
    %c2 = arith.constant 2 : index
    %c0_51 = arith.constant 0 : index
    %123 = vector.load %arg21[%c2, %c0_51] : memref<16x128xf32, #tpu.memory_space<vmem>>, vector<1x64xf32>
    %c13 = arith.constant 13 : index
    %c64_52 = arith.constant 64 : index
    %124 = vector.load %arg21[%c13, %c64_52] : memref<16x128xf32, #tpu.memory_space<vmem>>, vector<1x64xf32>
    %125 = tpu.concatenate %123, %124 in 0 : vector<1x64xf32>, vector<1x64xf32> -> vector<2x64xf32>
    %c0_53 = arith.constant 0 : index
    %c0_54 = arith.constant 0 : index
    %126 = vector.load %arg7[%c0_53, %c0_54] : memref<16x128xf32, #tpu.memory_space<vmem>>, vector<16x128xf32>
    %cst_55 = arith.constant dense<0.000000e+00> : vector<2x128xf32>
    %127 = tpu.matmul %118, %126, %cst_55 {dimension_numbers = #tpu.dot_dimension_numbers<[1], [0], [0], [1], [0, 0, 1, 1], [], []>} : vector<2x16xf32>, vector<16x128xf32>, vector<2x128xf32> -> vector<2x128xf32>
    %128 = vector.extract_strided_slice %127 {offsets = [0, 0], sizes = [1, 64], strides = [1, 1]} : vector<2x128xf32> to vector<1x64xf32>
    %129 = vector.extract_strided_slice %127 {offsets = [1, 64], sizes = [1, 64], strides = [1, 1]} : vector<2x128xf32> to vector<1x64xf32>
    %130 = tpu.concatenate %128, %129 in 0 : vector<1x64xf32>, vector<1x64xf32> -> vector<2x64xf32>
    %131 = arith.addf %125, %130 : vector<2x64xf32>
    %132 = vector.extract_strided_slice %131 {offsets = [0, 0], sizes = [2, 48], strides = [1, 1]} : vector<2x64xf32> to vector<2x48xf32>
    %133 = arith.negf %132 : vector<2x48xf32>
    %134 = math.exp %133 : vector<2x48xf32>
    %cst_56 = arith.constant 1.000000e+00 : f32
    %135 = vector.broadcast %cst_56 : f32 to vector<2x48xf32>
    %136 = arith.addf %135, %134 : vector<2x48xf32>
    %137 = arith.divf %135, %136 : vector<2x48xf32>
    %138 = vector.extract_strided_slice %131 {offsets = [0, 48], sizes = [2, 16], strides = [1, 1]} : vector<2x64xf32> to vector<2x16xf32>
    %139 = math.tanh %138 : vector<2x16xf32>
    %140 = vector.extract_strided_slice %137 {offsets = [0, 16], sizes = [2, 16], strides = [1, 1]} : vector<2x48xf32> to vector<2x16xf32>
    %141 = arith.mulf %140, %115 : vector<2x16xf32>
    %142 = vector.extract_strided_slice %137 {offsets = [0, 0], sizes = [2, 16], strides = [1, 1]} : vector<2x48xf32> to vector<2x16xf32>
    %143 = arith.mulf %142, %139 : vector<2x16xf32>
    %144 = arith.addf %141, %143 : vector<2x16xf32>
    %145 = vector.extract_strided_slice %137 {offsets = [0, 32], sizes = [2, 16], strides = [1, 1]} : vector<2x48xf32> to vector<2x16xf32>
    %146 = math.tanh %144 : vector<2x16xf32>
    %147 = arith.mulf %145, %146 : vector<2x16xf32>
    %148 = vector.extract_strided_slice %147 {offsets = [0, 0], sizes = [1, 16], strides = [1, 1]} : vector<2x16xf32> to vector<1x16xf32>
    %c2_57 = arith.constant 2 : index
    %c0_58 = arith.constant 0 : index
    %149 = vector.load %arg20[%c2_57, %c0_58] : memref<16x32xf32, #tpu.memory_space<vmem>>, vector<1x16xf32>
    tpu.vector_store %arg20[%c2_57, %c0_58], %148 {strides = array<i32>} : memref<16x32xf32, #tpu.memory_space<vmem>>, vector<1x16xf32>,
    %150 = vector.extract_strided_slice %147 {offsets = [1, 0], sizes = [1, 16], strides = [1, 1]} : vector<2x16xf32> to vector<1x16xf32>
    %c13_59 = arith.constant 13 : index
    %c16_60 = arith.constant 16 : index
    %151 = vector.load %arg20[%c13_59, %c16_60] : memref<16x32xf32, #tpu.memory_space<vmem>>, vector<1x16xf32>
    tpu.vector_store %arg20[%c13_59, %c16_60], %150 {strides = array<i32>} : memref<16x32xf32, #tpu.memory_space<vmem>>, vector<1x16xf32>,
    %c3 = arith.constant 3 : index
    %c0_61 = arith.constant 0 : index
    %152 = vector.load %arg21[%c3, %c0_61] : memref<16x128xf32, #tpu.memory_space<vmem>>, vector<1x64xf32>
    %c12 = arith.constant 12 : index
    %c64_62 = arith.constant 64 : index
    %153 = vector.load %arg21[%c12, %c64_62] : memref<16x128xf32, #tpu.memory_space<vmem>>, vector<1x64xf32>
    %154 = tpu.concatenate %152, %153 in 0 : vector<1x64xf32>, vector<1x64xf32> -> vector<2x64xf32>
    %c0_63 = arith.constant 0 : index
    %c0_64 = arith.constant 0 : index
    %155 = vector.load %arg7[%c0_63, %c0_64] : memref<16x128xf32, #tpu.memory_space<vmem>>, vector<16x128xf32>
    %cst_65 = arith.constant dense<0.000000e+00> : vector<2x128xf32>
    %156 = tpu.matmul %147, %155, %cst_65 {dimension_numbers = #tpu.dot_dimension_numbers<[1], [0], [0], [1], [0, 0, 1, 1], [], []>} : vector<2x16xf32>, vector<16x128xf32>, vector<2x128xf32> -> vector<2x128xf32>
    %157 = vector.extract_strided_slice %156 {offsets = [0, 0], sizes = [1, 64], strides = [1, 1]} : vector<2x128xf32> to vector<1x64xf32>
    %158 = vector.extract_strided_slice %156 {offsets = [1, 64], sizes = [1, 64], strides = [1, 1]} : vector<2x128xf32> to vector<1x64xf32>
    %159 = tpu.concatenate %157, %158 in 0 : vector<1x64xf32>, vector<1x64xf32> -> vector<2x64xf32>
    %160 = arith.addf %154, %159 : vector<2x64xf32>
    %161 = vector.extract_strided_slice %160 {offsets = [0, 0], sizes = [2, 48], strides = [1, 1]} : vector<2x64xf32> to vector<2x48xf32>
    %162 = arith.negf %161 : vector<2x48xf32>
    %163 = math.exp %162 : vector<2x48xf32>
    %cst_66 = arith.constant 1.000000e+00 : f32
    %164 = vector.broadcast %cst_66 : f32 to vector<2x48xf32>
    %165 = arith.addf %164, %163 : vector<2x48xf32>
    %166 = arith.divf %164, %165 : vector<2x48xf32>
    %167 = vector.extract_strided_slice %160 {offsets = [0, 48], sizes = [2, 16], strides = [1, 1]} : vector<2x64xf32> to vector<2x16xf32>
    %168 = math.tanh %167 : vector<2x16xf32>
    %169 = vector.extract_strided_slice %166 {offsets = [0, 16], sizes = [2, 16], strides = [1, 1]} : vector<2x48xf32> to vector<2x16xf32>
    %170 = arith.mulf %169, %144 : vector<2x16xf32>
    %171 = vector.extract_strided_slice %166 {offsets = [0, 0], sizes = [2, 16], strides = [1, 1]} : vector<2x48xf32> to vector<2x16xf32>
    %172 = arith.mulf %171, %168 : vector<2x16xf32>
    %173 = arith.addf %170, %172 : vector<2x16xf32>
    %174 = vector.extract_strided_slice %166 {offsets = [0, 32], sizes = [2, 16], strides = [1, 1]} : vector<2x48xf32> to vector<2x16xf32>
    %175 = math.tanh %173 : vector<2x16xf32>
    %176 = arith.mulf %174, %175 : vector<2x16xf32>
    %177 = vector.extract_strided_slice %176 {offsets = [0, 0], sizes = [1, 16], strides = [1, 1]} : vector<2x16xf32> to vector<1x16xf32>
    %c3_67 = arith.constant 3 : index
    %c0_68 = arith.constant 0 : index
    %178 = vector.load %arg20[%c3_67, %c0_68] : memref<16x32xf32, #tpu.memory_space<vmem>>, vector<1x16xf32>
    tpu.vector_store %arg20[%c3_67, %c0_68], %177 {strides = array<i32>} : memref<16x32xf32, #tpu.memory_space<vmem>>, vector<1x16xf32>,
    %179 = vector.extract_strided_slice %176 {offsets = [1, 0], sizes = [1, 16], strides = [1, 1]} : vector<2x16xf32> to vector<1x16xf32>
    %c12_69 = arith.constant 12 : index
    %c16_70 = arith.constant 16 : index
    %180 = vector.load %arg20[%c12_69, %c16_70] : memref<16x32xf32, #tpu.memory_space<vmem>>, vector<1x16xf32>
    tpu.vector_store %arg20[%c12_69, %c16_70], %179 {strides = array<i32>} : memref<16x32xf32, #tpu.memory_space<vmem>>, vector<1x16xf32>,
    %c4 = arith.constant 4 : index
    %c0_71 = arith.constant 0 : index
    %181 = vector.load %arg21[%c4, %c0_71] : memref<16x128xf32, #tpu.memory_space<vmem>>, vector<1x64xf32>
    %c11 = arith.constant 11 : index
    %c64_72 = arith.constant 64 : index
    %182 = vector.load %arg21[%c11, %c64_72] : memref<16x128xf32, #tpu.memory_space<vmem>>, vector<1x64xf32>
    %183 = tpu.concatenate %181, %182 in 0 : vector<1x64xf32>, vector<1x64xf32> -> vector<2x64xf32>
    %c0_73 = arith.constant 0 : index
    %c0_74 = arith.constant 0 : index
    %184 = vector.load %arg7[%c0_73, %c0_74] : memref<16x128xf32, #tpu.memory_space<vmem>>, vector<16x128xf32>
    %cst_75 = arith.constant dense<0.000000e+00> : vector<2x128xf32>
    %185 = tpu.matmul %176, %184, %cst_75 {dimension_numbers = #tpu.dot_dimension_numbers<[1], [0], [0], [1], [0, 0, 1, 1], [], []>} : vector<2x16xf32>, vector<16x128xf32>, vector<2x128xf32> -> vector<2x128xf32>
    %186 = vector.extract_strided_slice %185 {offsets = [0, 0], sizes = [1, 64], strides = [1, 1]} : vector<2x128xf32> to vector<1x64xf32>
    %187 = vector.extract_strided_slice %185 {offsets = [1, 64], sizes = [1, 64], strides = [1, 1]} : vector<2x128xf32> to vector<1x64xf32>
    %188 = tpu.concatenate %186, %187 in 0 : vector<1x64xf32>, vector<1x64xf32> -> vector<2x64xf32>
    %189 = arith.addf %183, %188 : vector<2x64xf32>
    %190 = vector.extract_strided_slice %189 {offsets = [0, 0], sizes = [2, 48], strides = [1, 1]} : vector<2x64xf32> to vector<2x48xf32>
    %191 = arith.negf %190 : vector<2x48xf32>
    %192 = math.exp %191 : vector<2x48xf32>
    %cst_76 = arith.constant 1.000000e+00 : f32
    %193 = vector.broadcast %cst_76 : f32 to vector<2x48xf32>
    %194 = arith.addf %193, %192 : vector<2x48xf32>
    %195 = arith.divf %193, %194 : vector<2x48xf32>
    %196 = vector.extract_strided_slice %189 {offsets = [0, 48], sizes = [2, 16], strides = [1, 1]} : vector<2x64xf32> to vector<2x16xf32>
    %197 = math.tanh %196 : vector<2x16xf32>
    %198 = vector.extract_strided_slice %195 {offsets = [0, 16], sizes = [2, 16], strides = [1, 1]} : vector<2x48xf32> to vector<2x16xf32>
    %199 = arith.mulf %198, %173 : vector<2x16xf32>
    %200 = vector.extract_strided_slice %195 {offsets = [0, 0], sizes = [2, 16], strides = [1, 1]} : vector<2x48xf32> to vector<2x16xf32>
    %201 = arith.mulf %200, %197 : vector<2x16xf32>
    %202 = arith.addf %199, %201 : vector<2x16xf32>
    %203 = vector.extract_strided_slice %195 {offsets = [0, 32], sizes = [2, 16], strides = [1, 1]} : vector<2x48xf32> to vector<2x16xf32>
    %204 = math.tanh %202 : vector<2x16xf32>
    %205 = arith.mulf %203, %204 : vector<2x16xf32>
    %206 = vector.extract_strided_slice %205 {offsets = [0, 0], sizes = [1, 16], strides = [1, 1]} : vector<2x16xf32> to vector<1x16xf32>
    %c4_77 = arith.constant 4 : index
    %c0_78 = arith.constant 0 : index
    %207 = vector.load %arg20[%c4_77, %c0_78] : memref<16x32xf32, #tpu.memory_space<vmem>>, vector<1x16xf32>
    tpu.vector_store %arg20[%c4_77, %c0_78], %206 {strides = array<i32>} : memref<16x32xf32, #tpu.memory_space<vmem>>, vector<1x16xf32>,
    %208 = vector.extract_strided_slice %205 {offsets = [1, 0], sizes = [1, 16], strides = [1, 1]} : vector<2x16xf32> to vector<1x16xf32>
    %c11_79 = arith.constant 11 : index
    %c16_80 = arith.constant 16 : index
    %209 = vector.load %arg20[%c11_79, %c16_80] : memref<16x32xf32, #tpu.memory_space<vmem>>, vector<1x16xf32>
    tpu.vector_store %arg20[%c11_79, %c16_80], %208 {strides = array<i32>} : memref<16x32xf32, #tpu.memory_space<vmem>>, vector<1x16xf32>,
    %c5 = arith.constant 5 : index
    %c0_81 = arith.constant 0 : index
    %210 = vector.load %arg21[%c5, %c0_81] : memref<16x128xf32, #tpu.memory_space<vmem>>, vector<1x64xf32>
    %c10 = arith.constant 10 : index
    %c64_82 = arith.constant 64 : index
    %211 = vector.load %arg21[%c10, %c64_82] : memref<16x128xf32, #tpu.memory_space<vmem>>, vector<1x64xf32>
    %212 = tpu.concatenate %210, %211 in 0 : vector<1x64xf32>, vector<1x64xf32> -> vector<2x64xf32>
    %c0_83 = arith.constant 0 : index
    %c0_84 = arith.constant 0 : index
    %213 = vector.load %arg7[%c0_83, %c0_84] : memref<16x128xf32, #tpu.memory_space<vmem>>, vector<16x128xf32>
    %cst_85 = arith.constant dense<0.000000e+00> : vector<2x128xf32>
    %214 = tpu.matmul %205, %213, %cst_85 {dimension_numbers = #tpu.dot_dimension_numbers<[1], [0], [0], [1], [0, 0, 1, 1], [], []>} : vector<2x16xf32>, vector<16x128xf32>, vector<2x128xf32> -> vector<2x128xf32>
    %215 = vector.extract_strided_slice %214 {offsets = [0, 0], sizes = [1, 64], strides = [1, 1]} : vector<2x128xf32> to vector<1x64xf32>
    %216 = vector.extract_strided_slice %214 {offsets = [1, 64], sizes = [1, 64], strides = [1, 1]} : vector<2x128xf32> to vector<1x64xf32>
    %217 = tpu.concatenate %215, %216 in 0 : vector<1x64xf32>, vector<1x64xf32> -> vector<2x64xf32>
    %218 = arith.addf %212, %217 : vector<2x64xf32>
    %219 = vector.extract_strided_slice %218 {offsets = [0, 0], sizes = [2, 48], strides = [1, 1]} : vector<2x64xf32> to vector<2x48xf32>
    %220 = arith.negf %219 : vector<2x48xf32>
    %221 = math.exp %220 : vector<2x48xf32>
    %cst_86 = arith.constant 1.000000e+00 : f32
    %222 = vector.broadcast %cst_86 : f32 to vector<2x48xf32>
    %223 = arith.addf %222, %221 : vector<2x48xf32>
    %224 = arith.divf %222, %223 : vector<2x48xf32>
    %225 = vector.extract_strided_slice %218 {offsets = [0, 48], sizes = [2, 16], strides = [1, 1]} : vector<2x64xf32> to vector<2x16xf32>
    %226 = math.tanh %225 : vector<2x16xf32>
    %227 = vector.extract_strided_slice %224 {offsets = [0, 16], sizes = [2, 16], strides = [1, 1]} : vector<2x48xf32> to vector<2x16xf32>
    %228 = arith.mulf %227, %202 : vector<2x16xf32>
    %229 = vector.extract_strided_slice %224 {offsets = [0, 0], sizes = [2, 16], strides = [1, 1]} : vector<2x48xf32> to vector<2x16xf32>
    %230 = arith.mulf %229, %226 : vector<2x16xf32>
    %231 = arith.addf %228, %230 : vector<2x16xf32>
    %232 = vector.extract_strided_slice %224 {offsets = [0, 32], sizes = [2, 16], strides = [1, 1]} : vector<2x48xf32> to vector<2x16xf32>
    %233 = math.tanh %231 : vector<2x16xf32>
    %234 = arith.mulf %232, %233 : vector<2x16xf32>
    %235 = vector.extract_strided_slice %234 {offsets = [0, 0], sizes = [1, 16], strides = [1, 1]} : vector<2x16xf32> to vector<1x16xf32>
    %c5_87 = arith.constant 5 : index
    %c0_88 = arith.constant 0 : index
    %236 = vector.load %arg20[%c5_87, %c0_88] : memref<16x32xf32, #tpu.memory_space<vmem>>, vector<1x16xf32>
    tpu.vector_store %arg20[%c5_87, %c0_88], %235 {strides = array<i32>} : memref<16x32xf32, #tpu.memory_space<vmem>>, vector<1x16xf32>,
    %237 = vector.extract_strided_slice %234 {offsets = [1, 0], sizes = [1, 16], strides = [1, 1]} : vector<2x16xf32> to vector<1x16xf32>
    %c10_89 = arith.constant 10 : index
    %c16_90 = arith.constant 16 : index
    %238 = vector.load %arg20[%c10_89, %c16_90] : memref<16x32xf32, #tpu.memory_space<vmem>>, vector<1x16xf32>
    tpu.vector_store %arg20[%c10_89, %c16_90], %237 {strides = array<i32>} : memref<16x32xf32, #tpu.memory_space<vmem>>, vector<1x16xf32>,
    %c6 = arith.constant 6 : index
    %c0_91 = arith.constant 0 : index
    %239 = vector.load %arg21[%c6, %c0_91] : memref<16x128xf32, #tpu.memory_space<vmem>>, vector<1x64xf32>
    %c9 = arith.constant 9 : index
    %c64_92 = arith.constant 64 : index
    %240 = vector.load %arg21[%c9, %c64_92] : memref<16x128xf32, #tpu.memory_space<vmem>>, vector<1x64xf32>
    %241 = tpu.concatenate %239, %240 in 0 : vector<1x64xf32>, vector<1x64xf32> -> vector<2x64xf32>
    %c0_93 = arith.constant 0 : index
    %c0_94 = arith.constant 0 : index
    %242 = vector.load %arg7[%c0_93, %c0_94] : memref<16x128xf32, #tpu.memory_space<vmem>>, vector<16x128xf32>
    %cst_95 = arith.constant dense<0.000000e+00> : vector<2x128xf32>
    %243 = tpu.matmul %234, %242, %cst_95 {dimension_numbers = #tpu.dot_dimension_numbers<[1], [0], [0], [1], [0, 0, 1, 1], [], []>} : vector<2x16xf32>, vector<16x128xf32>, vector<2x128xf32> -> vector<2x128xf32>
    %244 = vector.extract_strided_slice %243 {offsets = [0, 0], sizes = [1, 64], strides = [1, 1]} : vector<2x128xf32> to vector<1x64xf32>
    %245 = vector.extract_strided_slice %243 {offsets = [1, 64], sizes = [1, 64], strides = [1, 1]} : vector<2x128xf32> to vector<1x64xf32>
    %246 = tpu.concatenate %244, %245 in 0 : vector<1x64xf32>, vector<1x64xf32> -> vector<2x64xf32>
    %247 = arith.addf %241, %246 : vector<2x64xf32>
    %248 = vector.extract_strided_slice %247 {offsets = [0, 0], sizes = [2, 48], strides = [1, 1]} : vector<2x64xf32> to vector<2x48xf32>
    %249 = arith.negf %248 : vector<2x48xf32>
    %250 = math.exp %249 : vector<2x48xf32>
    %cst_96 = arith.constant 1.000000e+00 : f32
    %251 = vector.broadcast %cst_96 : f32 to vector<2x48xf32>
    %252 = arith.addf %251, %250 : vector<2x48xf32>
    %253 = arith.divf %251, %252 : vector<2x48xf32>
    %254 = vector.extract_strided_slice %247 {offsets = [0, 48], sizes = [2, 16], strides = [1, 1]} : vector<2x64xf32> to vector<2x16xf32>
    %255 = math.tanh %254 : vector<2x16xf32>
    %256 = vector.extract_strided_slice %253 {offsets = [0, 16], sizes = [2, 16], strides = [1, 1]} : vector<2x48xf32> to vector<2x16xf32>
    %257 = arith.mulf %256, %231 : vector<2x16xf32>
    %258 = vector.extract_strided_slice %253 {offsets = [0, 0], sizes = [2, 16], strides = [1, 1]} : vector<2x48xf32> to vector<2x16xf32>
    %259 = arith.mulf %258, %255 : vector<2x16xf32>
    %260 = arith.addf %257, %259 : vector<2x16xf32>
    %261 = vector.extract_strided_slice %253 {offsets = [0, 32], sizes = [2, 16], strides = [1, 1]} : vector<2x48xf32> to vector<2x16xf32>
    %262 = math.tanh %260 : vector<2x16xf32>
    %263 = arith.mulf %261, %262 : vector<2x16xf32>
    %264 = vector.extract_strided_slice %263 {offsets = [0, 0], sizes = [1, 16], strides = [1, 1]} : vector<2x16xf32> to vector<1x16xf32>
    %c6_97 = arith.constant 6 : index
    %c0_98 = arith.constant 0 : index
    %265 = vector.load %arg20[%c6_97, %c0_98] : memref<16x32xf32, #tpu.memory_space<vmem>>, vector<1x16xf32>
    tpu.vector_store %arg20[%c6_97, %c0_98], %264 {strides = array<i32>} : memref<16x32xf32, #tpu.memory_space<vmem>>, vector<1x16xf32>,
    %266 = vector.extract_strided_slice %263 {offsets = [1, 0], sizes = [1, 16], strides = [1, 1]} : vector<2x16xf32> to vector<1x16xf32>
    %c9_99 = arith.constant 9 : index
    %c16_100 = arith.constant 16 : index
    %267 = vector.load %arg20[%c9_99, %c16_100] : memref<16x32xf32, #tpu.memory_space<vmem>>, vector<1x16xf32>
    tpu.vector_store %arg20[%c9_99, %c16_100], %266 {strides = array<i32>} : memref<16x32xf32, #tpu.memory_space<vmem>>, vector<1x16xf32>,
    %c7 = arith.constant 7 : index
    %c0_101 = arith.constant 0 : index
    %268 = vector.load %arg21[%c7, %c0_101] : memref<16x128xf32, #tpu.memory_space<vmem>>, vector<1x64xf32>
    %c8 = arith.constant 8 : index
    %c64_102 = arith.constant 64 : index
    %269 = vector.load %arg21[%c8, %c64_102] : memref<16x128xf32, #tpu.memory_space<vmem>>, vector<1x64xf32>
    %270 = tpu.concatenate %268, %269 in 0 : vector<1x64xf32>, vector<1x64xf32> -> vector<2x64xf32>
    %c0_103 = arith.constant 0 : index
    %c0_104 = arith.constant 0 : index
    %271 = vector.load %arg7[%c0_103, %c0_104] : memref<16x128xf32, #tpu.memory_space<vmem>>, vector<16x128xf32>
    %cst_105 = arith.constant dense<0.000000e+00> : vector<2x128xf32>
    %272 = tpu.matmul %263, %271, %cst_105 {dimension_numbers = #tpu.dot_dimension_numbers<[1], [0], [0], [1], [0, 0, 1, 1], [], []>} : vector<2x16xf32>, vector<16x128xf32>, vector<2x128xf32> -> vector<2x128xf32>
    %273 = vector.extract_strided_slice %272 {offsets = [0, 0], sizes = [1, 64], strides = [1, 1]} : vector<2x128xf32> to vector<1x64xf32>
    %274 = vector.extract_strided_slice %272 {offsets = [1, 64], sizes = [1, 64], strides = [1, 1]} : vector<2x128xf32> to vector<1x64xf32>
    %275 = tpu.concatenate %273, %274 in 0 : vector<1x64xf32>, vector<1x64xf32> -> vector<2x64xf32>
    %276 = arith.addf %270, %275 : vector<2x64xf32>
    %277 = vector.extract_strided_slice %276 {offsets = [0, 0], sizes = [2, 48], strides = [1, 1]} : vector<2x64xf32> to vector<2x48xf32>
    %278 = arith.negf %277 : vector<2x48xf32>
    %279 = math.exp %278 : vector<2x48xf32>
    %cst_106 = arith.constant 1.000000e+00 : f32
    %280 = vector.broadcast %cst_106 : f32 to vector<2x48xf32>
    %281 = arith.addf %280, %279 : vector<2x48xf32>
    %282 = arith.divf %280, %281 : vector<2x48xf32>
    %283 = vector.extract_strided_slice %276 {offsets = [0, 48], sizes = [2, 16], strides = [1, 1]} : vector<2x64xf32> to vector<2x16xf32>
    %284 = math.tanh %283 : vector<2x16xf32>
    %285 = vector.extract_strided_slice %282 {offsets = [0, 16], sizes = [2, 16], strides = [1, 1]} : vector<2x48xf32> to vector<2x16xf32>
    %286 = arith.mulf %285, %260 : vector<2x16xf32>
    %287 = vector.extract_strided_slice %282 {offsets = [0, 0], sizes = [2, 16], strides = [1, 1]} : vector<2x48xf32> to vector<2x16xf32>
    %288 = arith.mulf %287, %284 : vector<2x16xf32>
    %289 = arith.addf %286, %288 : vector<2x16xf32>
    %290 = vector.extract_strided_slice %282 {offsets = [0, 32], sizes = [2, 16], strides = [1, 1]} : vector<2x48xf32> to vector<2x16xf32>
    %291 = math.tanh %289 : vector<2x16xf32>
    %292 = arith.mulf %290, %291 : vector<2x16xf32>
    %293 = vector.extract_strided_slice %292 {offsets = [0, 0], sizes = [1, 16], strides = [1, 1]} : vector<2x16xf32> to vector<1x16xf32>
    %c7_107 = arith.constant 7 : index
    %c0_108 = arith.constant 0 : index
    %294 = vector.load %arg20[%c7_107, %c0_108] : memref<16x32xf32, #tpu.memory_space<vmem>>, vector<1x16xf32>
    tpu.vector_store %arg20[%c7_107, %c0_108], %293 {strides = array<i32>} : memref<16x32xf32, #tpu.memory_space<vmem>>, vector<1x16xf32>,
    %295 = vector.extract_strided_slice %292 {offsets = [1, 0], sizes = [1, 16], strides = [1, 1]} : vector<2x16xf32> to vector<1x16xf32>
    %c8_109 = arith.constant 8 : index
    %c16_110 = arith.constant 16 : index
    %296 = vector.load %arg20[%c8_109, %c16_110] : memref<16x32xf32, #tpu.memory_space<vmem>>, vector<1x16xf32>
    tpu.vector_store %arg20[%c8_109, %c16_110], %295 {strides = array<i32>} : memref<16x32xf32, #tpu.memory_space<vmem>>, vector<1x16xf32>,
    %c8_111 = arith.constant 8 : index
    %c0_112 = arith.constant 0 : index
    %297 = vector.load %arg21[%c8_111, %c0_112] : memref<16x128xf32, #tpu.memory_space<vmem>>, vector<1x64xf32>
    %c7_113 = arith.constant 7 : index
    %c64_114 = arith.constant 64 : index
    %298 = vector.load %arg21[%c7_113, %c64_114] : memref<16x128xf32, #tpu.memory_space<vmem>>, vector<1x64xf32>
    %299 = tpu.concatenate %297, %298 in 0 : vector<1x64xf32>, vector<1x64xf32> -> vector<2x64xf32>
    %c0_115 = arith.constant 0 : index
    %c0_116 = arith.constant 0 : index
    %300 = vector.load %arg7[%c0_115, %c0_116] : memref<16x128xf32, #tpu.memory_space<vmem>>, vector<16x128xf32>
    %cst_117 = arith.constant dense<0.000000e+00> : vector<2x128xf32>
    %301 = tpu.matmul %292, %300, %cst_117 {dimension_numbers = #tpu.dot_dimension_numbers<[1], [0], [0], [1], [0, 0, 1, 1], [], []>} : vector<2x16xf32>, vector<16x128xf32>, vector<2x128xf32> -> vector<2x128xf32>
    %302 = vector.extract_strided_slice %301 {offsets = [0, 0], sizes = [1, 64], strides = [1, 1]} : vector<2x128xf32> to vector<1x64xf32>
    %303 = vector.extract_strided_slice %301 {offsets = [1, 64], sizes = [1, 64], strides = [1, 1]} : vector<2x128xf32> to vector<1x64xf32>
    %304 = tpu.concatenate %302, %303 in 0 : vector<1x64xf32>, vector<1x64xf32> -> vector<2x64xf32>
    %305 = arith.addf %299, %304 : vector<2x64xf32>
    %306 = vector.extract_strided_slice %305 {offsets = [0, 0], sizes = [2, 48], strides = [1, 1]} : vector<2x64xf32> to vector<2x48xf32>
    %307 = arith.negf %306 : vector<2x48xf32>
    %308 = math.exp %307 : vector<2x48xf32>
    %cst_118 = arith.constant 1.000000e+00 : f32
    %309 = vector.broadcast %cst_118 : f32 to vector<2x48xf32>
    %310 = arith.addf %309, %308 : vector<2x48xf32>
    %311 = arith.divf %309, %310 : vector<2x48xf32>
    %312 = vector.extract_strided_slice %305 {offsets = [0, 48], sizes = [2, 16], strides = [1, 1]} : vector<2x64xf32> to vector<2x16xf32>
    %313 = math.tanh %312 : vector<2x16xf32>
    %314 = vector.extract_strided_slice %311 {offsets = [0, 16], sizes = [2, 16], strides = [1, 1]} : vector<2x48xf32> to vector<2x16xf32>
    %315 = arith.mulf %314, %289 : vector<2x16xf32>
    %316 = vector.extract_strided_slice %311 {offsets = [0, 0], sizes = [2, 16], strides = [1, 1]} : vector<2x48xf32> to vector<2x16xf32>
    %317 = arith.mulf %316, %313 : vector<2x16xf32>
    %318 = arith.addf %315, %317 : vector<2x16xf32>
    %319 = vector.extract_strided_slice %311 {offsets = [0, 32], sizes = [2, 16], strides = [1, 1]} : vector<2x48xf32> to vector<2x16xf32>
    %320 = math.tanh %318 : vector<2x16xf32>
    %321 = arith.mulf %319, %320 : vector<2x16xf32>
    %322 = vector.extract_strided_slice %321 {offsets = [0, 0], sizes = [1, 16], strides = [1, 1]} : vector<2x16xf32> to vector<1x16xf32>
    %c8_119 = arith.constant 8 : index
    %c0_120 = arith.constant 0 : index
    %323 = vector.load %arg20[%c8_119, %c0_120] : memref<16x32xf32, #tpu.memory_space<vmem>>, vector<1x16xf32>
    tpu.vector_store %arg20[%c8_119, %c0_120], %322 {strides = array<i32>} : memref<16x32xf32, #tpu.memory_space<vmem>>, vector<1x16xf32>,
    %324 = vector.extract_strided_slice %321 {offsets = [1, 0], sizes = [1, 16], strides = [1, 1]} : vector<2x16xf32> to vector<1x16xf32>
    %c7_121 = arith.constant 7 : index
    %c16_122 = arith.constant 16 : index
    %325 = vector.load %arg20[%c7_121, %c16_122] : memref<16x32xf32, #tpu.memory_space<vmem>>, vector<1x16xf32>
    tpu.vector_store %arg20[%c7_121, %c16_122], %324 {strides = array<i32>} : memref<16x32xf32, #tpu.memory_space<vmem>>, vector<1x16xf32>,
    %c9_123 = arith.constant 9 : index
    %c0_124 = arith.constant 0 : index
    %326 = vector.load %arg21[%c9_123, %c0_124] : memref<16x128xf32, #tpu.memory_space<vmem>>, vector<1x64xf32>
    %c6_125 = arith.constant 6 : index
    %c64_126 = arith.constant 64 : index
    %327 = vector.load %arg21[%c6_125, %c64_126] : memref<16x128xf32, #tpu.memory_space<vmem>>, vector<1x64xf32>
    %328 = tpu.concatenate %326, %327 in 0 : vector<1x64xf32>, vector<1x64xf32> -> vector<2x64xf32>
    %c0_127 = arith.constant 0 : index
    %c0_128 = arith.constant 0 : index
    %329 = vector.load %arg7[%c0_127, %c0_128] : memref<16x128xf32, #tpu.memory_space<vmem>>, vector<16x128xf32>
    %cst_129 = arith.constant dense<0.000000e+00> : vector<2x128xf32>
    %330 = tpu.matmul %321, %329, %cst_129 {dimension_numbers = #tpu.dot_dimension_numbers<[1], [0], [0], [1], [0, 0, 1, 1], [], []>} : vector<2x16xf32>, vector<16x128xf32>, vector<2x128xf32> -> vector<2x128xf32>
    %331 = vector.extract_strided_slice %330 {offsets = [0, 0], sizes = [1, 64], strides = [1, 1]} : vector<2x128xf32> to vector<1x64xf32>
    %332 = vector.extract_strided_slice %330 {offsets = [1, 64], sizes = [1, 64], strides = [1, 1]} : vector<2x128xf32> to vector<1x64xf32>
    %333 = tpu.concatenate %331, %332 in 0 : vector<1x64xf32>, vector<1x64xf32> -> vector<2x64xf32>
    %334 = arith.addf %328, %333 : vector<2x64xf32>
    %335 = vector.extract_strided_slice %334 {offsets = [0, 0], sizes = [2, 48], strides = [1, 1]} : vector<2x64xf32> to vector<2x48xf32>
    %336 = arith.negf %335 : vector<2x48xf32>
    %337 = math.exp %336 : vector<2x48xf32>
    %cst_130 = arith.constant 1.000000e+00 : f32
    %338 = vector.broadcast %cst_130 : f32 to vector<2x48xf32>
    %339 = arith.addf %338, %337 : vector<2x48xf32>
    %340 = arith.divf %338, %339 : vector<2x48xf32>
    %341 = vector.extract_strided_slice %334 {offsets = [0, 48], sizes = [2, 16], strides = [1, 1]} : vector<2x64xf32> to vector<2x16xf32>
    %342 = math.tanh %341 : vector<2x16xf32>
    %343 = vector.extract_strided_slice %340 {offsets = [0, 16], sizes = [2, 16], strides = [1, 1]} : vector<2x48xf32> to vector<2x16xf32>
    %344 = arith.mulf %343, %318 : vector<2x16xf32>
    %345 = vector.extract_strided_slice %340 {offsets = [0, 0], sizes = [2, 16], strides = [1, 1]} : vector<2x48xf32> to vector<2x16xf32>
    %346 = arith.mulf %345, %342 : vector<2x16xf32>
    %347 = arith.addf %344, %346 : vector<2x16xf32>
    %348 = vector.extract_strided_slice %340 {offsets = [0, 32], sizes = [2, 16], strides = [1, 1]} : vector<2x48xf32> to vector<2x16xf32>
    %349 = math.tanh %347 : vector<2x16xf32>
    %350 = arith.mulf %348, %349 : vector<2x16xf32>
    %351 = vector.extract_strided_slice %350 {offsets = [0, 0], sizes = [1, 16], strides = [1, 1]} : vector<2x16xf32> to vector<1x16xf32>
    %c9_131 = arith.constant 9 : index
    %c0_132 = arith.constant 0 : index
    %352 = vector.load %arg20[%c9_131, %c0_132] : memref<16x32xf32, #tpu.memory_space<vmem>>, vector<1x16xf32>
    tpu.vector_store %arg20[%c9_131, %c0_132], %351 {strides = array<i32>} : memref<16x32xf32, #tpu.memory_space<vmem>>, vector<1x16xf32>,
    %353 = vector.extract_strided_slice %350 {offsets = [1, 0], sizes = [1, 16], strides = [1, 1]} : vector<2x16xf32> to vector<1x16xf32>
    %c6_133 = arith.constant 6 : index
    %c16_134 = arith.constant 16 : index
    %354 = vector.load %arg20[%c6_133, %c16_134] : memref<16x32xf32, #tpu.memory_space<vmem>>, vector<1x16xf32>
    tpu.vector_store %arg20[%c6_133, %c16_134], %353 {strides = array<i32>} : memref<16x32xf32, #tpu.memory_space<vmem>>, vector<1x16xf32>,
    %c10_135 = arith.constant 10 : index
    %c0_136 = arith.constant 0 : index
    %355 = vector.load %arg21[%c10_135, %c0_136] : memref<16x128xf32, #tpu.memory_space<vmem>>, vector<1x64xf32>
    %c5_137 = arith.constant 5 : index
    %c64_138 = arith.constant 64 : index
    %356 = vector.load %arg21[%c5_137, %c64_138] : memref<16x128xf32, #tpu.memory_space<vmem>>, vector<1x64xf32>
    %357 = tpu.concatenate %355, %356 in 0 : vector<1x64xf32>, vector<1x64xf32> -> vector<2x64xf32>
    %c0_139 = arith.constant 0 : index
    %c0_140 = arith.constant 0 : index
    %358 = vector.load %arg7[%c0_139, %c0_140] : memref<16x128xf32, #tpu.memory_space<vmem>>, vector<16x128xf32>
    %cst_141 = arith.constant dense<0.000000e+00> : vector<2x128xf32>
    %359 = tpu.matmul %350, %358, %cst_141 {dimension_numbers = #tpu.dot_dimension_numbers<[1], [0], [0], [1], [0, 0, 1, 1], [], []>} : vector<2x16xf32>, vector<16x128xf32>, vector<2x128xf32> -> vector<2x128xf32>
    %360 = vector.extract_strided_slice %359 {offsets = [0, 0], sizes = [1, 64], strides = [1, 1]} : vector<2x128xf32> to vector<1x64xf32>
    %361 = vector.extract_strided_slice %359 {offsets = [1, 64], sizes = [1, 64], strides = [1, 1]} : vector<2x128xf32> to vector<1x64xf32>
    %362 = tpu.concatenate %360, %361 in 0 : vector<1x64xf32>, vector<1x64xf32> -> vector<2x64xf32>
    %363 = arith.addf %357, %362 : vector<2x64xf32>
    %364 = vector.extract_strided_slice %363 {offsets = [0, 0], sizes = [2, 48], strides = [1, 1]} : vector<2x64xf32> to vector<2x48xf32>
    %365 = arith.negf %364 : vector<2x48xf32>
    %366 = math.exp %365 : vector<2x48xf32>
    %cst_142 = arith.constant 1.000000e+00 : f32
    %367 = vector.broadcast %cst_142 : f32 to vector<2x48xf32>
    %368 = arith.addf %367, %366 : vector<2x48xf32>
    %369 = arith.divf %367, %368 : vector<2x48xf32>
    %370 = vector.extract_strided_slice %363 {offsets = [0, 48], sizes = [2, 16], strides = [1, 1]} : vector<2x64xf32> to vector<2x16xf32>
    %371 = math.tanh %370 : vector<2x16xf32>
    %372 = vector.extract_strided_slice %369 {offsets = [0, 16], sizes = [2, 16], strides = [1, 1]} : vector<2x48xf32> to vector<2x16xf32>
    %373 = arith.mulf %372, %347 : vector<2x16xf32>
    %374 = vector.extract_strided_slice %369 {offsets = [0, 0], sizes = [2, 16], strides = [1, 1]} : vector<2x48xf32> to vector<2x16xf32>
    %375 = arith.mulf %374, %371 : vector<2x16xf32>
    %376 = arith.addf %373, %375 : vector<2x16xf32>
    %377 = vector.extract_strided_slice %369 {offsets = [0, 32], sizes = [2, 16], strides = [1, 1]} : vector<2x48xf32> to vector<2x16xf32>
    %378 = math.tanh %376 : vector<2x16xf32>
    %379 = arith.mulf %377, %378 : vector<2x16xf32>
    %380 = vector.extract_strided_slice %379 {offsets = [0, 0], sizes = [1, 16], strides = [1, 1]} : vector<2x16xf32> to vector<1x16xf32>
    %c10_143 = arith.constant 10 : index
    %c0_144 = arith.constant 0 : index
    %381 = vector.load %arg20[%c10_143, %c0_144] : memref<16x32xf32, #tpu.memory_space<vmem>>, vector<1x16xf32>
    tpu.vector_store %arg20[%c10_143, %c0_144], %380 {strides = array<i32>} : memref<16x32xf32, #tpu.memory_space<vmem>>, vector<1x16xf32>,
    %382 = vector.extract_strided_slice %379 {offsets = [1, 0], sizes = [1, 16], strides = [1, 1]} : vector<2x16xf32> to vector<1x16xf32>
    %c5_145 = arith.constant 5 : index
    %c16_146 = arith.constant 16 : index
    %383 = vector.load %arg20[%c5_145, %c16_146] : memref<16x32xf32, #tpu.memory_space<vmem>>, vector<1x16xf32>
    tpu.vector_store %arg20[%c5_145, %c16_146], %382 {strides = array<i32>} : memref<16x32xf32, #tpu.memory_space<vmem>>, vector<1x16xf32>,
    %c11_147 = arith.constant 11 : index
    %c0_148 = arith.constant 0 : index
    %384 = vector.load %arg21[%c11_147, %c0_148] : memref<16x128xf32, #tpu.memory_space<vmem>>, vector<1x64xf32>
    %c4_149 = arith.constant 4 : index
    %c64_150 = arith.constant 64 : index
    %385 = vector.load %arg21[%c4_149, %c64_150] : memref<16x128xf32, #tpu.memory_space<vmem>>, vector<1x64xf32>
    %386 = tpu.concatenate %384, %385 in 0 : vector<1x64xf32>, vector<1x64xf32> -> vector<2x64xf32>
    %c0_151 = arith.constant 0 : index
    %c0_152 = arith.constant 0 : index
    %387 = vector.load %arg7[%c0_151, %c0_152] : memref<16x128xf32, #tpu.memory_space<vmem>>, vector<16x128xf32>
    %cst_153 = arith.constant dense<0.000000e+00> : vector<2x128xf32>
    %388 = tpu.matmul %379, %387, %cst_153 {dimension_numbers = #tpu.dot_dimension_numbers<[1], [0], [0], [1], [0, 0, 1, 1], [], []>} : vector<2x16xf32>, vector<16x128xf32>, vector<2x128xf32> -> vector<2x128xf32>
    %389 = vector.extract_strided_slice %388 {offsets = [0, 0], sizes = [1, 64], strides = [1, 1]} : vector<2x128xf32> to vector<1x64xf32>
    %390 = vector.extract_strided_slice %388 {offsets = [1, 64], sizes = [1, 64], strides = [1, 1]} : vector<2x128xf32> to vector<1x64xf32>
    %391 = tpu.concatenate %389, %390 in 0 : vector<1x64xf32>, vector<1x64xf32> -> vector<2x64xf32>
    %392 = arith.addf %386, %391 : vector<2x64xf32>
    %393 = vector.extract_strided_slice %392 {offsets = [0, 0], sizes = [2, 48], strides = [1, 1]} : vector<2x64xf32> to vector<2x48xf32>
    %394 = arith.negf %393 : vector<2x48xf32>
    %395 = math.exp %394 : vector<2x48xf32>
    %cst_154 = arith.constant 1.000000e+00 : f32
    %396 = vector.broadcast %cst_154 : f32 to vector<2x48xf32>
    %397 = arith.addf %396, %395 : vector<2x48xf32>
    %398 = arith.divf %396, %397 : vector<2x48xf32>
    %399 = vector.extract_strided_slice %392 {offsets = [0, 48], sizes = [2, 16], strides = [1, 1]} : vector<2x64xf32> to vector<2x16xf32>
    %400 = math.tanh %399 : vector<2x16xf32>
    %401 = vector.extract_strided_slice %398 {offsets = [0, 16], sizes = [2, 16], strides = [1, 1]} : vector<2x48xf32> to vector<2x16xf32>
    %402 = arith.mulf %401, %376 : vector<2x16xf32>
    %403 = vector.extract_strided_slice %398 {offsets = [0, 0], sizes = [2, 16], strides = [1, 1]} : vector<2x48xf32> to vector<2x16xf32>
    %404 = arith.mulf %403, %400 : vector<2x16xf32>
    %405 = arith.addf %402, %404 : vector<2x16xf32>
    %406 = vector.extract_strided_slice %398 {offsets = [0, 32], sizes = [2, 16], strides = [1, 1]} : vector<2x48xf32> to vector<2x16xf32>
    %407 = math.tanh %405 : vector<2x16xf32>
    %408 = arith.mulf %406, %407 : vector<2x16xf32>
    %409 = vector.extract_strided_slice %408 {offsets = [0, 0], sizes = [1, 16], strides = [1, 1]} : vector<2x16xf32> to vector<1x16xf32>
    %c11_155 = arith.constant 11 : index
    %c0_156 = arith.constant 0 : index
    %410 = vector.load %arg20[%c11_155, %c0_156] : memref<16x32xf32, #tpu.memory_space<vmem>>, vector<1x16xf32>
    tpu.vector_store %arg20[%c11_155, %c0_156], %409 {strides = array<i32>} : memref<16x32xf32, #tpu.memory_space<vmem>>, vector<1x16xf32>,
    %411 = vector.extract_strided_slice %408 {offsets = [1, 0], sizes = [1, 16], strides = [1, 1]} : vector<2x16xf32> to vector<1x16xf32>
    %c4_157 = arith.constant 4 : index
    %c16_158 = arith.constant 16 : index
    %412 = vector.load %arg20[%c4_157, %c16_158] : memref<16x32xf32, #tpu.memory_space<vmem>>, vector<1x16xf32>
    tpu.vector_store %arg20[%c4_157, %c16_158], %411 {strides = array<i32>} : memref<16x32xf32, #tpu.memory_space<vmem>>, vector<1x16xf32>,
    %c12_159 = arith.constant 12 : index
    %c0_160 = arith.constant 0 : index
    %413 = vector.load %arg21[%c12_159, %c0_160] : memref<16x128xf32, #tpu.memory_space<vmem>>, vector<1x64xf32>
    %c3_161 = arith.constant 3 : index
    %c64_162 = arith.constant 64 : index
    %414 = vector.load %arg21[%c3_161, %c64_162] : memref<16x128xf32, #tpu.memory_space<vmem>>, vector<1x64xf32>
    %415 = tpu.concatenate %413, %414 in 0 : vector<1x64xf32>, vector<1x64xf32> -> vector<2x64xf32>
    %c0_163 = arith.constant 0 : index
    %c0_164 = arith.constant 0 : index
    %416 = vector.load %arg7[%c0_163, %c0_164] : memref<16x128xf32, #tpu.memory_space<vmem>>, vector<16x128xf32>
    %cst_165 = arith.constant dense<0.000000e+00> : vector<2x128xf32>
    %417 = tpu.matmul %408, %416, %cst_165 {dimension_numbers = #tpu.dot_dimension_numbers<[1], [0], [0], [1], [0, 0, 1, 1], [], []>} : vector<2x16xf32>, vector<16x128xf32>, vector<2x128xf32> -> vector<2x128xf32>
    %418 = vector.extract_strided_slice %417 {offsets = [0, 0], sizes = [1, 64], strides = [1, 1]} : vector<2x128xf32> to vector<1x64xf32>
    %419 = vector.extract_strided_slice %417 {offsets = [1, 64], sizes = [1, 64], strides = [1, 1]} : vector<2x128xf32> to vector<1x64xf32>
    %420 = tpu.concatenate %418, %419 in 0 : vector<1x64xf32>, vector<1x64xf32> -> vector<2x64xf32>
    %421 = arith.addf %415, %420 : vector<2x64xf32>
    %422 = vector.extract_strided_slice %421 {offsets = [0, 0], sizes = [2, 48], strides = [1, 1]} : vector<2x64xf32> to vector<2x48xf32>
    %423 = arith.negf %422 : vector<2x48xf32>
    %424 = math.exp %423 : vector<2x48xf32>
    %cst_166 = arith.constant 1.000000e+00 : f32
    %425 = vector.broadcast %cst_166 : f32 to vector<2x48xf32>
    %426 = arith.addf %425, %424 : vector<2x48xf32>
    %427 = arith.divf %425, %426 : vector<2x48xf32>
    %428 = vector.extract_strided_slice %421 {offsets = [0, 48], sizes = [2, 16], strides = [1, 1]} : vector<2x64xf32> to vector<2x16xf32>
    %429 = math.tanh %428 : vector<2x16xf32>
    %430 = vector.extract_strided_slice %427 {offsets = [0, 16], sizes = [2, 16], strides = [1, 1]} : vector<2x48xf32> to vector<2x16xf32>
    %431 = arith.mulf %430, %405 : vector<2x16xf32>
    %432 = vector.extract_strided_slice %427 {offsets = [0, 0], sizes = [2, 16], strides = [1, 1]} : vector<2x48xf32> to vector<2x16xf32>
    %433 = arith.mulf %432, %429 : vector<2x16xf32>
    %434 = arith.addf %431, %433 : vector<2x16xf32>
    %435 = vector.extract_strided_slice %427 {offsets = [0, 32], sizes = [2, 16], strides = [1, 1]} : vector<2x48xf32> to vector<2x16xf32>
    %436 = math.tanh %434 : vector<2x16xf32>
    %437 = arith.mulf %435, %436 : vector<2x16xf32>
    %438 = vector.extract_strided_slice %437 {offsets = [0, 0], sizes = [1, 16], strides = [1, 1]} : vector<2x16xf32> to vector<1x16xf32>
    %c12_167 = arith.constant 12 : index
    %c0_168 = arith.constant 0 : index
    %439 = vector.load %arg20[%c12_167, %c0_168] : memref<16x32xf32, #tpu.memory_space<vmem>>, vector<1x16xf32>
    tpu.vector_store %arg20[%c12_167, %c0_168], %438 {strides = array<i32>} : memref<16x32xf32, #tpu.memory_space<vmem>>, vector<1x16xf32>,
    %440 = vector.extract_strided_slice %437 {offsets = [1, 0], sizes = [1, 16], strides = [1, 1]} : vector<2x16xf32> to vector<1x16xf32>
    %c3_169 = arith.constant 3 : index
    %c16_170 = arith.constant 16 : index
    %441 = vector.load %arg20[%c3_169, %c16_170] : memref<16x32xf32, #tpu.memory_space<vmem>>, vector<1x16xf32>
    tpu.vector_store %arg20[%c3_169, %c16_170], %440 {strides = array<i32>} : memref<16x32xf32, #tpu.memory_space<vmem>>, vector<1x16xf32>,
    %c13_171 = arith.constant 13 : index
    %c0_172 = arith.constant 0 : index
    %442 = vector.load %arg21[%c13_171, %c0_172] : memref<16x128xf32, #tpu.memory_space<vmem>>, vector<1x64xf32>
    %c2_173 = arith.constant 2 : index
    %c64_174 = arith.constant 64 : index
    %443 = vector.load %arg21[%c2_173, %c64_174] : memref<16x128xf32, #tpu.memory_space<vmem>>, vector<1x64xf32>
    %444 = tpu.concatenate %442, %443 in 0 : vector<1x64xf32>, vector<1x64xf32> -> vector<2x64xf32>
    %c0_175 = arith.constant 0 : index
    %c0_176 = arith.constant 0 : index
    %445 = vector.load %arg7[%c0_175, %c0_176] : memref<16x128xf32, #tpu.memory_space<vmem>>, vector<16x128xf32>
    %cst_177 = arith.constant dense<0.000000e+00> : vector<2x128xf32>
    %446 = tpu.matmul %437, %445, %cst_177 {dimension_numbers = #tpu.dot_dimension_numbers<[1], [0], [0], [1], [0, 0, 1, 1], [], []>} : vector<2x16xf32>, vector<16x128xf32>, vector<2x128xf32> -> vector<2x128xf32>
    %447 = vector.extract_strided_slice %446 {offsets = [0, 0], sizes = [1, 64], strides = [1, 1]} : vector<2x128xf32> to vector<1x64xf32>
    %448 = vector.extract_strided_slice %446 {offsets = [1, 64], sizes = [1, 64], strides = [1, 1]} : vector<2x128xf32> to vector<1x64xf32>
    %449 = tpu.concatenate %447, %448 in 0 : vector<1x64xf32>, vector<1x64xf32> -> vector<2x64xf32>
    %450 = arith.addf %444, %449 : vector<2x64xf32>
    %451 = vector.extract_strided_slice %450 {offsets = [0, 0], sizes = [2, 48], strides = [1, 1]} : vector<2x64xf32> to vector<2x48xf32>
    %452 = arith.negf %451 : vector<2x48xf32>
    %453 = math.exp %452 : vector<2x48xf32>
    %cst_178 = arith.constant 1.000000e+00 : f32
    %454 = vector.broadcast %cst_178 : f32 to vector<2x48xf32>
    %455 = arith.addf %454, %453 : vector<2x48xf32>
    %456 = arith.divf %454, %455 : vector<2x48xf32>
    %457 = vector.extract_strided_slice %450 {offsets = [0, 48], sizes = [2, 16], strides = [1, 1]} : vector<2x64xf32> to vector<2x16xf32>
    %458 = math.tanh %457 : vector<2x16xf32>
    %459 = vector.extract_strided_slice %456 {offsets = [0, 16], sizes = [2, 16], strides = [1, 1]} : vector<2x48xf32> to vector<2x16xf32>
    %460 = arith.mulf %459, %434 : vector<2x16xf32>
    %461 = vector.extract_strided_slice %456 {offsets = [0, 0], sizes = [2, 16], strides = [1, 1]} : vector<2x48xf32> to vector<2x16xf32>
    %462 = arith.mulf %461, %458 : vector<2x16xf32>
    %463 = arith.addf %460, %462 : vector<2x16xf32>
    %464 = vector.extract_strided_slice %456 {offsets = [0, 32], sizes = [2, 16], strides = [1, 1]} : vector<2x48xf32> to vector<2x16xf32>
    %465 = math.tanh %463 : vector<2x16xf32>
    %466 = arith.mulf %464, %465 : vector<2x16xf32>
    %467 = vector.extract_strided_slice %466 {offsets = [0, 0], sizes = [1, 16], strides = [1, 1]} : vector<2x16xf32> to vector<1x16xf32>
    %c13_179 = arith.constant 13 : index
    %c0_180 = arith.constant 0 : index
    %468 = vector.load %arg20[%c13_179, %c0_180] : memref<16x32xf32, #tpu.memory_space<vmem>>, vector<1x16xf32>
    tpu.vector_store %arg20[%c13_179, %c0_180], %467 {strides = array<i32>} : memref<16x32xf32, #tpu.memory_space<vmem>>, vector<1x16xf32>,
    %469 = vector.extract_strided_slice %466 {offsets = [1, 0], sizes = [1, 16], strides = [1, 1]} : vector<2x16xf32> to vector<1x16xf32>
    %c2_181 = arith.constant 2 : index
    %c16_182 = arith.constant 16 : index
    %470 = vector.load %arg20[%c2_181, %c16_182] : memref<16x32xf32, #tpu.memory_space<vmem>>, vector<1x16xf32>
    tpu.vector_store %arg20[%c2_181, %c16_182], %469 {strides = array<i32>} : memref<16x32xf32, #tpu.memory_space<vmem>>, vector<1x16xf32>,
    %c14_183 = arith.constant 14 : index
    %c0_184 = arith.constant 0 : index
    %471 = vector.load %arg21[%c14_183, %c0_184] : memref<16x128xf32, #tpu.memory_space<vmem>>, vector<1x64xf32>
    %c1_185 = arith.constant 1 : index
    %c64_186 = arith.constant 64 : index
    %472 = vector.load %arg21[%c1_185, %c64_186] : memref<16x128xf32, #tpu.memory_space<vmem>>, vector<1x64xf32>
    %473 = tpu.concatenate %471, %472 in 0 : vector<1x64xf32>, vector<1x64xf32> -> vector<2x64xf32>
    %c0_187 = arith.constant 0 : index
    %c0_188 = arith.constant 0 : index
    %474 = vector.load %arg7[%c0_187, %c0_188] : memref<16x128xf32, #tpu.memory_space<vmem>>, vector<16x128xf32>
    %cst_189 = arith.constant dense<0.000000e+00> : vector<2x128xf32>
    %475 = tpu.matmul %466, %474, %cst_189 {dimension_numbers = #tpu.dot_dimension_numbers<[1], [0], [0], [1], [0, 0, 1, 1], [], []>} : vector<2x16xf32>, vector<16x128xf32>, vector<2x128xf32> -> vector<2x128xf32>
    %476 = vector.extract_strided_slice %475 {offsets = [0, 0], sizes = [1, 64], strides = [1, 1]} : vector<2x128xf32> to vector<1x64xf32>
    %477 = vector.extract_strided_slice %475 {offsets = [1, 64], sizes = [1, 64], strides = [1, 1]} : vector<2x128xf32> to vector<1x64xf32>
    %478 = tpu.concatenate %476, %477 in 0 : vector<1x64xf32>, vector<1x64xf32> -> vector<2x64xf32>
    %479 = arith.addf %473, %478 : vector<2x64xf32>
    %480 = vector.extract_strided_slice %479 {offsets = [0, 0], sizes = [2, 48], strides = [1, 1]} : vector<2x64xf32> to vector<2x48xf32>
    %481 = arith.negf %480 : vector<2x48xf32>
    %482 = math.exp %481 : vector<2x48xf32>
    %cst_190 = arith.constant 1.000000e+00 : f32
    %483 = vector.broadcast %cst_190 : f32 to vector<2x48xf32>
    %484 = arith.addf %483, %482 : vector<2x48xf32>
    %485 = arith.divf %483, %484 : vector<2x48xf32>
    %486 = vector.extract_strided_slice %479 {offsets = [0, 48], sizes = [2, 16], strides = [1, 1]} : vector<2x64xf32> to vector<2x16xf32>
    %487 = math.tanh %486 : vector<2x16xf32>
    %488 = vector.extract_strided_slice %485 {offsets = [0, 16], sizes = [2, 16], strides = [1, 1]} : vector<2x48xf32> to vector<2x16xf32>
    %489 = arith.mulf %488, %463 : vector<2x16xf32>
    %490 = vector.extract_strided_slice %485 {offsets = [0, 0], sizes = [2, 16], strides = [1, 1]} : vector<2x48xf32> to vector<2x16xf32>
    %491 = arith.mulf %490, %487 : vector<2x16xf32>
    %492 = arith.addf %489, %491 : vector<2x16xf32>
    %493 = vector.extract_strided_slice %485 {offsets = [0, 32], sizes = [2, 16], strides = [1, 1]} : vector<2x48xf32> to vector<2x16xf32>
    %494 = math.tanh %492 : vector<2x16xf32>
    %495 = arith.mulf %493, %494 : vector<2x16xf32>
    %496 = vector.extract_strided_slice %495 {offsets = [0, 0], sizes = [1, 16], strides = [1, 1]} : vector<2x16xf32> to vector<1x16xf32>
    %c14_191 = arith.constant 14 : index
    %c0_192 = arith.constant 0 : index
    %497 = vector.load %arg20[%c14_191, %c0_192] : memref<16x32xf32, #tpu.memory_space<vmem>>, vector<1x16xf32>
    tpu.vector_store %arg20[%c14_191, %c0_192], %496 {strides = array<i32>} : memref<16x32xf32, #tpu.memory_space<vmem>>, vector<1x16xf32>,
    %498 = vector.extract_strided_slice %495 {offsets = [1, 0], sizes = [1, 16], strides = [1, 1]} : vector<2x16xf32> to vector<1x16xf32>
    %c1_193 = arith.constant 1 : index
    %c16_194 = arith.constant 16 : index
    %499 = vector.load %arg20[%c1_193, %c16_194] : memref<16x32xf32, #tpu.memory_space<vmem>>, vector<1x16xf32>
    tpu.vector_store %arg20[%c1_193, %c16_194], %498 {strides = array<i32>} : memref<16x32xf32, #tpu.memory_space<vmem>>, vector<1x16xf32>,
    %c15_195 = arith.constant 15 : index
    %c0_196 = arith.constant 0 : index
    %500 = vector.load %arg21[%c15_195, %c0_196] : memref<16x128xf32, #tpu.memory_space<vmem>>, vector<1x64xf32>
    %c0_197 = arith.constant 0 : index
    %c64_198 = arith.constant 64 : index
    %501 = vector.load %arg21[%c0_197, %c64_198] : memref<16x128xf32, #tpu.memory_space<vmem>>, vector<1x64xf32>
    %502 = tpu.concatenate %500, %501 in 0 : vector<1x64xf32>, vector<1x64xf32> -> vector<2x64xf32>
    %c0_199 = arith.constant 0 : index
    %c0_200 = arith.constant 0 : index
    %503 = vector.load %arg7[%c0_199, %c0_200] : memref<16x128xf32, #tpu.memory_space<vmem>>, vector<16x128xf32>
    %cst_201 = arith.constant dense<0.000000e+00> : vector<2x128xf32>
    %504 = tpu.matmul %495, %503, %cst_201 {dimension_numbers = #tpu.dot_dimension_numbers<[1], [0], [0], [1], [0, 0, 1, 1], [], []>} : vector<2x16xf32>, vector<16x128xf32>, vector<2x128xf32> -> vector<2x128xf32>
    %505 = vector.extract_strided_slice %504 {offsets = [0, 0], sizes = [1, 64], strides = [1, 1]} : vector<2x128xf32> to vector<1x64xf32>
    %506 = vector.extract_strided_slice %504 {offsets = [1, 64], sizes = [1, 64], strides = [1, 1]} : vector<2x128xf32> to vector<1x64xf32>
    %507 = tpu.concatenate %505, %506 in 0 : vector<1x64xf32>, vector<1x64xf32> -> vector<2x64xf32>
    %508 = arith.addf %502, %507 : vector<2x64xf32>
    %509 = vector.extract_strided_slice %508 {offsets = [0, 0], sizes = [2, 48], strides = [1, 1]} : vector<2x64xf32> to vector<2x48xf32>
    %510 = arith.negf %509 : vector<2x48xf32>
    %511 = math.exp %510 : vector<2x48xf32>
    %cst_202 = arith.constant 1.000000e+00 : f32
    %512 = vector.broadcast %cst_202 : f32 to vector<2x48xf32>
    %513 = arith.addf %512, %511 : vector<2x48xf32>
    %514 = arith.divf %512, %513 : vector<2x48xf32>
    %515 = vector.extract_strided_slice %508 {offsets = [0, 48], sizes = [2, 16], strides = [1, 1]} : vector<2x64xf32> to vector<2x16xf32>
    %516 = math.tanh %515 : vector<2x16xf32>
    %517 = vector.extract_strided_slice %514 {offsets = [0, 16], sizes = [2, 16], strides = [1, 1]} : vector<2x48xf32> to vector<2x16xf32>
    %518 = arith.mulf %517, %492 : vector<2x16xf32>
    %519 = vector.extract_strided_slice %514 {offsets = [0, 0], sizes = [2, 16], strides = [1, 1]} : vector<2x48xf32> to vector<2x16xf32>
    %520 = arith.mulf %519, %516 : vector<2x16xf32>
    %521 = arith.addf %518, %520 : vector<2x16xf32>
    %522 = vector.extract_strided_slice %514 {offsets = [0, 32], sizes = [2, 16], strides = [1, 1]} : vector<2x48xf32> to vector<2x16xf32>
    %523 = math.tanh %521 : vector<2x16xf32>
    %524 = arith.mulf %522, %523 : vector<2x16xf32>
    %525 = vector.extract_strided_slice %524 {offsets = [0, 0], sizes = [1, 16], strides = [1, 1]} : vector<2x16xf32> to vector<1x16xf32>
    %c15_203 = arith.constant 15 : index
    %c0_204 = arith.constant 0 : index
    %526 = vector.load %arg20[%c15_203, %c0_204] : memref<16x32xf32, #tpu.memory_space<vmem>>, vector<1x16xf32>
    tpu.vector_store %arg20[%c15_203, %c0_204], %525 {strides = array<i32>} : memref<16x32xf32, #tpu.memory_space<vmem>>, vector<1x16xf32>,
    %527 = vector.extract_strided_slice %524 {offsets = [1, 0], sizes = [1, 16], strides = [1, 1]} : vector<2x16xf32> to vector<1x16xf32>
    %c0_205 = arith.constant 0 : index
    %c16_206 = arith.constant 16 : index
    %528 = vector.load %arg20[%c0_205, %c16_206] : memref<16x32xf32, #tpu.memory_space<vmem>>, vector<1x16xf32>
    tpu.vector_store %arg20[%c0_205, %c16_206], %527 {strides = array<i32>} : memref<16x32xf32, #tpu.memory_space<vmem>>, vector<1x16xf32>,
    %c0_207 = arith.constant 0 : index
    %c0_208 = arith.constant 0 : index
    %529 = vector.load %arg20[%c0_207, %c0_208] : memref<16x32xf32, #tpu.memory_space<vmem>>, vector<16x32xf32>
    %c0_209 = arith.constant 0 : index
    %c0_210 = arith.constant 0 : index
    %530 = vector.load %arg9[%c0_209, %c0_210] : memref<32x128xf32, #tpu.memory_space<vmem>>, vector<32x128xf32>
    %cst_211 = arith.constant dense<0.000000e+00> : vector<16x128xf32>
    %531 = tpu.matmul %529, %530, %cst_211 {dimension_numbers = #tpu.dot_dimension_numbers<[1], [0], [0], [1], [0, 0, 1, 1], [], []>} : vector<16x32xf32>, vector<32x128xf32>, vector<16x128xf32> -> vector<16x128xf32>
    %c0_212 = arith.constant 0 : index
    %c0_213 = arith.constant 0 : index
    %532 = vector.load %arg11[%c0_212, %c0_213] : memref<1x128xf32, #tpu.memory_space<vmem>>, vector<1x128xf32>
    %533 = vector.broadcast %532 : vector<1x128xf32> to vector<16x128xf32>
    %534 = arith.addf %531, %533 : vector<16x128xf32>
    %c0_214 = arith.constant 0 : index
    %c0_215 = arith.constant 0 : index
    %535 = vector.load %arg21[%c0_214, %c0_215] : memref<16x128xf32, #tpu.memory_space<vmem>>, vector<16x128xf32>
    tpu.vector_store %arg21[%c0_214, %c0_215], %534 {strides = array<i32>} : memref<16x128xf32, #tpu.memory_space<vmem>>, vector<16x128xf32>,
    %cst_216 = arith.constant 0.000000e+00 : f32
    %536 = vector.broadcast %cst_216 : f32 to vector<2x16xf32>
    %cst_217 = arith.constant 0.000000e+00 : f32
    %537 = vector.broadcast %cst_217 : f32 to vector<2x16xf32>
    %c0_218 = arith.constant 0 : index
    %c0_219 = arith.constant 0 : index
    %538 = vector.load %arg21[%c0_218, %c0_219] : memref<16x128xf32, #tpu.memory_space<vmem>>, vector<1x64xf32>
    %c15_220 = arith.constant 15 : index
    %c64_221 = arith.constant 64 : index
    %539 = vector.load %arg21[%c15_220, %c64_221] : memref<16x128xf32, #tpu.memory_space<vmem>>, vector<1x64xf32>
    %540 = tpu.concatenate %538, %539 in 0 : vector<1x64xf32>, vector<1x64xf32> -> vector<2x64xf32>
    %c0_222 = arith.constant 0 : index
    %c0_223 = arith.constant 0 : index
    %541 = vector.load %arg10[%c0_222, %c0_223] : memref<16x128xf32, #tpu.memory_space<vmem>>, vector<16x128xf32>
    %cst_224 = arith.constant dense<0.000000e+00> : vector<2x128xf32>
    %542 = tpu.matmul %536, %541, %cst_224 {dimension_numbers = #tpu.dot_dimension_numbers<[1], [0], [0], [1], [0, 0, 1, 1], [], []>} : vector<2x16xf32>, vector<16x128xf32>, vector<2x128xf32> -> vector<2x128xf32>
    %543 = vector.extract_strided_slice %542 {offsets = [0, 0], sizes = [1, 64], strides = [1, 1]} : vector<2x128xf32> to vector<1x64xf32>
    %544 = vector.extract_strided_slice %542 {offsets = [1, 64], sizes = [1, 64], strides = [1, 1]} : vector<2x128xf32> to vector<1x64xf32>
    %545 = tpu.concatenate %543, %544 in 0 : vector<1x64xf32>, vector<1x64xf32> -> vector<2x64xf32>
    %546 = arith.addf %540, %545 : vector<2x64xf32>
    %547 = vector.extract_strided_slice %546 {offsets = [0, 0], sizes = [2, 48], strides = [1, 1]} : vector<2x64xf32> to vector<2x48xf32>
    %548 = arith.negf %547 : vector<2x48xf32>
    %549 = math.exp %548 : vector<2x48xf32>
    %cst_225 = arith.constant 1.000000e+00 : f32
    %550 = vector.broadcast %cst_225 : f32 to vector<2x48xf32>
    %551 = arith.addf %550, %549 : vector<2x48xf32>
    %552 = arith.divf %550, %551 : vector<2x48xf32>
    %553 = vector.extract_strided_slice %546 {offsets = [0, 48], sizes = [2, 16], strides = [1, 1]} : vector<2x64xf32> to vector<2x16xf32>
    %554 = math.tanh %553 : vector<2x16xf32>
    %555 = vector.extract_strided_slice %552 {offsets = [0, 16], sizes = [2, 16], strides = [1, 1]} : vector<2x48xf32> to vector<2x16xf32>
    %556 = arith.mulf %555, %537 : vector<2x16xf32>
    %557 = vector.extract_strided_slice %552 {offsets = [0, 0], sizes = [2, 16], strides = [1, 1]} : vector<2x48xf32> to vector<2x16xf32>
    %558 = arith.mulf %557, %554 : vector<2x16xf32>
    %559 = arith.addf %556, %558 : vector<2x16xf32>
    %560 = vector.extract_strided_slice %552 {offsets = [0, 32], sizes = [2, 16], strides = [1, 1]} : vector<2x48xf32> to vector<2x16xf32>
    %561 = math.tanh %559 : vector<2x16xf32>
    %562 = arith.mulf %560, %561 : vector<2x16xf32>
    %c1_226 = arith.constant 1 : index
    %c0_227 = arith.constant 0 : index
    %563 = vector.load %arg21[%c1_226, %c0_227] : memref<16x128xf32, #tpu.memory_space<vmem>>, vector<1x64xf32>
    %c14_228 = arith.constant 14 : index
    %c64_229 = arith.constant 64 : index
    %564 = vector.load %arg21[%c14_228, %c64_229] : memref<16x128xf32, #tpu.memory_space<vmem>>, vector<1x64xf32>
    %565 = tpu.concatenate %563, %564 in 0 : vector<1x64xf32>, vector<1x64xf32> -> vector<2x64xf32>
    %c0_230 = arith.constant 0 : index
    %c0_231 = arith.constant 0 : index
    %566 = vector.load %arg10[%c0_230, %c0_231] : memref<16x128xf32, #tpu.memory_space<vmem>>, vector<16x128xf32>
    %cst_232 = arith.constant dense<0.000000e+00> : vector<2x128xf32>
    %567 = tpu.matmul %562, %566, %cst_232 {dimension_numbers = #tpu.dot_dimension_numbers<[1], [0], [0], [1], [0, 0, 1, 1], [], []>} : vector<2x16xf32>, vector<16x128xf32>, vector<2x128xf32> -> vector<2x128xf32>
    %568 = vector.extract_strided_slice %567 {offsets = [0, 0], sizes = [1, 64], strides = [1, 1]} : vector<2x128xf32> to vector<1x64xf32>
    %569 = vector.extract_strided_slice %567 {offsets = [1, 64], sizes = [1, 64], strides = [1, 1]} : vector<2x128xf32> to vector<1x64xf32>
    %570 = tpu.concatenate %568, %569 in 0 : vector<1x64xf32>, vector<1x64xf32> -> vector<2x64xf32>
    %571 = arith.addf %565, %570 : vector<2x64xf32>
    %572 = vector.extract_strided_slice %571 {offsets = [0, 0], sizes = [2, 48], strides = [1, 1]} : vector<2x64xf32> to vector<2x48xf32>
    %573 = arith.negf %572 : vector<2x48xf32>
    %574 = math.exp %573 : vector<2x48xf32>
    %cst_233 = arith.constant 1.000000e+00 : f32
    %575 = vector.broadcast %cst_233 : f32 to vector<2x48xf32>
    %576 = arith.addf %575, %574 : vector<2x48xf32>
    %577 = arith.divf %575, %576 : vector<2x48xf32>
    %578 = vector.extract_strided_slice %571 {offsets = [0, 48], sizes = [2, 16], strides = [1, 1]} : vector<2x64xf32> to vector<2x16xf32>
    %579 = math.tanh %578 : vector<2x16xf32>
    %580 = vector.extract_strided_slice %577 {offsets = [0, 16], sizes = [2, 16], strides = [1, 1]} : vector<2x48xf32> to vector<2x16xf32>
    %581 = arith.mulf %580, %559 : vector<2x16xf32>
    %582 = vector.extract_strided_slice %577 {offsets = [0, 0], sizes = [2, 16], strides = [1, 1]} : vector<2x48xf32> to vector<2x16xf32>
    %583 = arith.mulf %582, %579 : vector<2x16xf32>
    %584 = arith.addf %581, %583 : vector<2x16xf32>
    %585 = vector.extract_strided_slice %577 {offsets = [0, 32], sizes = [2, 16], strides = [1, 1]} : vector<2x48xf32> to vector<2x16xf32>
    %586 = math.tanh %584 : vector<2x16xf32>
    %587 = arith.mulf %585, %586 : vector<2x16xf32>
    %c2_234 = arith.constant 2 : index
    %c0_235 = arith.constant 0 : index
    %588 = vector.load %arg21[%c2_234, %c0_235] : memref<16x128xf32, #tpu.memory_space<vmem>>, vector<1x64xf32>
    %c13_236 = arith.constant 13 : index
    %c64_237 = arith.constant 64 : index
    %589 = vector.load %arg21[%c13_236, %c64_237] : memref<16x128xf32, #tpu.memory_space<vmem>>, vector<1x64xf32>
    %590 = tpu.concatenate %588, %589 in 0 : vector<1x64xf32>, vector<1x64xf32> -> vector<2x64xf32>
    %c0_238 = arith.constant 0 : index
    %c0_239 = arith.constant 0 : index
    %591 = vector.load %arg10[%c0_238, %c0_239] : memref<16x128xf32, #tpu.memory_space<vmem>>, vector<16x128xf32>
    %cst_240 = arith.constant dense<0.000000e+00> : vector<2x128xf32>
    %592 = tpu.matmul %587, %591, %cst_240 {dimension_numbers = #tpu.dot_dimension_numbers<[1], [0], [0], [1], [0, 0, 1, 1], [], []>} : vector<2x16xf32>, vector<16x128xf32>, vector<2x128xf32> -> vector<2x128xf32>
    %593 = vector.extract_strided_slice %592 {offsets = [0, 0], sizes = [1, 64], strides = [1, 1]} : vector<2x128xf32> to vector<1x64xf32>
    %594 = vector.extract_strided_slice %592 {offsets = [1, 64], sizes = [1, 64], strides = [1, 1]} : vector<2x128xf32> to vector<1x64xf32>
    %595 = tpu.concatenate %593, %594 in 0 : vector<1x64xf32>, vector<1x64xf32> -> vector<2x64xf32>
    %596 = arith.addf %590, %595 : vector<2x64xf32>
    %597 = vector.extract_strided_slice %596 {offsets = [0, 0], sizes = [2, 48], strides = [1, 1]} : vector<2x64xf32> to vector<2x48xf32>
    %598 = arith.negf %597 : vector<2x48xf32>
    %599 = math.exp %598 : vector<2x48xf32>
    %cst_241 = arith.constant 1.000000e+00 : f32
    %600 = vector.broadcast %cst_241 : f32 to vector<2x48xf32>
    %601 = arith.addf %600, %599 : vector<2x48xf32>
    %602 = arith.divf %600, %601 : vector<2x48xf32>
    %603 = vector.extract_strided_slice %596 {offsets = [0, 48], sizes = [2, 16], strides = [1, 1]} : vector<2x64xf32> to vector<2x16xf32>
    %604 = math.tanh %603 : vector<2x16xf32>
    %605 = vector.extract_strided_slice %602 {offsets = [0, 16], sizes = [2, 16], strides = [1, 1]} : vector<2x48xf32> to vector<2x16xf32>
    %606 = arith.mulf %605, %584 : vector<2x16xf32>
    %607 = vector.extract_strided_slice %602 {offsets = [0, 0], sizes = [2, 16], strides = [1, 1]} : vector<2x48xf32> to vector<2x16xf32>
    %608 = arith.mulf %607, %604 : vector<2x16xf32>
    %609 = arith.addf %606, %608 : vector<2x16xf32>
    %610 = vector.extract_strided_slice %602 {offsets = [0, 32], sizes = [2, 16], strides = [1, 1]} : vector<2x48xf32> to vector<2x16xf32>
    %611 = math.tanh %609 : vector<2x16xf32>
    %612 = arith.mulf %610, %611 : vector<2x16xf32>
    %c3_242 = arith.constant 3 : index
    %c0_243 = arith.constant 0 : index
    %613 = vector.load %arg21[%c3_242, %c0_243] : memref<16x128xf32, #tpu.memory_space<vmem>>, vector<1x64xf32>
    %c12_244 = arith.constant 12 : index
    %c64_245 = arith.constant 64 : index
    %614 = vector.load %arg21[%c12_244, %c64_245] : memref<16x128xf32, #tpu.memory_space<vmem>>, vector<1x64xf32>
    %615 = tpu.concatenate %613, %614 in 0 : vector<1x64xf32>, vector<1x64xf32> -> vector<2x64xf32>
    %c0_246 = arith.constant 0 : index
    %c0_247 = arith.constant 0 : index
    %616 = vector.load %arg10[%c0_246, %c0_247] : memref<16x128xf32, #tpu.memory_space<vmem>>, vector<16x128xf32>
    %cst_248 = arith.constant dense<0.000000e+00> : vector<2x128xf32>
    %617 = tpu.matmul %612, %616, %cst_248 {dimension_numbers = #tpu.dot_dimension_numbers<[1], [0], [0], [1], [0, 0, 1, 1], [], []>} : vector<2x16xf32>, vector<16x128xf32>, vector<2x128xf32> -> vector<2x128xf32>
    %618 = vector.extract_strided_slice %617 {offsets = [0, 0], sizes = [1, 64], strides = [1, 1]} : vector<2x128xf32> to vector<1x64xf32>
    %619 = vector.extract_strided_slice %617 {offsets = [1, 64], sizes = [1, 64], strides = [1, 1]} : vector<2x128xf32> to vector<1x64xf32>
    %620 = tpu.concatenate %618, %619 in 0 : vector<1x64xf32>, vector<1x64xf32> -> vector<2x64xf32>
    %621 = arith.addf %615, %620 : vector<2x64xf32>
    %622 = vector.extract_strided_slice %621 {offsets = [0, 0], sizes = [2, 48], strides = [1, 1]} : vector<2x64xf32> to vector<2x48xf32>
    %623 = arith.negf %622 : vector<2x48xf32>
    %624 = math.exp %623 : vector<2x48xf32>
    %cst_249 = arith.constant 1.000000e+00 : f32
    %625 = vector.broadcast %cst_249 : f32 to vector<2x48xf32>
    %626 = arith.addf %625, %624 : vector<2x48xf32>
    %627 = arith.divf %625, %626 : vector<2x48xf32>
    %628 = vector.extract_strided_slice %621 {offsets = [0, 48], sizes = [2, 16], strides = [1, 1]} : vector<2x64xf32> to vector<2x16xf32>
    %629 = math.tanh %628 : vector<2x16xf32>
    %630 = vector.extract_strided_slice %627 {offsets = [0, 16], sizes = [2, 16], strides = [1, 1]} : vector<2x48xf32> to vector<2x16xf32>
    %631 = arith.mulf %630, %609 : vector<2x16xf32>
    %632 = vector.extract_strided_slice %627 {offsets = [0, 0], sizes = [2, 16], strides = [1, 1]} : vector<2x48xf32> to vector<2x16xf32>
    %633 = arith.mulf %632, %629 : vector<2x16xf32>
    %634 = arith.addf %631, %633 : vector<2x16xf32>
    %635 = vector.extract_strided_slice %627 {offsets = [0, 32], sizes = [2, 16], strides = [1, 1]} : vector<2x48xf32> to vector<2x16xf32>
    %636 = math.tanh %634 : vector<2x16xf32>
    %637 = arith.mulf %635, %636 : vector<2x16xf32>
    %c4_250 = arith.constant 4 : index
    %c0_251 = arith.constant 0 : index
    %638 = vector.load %arg21[%c4_250, %c0_251] : memref<16x128xf32, #tpu.memory_space<vmem>>, vector<1x64xf32>
    %c11_252 = arith.constant 11 : index
    %c64_253 = arith.constant 64 : index
    %639 = vector.load %arg21[%c11_252, %c64_253] : memref<16x128xf32, #tpu.memory_space<vmem>>, vector<1x64xf32>
    %640 = tpu.concatenate %638, %639 in 0 : vector<1x64xf32>, vector<1x64xf32> -> vector<2x64xf32>
    %c0_254 = arith.constant 0 : index
    %c0_255 = arith.constant 0 : index
    %641 = vector.load %arg10[%c0_254, %c0_255] : memref<16x128xf32, #tpu.memory_space<vmem>>, vector<16x128xf32>
    %cst_256 = arith.constant dense<0.000000e+00> : vector<2x128xf32>
    %642 = tpu.matmul %637, %641, %cst_256 {dimension_numbers = #tpu.dot_dimension_numbers<[1], [0], [0], [1], [0, 0, 1, 1], [], []>} : vector<2x16xf32>, vector<16x128xf32>, vector<2x128xf32> -> vector<2x128xf32>
    %643 = vector.extract_strided_slice %642 {offsets = [0, 0], sizes = [1, 64], strides = [1, 1]} : vector<2x128xf32> to vector<1x64xf32>
    %644 = vector.extract_strided_slice %642 {offsets = [1, 64], sizes = [1, 64], strides = [1, 1]} : vector<2x128xf32> to vector<1x64xf32>
    %645 = tpu.concatenate %643, %644 in 0 : vector<1x64xf32>, vector<1x64xf32> -> vector<2x64xf32>
    %646 = arith.addf %640, %645 : vector<2x64xf32>
    %647 = vector.extract_strided_slice %646 {offsets = [0, 0], sizes = [2, 48], strides = [1, 1]} : vector<2x64xf32> to vector<2x48xf32>
    %648 = arith.negf %647 : vector<2x48xf32>
    %649 = math.exp %648 : vector<2x48xf32>
    %cst_257 = arith.constant 1.000000e+00 : f32
    %650 = vector.broadcast %cst_257 : f32 to vector<2x48xf32>
    %651 = arith.addf %650, %649 : vector<2x48xf32>
    %652 = arith.divf %650, %651 : vector<2x48xf32>
    %653 = vector.extract_strided_slice %646 {offsets = [0, 48], sizes = [2, 16], strides = [1, 1]} : vector<2x64xf32> to vector<2x16xf32>
    %654 = math.tanh %653 : vector<2x16xf32>
    %655 = vector.extract_strided_slice %652 {offsets = [0, 16], sizes = [2, 16], strides = [1, 1]} : vector<2x48xf32> to vector<2x16xf32>
    %656 = arith.mulf %655, %634 : vector<2x16xf32>
    %657 = vector.extract_strided_slice %652 {offsets = [0, 0], sizes = [2, 16], strides = [1, 1]} : vector<2x48xf32> to vector<2x16xf32>
    %658 = arith.mulf %657, %654 : vector<2x16xf32>
    %659 = arith.addf %656, %658 : vector<2x16xf32>
    %660 = vector.extract_strided_slice %652 {offsets = [0, 32], sizes = [2, 16], strides = [1, 1]} : vector<2x48xf32> to vector<2x16xf32>
    %661 = math.tanh %659 : vector<2x16xf32>
    %662 = arith.mulf %660, %661 : vector<2x16xf32>
    %c5_258 = arith.constant 5 : index
    %c0_259 = arith.constant 0 : index
    %663 = vector.load %arg21[%c5_258, %c0_259] : memref<16x128xf32, #tpu.memory_space<vmem>>, vector<1x64xf32>
    %c10_260 = arith.constant 10 : index
    %c64_261 = arith.constant 64 : index
    %664 = vector.load %arg21[%c10_260, %c64_261] : memref<16x128xf32, #tpu.memory_space<vmem>>, vector<1x64xf32>
    %665 = tpu.concatenate %663, %664 in 0 : vector<1x64xf32>, vector<1x64xf32> -> vector<2x64xf32>
    %c0_262 = arith.constant 0 : index
    %c0_263 = arith.constant 0 : index
    %666 = vector.load %arg10[%c0_262, %c0_263] : memref<16x128xf32, #tpu.memory_space<vmem>>, vector<16x128xf32>
    %cst_264 = arith.constant dense<0.000000e+00> : vector<2x128xf32>
    %667 = tpu.matmul %662, %666, %cst_264 {dimension_numbers = #tpu.dot_dimension_numbers<[1], [0], [0], [1], [0, 0, 1, 1], [], []>} : vector<2x16xf32>, vector<16x128xf32>, vector<2x128xf32> -> vector<2x128xf32>
    %668 = vector.extract_strided_slice %667 {offsets = [0, 0], sizes = [1, 64], strides = [1, 1]} : vector<2x128xf32> to vector<1x64xf32>
    %669 = vector.extract_strided_slice %667 {offsets = [1, 64], sizes = [1, 64], strides = [1, 1]} : vector<2x128xf32> to vector<1x64xf32>
    %670 = tpu.concatenate %668, %669 in 0 : vector<1x64xf32>, vector<1x64xf32> -> vector<2x64xf32>
    %671 = arith.addf %665, %670 : vector<2x64xf32>
    %672 = vector.extract_strided_slice %671 {offsets = [0, 0], sizes = [2, 48], strides = [1, 1]} : vector<2x64xf32> to vector<2x48xf32>
    %673 = arith.negf %672 : vector<2x48xf32>
    %674 = math.exp %673 : vector<2x48xf32>
    %cst_265 = arith.constant 1.000000e+00 : f32
    %675 = vector.broadcast %cst_265 : f32 to vector<2x48xf32>
    %676 = arith.addf %675, %674 : vector<2x48xf32>
    %677 = arith.divf %675, %676 : vector<2x48xf32>
    %678 = vector.extract_strided_slice %671 {offsets = [0, 48], sizes = [2, 16], strides = [1, 1]} : vector<2x64xf32> to vector<2x16xf32>
    %679 = math.tanh %678 : vector<2x16xf32>
    %680 = vector.extract_strided_slice %677 {offsets = [0, 16], sizes = [2, 16], strides = [1, 1]} : vector<2x48xf32> to vector<2x16xf32>
    %681 = arith.mulf %680, %659 : vector<2x16xf32>
    %682 = vector.extract_strided_slice %677 {offsets = [0, 0], sizes = [2, 16], strides = [1, 1]} : vector<2x48xf32> to vector<2x16xf32>
    %683 = arith.mulf %682, %679 : vector<2x16xf32>
    %684 = arith.addf %681, %683 : vector<2x16xf32>
    %685 = vector.extract_strided_slice %677 {offsets = [0, 32], sizes = [2, 16], strides = [1, 1]} : vector<2x48xf32> to vector<2x16xf32>
    %686 = math.tanh %684 : vector<2x16xf32>
    %687 = arith.mulf %685, %686 : vector<2x16xf32>
    %c6_266 = arith.constant 6 : index
    %c0_267 = arith.constant 0 : index
    %688 = vector.load %arg21[%c6_266, %c0_267] : memref<16x128xf32, #tpu.memory_space<vmem>>, vector<1x64xf32>
    %c9_268 = arith.constant 9 : index
    %c64_269 = arith.constant 64 : index
    %689 = vector.load %arg21[%c9_268, %c64_269] : memref<16x128xf32, #tpu.memory_space<vmem>>, vector<1x64xf32>
    %690 = tpu.concatenate %688, %689 in 0 : vector<1x64xf32>, vector<1x64xf32> -> vector<2x64xf32>
    %c0_270 = arith.constant 0 : index
    %c0_271 = arith.constant 0 : index
    %691 = vector.load %arg10[%c0_270, %c0_271] : memref<16x128xf32, #tpu.memory_space<vmem>>, vector<16x128xf32>
    %cst_272 = arith.constant dense<0.000000e+00> : vector<2x128xf32>
    %692 = tpu.matmul %687, %691, %cst_272 {dimension_numbers = #tpu.dot_dimension_numbers<[1], [0], [0], [1], [0, 0, 1, 1], [], []>} : vector<2x16xf32>, vector<16x128xf32>, vector<2x128xf32> -> vector<2x128xf32>
    %693 = vector.extract_strided_slice %692 {offsets = [0, 0], sizes = [1, 64], strides = [1, 1]} : vector<2x128xf32> to vector<1x64xf32>
    %694 = vector.extract_strided_slice %692 {offsets = [1, 64], sizes = [1, 64], strides = [1, 1]} : vector<2x128xf32> to vector<1x64xf32>
    %695 = tpu.concatenate %693, %694 in 0 : vector<1x64xf32>, vector<1x64xf32> -> vector<2x64xf32>
    %696 = arith.addf %690, %695 : vector<2x64xf32>
    %697 = vector.extract_strided_slice %696 {offsets = [0, 0], sizes = [2, 48], strides = [1, 1]} : vector<2x64xf32> to vector<2x48xf32>
    %698 = arith.negf %697 : vector<2x48xf32>
    %699 = math.exp %698 : vector<2x48xf32>
    %cst_273 = arith.constant 1.000000e+00 : f32
    %700 = vector.broadcast %cst_273 : f32 to vector<2x48xf32>
    %701 = arith.addf %700, %699 : vector<2x48xf32>
    %702 = arith.divf %700, %701 : vector<2x48xf32>
    %703 = vector.extract_strided_slice %696 {offsets = [0, 48], sizes = [2, 16], strides = [1, 1]} : vector<2x64xf32> to vector<2x16xf32>
    %704 = math.tanh %703 : vector<2x16xf32>
    %705 = vector.extract_strided_slice %702 {offsets = [0, 16], sizes = [2, 16], strides = [1, 1]} : vector<2x48xf32> to vector<2x16xf32>
    %706 = arith.mulf %705, %684 : vector<2x16xf32>
    %707 = vector.extract_strided_slice %702 {offsets = [0, 0], sizes = [2, 16], strides = [1, 1]} : vector<2x48xf32> to vector<2x16xf32>
    %708 = arith.mulf %707, %704 : vector<2x16xf32>
    %709 = arith.addf %706, %708 : vector<2x16xf32>
    %710 = vector.extract_strided_slice %702 {offsets = [0, 32], sizes = [2, 16], strides = [1, 1]} : vector<2x48xf32> to vector<2x16xf32>
    %711 = math.tanh %709 : vector<2x16xf32>
    %712 = arith.mulf %710, %711 : vector<2x16xf32>
    %c7_274 = arith.constant 7 : index
    %c0_275 = arith.constant 0 : index
    %713 = vector.load %arg21[%c7_274, %c0_275] : memref<16x128xf32, #tpu.memory_space<vmem>>, vector<1x64xf32>
    %c8_276 = arith.constant 8 : index
    %c64_277 = arith.constant 64 : index
    %714 = vector.load %arg21[%c8_276, %c64_277] : memref<16x128xf32, #tpu.memory_space<vmem>>, vector<1x64xf32>
    %715 = tpu.concatenate %713, %714 in 0 : vector<1x64xf32>, vector<1x64xf32> -> vector<2x64xf32>
    %c0_278 = arith.constant 0 : index
    %c0_279 = arith.constant 0 : index
    %716 = vector.load %arg10[%c0_278, %c0_279] : memref<16x128xf32, #tpu.memory_space<vmem>>, vector<16x128xf32>
    %cst_280 = arith.constant dense<0.000000e+00> : vector<2x128xf32>
    %717 = tpu.matmul %712, %716, %cst_280 {dimension_numbers = #tpu.dot_dimension_numbers<[1], [0], [0], [1], [0, 0, 1, 1], [], []>} : vector<2x16xf32>, vector<16x128xf32>, vector<2x128xf32> -> vector<2x128xf32>
    %718 = vector.extract_strided_slice %717 {offsets = [0, 0], sizes = [1, 64], strides = [1, 1]} : vector<2x128xf32> to vector<1x64xf32>
    %719 = vector.extract_strided_slice %717 {offsets = [1, 64], sizes = [1, 64], strides = [1, 1]} : vector<2x128xf32> to vector<1x64xf32>
    %720 = tpu.concatenate %718, %719 in 0 : vector<1x64xf32>, vector<1x64xf32> -> vector<2x64xf32>
    %721 = arith.addf %715, %720 : vector<2x64xf32>
    %722 = vector.extract_strided_slice %721 {offsets = [0, 0], sizes = [2, 48], strides = [1, 1]} : vector<2x64xf32> to vector<2x48xf32>
    %723 = arith.negf %722 : vector<2x48xf32>
    %724 = math.exp %723 : vector<2x48xf32>
    %cst_281 = arith.constant 1.000000e+00 : f32
    %725 = vector.broadcast %cst_281 : f32 to vector<2x48xf32>
    %726 = arith.addf %725, %724 : vector<2x48xf32>
    %727 = arith.divf %725, %726 : vector<2x48xf32>
    %728 = vector.extract_strided_slice %721 {offsets = [0, 48], sizes = [2, 16], strides = [1, 1]} : vector<2x64xf32> to vector<2x16xf32>
    %729 = math.tanh %728 : vector<2x16xf32>
    %730 = vector.extract_strided_slice %727 {offsets = [0, 16], sizes = [2, 16], strides = [1, 1]} : vector<2x48xf32> to vector<2x16xf32>
    %731 = arith.mulf %730, %709 : vector<2x16xf32>
    %732 = vector.extract_strided_slice %727 {offsets = [0, 0], sizes = [2, 16], strides = [1, 1]} : vector<2x48xf32> to vector<2x16xf32>
    %733 = arith.mulf %732, %729 : vector<2x16xf32>
    %734 = arith.addf %731, %733 : vector<2x16xf32>
    %735 = vector.extract_strided_slice %727 {offsets = [0, 32], sizes = [2, 16], strides = [1, 1]} : vector<2x48xf32> to vector<2x16xf32>
    %736 = math.tanh %734 : vector<2x16xf32>
    %737 = arith.mulf %735, %736 : vector<2x16xf32>
    %c8_282 = arith.constant 8 : index
    %c0_283 = arith.constant 0 : index
    %738 = vector.load %arg21[%c8_282, %c0_283] : memref<16x128xf32, #tpu.memory_space<vmem>>, vector<1x64xf32>
    %c7_284 = arith.constant 7 : index
    %c64_285 = arith.constant 64 : index
    %739 = vector.load %arg21[%c7_284, %c64_285] : memref<16x128xf32, #tpu.memory_space<vmem>>, vector<1x64xf32>
    %740 = tpu.concatenate %738, %739 in 0 : vector<1x64xf32>, vector<1x64xf32> -> vector<2x64xf32>
    %c0_286 = arith.constant 0 : index
    %c0_287 = arith.constant 0 : index
    %741 = vector.load %arg10[%c0_286, %c0_287] : memref<16x128xf32, #tpu.memory_space<vmem>>, vector<16x128xf32>
    %cst_288 = arith.constant dense<0.000000e+00> : vector<2x128xf32>
    %742 = tpu.matmul %737, %741, %cst_288 {dimension_numbers = #tpu.dot_dimension_numbers<[1], [0], [0], [1], [0, 0, 1, 1], [], []>} : vector<2x16xf32>, vector<16x128xf32>, vector<2x128xf32> -> vector<2x128xf32>
    %743 = vector.extract_strided_slice %742 {offsets = [0, 0], sizes = [1, 64], strides = [1, 1]} : vector<2x128xf32> to vector<1x64xf32>
    %744 = vector.extract_strided_slice %742 {offsets = [1, 64], sizes = [1, 64], strides = [1, 1]} : vector<2x128xf32> to vector<1x64xf32>
    %745 = tpu.concatenate %743, %744 in 0 : vector<1x64xf32>, vector<1x64xf32> -> vector<2x64xf32>
    %746 = arith.addf %740, %745 : vector<2x64xf32>
    %747 = vector.extract_strided_slice %746 {offsets = [0, 0], sizes = [2, 48], strides = [1, 1]} : vector<2x64xf32> to vector<2x48xf32>
    %748 = arith.negf %747 : vector<2x48xf32>
    %749 = math.exp %748 : vector<2x48xf32>
    %cst_289 = arith.constant 1.000000e+00 : f32
    %750 = vector.broadcast %cst_289 : f32 to vector<2x48xf32>
    %751 = arith.addf %750, %749 : vector<2x48xf32>
    %752 = arith.divf %750, %751 : vector<2x48xf32>
    %753 = vector.extract_strided_slice %746 {offsets = [0, 48], sizes = [2, 16], strides = [1, 1]} : vector<2x64xf32> to vector<2x16xf32>
    %754 = math.tanh %753 : vector<2x16xf32>
    %755 = vector.extract_strided_slice %752 {offsets = [0, 16], sizes = [2, 16], strides = [1, 1]} : vector<2x48xf32> to vector<2x16xf32>
    %756 = arith.mulf %755, %734 : vector<2x16xf32>
    %757 = vector.extract_strided_slice %752 {offsets = [0, 0], sizes = [2, 16], strides = [1, 1]} : vector<2x48xf32> to vector<2x16xf32>
    %758 = arith.mulf %757, %754 : vector<2x16xf32>
    %759 = arith.addf %756, %758 : vector<2x16xf32>
    %760 = vector.extract_strided_slice %752 {offsets = [0, 32], sizes = [2, 16], strides = [1, 1]} : vector<2x48xf32> to vector<2x16xf32>
    %761 = math.tanh %759 : vector<2x16xf32>
    %762 = arith.mulf %760, %761 : vector<2x16xf32>
    %c9_290 = arith.constant 9 : index
    %c0_291 = arith.constant 0 : index
    %763 = vector.load %arg21[%c9_290, %c0_291] : memref<16x128xf32, #tpu.memory_space<vmem>>, vector<1x64xf32>
    %c6_292 = arith.constant 6 : index
    %c64_293 = arith.constant 64 : index
    %764 = vector.load %arg21[%c6_292, %c64_293] : memref<16x128xf32, #tpu.memory_space<vmem>>, vector<1x64xf32>
    %765 = tpu.concatenate %763, %764 in 0 : vector<1x64xf32>, vector<1x64xf32> -> vector<2x64xf32>
    %c0_294 = arith.constant 0 : index
    %c0_295 = arith.constant 0 : index
    %766 = vector.load %arg10[%c0_294, %c0_295] : memref<16x128xf32, #tpu.memory_space<vmem>>, vector<16x128xf32>
    %cst_296 = arith.constant dense<0.000000e+00> : vector<2x128xf32>
    %767 = tpu.matmul %762, %766, %cst_296 {dimension_numbers = #tpu.dot_dimension_numbers<[1], [0], [0], [1], [0, 0, 1, 1], [], []>} : vector<2x16xf32>, vector<16x128xf32>, vector<2x128xf32> -> vector<2x128xf32>
    %768 = vector.extract_strided_slice %767 {offsets = [0, 0], sizes = [1, 64], strides = [1, 1]} : vector<2x128xf32> to vector<1x64xf32>
    %769 = vector.extract_strided_slice %767 {offsets = [1, 64], sizes = [1, 64], strides = [1, 1]} : vector<2x128xf32> to vector<1x64xf32>
    %770 = tpu.concatenate %768, %769 in 0 : vector<1x64xf32>, vector<1x64xf32> -> vector<2x64xf32>
    %771 = arith.addf %765, %770 : vector<2x64xf32>
    %772 = vector.extract_strided_slice %771 {offsets = [0, 0], sizes = [2, 48], strides = [1, 1]} : vector<2x64xf32> to vector<2x48xf32>
    %773 = arith.negf %772 : vector<2x48xf32>
    %774 = math.exp %773 : vector<2x48xf32>
    %cst_297 = arith.constant 1.000000e+00 : f32
    %775 = vector.broadcast %cst_297 : f32 to vector<2x48xf32>
    %776 = arith.addf %775, %774 : vector<2x48xf32>
    %777 = arith.divf %775, %776 : vector<2x48xf32>
    %778 = vector.extract_strided_slice %771 {offsets = [0, 48], sizes = [2, 16], strides = [1, 1]} : vector<2x64xf32> to vector<2x16xf32>
    %779 = math.tanh %778 : vector<2x16xf32>
    %780 = vector.extract_strided_slice %777 {offsets = [0, 16], sizes = [2, 16], strides = [1, 1]} : vector<2x48xf32> to vector<2x16xf32>
    %781 = arith.mulf %780, %759 : vector<2x16xf32>
    %782 = vector.extract_strided_slice %777 {offsets = [0, 0], sizes = [2, 16], strides = [1, 1]} : vector<2x48xf32> to vector<2x16xf32>
    %783 = arith.mulf %782, %779 : vector<2x16xf32>
    %784 = arith.addf %781, %783 : vector<2x16xf32>
    %785 = vector.extract_strided_slice %777 {offsets = [0, 32], sizes = [2, 16], strides = [1, 1]} : vector<2x48xf32> to vector<2x16xf32>
    %786 = math.tanh %784 : vector<2x16xf32>
    %787 = arith.mulf %785, %786 : vector<2x16xf32>
    %c10_298 = arith.constant 10 : index
    %c0_299 = arith.constant 0 : index
    %788 = vector.load %arg21[%c10_298, %c0_299] : memref<16x128xf32, #tpu.memory_space<vmem>>, vector<1x64xf32>
    %c5_300 = arith.constant 5 : index
    %c64_301 = arith.constant 64 : index
    %789 = vector.load %arg21[%c5_300, %c64_301] : memref<16x128xf32, #tpu.memory_space<vmem>>, vector<1x64xf32>
    %790 = tpu.concatenate %788, %789 in 0 : vector<1x64xf32>, vector<1x64xf32> -> vector<2x64xf32>
    %c0_302 = arith.constant 0 : index
    %c0_303 = arith.constant 0 : index
    %791 = vector.load %arg10[%c0_302, %c0_303] : memref<16x128xf32, #tpu.memory_space<vmem>>, vector<16x128xf32>
    %cst_304 = arith.constant dense<0.000000e+00> : vector<2x128xf32>
    %792 = tpu.matmul %787, %791, %cst_304 {dimension_numbers = #tpu.dot_dimension_numbers<[1], [0], [0], [1], [0, 0, 1, 1], [], []>} : vector<2x16xf32>, vector<16x128xf32>, vector<2x128xf32> -> vector<2x128xf32>
    %793 = vector.extract_strided_slice %792 {offsets = [0, 0], sizes = [1, 64], strides = [1, 1]} : vector<2x128xf32> to vector<1x64xf32>
    %794 = vector.extract_strided_slice %792 {offsets = [1, 64], sizes = [1, 64], strides = [1, 1]} : vector<2x128xf32> to vector<1x64xf32>
    %795 = tpu.concatenate %793, %794 in 0 : vector<1x64xf32>, vector<1x64xf32> -> vector<2x64xf32>
    %796 = arith.addf %790, %795 : vector<2x64xf32>
    %797 = vector.extract_strided_slice %796 {offsets = [0, 0], sizes = [2, 48], strides = [1, 1]} : vector<2x64xf32> to vector<2x48xf32>
    %798 = arith.negf %797 : vector<2x48xf32>
    %799 = math.exp %798 : vector<2x48xf32>
    %cst_305 = arith.constant 1.000000e+00 : f32
    %800 = vector.broadcast %cst_305 : f32 to vector<2x48xf32>
    %801 = arith.addf %800, %799 : vector<2x48xf32>
    %802 = arith.divf %800, %801 : vector<2x48xf32>
    %803 = vector.extract_strided_slice %796 {offsets = [0, 48], sizes = [2, 16], strides = [1, 1]} : vector<2x64xf32> to vector<2x16xf32>
    %804 = math.tanh %803 : vector<2x16xf32>
    %805 = vector.extract_strided_slice %802 {offsets = [0, 16], sizes = [2, 16], strides = [1, 1]} : vector<2x48xf32> to vector<2x16xf32>
    %806 = arith.mulf %805, %784 : vector<2x16xf32>
    %807 = vector.extract_strided_slice %802 {offsets = [0, 0], sizes = [2, 16], strides = [1, 1]} : vector<2x48xf32> to vector<2x16xf32>
    %808 = arith.mulf %807, %804 : vector<2x16xf32>
    %809 = arith.addf %806, %808 : vector<2x16xf32>
    %810 = vector.extract_strided_slice %802 {offsets = [0, 32], sizes = [2, 16], strides = [1, 1]} : vector<2x48xf32> to vector<2x16xf32>
    %811 = math.tanh %809 : vector<2x16xf32>
    %812 = arith.mulf %810, %811 : vector<2x16xf32>
    %c11_306 = arith.constant 11 : index
    %c0_307 = arith.constant 0 : index
    %813 = vector.load %arg21[%c11_306, %c0_307] : memref<16x128xf32, #tpu.memory_space<vmem>>, vector<1x64xf32>
    %c4_308 = arith.constant 4 : index
    %c64_309 = arith.constant 64 : index
    %814 = vector.load %arg21[%c4_308, %c64_309] : memref<16x128xf32, #tpu.memory_space<vmem>>, vector<1x64xf32>
    %815 = tpu.concatenate %813, %814 in 0 : vector<1x64xf32>, vector<1x64xf32> -> vector<2x64xf32>
    %c0_310 = arith.constant 0 : index
    %c0_311 = arith.constant 0 : index
    %816 = vector.load %arg10[%c0_310, %c0_311] : memref<16x128xf32, #tpu.memory_space<vmem>>, vector<16x128xf32>
    %cst_312 = arith.constant dense<0.000000e+00> : vector<2x128xf32>
    %817 = tpu.matmul %812, %816, %cst_312 {dimension_numbers = #tpu.dot_dimension_numbers<[1], [0], [0], [1], [0, 0, 1, 1], [], []>} : vector<2x16xf32>, vector<16x128xf32>, vector<2x128xf32> -> vector<2x128xf32>
    %818 = vector.extract_strided_slice %817 {offsets = [0, 0], sizes = [1, 64], strides = [1, 1]} : vector<2x128xf32> to vector<1x64xf32>
    %819 = vector.extract_strided_slice %817 {offsets = [1, 64], sizes = [1, 64], strides = [1, 1]} : vector<2x128xf32> to vector<1x64xf32>
    %820 = tpu.concatenate %818, %819 in 0 : vector<1x64xf32>, vector<1x64xf32> -> vector<2x64xf32>
    %821 = arith.addf %815, %820 : vector<2x64xf32>
    %822 = vector.extract_strided_slice %821 {offsets = [0, 0], sizes = [2, 48], strides = [1, 1]} : vector<2x64xf32> to vector<2x48xf32>
    %823 = arith.negf %822 : vector<2x48xf32>
    %824 = math.exp %823 : vector<2x48xf32>
    %cst_313 = arith.constant 1.000000e+00 : f32
    %825 = vector.broadcast %cst_313 : f32 to vector<2x48xf32>
    %826 = arith.addf %825, %824 : vector<2x48xf32>
    %827 = arith.divf %825, %826 : vector<2x48xf32>
    %828 = vector.extract_strided_slice %821 {offsets = [0, 48], sizes = [2, 16], strides = [1, 1]} : vector<2x64xf32> to vector<2x16xf32>
    %829 = math.tanh %828 : vector<2x16xf32>
    %830 = vector.extract_strided_slice %827 {offsets = [0, 16], sizes = [2, 16], strides = [1, 1]} : vector<2x48xf32> to vector<2x16xf32>
    %831 = arith.mulf %830, %809 : vector<2x16xf32>
    %832 = vector.extract_strided_slice %827 {offsets = [0, 0], sizes = [2, 16], strides = [1, 1]} : vector<2x48xf32> to vector<2x16xf32>
    %833 = arith.mulf %832, %829 : vector<2x16xf32>
    %834 = arith.addf %831, %833 : vector<2x16xf32>
    %835 = vector.extract_strided_slice %827 {offsets = [0, 32], sizes = [2, 16], strides = [1, 1]} : vector<2x48xf32> to vector<2x16xf32>
    %836 = math.tanh %834 : vector<2x16xf32>
    %837 = arith.mulf %835, %836 : vector<2x16xf32>
    %c12_314 = arith.constant 12 : index
    %c0_315 = arith.constant 0 : index
    %838 = vector.load %arg21[%c12_314, %c0_315] : memref<16x128xf32, #tpu.memory_space<vmem>>, vector<1x64xf32>
    %c3_316 = arith.constant 3 : index
    %c64_317 = arith.constant 64 : index
    %839 = vector.load %arg21[%c3_316, %c64_317] : memref<16x128xf32, #tpu.memory_space<vmem>>, vector<1x64xf32>
    %840 = tpu.concatenate %838, %839 in 0 : vector<1x64xf32>, vector<1x64xf32> -> vector<2x64xf32>
    %c0_318 = arith.constant 0 : index
    %c0_319 = arith.constant 0 : index
    %841 = vector.load %arg10[%c0_318, %c0_319] : memref<16x128xf32, #tpu.memory_space<vmem>>, vector<16x128xf32>
    %cst_320 = arith.constant dense<0.000000e+00> : vector<2x128xf32>
    %842 = tpu.matmul %837, %841, %cst_320 {dimension_numbers = #tpu.dot_dimension_numbers<[1], [0], [0], [1], [0, 0, 1, 1], [], []>} : vector<2x16xf32>, vector<16x128xf32>, vector<2x128xf32> -> vector<2x128xf32>
    %843 = vector.extract_strided_slice %842 {offsets = [0, 0], sizes = [1, 64], strides = [1, 1]} : vector<2x128xf32> to vector<1x64xf32>
    %844 = vector.extract_strided_slice %842 {offsets = [1, 64], sizes = [1, 64], strides = [1, 1]} : vector<2x128xf32> to vector<1x64xf32>
    %845 = tpu.concatenate %843, %844 in 0 : vector<1x64xf32>, vector<1x64xf32> -> vector<2x64xf32>
    %846 = arith.addf %840, %845 : vector<2x64xf32>
    %847 = vector.extract_strided_slice %846 {offsets = [0, 0], sizes = [2, 48], strides = [1, 1]} : vector<2x64xf32> to vector<2x48xf32>
    %848 = arith.negf %847 : vector<2x48xf32>
    %849 = math.exp %848 : vector<2x48xf32>
    %cst_321 = arith.constant 1.000000e+00 : f32
    %850 = vector.broadcast %cst_321 : f32 to vector<2x48xf32>
    %851 = arith.addf %850, %849 : vector<2x48xf32>
    %852 = arith.divf %850, %851 : vector<2x48xf32>
    %853 = vector.extract_strided_slice %846 {offsets = [0, 48], sizes = [2, 16], strides = [1, 1]} : vector<2x64xf32> to vector<2x16xf32>
    %854 = math.tanh %853 : vector<2x16xf32>
    %855 = vector.extract_strided_slice %852 {offsets = [0, 16], sizes = [2, 16], strides = [1, 1]} : vector<2x48xf32> to vector<2x16xf32>
    %856 = arith.mulf %855, %834 : vector<2x16xf32>
    %857 = vector.extract_strided_slice %852 {offsets = [0, 0], sizes = [2, 16], strides = [1, 1]} : vector<2x48xf32> to vector<2x16xf32>
    %858 = arith.mulf %857, %854 : vector<2x16xf32>
    %859 = arith.addf %856, %858 : vector<2x16xf32>
    %860 = vector.extract_strided_slice %852 {offsets = [0, 32], sizes = [2, 16], strides = [1, 1]} : vector<2x48xf32> to vector<2x16xf32>
    %861 = math.tanh %859 : vector<2x16xf32>
    %862 = arith.mulf %860, %861 : vector<2x16xf32>
    %c13_322 = arith.constant 13 : index
    %c0_323 = arith.constant 0 : index
    %863 = vector.load %arg21[%c13_322, %c0_323] : memref<16x128xf32, #tpu.memory_space<vmem>>, vector<1x64xf32>
    %c2_324 = arith.constant 2 : index
    %c64_325 = arith.constant 64 : index
    %864 = vector.load %arg21[%c2_324, %c64_325] : memref<16x128xf32, #tpu.memory_space<vmem>>, vector<1x64xf32>
    %865 = tpu.concatenate %863, %864 in 0 : vector<1x64xf32>, vector<1x64xf32> -> vector<2x64xf32>
    %c0_326 = arith.constant 0 : index
    %c0_327 = arith.constant 0 : index
    %866 = vector.load %arg10[%c0_326, %c0_327] : memref<16x128xf32, #tpu.memory_space<vmem>>, vector<16x128xf32>
    %cst_328 = arith.constant dense<0.000000e+00> : vector<2x128xf32>
    %867 = tpu.matmul %862, %866, %cst_328 {dimension_numbers = #tpu.dot_dimension_numbers<[1], [0], [0], [1], [0, 0, 1, 1], [], []>} : vector<2x16xf32>, vector<16x128xf32>, vector<2x128xf32> -> vector<2x128xf32>
    %868 = vector.extract_strided_slice %867 {offsets = [0, 0], sizes = [1, 64], strides = [1, 1]} : vector<2x128xf32> to vector<1x64xf32>
    %869 = vector.extract_strided_slice %867 {offsets = [1, 64], sizes = [1, 64], strides = [1, 1]} : vector<2x128xf32> to vector<1x64xf32>
    %870 = tpu.concatenate %868, %869 in 0 : vector<1x64xf32>, vector<1x64xf32> -> vector<2x64xf32>
    %871 = arith.addf %865, %870 : vector<2x64xf32>
    %872 = vector.extract_strided_slice %871 {offsets = [0, 0], sizes = [2, 48], strides = [1, 1]} : vector<2x64xf32> to vector<2x48xf32>
    %873 = arith.negf %872 : vector<2x48xf32>
    %874 = math.exp %873 : vector<2x48xf32>
    %cst_329 = arith.constant 1.000000e+00 : f32
    %875 = vector.broadcast %cst_329 : f32 to vector<2x48xf32>
    %876 = arith.addf %875, %874 : vector<2x48xf32>
    %877 = arith.divf %875, %876 : vector<2x48xf32>
    %878 = vector.extract_strided_slice %871 {offsets = [0, 48], sizes = [2, 16], strides = [1, 1]} : vector<2x64xf32> to vector<2x16xf32>
    %879 = math.tanh %878 : vector<2x16xf32>
    %880 = vector.extract_strided_slice %877 {offsets = [0, 16], sizes = [2, 16], strides = [1, 1]} : vector<2x48xf32> to vector<2x16xf32>
    %881 = arith.mulf %880, %859 : vector<2x16xf32>
    %882 = vector.extract_strided_slice %877 {offsets = [0, 0], sizes = [2, 16], strides = [1, 1]} : vector<2x48xf32> to vector<2x16xf32>
    %883 = arith.mulf %882, %879 : vector<2x16xf32>
    %884 = arith.addf %881, %883 : vector<2x16xf32>
    %885 = vector.extract_strided_slice %877 {offsets = [0, 32], sizes = [2, 16], strides = [1, 1]} : vector<2x48xf32> to vector<2x16xf32>
    %886 = math.tanh %884 : vector<2x16xf32>
    %887 = arith.mulf %885, %886 : vector<2x16xf32>
    %c14_330 = arith.constant 14 : index
    %c0_331 = arith.constant 0 : index
    %888 = vector.load %arg21[%c14_330, %c0_331] : memref<16x128xf32, #tpu.memory_space<vmem>>, vector<1x64xf32>
    %c1_332 = arith.constant 1 : index
    %c64_333 = arith.constant 64 : index
    %889 = vector.load %arg21[%c1_332, %c64_333] : memref<16x128xf32, #tpu.memory_space<vmem>>, vector<1x64xf32>
    %890 = tpu.concatenate %888, %889 in 0 : vector<1x64xf32>, vector<1x64xf32> -> vector<2x64xf32>
    %c0_334 = arith.constant 0 : index
    %c0_335 = arith.constant 0 : index
    %891 = vector.load %arg10[%c0_334, %c0_335] : memref<16x128xf32, #tpu.memory_space<vmem>>, vector<16x128xf32>
    %cst_336 = arith.constant dense<0.000000e+00> : vector<2x128xf32>
    %892 = tpu.matmul %887, %891, %cst_336 {dimension_numbers = #tpu.dot_dimension_numbers<[1], [0], [0], [1], [0, 0, 1, 1], [], []>} : vector<2x16xf32>, vector<16x128xf32>, vector<2x128xf32> -> vector<2x128xf32>
    %893 = vector.extract_strided_slice %892 {offsets = [0, 0], sizes = [1, 64], strides = [1, 1]} : vector<2x128xf32> to vector<1x64xf32>
    %894 = vector.extract_strided_slice %892 {offsets = [1, 64], sizes = [1, 64], strides = [1, 1]} : vector<2x128xf32> to vector<1x64xf32>
    %895 = tpu.concatenate %893, %894 in 0 : vector<1x64xf32>, vector<1x64xf32> -> vector<2x64xf32>
    %896 = arith.addf %890, %895 : vector<2x64xf32>
    %897 = vector.extract_strided_slice %896 {offsets = [0, 0], sizes = [2, 48], strides = [1, 1]} : vector<2x64xf32> to vector<2x48xf32>
    %898 = arith.negf %897 : vector<2x48xf32>
    %899 = math.exp %898 : vector<2x48xf32>
    %cst_337 = arith.constant 1.000000e+00 : f32
    %900 = vector.broadcast %cst_337 : f32 to vector<2x48xf32>
    %901 = arith.addf %900, %899 : vector<2x48xf32>
    %902 = arith.divf %900, %901 : vector<2x48xf32>
    %903 = vector.extract_strided_slice %896 {offsets = [0, 48], sizes = [2, 16], strides = [1, 1]} : vector<2x64xf32> to vector<2x16xf32>
    %904 = math.tanh %903 : vector<2x16xf32>
    %905 = vector.extract_strided_slice %902 {offsets = [0, 16], sizes = [2, 16], strides = [1, 1]} : vector<2x48xf32> to vector<2x16xf32>
    %906 = arith.mulf %905, %884 : vector<2x16xf32>
    %907 = vector.extract_strided_slice %902 {offsets = [0, 0], sizes = [2, 16], strides = [1, 1]} : vector<2x48xf32> to vector<2x16xf32>
    %908 = arith.mulf %907, %904 : vector<2x16xf32>
    %909 = arith.addf %906, %908 : vector<2x16xf32>
    %910 = vector.extract_strided_slice %902 {offsets = [0, 32], sizes = [2, 16], strides = [1, 1]} : vector<2x48xf32> to vector<2x16xf32>
    %911 = math.tanh %909 : vector<2x16xf32>
    %912 = arith.mulf %910, %911 : vector<2x16xf32>
    %c15_338 = arith.constant 15 : index
    %c0_339 = arith.constant 0 : index
    %913 = vector.load %arg21[%c15_338, %c0_339] : memref<16x128xf32, #tpu.memory_space<vmem>>, vector<1x64xf32>
    %c0_340 = arith.constant 0 : index
    %c64_341 = arith.constant 64 : index
    %914 = vector.load %arg21[%c0_340, %c64_341] : memref<16x128xf32, #tpu.memory_space<vmem>>, vector<1x64xf32>
    %915 = tpu.concatenate %913, %914 in 0 : vector<1x64xf32>, vector<1x64xf32> -> vector<2x64xf32>
    %c0_342 = arith.constant 0 : index
    %c0_343 = arith.constant 0 : index
    %916 = vector.load %arg10[%c0_342, %c0_343] : memref<16x128xf32, #tpu.memory_space<vmem>>, vector<16x128xf32>
    %cst_344 = arith.constant dense<0.000000e+00> : vector<2x128xf32>
    %917 = tpu.matmul %912, %916, %cst_344 {dimension_numbers = #tpu.dot_dimension_numbers<[1], [0], [0], [1], [0, 0, 1, 1], [], []>} : vector<2x16xf32>, vector<16x128xf32>, vector<2x128xf32> -> vector<2x128xf32>
    %918 = vector.extract_strided_slice %917 {offsets = [0, 0], sizes = [1, 64], strides = [1, 1]} : vector<2x128xf32> to vector<1x64xf32>
    %919 = vector.extract_strided_slice %917 {offsets = [1, 64], sizes = [1, 64], strides = [1, 1]} : vector<2x128xf32> to vector<1x64xf32>
    %920 = tpu.concatenate %918, %919 in 0 : vector<1x64xf32>, vector<1x64xf32> -> vector<2x64xf32>
    %921 = arith.addf %915, %920 : vector<2x64xf32>
    %922 = vector.extract_strided_slice %921 {offsets = [0, 0], sizes = [2, 48], strides = [1, 1]} : vector<2x64xf32> to vector<2x48xf32>
    %923 = arith.negf %922 : vector<2x48xf32>
    %924 = math.exp %923 : vector<2x48xf32>
    %cst_345 = arith.constant 1.000000e+00 : f32
    %925 = vector.broadcast %cst_345 : f32 to vector<2x48xf32>
    %926 = arith.addf %925, %924 : vector<2x48xf32>
    %927 = arith.divf %925, %926 : vector<2x48xf32>
    %928 = vector.extract_strided_slice %921 {offsets = [0, 48], sizes = [2, 16], strides = [1, 1]} : vector<2x64xf32> to vector<2x16xf32>
    %929 = math.tanh %928 : vector<2x16xf32>
    %930 = vector.extract_strided_slice %927 {offsets = [0, 16], sizes = [2, 16], strides = [1, 1]} : vector<2x48xf32> to vector<2x16xf32>
    %931 = arith.mulf %930, %909 : vector<2x16xf32>
    %932 = vector.extract_strided_slice %927 {offsets = [0, 0], sizes = [2, 16], strides = [1, 1]} : vector<2x48xf32> to vector<2x16xf32>
    %933 = arith.mulf %932, %929 : vector<2x16xf32>
    %934 = arith.addf %931, %933 : vector<2x16xf32>
    %935 = vector.extract_strided_slice %927 {offsets = [0, 32], sizes = [2, 16], strides = [1, 1]} : vector<2x48xf32> to vector<2x16xf32>
    %936 = math.tanh %934 : vector<2x16xf32>
    %937 = arith.mulf %935, %936 : vector<2x16xf32>
    %938 = vector.extract_strided_slice %524 {offsets = [0, 0], sizes = [1, 16], strides = [1, 1]} : vector<2x16xf32> to vector<1x16xf32>
    %939 = vector.extract_strided_slice %524 {offsets = [1, 0], sizes = [1, 16], strides = [1, 1]} : vector<2x16xf32> to vector<1x16xf32>
    %940 = vector.extract_strided_slice %937 {offsets = [0, 0], sizes = [1, 16], strides = [1, 1]} : vector<2x16xf32> to vector<1x16xf32>
    %941 = vector.extract_strided_slice %937 {offsets = [1, 0], sizes = [1, 16], strides = [1, 1]} : vector<2x16xf32> to vector<1x16xf32>
    %942 = tpu.concatenate %938, %939, %940, %941 in 1 : vector<1x16xf32>, vector<1x16xf32>, vector<1x16xf32>, vector<1x16xf32> -> vector<1x64xf32>
    %c0_346 = arith.constant 0 : index
    %c0_347 = arith.constant 0 : index
    %943 = vector.load %arg12[%c0_346, %c0_347] : memref<64x32xf32, #tpu.memory_space<vmem>>, vector<64x32xf32>
    %cst_348 = arith.constant dense<0.000000e+00> : vector<1x32xf32>
    %944 = tpu.matmul %942, %943, %cst_348 {dimension_numbers = #tpu.dot_dimension_numbers<[1], [0], [0], [1], [0, 0, 1, 1], [], []>} : vector<1x64xf32>, vector<64x32xf32>, vector<1x32xf32> -> vector<1x32xf32>
    %c0_349 = arith.constant 0 : index
    %c0_350 = arith.constant 0 : index
    %945 = vector.load %arg13[%c0_349, %c0_350] : memref<1x32xf32, #tpu.memory_space<vmem>>, vector<1x32xf32>
    %946 = arith.addf %944, %945 : vector<1x32xf32>
    %c0_351 = arith.constant 0 : index
    %c0_352 = arith.constant 0 : index
    %947 = vector.load %arg19[%c0_351, %c0_352] : memref<1x32xf32, #tpu.memory_space<vmem>>, vector<1x32xf32>
    tpu.vector_store %arg19[%c0_351, %c0_352], %946 {strides = array<i32>} : memref<1x32xf32, #tpu.memory_space<vmem>>, vector<1x32xf32>,
    %cst_353 = arith.constant 0.000000e+00 : f32
    %948 = vector.broadcast %cst_353 : f32 to vector<1x32xf32>
    %cst_354 = arith.constant 0.000000e+00 : f32
    %949 = vector.broadcast %cst_354 : f32 to vector<1x32xf32>
    %950 = tpu.concatenate %949, %946 in 1 : vector<1x32xf32>, vector<1x32xf32> -> vector<1x64xf32>
    %c0_355 = arith.constant 0 : index
    %c0_356 = arith.constant 0 : index
    %951 = vector.load %arg14[%c0_355, %c0_356] : memref<64x128xf32, #tpu.memory_space<vmem>>, vector<64x128xf32>
    %cst_357 = arith.constant dense<0.000000e+00> : vector<1x128xf32>
    %952 = tpu.matmul %950, %951, %cst_357 {dimension_numbers = #tpu.dot_dimension_numbers<[1], [0], [0], [1], [0, 0, 1, 1], [], []>} : vector<1x64xf32>, vector<64x128xf32>, vector<1x128xf32> -> vector<1x128xf32>
    %c0_358 = arith.constant 0 : index
    %c0_359 = arith.constant 0 : index
    %953 = vector.load %arg15[%c0_358, %c0_359] : memref<1x128xf32, #tpu.memory_space<vmem>>, vector<1x128xf32>
    %954 = arith.addf %952, %953 : vector<1x128xf32>
    %955 = vector.extract_strided_slice %954 {offsets = [0, 0], sizes = [1, 96], strides = [1, 1]} : vector<1x128xf32> to vector<1x96xf32>
    %956 = arith.negf %955 : vector<1x96xf32>
    %957 = math.exp %956 : vector<1x96xf32>
    %cst_360 = arith.constant 1.000000e+00 : f32
    %958 = vector.broadcast %cst_360 : f32 to vector<1x96xf32>
    %959 = arith.addf %958, %957 : vector<1x96xf32>
    %960 = arith.divf %958, %959 : vector<1x96xf32>
    %961 = vector.extract_strided_slice %954 {offsets = [0, 96], sizes = [1, 32], strides = [1, 1]} : vector<1x128xf32> to vector<1x32xf32>
    %962 = math.tanh %961 : vector<1x32xf32>
    %963 = vector.extract_strided_slice %960 {offsets = [0, 32], sizes = [1, 32], strides = [1, 1]} : vector<1x96xf32> to vector<1x32xf32>
    %964 = arith.mulf %963, %948 : vector<1x32xf32>
    %965 = vector.extract_strided_slice %960 {offsets = [0, 0], sizes = [1, 32], strides = [1, 1]} : vector<1x96xf32> to vector<1x32xf32>
    %966 = arith.mulf %965, %962 : vector<1x32xf32>
    %967 = arith.addf %964, %966 : vector<1x32xf32>
    %968 = vector.extract_strided_slice %960 {offsets = [0, 64], sizes = [1, 32], strides = [1, 1]} : vector<1x96xf32> to vector<1x32xf32>
    %969 = math.tanh %967 : vector<1x32xf32>
    %970 = arith.mulf %968, %969 : vector<1x32xf32>
    %c0_361 = arith.constant 0 : index
    %c0_362 = arith.constant 0 : index
    %971 = vector.load %arg22[%c0_361, %c0_362] : memref<16x32xf32, #tpu.memory_space<vmem>>, vector<1x32xf32>
    tpu.vector_store %arg22[%c0_361, %c0_362], %970 {strides = array<i32>} : memref<16x32xf32, #tpu.memory_space<vmem>>, vector<1x32xf32>,
    %972 = tpu.concatenate %970, %970 in 1 : vector<1x32xf32>, vector<1x32xf32> -> vector<1x64xf32>
    %c0_363 = arith.constant 0 : index
    %c0_364 = arith.constant 0 : index
    %973 = vector.load %arg14[%c0_363, %c0_364] : memref<64x128xf32, #tpu.memory_space<vmem>>, vector<64x128xf32>
    %cst_365 = arith.constant dense<0.000000e+00> : vector<1x128xf32>
    %974 = tpu.matmul %972, %973, %cst_365 {dimension_numbers = #tpu.dot_dimension_numbers<[1], [0], [0], [1], [0, 0, 1, 1], [], []>} : vector<1x64xf32>, vector<64x128xf32>, vector<1x128xf32> -> vector<1x128xf32>
    %c0_366 = arith.constant 0 : index
    %c0_367 = arith.constant 0 : index
    %975 = vector.load %arg15[%c0_366, %c0_367] : memref<1x128xf32, #tpu.memory_space<vmem>>, vector<1x128xf32>
    %976 = arith.addf %974, %975 : vector<1x128xf32>
    %977 = vector.extract_strided_slice %976 {offsets = [0, 0], sizes = [1, 96], strides = [1, 1]} : vector<1x128xf32> to vector<1x96xf32>
    %978 = arith.negf %977 : vector<1x96xf32>
    %979 = math.exp %978 : vector<1x96xf32>
    %cst_368 = arith.constant 1.000000e+00 : f32
    %980 = vector.broadcast %cst_368 : f32 to vector<1x96xf32>
    %981 = arith.addf %980, %979 : vector<1x96xf32>
    %982 = arith.divf %980, %981 : vector<1x96xf32>
    %983 = vector.extract_strided_slice %976 {offsets = [0, 96], sizes = [1, 32], strides = [1, 1]} : vector<1x128xf32> to vector<1x32xf32>
    %984 = math.tanh %983 : vector<1x32xf32>
    %985 = vector.extract_strided_slice %982 {offsets = [0, 32], sizes = [1, 32], strides = [1, 1]} : vector<1x96xf32> to vector<1x32xf32>
    %986 = arith.mulf %985, %967 : vector<1x32xf32>
    %987 = vector.extract_strided_slice %982 {offsets = [0, 0], sizes = [1, 32], strides = [1, 1]} : vector<1x96xf32> to vector<1x32xf32>
    %988 = arith.mulf %987, %984 : vector<1x32xf32>
    %989 = arith.addf %986, %988 : vector<1x32xf32>
    %990 = vector.extract_strided_slice %982 {offsets = [0, 64], sizes = [1, 32], strides = [1, 1]} : vector<1x96xf32> to vector<1x32xf32>
    %991 = math.tanh %989 : vector<1x32xf32>
    %992 = arith.mulf %990, %991 : vector<1x32xf32>
    %c1_369 = arith.constant 1 : index
    %c0_370 = arith.constant 0 : index
    %993 = vector.load %arg22[%c1_369, %c0_370] : memref<16x32xf32, #tpu.memory_space<vmem>>, vector<1x32xf32>
    tpu.vector_store %arg22[%c1_369, %c0_370], %992 {strides = array<i32>} : memref<16x32xf32, #tpu.memory_space<vmem>>, vector<1x32xf32>,
    %994 = tpu.concatenate %992, %992 in 1 : vector<1x32xf32>, vector<1x32xf32> -> vector<1x64xf32>
    %c0_371 = arith.constant 0 : index
    %c0_372 = arith.constant 0 : index
    %995 = vector.load %arg14[%c0_371, %c0_372] : memref<64x128xf32, #tpu.memory_space<vmem>>, vector<64x128xf32>
    %cst_373 = arith.constant dense<0.000000e+00> : vector<1x128xf32>
    %996 = tpu.matmul %994, %995, %cst_373 {dimension_numbers = #tpu.dot_dimension_numbers<[1], [0], [0], [1], [0, 0, 1, 1], [], []>} : vector<1x64xf32>, vector<64x128xf32>, vector<1x128xf32> -> vector<1x128xf32>
    %c0_374 = arith.constant 0 : index
    %c0_375 = arith.constant 0 : index
    %997 = vector.load %arg15[%c0_374, %c0_375] : memref<1x128xf32, #tpu.memory_space<vmem>>, vector<1x128xf32>
    %998 = arith.addf %996, %997 : vector<1x128xf32>
    %999 = vector.extract_strided_slice %998 {offsets = [0, 0], sizes = [1, 96], strides = [1, 1]} : vector<1x128xf32> to vector<1x96xf32>
    %1000 = arith.negf %999 : vector<1x96xf32>
    %1001 = math.exp %1000 : vector<1x96xf32>
    %cst_376 = arith.constant 1.000000e+00 : f32
    %1002 = vector.broadcast %cst_376 : f32 to vector<1x96xf32>
    %1003 = arith.addf %1002, %1001 : vector<1x96xf32>
    %1004 = arith.divf %1002, %1003 : vector<1x96xf32>
    %1005 = vector.extract_strided_slice %998 {offsets = [0, 96], sizes = [1, 32], strides = [1, 1]} : vector<1x128xf32> to vector<1x32xf32>
    %1006 = math.tanh %1005 : vector<1x32xf32>
    %1007 = vector.extract_strided_slice %1004 {offsets = [0, 32], sizes = [1, 32], strides = [1, 1]} : vector<1x96xf32> to vector<1x32xf32>
    %1008 = arith.mulf %1007, %989 : vector<1x32xf32>
    %1009 = vector.extract_strided_slice %1004 {offsets = [0, 0], sizes = [1, 32], strides = [1, 1]} : vector<1x96xf32> to vector<1x32xf32>
    %1010 = arith.mulf %1009, %1006 : vector<1x32xf32>
    %1011 = arith.addf %1008, %1010 : vector<1x32xf32>
    %1012 = vector.extract_strided_slice %1004 {offsets = [0, 64], sizes = [1, 32], strides = [1, 1]} : vector<1x96xf32> to vector<1x32xf32>
    %1013 = math.tanh %1011 : vector<1x32xf32>
    %1014 = arith.mulf %1012, %1013 : vector<1x32xf32>
    %c2_377 = arith.constant 2 : index
    %c0_378 = arith.constant 0 : index
    %1015 = vector.load %arg22[%c2_377, %c0_378] : memref<16x32xf32, #tpu.memory_space<vmem>>, vector<1x32xf32>
    tpu.vector_store %arg22[%c2_377, %c0_378], %1014 {strides = array<i32>} : memref<16x32xf32, #tpu.memory_space<vmem>>, vector<1x32xf32>,
    %1016 = tpu.concatenate %1014, %1014 in 1 : vector<1x32xf32>, vector<1x32xf32> -> vector<1x64xf32>
    %c0_379 = arith.constant 0 : index
    %c0_380 = arith.constant 0 : index
    %1017 = vector.load %arg14[%c0_379, %c0_380] : memref<64x128xf32, #tpu.memory_space<vmem>>, vector<64x128xf32>
    %cst_381 = arith.constant dense<0.000000e+00> : vector<1x128xf32>
    %1018 = tpu.matmul %1016, %1017, %cst_381 {dimension_numbers = #tpu.dot_dimension_numbers<[1], [0], [0], [1], [0, 0, 1, 1], [], []>} : vector<1x64xf32>, vector<64x128xf32>, vector<1x128xf32> -> vector<1x128xf32>
    %c0_382 = arith.constant 0 : index
    %c0_383 = arith.constant 0 : index
    %1019 = vector.load %arg15[%c0_382, %c0_383] : memref<1x128xf32, #tpu.memory_space<vmem>>, vector<1x128xf32>
    %1020 = arith.addf %1018, %1019 : vector<1x128xf32>
    %1021 = vector.extract_strided_slice %1020 {offsets = [0, 0], sizes = [1, 96], strides = [1, 1]} : vector<1x128xf32> to vector<1x96xf32>
    %1022 = arith.negf %1021 : vector<1x96xf32>
    %1023 = math.exp %1022 : vector<1x96xf32>
    %cst_384 = arith.constant 1.000000e+00 : f32
    %1024 = vector.broadcast %cst_384 : f32 to vector<1x96xf32>
    %1025 = arith.addf %1024, %1023 : vector<1x96xf32>
    %1026 = arith.divf %1024, %1025 : vector<1x96xf32>
    %1027 = vector.extract_strided_slice %1020 {offsets = [0, 96], sizes = [1, 32], strides = [1, 1]} : vector<1x128xf32> to vector<1x32xf32>
    %1028 = math.tanh %1027 : vector<1x32xf32>
    %1029 = vector.extract_strided_slice %1026 {offsets = [0, 32], sizes = [1, 32], strides = [1, 1]} : vector<1x96xf32> to vector<1x32xf32>
    %1030 = arith.mulf %1029, %1011 : vector<1x32xf32>
    %1031 = vector.extract_strided_slice %1026 {offsets = [0, 0], sizes = [1, 32], strides = [1, 1]} : vector<1x96xf32> to vector<1x32xf32>
    %1032 = arith.mulf %1031, %1028 : vector<1x32xf32>
    %1033 = arith.addf %1030, %1032 : vector<1x32xf32>
    %1034 = vector.extract_strided_slice %1026 {offsets = [0, 64], sizes = [1, 32], strides = [1, 1]} : vector<1x96xf32> to vector<1x32xf32>
    %1035 = math.tanh %1033 : vector<1x32xf32>
    %1036 = arith.mulf %1034, %1035 : vector<1x32xf32>
    %c3_385 = arith.constant 3 : index
    %c0_386 = arith.constant 0 : index
    %1037 = vector.load %arg22[%c3_385, %c0_386] : memref<16x32xf32, #tpu.memory_space<vmem>>, vector<1x32xf32>
    tpu.vector_store %arg22[%c3_385, %c0_386], %1036 {strides = array<i32>} : memref<16x32xf32, #tpu.memory_space<vmem>>, vector<1x32xf32>,
    %1038 = tpu.concatenate %1036, %1036 in 1 : vector<1x32xf32>, vector<1x32xf32> -> vector<1x64xf32>
    %c0_387 = arith.constant 0 : index
    %c0_388 = arith.constant 0 : index
    %1039 = vector.load %arg14[%c0_387, %c0_388] : memref<64x128xf32, #tpu.memory_space<vmem>>, vector<64x128xf32>
    %cst_389 = arith.constant dense<0.000000e+00> : vector<1x128xf32>
    %1040 = tpu.matmul %1038, %1039, %cst_389 {dimension_numbers = #tpu.dot_dimension_numbers<[1], [0], [0], [1], [0, 0, 1, 1], [], []>} : vector<1x64xf32>, vector<64x128xf32>, vector<1x128xf32> -> vector<1x128xf32>
    %c0_390 = arith.constant 0 : index
    %c0_391 = arith.constant 0 : index
    %1041 = vector.load %arg15[%c0_390, %c0_391] : memref<1x128xf32, #tpu.memory_space<vmem>>, vector<1x128xf32>
    %1042 = arith.addf %1040, %1041 : vector<1x128xf32>
    %1043 = vector.extract_strided_slice %1042 {offsets = [0, 0], sizes = [1, 96], strides = [1, 1]} : vector<1x128xf32> to vector<1x96xf32>
    %1044 = arith.negf %1043 : vector<1x96xf32>
    %1045 = math.exp %1044 : vector<1x96xf32>
    %cst_392 = arith.constant 1.000000e+00 : f32
    %1046 = vector.broadcast %cst_392 : f32 to vector<1x96xf32>
    %1047 = arith.addf %1046, %1045 : vector<1x96xf32>
    %1048 = arith.divf %1046, %1047 : vector<1x96xf32>
    %1049 = vector.extract_strided_slice %1042 {offsets = [0, 96], sizes = [1, 32], strides = [1, 1]} : vector<1x128xf32> to vector<1x32xf32>
    %1050 = math.tanh %1049 : vector<1x32xf32>
    %1051 = vector.extract_strided_slice %1048 {offsets = [0, 32], sizes = [1, 32], strides = [1, 1]} : vector<1x96xf32> to vector<1x32xf32>
    %1052 = arith.mulf %1051, %1033 : vector<1x32xf32>
    %1053 = vector.extract_strided_slice %1048 {offsets = [0, 0], sizes = [1, 32], strides = [1, 1]} : vector<1x96xf32> to vector<1x32xf32>
    %1054 = arith.mulf %1053, %1050 : vector<1x32xf32>
    %1055 = arith.addf %1052, %1054 : vector<1x32xf32>
    %1056 = vector.extract_strided_slice %1048 {offsets = [0, 64], sizes = [1, 32], strides = [1, 1]} : vector<1x96xf32> to vector<1x32xf32>
    %1057 = math.tanh %1055 : vector<1x32xf32>
    %1058 = arith.mulf %1056, %1057 : vector<1x32xf32>
    %c4_393 = arith.constant 4 : index
    %c0_394 = arith.constant 0 : index
    %1059 = vector.load %arg22[%c4_393, %c0_394] : memref<16x32xf32, #tpu.memory_space<vmem>>, vector<1x32xf32>
    tpu.vector_store %arg22[%c4_393, %c0_394], %1058 {strides = array<i32>} : memref<16x32xf32, #tpu.memory_space<vmem>>, vector<1x32xf32>,
    %1060 = tpu.concatenate %1058, %1058 in 1 : vector<1x32xf32>, vector<1x32xf32> -> vector<1x64xf32>
    %c0_395 = arith.constant 0 : index
    %c0_396 = arith.constant 0 : index
    %1061 = vector.load %arg14[%c0_395, %c0_396] : memref<64x128xf32, #tpu.memory_space<vmem>>, vector<64x128xf32>
    %cst_397 = arith.constant dense<0.000000e+00> : vector<1x128xf32>
    %1062 = tpu.matmul %1060, %1061, %cst_397 {dimension_numbers = #tpu.dot_dimension_numbers<[1], [0], [0], [1], [0, 0, 1, 1], [], []>} : vector<1x64xf32>, vector<64x128xf32>, vector<1x128xf32> -> vector<1x128xf32>
    %c0_398 = arith.constant 0 : index
    %c0_399 = arith.constant 0 : index
    %1063 = vector.load %arg15[%c0_398, %c0_399] : memref<1x128xf32, #tpu.memory_space<vmem>>, vector<1x128xf32>
    %1064 = arith.addf %1062, %1063 : vector<1x128xf32>
    %1065 = vector.extract_strided_slice %1064 {offsets = [0, 0], sizes = [1, 96], strides = [1, 1]} : vector<1x128xf32> to vector<1x96xf32>
    %1066 = arith.negf %1065 : vector<1x96xf32>
    %1067 = math.exp %1066 : vector<1x96xf32>
    %cst_400 = arith.constant 1.000000e+00 : f32
    %1068 = vector.broadcast %cst_400 : f32 to vector<1x96xf32>
    %1069 = arith.addf %1068, %1067 : vector<1x96xf32>
    %1070 = arith.divf %1068, %1069 : vector<1x96xf32>
    %1071 = vector.extract_strided_slice %1064 {offsets = [0, 96], sizes = [1, 32], strides = [1, 1]} : vector<1x128xf32> to vector<1x32xf32>
    %1072 = math.tanh %1071 : vector<1x32xf32>
    %1073 = vector.extract_strided_slice %1070 {offsets = [0, 32], sizes = [1, 32], strides = [1, 1]} : vector<1x96xf32> to vector<1x32xf32>
    %1074 = arith.mulf %1073, %1055 : vector<1x32xf32>
    %1075 = vector.extract_strided_slice %1070 {offsets = [0, 0], sizes = [1, 32], strides = [1, 1]} : vector<1x96xf32> to vector<1x32xf32>
    %1076 = arith.mulf %1075, %1072 : vector<1x32xf32>
    %1077 = arith.addf %1074, %1076 : vector<1x32xf32>
    %1078 = vector.extract_strided_slice %1070 {offsets = [0, 64], sizes = [1, 32], strides = [1, 1]} : vector<1x96xf32> to vector<1x32xf32>
    %1079 = math.tanh %1077 : vector<1x32xf32>
    %1080 = arith.mulf %1078, %1079 : vector<1x32xf32>
    %c5_401 = arith.constant 5 : index
    %c0_402 = arith.constant 0 : index
    %1081 = vector.load %arg22[%c5_401, %c0_402] : memref<16x32xf32, #tpu.memory_space<vmem>>, vector<1x32xf32>
    tpu.vector_store %arg22[%c5_401, %c0_402], %1080 {strides = array<i32>} : memref<16x32xf32, #tpu.memory_space<vmem>>, vector<1x32xf32>,
    %1082 = tpu.concatenate %1080, %1080 in 1 : vector<1x32xf32>, vector<1x32xf32> -> vector<1x64xf32>
    %c0_403 = arith.constant 0 : index
    %c0_404 = arith.constant 0 : index
    %1083 = vector.load %arg14[%c0_403, %c0_404] : memref<64x128xf32, #tpu.memory_space<vmem>>, vector<64x128xf32>
    %cst_405 = arith.constant dense<0.000000e+00> : vector<1x128xf32>
    %1084 = tpu.matmul %1082, %1083, %cst_405 {dimension_numbers = #tpu.dot_dimension_numbers<[1], [0], [0], [1], [0, 0, 1, 1], [], []>} : vector<1x64xf32>, vector<64x128xf32>, vector<1x128xf32> -> vector<1x128xf32>
    %c0_406 = arith.constant 0 : index
    %c0_407 = arith.constant 0 : index
    %1085 = vector.load %arg15[%c0_406, %c0_407] : memref<1x128xf32, #tpu.memory_space<vmem>>, vector<1x128xf32>
    %1086 = arith.addf %1084, %1085 : vector<1x128xf32>
    %1087 = vector.extract_strided_slice %1086 {offsets = [0, 0], sizes = [1, 96], strides = [1, 1]} : vector<1x128xf32> to vector<1x96xf32>
    %1088 = arith.negf %1087 : vector<1x96xf32>
    %1089 = math.exp %1088 : vector<1x96xf32>
    %cst_408 = arith.constant 1.000000e+00 : f32
    %1090 = vector.broadcast %cst_408 : f32 to vector<1x96xf32>
    %1091 = arith.addf %1090, %1089 : vector<1x96xf32>
    %1092 = arith.divf %1090, %1091 : vector<1x96xf32>
    %1093 = vector.extract_strided_slice %1086 {offsets = [0, 96], sizes = [1, 32], strides = [1, 1]} : vector<1x128xf32> to vector<1x32xf32>
    %1094 = math.tanh %1093 : vector<1x32xf32>
    %1095 = vector.extract_strided_slice %1092 {offsets = [0, 32], sizes = [1, 32], strides = [1, 1]} : vector<1x96xf32> to vector<1x32xf32>
    %1096 = arith.mulf %1095, %1077 : vector<1x32xf32>
    %1097 = vector.extract_strided_slice %1092 {offsets = [0, 0], sizes = [1, 32], strides = [1, 1]} : vector<1x96xf32> to vector<1x32xf32>
    %1098 = arith.mulf %1097, %1094 : vector<1x32xf32>
    %1099 = arith.addf %1096, %1098 : vector<1x32xf32>
    %1100 = vector.extract_strided_slice %1092 {offsets = [0, 64], sizes = [1, 32], strides = [1, 1]} : vector<1x96xf32> to vector<1x32xf32>
    %1101 = math.tanh %1099 : vector<1x32xf32>
    %1102 = arith.mulf %1100, %1101 : vector<1x32xf32>
    %c6_409 = arith.constant 6 : index
    %c0_410 = arith.constant 0 : index
    %1103 = vector.load %arg22[%c6_409, %c0_410] : memref<16x32xf32, #tpu.memory_space<vmem>>, vector<1x32xf32>
    tpu.vector_store %arg22[%c6_409, %c0_410], %1102 {strides = array<i32>} : memref<16x32xf32, #tpu.memory_space<vmem>>, vector<1x32xf32>,
    %1104 = tpu.concatenate %1102, %1102 in 1 : vector<1x32xf32>, vector<1x32xf32> -> vector<1x64xf32>
    %c0_411 = arith.constant 0 : index
    %c0_412 = arith.constant 0 : index
    %1105 = vector.load %arg14[%c0_411, %c0_412] : memref<64x128xf32, #tpu.memory_space<vmem>>, vector<64x128xf32>
    %cst_413 = arith.constant dense<0.000000e+00> : vector<1x128xf32>
    %1106 = tpu.matmul %1104, %1105, %cst_413 {dimension_numbers = #tpu.dot_dimension_numbers<[1], [0], [0], [1], [0, 0, 1, 1], [], []>} : vector<1x64xf32>, vector<64x128xf32>, vector<1x128xf32> -> vector<1x128xf32>
    %c0_414 = arith.constant 0 : index
    %c0_415 = arith.constant 0 : index
    %1107 = vector.load %arg15[%c0_414, %c0_415] : memref<1x128xf32, #tpu.memory_space<vmem>>, vector<1x128xf32>
    %1108 = arith.addf %1106, %1107 : vector<1x128xf32>
    %1109 = vector.extract_strided_slice %1108 {offsets = [0, 0], sizes = [1, 96], strides = [1, 1]} : vector<1x128xf32> to vector<1x96xf32>
    %1110 = arith.negf %1109 : vector<1x96xf32>
    %1111 = math.exp %1110 : vector<1x96xf32>
    %cst_416 = arith.constant 1.000000e+00 : f32
    %1112 = vector.broadcast %cst_416 : f32 to vector<1x96xf32>
    %1113 = arith.addf %1112, %1111 : vector<1x96xf32>
    %1114 = arith.divf %1112, %1113 : vector<1x96xf32>
    %1115 = vector.extract_strided_slice %1108 {offsets = [0, 96], sizes = [1, 32], strides = [1, 1]} : vector<1x128xf32> to vector<1x32xf32>
    %1116 = math.tanh %1115 : vector<1x32xf32>
    %1117 = vector.extract_strided_slice %1114 {offsets = [0, 32], sizes = [1, 32], strides = [1, 1]} : vector<1x96xf32> to vector<1x32xf32>
    %1118 = arith.mulf %1117, %1099 : vector<1x32xf32>
    %1119 = vector.extract_strided_slice %1114 {offsets = [0, 0], sizes = [1, 32], strides = [1, 1]} : vector<1x96xf32> to vector<1x32xf32>
    %1120 = arith.mulf %1119, %1116 : vector<1x32xf32>
    %1121 = arith.addf %1118, %1120 : vector<1x32xf32>
    %1122 = vector.extract_strided_slice %1114 {offsets = [0, 64], sizes = [1, 32], strides = [1, 1]} : vector<1x96xf32> to vector<1x32xf32>
    %1123 = math.tanh %1121 : vector<1x32xf32>
    %1124 = arith.mulf %1122, %1123 : vector<1x32xf32>
    %c7_417 = arith.constant 7 : index
    %c0_418 = arith.constant 0 : index
    %1125 = vector.load %arg22[%c7_417, %c0_418] : memref<16x32xf32, #tpu.memory_space<vmem>>, vector<1x32xf32>
    tpu.vector_store %arg22[%c7_417, %c0_418], %1124 {strides = array<i32>} : memref<16x32xf32, #tpu.memory_space<vmem>>, vector<1x32xf32>,
    %1126 = tpu.concatenate %1124, %1124 in 1 : vector<1x32xf32>, vector<1x32xf32> -> vector<1x64xf32>
    %c0_419 = arith.constant 0 : index
    %c0_420 = arith.constant 0 : index
    %1127 = vector.load %arg14[%c0_419, %c0_420] : memref<64x128xf32, #tpu.memory_space<vmem>>, vector<64x128xf32>
    %cst_421 = arith.constant dense<0.000000e+00> : vector<1x128xf32>
    %1128 = tpu.matmul %1126, %1127, %cst_421 {dimension_numbers = #tpu.dot_dimension_numbers<[1], [0], [0], [1], [0, 0, 1, 1], [], []>} : vector<1x64xf32>, vector<64x128xf32>, vector<1x128xf32> -> vector<1x128xf32>
    %c0_422 = arith.constant 0 : index
    %c0_423 = arith.constant 0 : index
    %1129 = vector.load %arg15[%c0_422, %c0_423] : memref<1x128xf32, #tpu.memory_space<vmem>>, vector<1x128xf32>
    %1130 = arith.addf %1128, %1129 : vector<1x128xf32>
    %1131 = vector.extract_strided_slice %1130 {offsets = [0, 0], sizes = [1, 96], strides = [1, 1]} : vector<1x128xf32> to vector<1x96xf32>
    %1132 = arith.negf %1131 : vector<1x96xf32>
    %1133 = math.exp %1132 : vector<1x96xf32>
    %cst_424 = arith.constant 1.000000e+00 : f32
    %1134 = vector.broadcast %cst_424 : f32 to vector<1x96xf32>
    %1135 = arith.addf %1134, %1133 : vector<1x96xf32>
    %1136 = arith.divf %1134, %1135 : vector<1x96xf32>
    %1137 = vector.extract_strided_slice %1130 {offsets = [0, 96], sizes = [1, 32], strides = [1, 1]} : vector<1x128xf32> to vector<1x32xf32>
    %1138 = math.tanh %1137 : vector<1x32xf32>
    %1139 = vector.extract_strided_slice %1136 {offsets = [0, 32], sizes = [1, 32], strides = [1, 1]} : vector<1x96xf32> to vector<1x32xf32>
    %1140 = arith.mulf %1139, %1121 : vector<1x32xf32>
    %1141 = vector.extract_strided_slice %1136 {offsets = [0, 0], sizes = [1, 32], strides = [1, 1]} : vector<1x96xf32> to vector<1x32xf32>
    %1142 = arith.mulf %1141, %1138 : vector<1x32xf32>
    %1143 = arith.addf %1140, %1142 : vector<1x32xf32>
    %1144 = vector.extract_strided_slice %1136 {offsets = [0, 64], sizes = [1, 32], strides = [1, 1]} : vector<1x96xf32> to vector<1x32xf32>
    %1145 = math.tanh %1143 : vector<1x32xf32>
    %1146 = arith.mulf %1144, %1145 : vector<1x32xf32>
    %c8_425 = arith.constant 8 : index
    %c0_426 = arith.constant 0 : index
    %1147 = vector.load %arg22[%c8_425, %c0_426] : memref<16x32xf32, #tpu.memory_space<vmem>>, vector<1x32xf32>
    tpu.vector_store %arg22[%c8_425, %c0_426], %1146 {strides = array<i32>} : memref<16x32xf32, #tpu.memory_space<vmem>>, vector<1x32xf32>,
    %1148 = tpu.concatenate %1146, %1146 in 1 : vector<1x32xf32>, vector<1x32xf32> -> vector<1x64xf32>
    %c0_427 = arith.constant 0 : index
    %c0_428 = arith.constant 0 : index
    %1149 = vector.load %arg14[%c0_427, %c0_428] : memref<64x128xf32, #tpu.memory_space<vmem>>, vector<64x128xf32>
    %cst_429 = arith.constant dense<0.000000e+00> : vector<1x128xf32>
    %1150 = tpu.matmul %1148, %1149, %cst_429 {dimension_numbers = #tpu.dot_dimension_numbers<[1], [0], [0], [1], [0, 0, 1, 1], [], []>} : vector<1x64xf32>, vector<64x128xf32>, vector<1x128xf32> -> vector<1x128xf32>
    %c0_430 = arith.constant 0 : index
    %c0_431 = arith.constant 0 : index
    %1151 = vector.load %arg15[%c0_430, %c0_431] : memref<1x128xf32, #tpu.memory_space<vmem>>, vector<1x128xf32>
    %1152 = arith.addf %1150, %1151 : vector<1x128xf32>
    %1153 = vector.extract_strided_slice %1152 {offsets = [0, 0], sizes = [1, 96], strides = [1, 1]} : vector<1x128xf32> to vector<1x96xf32>
    %1154 = arith.negf %1153 : vector<1x96xf32>
    %1155 = math.exp %1154 : vector<1x96xf32>
    %cst_432 = arith.constant 1.000000e+00 : f32
    %1156 = vector.broadcast %cst_432 : f32 to vector<1x96xf32>
    %1157 = arith.addf %1156, %1155 : vector<1x96xf32>
    %1158 = arith.divf %1156, %1157 : vector<1x96xf32>
    %1159 = vector.extract_strided_slice %1152 {offsets = [0, 96], sizes = [1, 32], strides = [1, 1]} : vector<1x128xf32> to vector<1x32xf32>
    %1160 = math.tanh %1159 : vector<1x32xf32>
    %1161 = vector.extract_strided_slice %1158 {offsets = [0, 32], sizes = [1, 32], strides = [1, 1]} : vector<1x96xf32> to vector<1x32xf32>
    %1162 = arith.mulf %1161, %1143 : vector<1x32xf32>
    %1163 = vector.extract_strided_slice %1158 {offsets = [0, 0], sizes = [1, 32], strides = [1, 1]} : vector<1x96xf32> to vector<1x32xf32>
    %1164 = arith.mulf %1163, %1160 : vector<1x32xf32>
    %1165 = arith.addf %1162, %1164 : vector<1x32xf32>
    %1166 = vector.extract_strided_slice %1158 {offsets = [0, 64], sizes = [1, 32], strides = [1, 1]} : vector<1x96xf32> to vector<1x32xf32>
    %1167 = math.tanh %1165 : vector<1x32xf32>
    %1168 = arith.mulf %1166, %1167 : vector<1x32xf32>
    %c9_433 = arith.constant 9 : index
    %c0_434 = arith.constant 0 : index
    %1169 = vector.load %arg22[%c9_433, %c0_434] : memref<16x32xf32, #tpu.memory_space<vmem>>, vector<1x32xf32>
    tpu.vector_store %arg22[%c9_433, %c0_434], %1168 {strides = array<i32>} : memref<16x32xf32, #tpu.memory_space<vmem>>, vector<1x32xf32>,
    %1170 = tpu.concatenate %1168, %1168 in 1 : vector<1x32xf32>, vector<1x32xf32> -> vector<1x64xf32>
    %c0_435 = arith.constant 0 : index
    %c0_436 = arith.constant 0 : index
    %1171 = vector.load %arg14[%c0_435, %c0_436] : memref<64x128xf32, #tpu.memory_space<vmem>>, vector<64x128xf32>
    %cst_437 = arith.constant dense<0.000000e+00> : vector<1x128xf32>
    %1172 = tpu.matmul %1170, %1171, %cst_437 {dimension_numbers = #tpu.dot_dimension_numbers<[1], [0], [0], [1], [0, 0, 1, 1], [], []>} : vector<1x64xf32>, vector<64x128xf32>, vector<1x128xf32> -> vector<1x128xf32>
    %c0_438 = arith.constant 0 : index
    %c0_439 = arith.constant 0 : index
    %1173 = vector.load %arg15[%c0_438, %c0_439] : memref<1x128xf32, #tpu.memory_space<vmem>>, vector<1x128xf32>
    %1174 = arith.addf %1172, %1173 : vector<1x128xf32>
    %1175 = vector.extract_strided_slice %1174 {offsets = [0, 0], sizes = [1, 96], strides = [1, 1]} : vector<1x128xf32> to vector<1x96xf32>
    %1176 = arith.negf %1175 : vector<1x96xf32>
    %1177 = math.exp %1176 : vector<1x96xf32>
    %cst_440 = arith.constant 1.000000e+00 : f32
    %1178 = vector.broadcast %cst_440 : f32 to vector<1x96xf32>
    %1179 = arith.addf %1178, %1177 : vector<1x96xf32>
    %1180 = arith.divf %1178, %1179 : vector<1x96xf32>
    %1181 = vector.extract_strided_slice %1174 {offsets = [0, 96], sizes = [1, 32], strides = [1, 1]} : vector<1x128xf32> to vector<1x32xf32>
    %1182 = math.tanh %1181 : vector<1x32xf32>
    %1183 = vector.extract_strided_slice %1180 {offsets = [0, 32], sizes = [1, 32], strides = [1, 1]} : vector<1x96xf32> to vector<1x32xf32>
    %1184 = arith.mulf %1183, %1165 : vector<1x32xf32>
    %1185 = vector.extract_strided_slice %1180 {offsets = [0, 0], sizes = [1, 32], strides = [1, 1]} : vector<1x96xf32> to vector<1x32xf32>
    %1186 = arith.mulf %1185, %1182 : vector<1x32xf32>
    %1187 = arith.addf %1184, %1186 : vector<1x32xf32>
    %1188 = vector.extract_strided_slice %1180 {offsets = [0, 64], sizes = [1, 32], strides = [1, 1]} : vector<1x96xf32> to vector<1x32xf32>
    %1189 = math.tanh %1187 : vector<1x32xf32>
    %1190 = arith.mulf %1188, %1189 : vector<1x32xf32>
    %c10_441 = arith.constant 10 : index
    %c0_442 = arith.constant 0 : index
    %1191 = vector.load %arg22[%c10_441, %c0_442] : memref<16x32xf32, #tpu.memory_space<vmem>>, vector<1x32xf32>
    tpu.vector_store %arg22[%c10_441, %c0_442], %1190 {strides = array<i32>} : memref<16x32xf32, #tpu.memory_space<vmem>>, vector<1x32xf32>,
    %1192 = tpu.concatenate %1190, %1190 in 1 : vector<1x32xf32>, vector<1x32xf32> -> vector<1x64xf32>
    %c0_443 = arith.constant 0 : index
    %c0_444 = arith.constant 0 : index
    %1193 = vector.load %arg14[%c0_443, %c0_444] : memref<64x128xf32, #tpu.memory_space<vmem>>, vector<64x128xf32>
    %cst_445 = arith.constant dense<0.000000e+00> : vector<1x128xf32>
    %1194 = tpu.matmul %1192, %1193, %cst_445 {dimension_numbers = #tpu.dot_dimension_numbers<[1], [0], [0], [1], [0, 0, 1, 1], [], []>} : vector<1x64xf32>, vector<64x128xf32>, vector<1x128xf32> -> vector<1x128xf32>
    %c0_446 = arith.constant 0 : index
    %c0_447 = arith.constant 0 : index
    %1195 = vector.load %arg15[%c0_446, %c0_447] : memref<1x128xf32, #tpu.memory_space<vmem>>, vector<1x128xf32>
    %1196 = arith.addf %1194, %1195 : vector<1x128xf32>
    %1197 = vector.extract_strided_slice %1196 {offsets = [0, 0], sizes = [1, 96], strides = [1, 1]} : vector<1x128xf32> to vector<1x96xf32>
    %1198 = arith.negf %1197 : vector<1x96xf32>
    %1199 = math.exp %1198 : vector<1x96xf32>
    %cst_448 = arith.constant 1.000000e+00 : f32
    %1200 = vector.broadcast %cst_448 : f32 to vector<1x96xf32>
    %1201 = arith.addf %1200, %1199 : vector<1x96xf32>
    %1202 = arith.divf %1200, %1201 : vector<1x96xf32>
    %1203 = vector.extract_strided_slice %1196 {offsets = [0, 96], sizes = [1, 32], strides = [1, 1]} : vector<1x128xf32> to vector<1x32xf32>
    %1204 = math.tanh %1203 : vector<1x32xf32>
    %1205 = vector.extract_strided_slice %1202 {offsets = [0, 32], sizes = [1, 32], strides = [1, 1]} : vector<1x96xf32> to vector<1x32xf32>
    %1206 = arith.mulf %1205, %1187 : vector<1x32xf32>
    %1207 = vector.extract_strided_slice %1202 {offsets = [0, 0], sizes = [1, 32], strides = [1, 1]} : vector<1x96xf32> to vector<1x32xf32>
    %1208 = arith.mulf %1207, %1204 : vector<1x32xf32>
    %1209 = arith.addf %1206, %1208 : vector<1x32xf32>
    %1210 = vector.extract_strided_slice %1202 {offsets = [0, 64], sizes = [1, 32], strides = [1, 1]} : vector<1x96xf32> to vector<1x32xf32>
    %1211 = math.tanh %1209 : vector<1x32xf32>
    %1212 = arith.mulf %1210, %1211 : vector<1x32xf32>
    %c11_449 = arith.constant 11 : index
    %c0_450 = arith.constant 0 : index
    %1213 = vector.load %arg22[%c11_449, %c0_450] : memref<16x32xf32, #tpu.memory_space<vmem>>, vector<1x32xf32>
    tpu.vector_store %arg22[%c11_449, %c0_450], %1212 {strides = array<i32>} : memref<16x32xf32, #tpu.memory_space<vmem>>, vector<1x32xf32>,
    %1214 = tpu.concatenate %1212, %1212 in 1 : vector<1x32xf32>, vector<1x32xf32> -> vector<1x64xf32>
    %c0_451 = arith.constant 0 : index
    %c0_452 = arith.constant 0 : index
    %1215 = vector.load %arg14[%c0_451, %c0_452] : memref<64x128xf32, #tpu.memory_space<vmem>>, vector<64x128xf32>
    %cst_453 = arith.constant dense<0.000000e+00> : vector<1x128xf32>
    %1216 = tpu.matmul %1214, %1215, %cst_453 {dimension_numbers = #tpu.dot_dimension_numbers<[1], [0], [0], [1], [0, 0, 1, 1], [], []>} : vector<1x64xf32>, vector<64x128xf32>, vector<1x128xf32> -> vector<1x128xf32>
    %c0_454 = arith.constant 0 : index
    %c0_455 = arith.constant 0 : index
    %1217 = vector.load %arg15[%c0_454, %c0_455] : memref<1x128xf32, #tpu.memory_space<vmem>>, vector<1x128xf32>
    %1218 = arith.addf %1216, %1217 : vector<1x128xf32>
    %1219 = vector.extract_strided_slice %1218 {offsets = [0, 0], sizes = [1, 96], strides = [1, 1]} : vector<1x128xf32> to vector<1x96xf32>
    %1220 = arith.negf %1219 : vector<1x96xf32>
    %1221 = math.exp %1220 : vector<1x96xf32>
    %cst_456 = arith.constant 1.000000e+00 : f32
    %1222 = vector.broadcast %cst_456 : f32 to vector<1x96xf32>
    %1223 = arith.addf %1222, %1221 : vector<1x96xf32>
    %1224 = arith.divf %1222, %1223 : vector<1x96xf32>
    %1225 = vector.extract_strided_slice %1218 {offsets = [0, 96], sizes = [1, 32], strides = [1, 1]} : vector<1x128xf32> to vector<1x32xf32>
    %1226 = math.tanh %1225 : vector<1x32xf32>
    %1227 = vector.extract_strided_slice %1224 {offsets = [0, 32], sizes = [1, 32], strides = [1, 1]} : vector<1x96xf32> to vector<1x32xf32>
    %1228 = arith.mulf %1227, %1209 : vector<1x32xf32>
    %1229 = vector.extract_strided_slice %1224 {offsets = [0, 0], sizes = [1, 32], strides = [1, 1]} : vector<1x96xf32> to vector<1x32xf32>
    %1230 = arith.mulf %1229, %1226 : vector<1x32xf32>
    %1231 = arith.addf %1228, %1230 : vector<1x32xf32>
    %1232 = vector.extract_strided_slice %1224 {offsets = [0, 64], sizes = [1, 32], strides = [1, 1]} : vector<1x96xf32> to vector<1x32xf32>
    %1233 = math.tanh %1231 : vector<1x32xf32>
    %1234 = arith.mulf %1232, %1233 : vector<1x32xf32>
    %c12_457 = arith.constant 12 : index
    %c0_458 = arith.constant 0 : index
    %1235 = vector.load %arg22[%c12_457, %c0_458] : memref<16x32xf32, #tpu.memory_space<vmem>>, vector<1x32xf32>
    tpu.vector_store %arg22[%c12_457, %c0_458], %1234 {strides = array<i32>} : memref<16x32xf32, #tpu.memory_space<vmem>>, vector<1x32xf32>,
    %1236 = tpu.concatenate %1234, %1234 in 1 : vector<1x32xf32>, vector<1x32xf32> -> vector<1x64xf32>
    %c0_459 = arith.constant 0 : index
    %c0_460 = arith.constant 0 : index
    %1237 = vector.load %arg14[%c0_459, %c0_460] : memref<64x128xf32, #tpu.memory_space<vmem>>, vector<64x128xf32>
    %cst_461 = arith.constant dense<0.000000e+00> : vector<1x128xf32>
    %1238 = tpu.matmul %1236, %1237, %cst_461 {dimension_numbers = #tpu.dot_dimension_numbers<[1], [0], [0], [1], [0, 0, 1, 1], [], []>} : vector<1x64xf32>, vector<64x128xf32>, vector<1x128xf32> -> vector<1x128xf32>
    %c0_462 = arith.constant 0 : index
    %c0_463 = arith.constant 0 : index
    %1239 = vector.load %arg15[%c0_462, %c0_463] : memref<1x128xf32, #tpu.memory_space<vmem>>, vector<1x128xf32>
    %1240 = arith.addf %1238, %1239 : vector<1x128xf32>
    %1241 = vector.extract_strided_slice %1240 {offsets = [0, 0], sizes = [1, 96], strides = [1, 1]} : vector<1x128xf32> to vector<1x96xf32>
    %1242 = arith.negf %1241 : vector<1x96xf32>
    %1243 = math.exp %1242 : vector<1x96xf32>
    %cst_464 = arith.constant 1.000000e+00 : f32
    %1244 = vector.broadcast %cst_464 : f32 to vector<1x96xf32>
    %1245 = arith.addf %1244, %1243 : vector<1x96xf32>
    %1246 = arith.divf %1244, %1245 : vector<1x96xf32>
    %1247 = vector.extract_strided_slice %1240 {offsets = [0, 96], sizes = [1, 32], strides = [1, 1]} : vector<1x128xf32> to vector<1x32xf32>
    %1248 = math.tanh %1247 : vector<1x32xf32>
    %1249 = vector.extract_strided_slice %1246 {offsets = [0, 32], sizes = [1, 32], strides = [1, 1]} : vector<1x96xf32> to vector<1x32xf32>
    %1250 = arith.mulf %1249, %1231 : vector<1x32xf32>
    %1251 = vector.extract_strided_slice %1246 {offsets = [0, 0], sizes = [1, 32], strides = [1, 1]} : vector<1x96xf32> to vector<1x32xf32>
    %1252 = arith.mulf %1251, %1248 : vector<1x32xf32>
    %1253 = arith.addf %1250, %1252 : vector<1x32xf32>
    %1254 = vector.extract_strided_slice %1246 {offsets = [0, 64], sizes = [1, 32], strides = [1, 1]} : vector<1x96xf32> to vector<1x32xf32>
    %1255 = math.tanh %1253 : vector<1x32xf32>
    %1256 = arith.mulf %1254, %1255 : vector<1x32xf32>
    %c13_465 = arith.constant 13 : index
    %c0_466 = arith.constant 0 : index
    %1257 = vector.load %arg22[%c13_465, %c0_466] : memref<16x32xf32, #tpu.memory_space<vmem>>, vector<1x32xf32>
    tpu.vector_store %arg22[%c13_465, %c0_466], %1256 {strides = array<i32>} : memref<16x32xf32, #tpu.memory_space<vmem>>, vector<1x32xf32>,
    %1258 = tpu.concatenate %1256, %1256 in 1 : vector<1x32xf32>, vector<1x32xf32> -> vector<1x64xf32>
    %c0_467 = arith.constant 0 : index
    %c0_468 = arith.constant 0 : index
    %1259 = vector.load %arg14[%c0_467, %c0_468] : memref<64x128xf32, #tpu.memory_space<vmem>>, vector<64x128xf32>
    %cst_469 = arith.constant dense<0.000000e+00> : vector<1x128xf32>
    %1260 = tpu.matmul %1258, %1259, %cst_469 {dimension_numbers = #tpu.dot_dimension_numbers<[1], [0], [0], [1], [0, 0, 1, 1], [], []>} : vector<1x64xf32>, vector<64x128xf32>, vector<1x128xf32> -> vector<1x128xf32>
    %c0_470 = arith.constant 0 : index
    %c0_471 = arith.constant 0 : index
    %1261 = vector.load %arg15[%c0_470, %c0_471] : memref<1x128xf32, #tpu.memory_space<vmem>>, vector<1x128xf32>
    %1262 = arith.addf %1260, %1261 : vector<1x128xf32>
    %1263 = vector.extract_strided_slice %1262 {offsets = [0, 0], sizes = [1, 96], strides = [1, 1]} : vector<1x128xf32> to vector<1x96xf32>
    %1264 = arith.negf %1263 : vector<1x96xf32>
    %1265 = math.exp %1264 : vector<1x96xf32>
    %cst_472 = arith.constant 1.000000e+00 : f32
    %1266 = vector.broadcast %cst_472 : f32 to vector<1x96xf32>
    %1267 = arith.addf %1266, %1265 : vector<1x96xf32>
    %1268 = arith.divf %1266, %1267 : vector<1x96xf32>
    %1269 = vector.extract_strided_slice %1262 {offsets = [0, 96], sizes = [1, 32], strides = [1, 1]} : vector<1x128xf32> to vector<1x32xf32>
    %1270 = math.tanh %1269 : vector<1x32xf32>
    %1271 = vector.extract_strided_slice %1268 {offsets = [0, 32], sizes = [1, 32], strides = [1, 1]} : vector<1x96xf32> to vector<1x32xf32>
    %1272 = arith.mulf %1271, %1253 : vector<1x32xf32>
    %1273 = vector.extract_strided_slice %1268 {offsets = [0, 0], sizes = [1, 32], strides = [1, 1]} : vector<1x96xf32> to vector<1x32xf32>
    %1274 = arith.mulf %1273, %1270 : vector<1x32xf32>
    %1275 = arith.addf %1272, %1274 : vector<1x32xf32>
    %1276 = vector.extract_strided_slice %1268 {offsets = [0, 64], sizes = [1, 32], strides = [1, 1]} : vector<1x96xf32> to vector<1x32xf32>
    %1277 = math.tanh %1275 : vector<1x32xf32>
    %1278 = arith.mulf %1276, %1277 : vector<1x32xf32>
    %c14_473 = arith.constant 14 : index
    %c0_474 = arith.constant 0 : index
    %1279 = vector.load %arg22[%c14_473, %c0_474] : memref<16x32xf32, #tpu.memory_space<vmem>>, vector<1x32xf32>
    tpu.vector_store %arg22[%c14_473, %c0_474], %1278 {strides = array<i32>} : memref<16x32xf32, #tpu.memory_space<vmem>>, vector<1x32xf32>,
    %1280 = tpu.concatenate %1278, %1278 in 1 : vector<1x32xf32>, vector<1x32xf32> -> vector<1x64xf32>
    %c0_475 = arith.constant 0 : index
    %c0_476 = arith.constant 0 : index
    %1281 = vector.load %arg14[%c0_475, %c0_476] : memref<64x128xf32, #tpu.memory_space<vmem>>, vector<64x128xf32>
    %cst_477 = arith.constant dense<0.000000e+00> : vector<1x128xf32>
    %1282 = tpu.matmul %1280, %1281, %cst_477 {dimension_numbers = #tpu.dot_dimension_numbers<[1], [0], [0], [1], [0, 0, 1, 1], [], []>} : vector<1x64xf32>, vector<64x128xf32>, vector<1x128xf32> -> vector<1x128xf32>
    %c0_478 = arith.constant 0 : index
    %c0_479 = arith.constant 0 : index
    %1283 = vector.load %arg15[%c0_478, %c0_479] : memref<1x128xf32, #tpu.memory_space<vmem>>, vector<1x128xf32>
    %1284 = arith.addf %1282, %1283 : vector<1x128xf32>
    %1285 = vector.extract_strided_slice %1284 {offsets = [0, 0], sizes = [1, 96], strides = [1, 1]} : vector<1x128xf32> to vector<1x96xf32>
    %1286 = arith.negf %1285 : vector<1x96xf32>
    %1287 = math.exp %1286 : vector<1x96xf32>
    %cst_480 = arith.constant 1.000000e+00 : f32
    %1288 = vector.broadcast %cst_480 : f32 to vector<1x96xf32>
    %1289 = arith.addf %1288, %1287 : vector<1x96xf32>
    %1290 = arith.divf %1288, %1289 : vector<1x96xf32>
    %1291 = vector.extract_strided_slice %1284 {offsets = [0, 96], sizes = [1, 32], strides = [1, 1]} : vector<1x128xf32> to vector<1x32xf32>
    %1292 = math.tanh %1291 : vector<1x32xf32>
    %1293 = vector.extract_strided_slice %1290 {offsets = [0, 32], sizes = [1, 32], strides = [1, 1]} : vector<1x96xf32> to vector<1x32xf32>
    %1294 = arith.mulf %1293, %1275 : vector<1x32xf32>
    %1295 = vector.extract_strided_slice %1290 {offsets = [0, 0], sizes = [1, 32], strides = [1, 1]} : vector<1x96xf32> to vector<1x32xf32>
    %1296 = arith.mulf %1295, %1292 : vector<1x32xf32>
    %1297 = arith.addf %1294, %1296 : vector<1x32xf32>
    %1298 = vector.extract_strided_slice %1290 {offsets = [0, 64], sizes = [1, 32], strides = [1, 1]} : vector<1x96xf32> to vector<1x32xf32>
    %1299 = math.tanh %1297 : vector<1x32xf32>
    %1300 = arith.mulf %1298, %1299 : vector<1x32xf32>
    %c15_481 = arith.constant 15 : index
    %c0_482 = arith.constant 0 : index
    %1301 = vector.load %arg22[%c15_481, %c0_482] : memref<16x32xf32, #tpu.memory_space<vmem>>, vector<1x32xf32>
    tpu.vector_store %arg22[%c15_481, %c0_482], %1300 {strides = array<i32>} : memref<16x32xf32, #tpu.memory_space<vmem>>, vector<1x32xf32>,
    %c0_483 = arith.constant 0 : index
    %c0_484 = arith.constant 0 : index
    %1302 = vector.load %arg22[%c0_483, %c0_484] : memref<16x32xf32, #tpu.memory_space<vmem>>, vector<16x32xf32>
    %c0_485 = arith.constant 0 : index
    %c0_486 = arith.constant 0 : index
    %1303 = vector.load %arg16[%c0_485, %c0_486] : memref<32x8xf32, #tpu.memory_space<vmem>>, vector<32x8xf32>
    %cst_487 = arith.constant dense<0.000000e+00> : vector<16x8xf32>
    %1304 = tpu.matmul %1302, %1303, %cst_487 {dimension_numbers = #tpu.dot_dimension_numbers<[1], [0], [0], [1], [0, 0, 1, 1], [], []>} : vector<16x32xf32>, vector<32x8xf32>, vector<16x8xf32> -> vector<16x8xf32>
    %c0_488 = arith.constant 0 : index
    %c0_489 = arith.constant 0 : index
    %1305 = vector.load %arg17[%c0_488, %c0_489] : memref<1x8xf32, #tpu.memory_space<vmem>>, vector<1x8xf32>
    %1306 = vector.broadcast %1305 : vector<1x8xf32> to vector<16x8xf32>
    %1307 = arith.addf %1304, %1306 : vector<16x8xf32>
    %1308 = arith.negf %1307 : vector<16x8xf32>
    %1309 = math.exp %1308 : vector<16x8xf32>
    %cst_490 = arith.constant 1.000000e+00 : f32
    %1310 = vector.broadcast %cst_490 : f32 to vector<16x8xf32>
    %1311 = arith.addf %1310, %1309 : vector<16x8xf32>
    %1312 = arith.divf %1310, %1311 : vector<16x8xf32>
    %cst_491 = arith.constant 4.000000e+01 : f32
    %1313 = vector.broadcast %cst_491 : f32 to vector<16x8xf32>
    %1314 = arith.mulf %1312, %1313 : vector<16x8xf32>
    %cst_492 = arith.constant -4.000000e+01 : f32
    %1315 = vector.broadcast %cst_492 : f32 to vector<16x8xf32>
    %1316 = arith.addf %1314, %1315 : vector<16x8xf32>
    %1317 = tpu.transpose %1316, [1, 0] : vector<16x8xf32> -> vector<8x16xf32>
    %c0_493 = arith.constant 0 : index
    %c0_494 = arith.constant 0 : index
    %1318 = vector.load %arg18[%c0_493, %c0_494] : memref<8x16xf32, #tpu.memory_space<vmem>>, vector<8x16xf32>
    tpu.vector_store %arg18[%c0_493, %c0_494], %1317 {strides = array<i32>} : memref<8x16xf32, #tpu.memory_space<vmem>>, vector<8x16xf32>,
    return
  }
}

</mosaic_0001>

<llo_original>
// kernel: _lambda_.1
$region0: #{_lambda_.1}
  #allocation0 [shape = 'u32[]', space=smem, size = 0x4, offset = 0x4, fixed_abs, tag = 'smem constant byte address 0x4 - core index']
  #allocation1 [shape = 'u32[144,128]{1,0:T(1,128)}', space=vmem, size = 0x12000, scoped, tag = 'internal scratch']
  #allocation2 [shape = 'f32[16,32]{1,0:T(8,128)}', space=vmem, size = 0x2000, scoped, tag = 'scratch operand']
  #allocation3 [shape = 'f32[16,128]{1,0:T(8,128)}', space=vmem, size = 0x2000, scoped, tag = 'scratch operand']
  #allocation4 [shape = 'f32[16,32]{1,0:T(8,128)}', space=vmem, size = 0x2000, scoped, tag = 'scratch operand']
  %s0 = inlined_call_operand.vmem [shape: f32[48,16], index: 0, kind: input, shape index: {}]
  %s1 = inlined_call_operand.hbm [shape: f32[8,16], index: 1, kind: input, shape index: {}]
  %s2 = inlined_call_operand.vmem [shape: f32[256,48], index: 2, kind: input, shape index: {}]
  %s3 = inlined_call_operand.vmem [shape: f32[256,1], index: 3, kind: input, shape index: {}]
  %s4 = inlined_call_operand.vmem [shape: f32[256,1], index: 4, kind: input, shape index: {}]
  %s5 = inlined_call_operand.vmem [shape: f32[16,256], index: 5, kind: input, shape index: {}]
  %s6 = inlined_call_operand.hbm [shape: f32[24,128], index: 6, kind: input, shape index: {}]
  %s7 = inlined_call_operand.hbm [shape: f32[16,128], index: 7, kind: input, shape index: {}]
  %s8 = inlined_call_operand.vmem [shape: f32[1,128], index: 8, kind: input, shape index: {}]
  %s9 = inlined_call_operand.vmem [shape: f32[32,128], index: 9, kind: input, shape index: {}]
  %s10 = inlined_call_operand.vmem [shape: f32[16,128], index: 10, kind: input, shape index: {}]
  %s11 = inlined_call_operand.vmem [shape: f32[1,128], index: 11, kind: input, shape index: {}]
  %s12 = inlined_call_operand.vmem [shape: f32[64,32], index: 12, kind: input, shape index: {}]
  %s13 = inlined_call_operand.vmem [shape: f32[1,32], index: 13, kind: input, shape index: {}]
  %s14 = inlined_call_operand.vmem [shape: f32[64,128], index: 14, kind: input, shape index: {}]
  %s15 = inlined_call_operand.vmem [shape: f32[1,128], index: 15, kind: input, shape index: {}]
  %s16 = inlined_call_operand.vmem [shape: f32[32,8], index: 16, kind: input, shape index: {}]
  %s17 = inlined_call_operand.vmem [shape: f32[1,8], index: 17, kind: input, shape index: {}]
  %s18 = inlined_call_operand.hbm [shape: f32[8,16], index: 18, kind: output, shape index: {0}]
  %s19 = inlined_call_operand.hbm [shape: f32[1,32], index: 19, kind: output, shape index: {1}]
  %20 = xla_tuple %s18, %s19
  %s21 = sld [smem:[#allocation0]]
  $region102: #{_lambda_.1} parent=0
    _
  %s23 = ssub.s32 1, %s21
  %s24 = scalar_select 0, %s23, %s21
  $region1: #{_lambda_.1} parent=0
    #allocation5 [shape = 'u8[4096]{0}', space=vmem, size = 0x1000, scoped, tag = 'input window, operand 1, single buffered']
    #allocation6 [shape = 's32[1]{0}', space=sflag, size = 0x4, scoped, tag = 'scoped memory for _lambda_.1']
    #allocation7 [shape = 's32[1]{0}', space=sflag, size = 0x4, scoped, tag = 'scoped memory for _lambda_.1']
    #allocation8 [shape = 'u8[12288]{0}', space=vmem, size = 0x3000, scoped, tag = 'input window, operand 6, single buffered']
    #allocation9 [shape = 's32[1]{0}', space=sflag, size = 0x4, scoped, tag = 'scoped memory for _lambda_.1']
    #allocation10 [shape = 'u8[8192]{0}', space=vmem, size = 0x2000, scoped, tag = 'input window, operand 7, single buffered']
    #allocation11 [shape = 'u8[4096]{0}', space=vmem, size = 0x1000, scoped, tag = 'output window, operand 0, single buffered']
    #allocation12 [shape = 'u8[512]{0}', space=vmem, size = 0x400, scoped, tag = 'output window, operand 1, single buffered']
    #allocation13 [shape = 's32[1]{0}', space=sflag, size = 0x4, scoped, tag = 'scoped memory for _lambda_.1']
    %25 = vsyncpa [#allocation6], 0
    %26 = vsyncpa [#allocation9], 0
    %27 = vsyncpa [#allocation7], 0
    %28 = vsyncpa [#allocation13], 0
    // Predicated region
    $region2: #{_lambda_.1} parent=1 // pred_check
      _
    $region3: #{_lambda_.1} parent=1 // pred_check_branch
      %30 = sbr.rel (0) target = $region5
    $region4: #{_lambda_.1} parent=1 // pred_region
      _
    $region5: #{_lambda_.1} parent=1 // pred_fallthru
      _
    // Predicated region
    $region6: #{_lambda_.1} parent=1 // pred_check
      _
    $region7: #{_lambda_.1} parent=1 // pred_check_branch
      %32 = sbr.rel (0) target = $region9
    $region8: #{_lambda_.1} parent=1 // pred_region
      %s34 = ssub.s32 128, 128
      %35 = vsyncadd [#allocation6], %s34
      %s37 = sshll.u32 [#allocation5], 4
      %s38 = int_to_ptr.vmem [resolvable:$true] %s37
      %40 = dma.hbm_to_vmem [thread:$0]  %s1, 128, %s38, [#allocation6]
    $region9: #{_lambda_.1} parent=1 // pred_fallthru
      _
    // Predicated region
    $region10: #{_lambda_.1} parent=1 // pred_check
      _
    $region11: #{_lambda_.1} parent=1 // pred_check_branch
      %42 = sbr.rel (0) target = $region13
    $region12: #{_lambda_.1} parent=1 // pred_region
      _
    $region13: #{_lambda_.1} parent=1 // pred_fallthru
      _
    // Predicated region
    $region14: #{_lambda_.1} parent=1 // pred_check
      _
    $region15: #{_lambda_.1} parent=1 // pred_check_branch
      %44 = sbr.rel (0) target = $region17
    $region16: #{_lambda_.1} parent=1 // pred_region
      _
    $region17: #{_lambda_.1} parent=1 // pred_fallthru
      _
    // Predicated region
    $region18: #{_lambda_.1} parent=1 // pred_check
      _
    $region19: #{_lambda_.1} parent=1 // pred_check_branch
      %46 = sbr.rel (0) target = $region21
    $region20: #{_lambda_.1} parent=1 // pred_region
      _
    $region21: #{_lambda_.1} parent=1 // pred_fallthru
      _
    // Predicated region
    $region22: #{_lambda_.1} parent=1 // pred_check
      _
    $region23: #{_lambda_.1} parent=1 // pred_check_branch
      %48 = sbr.rel (0) target = $region25
    $region24: #{_lambda_.1} parent=1 // pred_region
      _
    $region25: #{_lambda_.1} parent=1 // pred_fallthru
      _
    // Predicated region
    $region26: #{_lambda_.1} parent=1 // pred_check
      _
    $region27: #{_lambda_.1} parent=1 // pred_check_branch
      %50 = sbr.rel (0) target = $region29
    $region28: #{_lambda_.1} parent=1 // pred_region
      %s52 = ssub.s32 384, 384
      %53 = vsyncadd [#allocation9], %s52
      %s54 = sshll.u32 [#allocation8], 4
      %s55 = int_to_ptr.vmem [resolvable:$true] %s54
      %60 = dma.hbm_to_vmem [thread:$0]  %s6, 384, %s55, [#allocation9], 128, 128, 8
    $region29: #{_lambda_.1} parent=1 // pred_fallthru
      _
    // Predicated region
    $region30: #{_lambda_.1} parent=1 // pred_check
      _
    $region31: #{_lambda_.1} parent=1 // pred_check_branch
      %62 = sbr.rel (0) target = $region33
    $region32: #{_lambda_.1} parent=1 // pred_region
      %s64 = ssub.s32 256, 256
      %65 = vsyncadd [#allocation9], %s64
      %s66 = sshll.u32 [#allocation10], 4
      %s67 = int_to_ptr.vmem [resolvable:$true] %s66
      %72 = dma.hbm_to_vmem [thread:$0]  %s7, 256, %s67, [#allocation9], 128, 128, 8
    $region33: #{_lambda_.1} parent=1 // pred_fallthru
      _
    // Predicated region
    $region34: #{_lambda_.1} parent=1 // pred_check
      _
    $region35: #{_lambda_.1} parent=1 // pred_check_branch
      %74 = sbr.rel (0) target = $region37
    $region36: #{_lambda_.1} parent=1 // pred_region
      _
    $region37: #{_lambda_.1} parent=1 // pred_fallthru
      _
    // Predicated region
    $region38: #{_lambda_.1} parent=1 // pred_check
      _
    $region39: #{_lambda_.1} parent=1 // pred_check_branch
      %76 = sbr.rel (0) target = $region41
    $region40: #{_lambda_.1} parent=1 // pred_region
      _
    $region41: #{_lambda_.1} parent=1 // pred_fallthru
      _
    // Predicated region
    $region42: #{_lambda_.1} parent=1 // pred_check
      _
    $region43: #{_lambda_.1} parent=1 // pred_check_branch
      %78 = sbr.rel (0) target = $region45
    $region44: #{_lambda_.1} parent=1 // pred_region
      _
    $region45: #{_lambda_.1} parent=1 // pred_fallthru
      _
    // Predicated region
    $region46: #{_lambda_.1} parent=1 // pred_check
      _
    $region47: #{_lambda_.1} parent=1 // pred_check_branch
      %80 = sbr.rel (0) target = $region49
    $region48: #{_lambda_.1} parent=1 // pred_region
      _
    $region49: #{_lambda_.1} parent=1 // pred_fallthru
      _
    // Predicated region
    $region50: #{_lambda_.1} parent=1 // pred_check
      _
    $region51: #{_lambda_.1} parent=1 // pred_check_branch
      %82 = sbr.rel (0) target = $region53
    $region52: #{_lambda_.1} parent=1 // pred_region
      _
    $region53: #{_lambda_.1} parent=1 // pred_fallthru
      _
    // Predicated region
    $region54: #{_lambda_.1} parent=1 // pred_check
      _
    $region55: #{_lambda_.1} parent=1 // pred_check_branch
      %84 = sbr.rel (0) target = $region57
    $region56: #{_lambda_.1} parent=1 // pred_region
      _
    $region57: #{_lambda_.1} parent=1 // pred_fallthru
      _
    // Predicated region
    $region58: #{_lambda_.1} parent=1 // pred_check
      _
    $region59: #{_lambda_.1} parent=1 // pred_check_branch
      %86 = sbr.rel (0) target = $region61
    $region60: #{_lambda_.1} parent=1 // pred_region
      _
    $region61: #{_lambda_.1} parent=1 // pred_fallthru
      _
    // Predicated region
    $region62: #{_lambda_.1} parent=1 // pred_check
      _
    $region63: #{_lambda_.1} parent=1 // pred_check_branch
      %88 = sbr.rel (0) target = $region65
    $region64: #{_lambda_.1} parent=1 // pred_region
      _
    $region65: #{_lambda_.1} parent=1 // pred_fallthru
      _
    // Predicated region
    $region66: #{_lambda_.1} parent=1 // pred_check
      _
    $region67: #{_lambda_.1} parent=1 // pred_check_branch
      %90 = sbr.rel (0) target = $region69
    $region68: #{_lambda_.1} parent=1 // pred_region
      _
    $region69: #{_lambda_.1} parent=1 // pred_fallthru
      _
    // Predicated region
    $region70: #{_lambda_.1} parent=1 // pred_check
      _
    $region71: #{_lambda_.1} parent=1 // pred_check_branch
      %92 = sbr.rel (0) target = $region73
    $region72: #{_lambda_.1} parent=1 // pred_region
      _
    $region73: #{_lambda_.1} parent=1 // pred_fallthru
      _
    // Predicated region
    $region74: #{_lambda_.1} parent=1 // pred_check
      _
    $region75: #{_lambda_.1} parent=1 // pred_check_branch
      %94 = sbr.rel (0) target = $region77
    $region76: #{_lambda_.1} parent=1 // pred_region
      %95 = dma.done [#allocation6], 128
    $region77: #{_lambda_.1} parent=1 // pred_fallthru
      _
    // Predicated region
    $region78: #{_lambda_.1} parent=1 // pred_check
      _
    $region79: #{_lambda_.1} parent=1 // pred_check_branch
      %97 = sbr.rel (0) target = $region81
    $region80: #{_lambda_.1} parent=1 // pred_region
      %98 = dma.done [#allocation9], 384
    $region81: #{_lambda_.1} parent=1 // pred_fallthru
      _
    // Predicated region
    $region82: #{_lambda_.1} parent=1 // pred_check
      _
    $region83: #{_lambda_.1} parent=1 // pred_check_branch
      %100 = sbr.rel (0) target = $region85
    $region84: #{_lambda_.1} parent=1 // pred_region
      %101 = dma.done [#allocation9], 256
    $region85: #{_lambda_.1} parent=1 // pred_fallthru
      _
    %v102 = vld [vmem:[%s2] sm:$0xff]
    %v103 = vld [vmem:[%s2 + $0x8] sm:$0xff]
    %v104 = vld [vmem:[%s2 + $0x10] sm:$0xff]
    %v105 = vld [vmem:[%s2 + $0x18] sm:$0xff]
    %v106 = vld [vmem:[%s2 + $0x20] sm:$0xff]
    %v107 = vld [vmem:[%s2 + $0x28] sm:$0xff]
    %v108 = vld [vmem:[%s2 + $0x30] sm:$0xff]
    %v109 = vld [vmem:[%s2 + $0x38] sm:$0xff]
    %v110 = vld [vmem:[%s2 + $0x40] sm:$0xff]
    %v111 = vld [vmem:[%s2 + $0x48] sm:$0xff]
    %v112 = vld [vmem:[%s2 + $0x50] sm:$0xff]
    %v113 = vld [vmem:[%s2 + $0x58] sm:$0xff]
    %v114 = vld [vmem:[%s2 + $0x60] sm:$0xff]
    %v115 = vld [vmem:[%s2 + $0x68] sm:$0xff]
    %v116 = vld [vmem:[%s2 + $0x70] sm:$0xff]
    %v117 = vld [vmem:[%s2 + $0x78] sm:$0xff]
    %v118 = vld [vmem:[%s2 + $0x80] sm:$0xff]
    %v119 = vld [vmem:[%s2 + $0x88] sm:$0xff]
    %v120 = vld [vmem:[%s2 + $0x90] sm:$0xff]
    %v121 = vld [vmem:[%s2 + $0x98] sm:$0xff]
    %v122 = vld [vmem:[%s2 + $0xa0] sm:$0xff]
    %v123 = vld [vmem:[%s2 + $0xa8] sm:$0xff]
    %v124 = vld [vmem:[%s2 + $0xb0] sm:$0xff]
    %v125 = vld [vmem:[%s2 + $0xb8] sm:$0xff]
    %v126 = vld [vmem:[%s2 + $0xc0] sm:$0xff]
    %v127 = vld [vmem:[%s2 + $0xc8] sm:$0xff]
    %v128 = vld [vmem:[%s2 + $0xd0] sm:$0xff]
    %v129 = vld [vmem:[%s2 + $0xd8] sm:$0xff]
    %v130 = vld [vmem:[%s2 + $0xe0] sm:$0xff]
    %v131 = vld [vmem:[%s2 + $0xe8] sm:$0xff]
    %v132 = vld [vmem:[%s2 + $0xf0] sm:$0xff]
    %v133 = vld [vmem:[%s2 + $0xf8] sm:$0xff]
    %v134 = vld [vmem:[%s0] sm:$0xff]
    %v135 = vld [vmem:[%s0 + $0x8] sm:$0xff]
    %v136 = vld [vmem:[%s0 + $0x10] sm:$0xff]
    %v137 = vld [vmem:[%s0 + $0x18] sm:$0xff]
    %v138 = vld [vmem:[%s0 + $0x20] sm:$0xff]
    %v139 = vld [vmem:[%s0 + $0x28] sm:$0xff]
    %vm140 = vcmask 392192
    %v142 = vsel %vm140, %v102, 0
    %v145 = vsel %vm140, %v103, 0
    %v148 = vsel %vm140, %v104, 0
    %v151 = vsel %vm140, %v105, 0
    %v154 = vsel %vm140, %v106, 0
    %v157 = vsel %vm140, %v107, 0
    %v160 = vsel %vm140, %v108, 0
    %v163 = vsel %vm140, %v109, 0
    %v166 = vsel %vm140, %v110, 0
    %v169 = vsel %vm140, %v111, 0
    %v172 = vsel %vm140, %v112, 0
    %v175 = vsel %vm140, %v113, 0
    %v178 = vsel %vm140, %v114, 0
    %v181 = vsel %vm140, %v115, 0
    %v184 = vsel %vm140, %v116, 0
    %v187 = vsel %vm140, %v117, 0
    %v190 = vsel %vm140, %v118, 0
    %v193 = vsel %vm140, %v119, 0
    %v196 = vsel %vm140, %v120, 0
    %v199 = vsel %vm140, %v121, 0
    %v202 = vsel %vm140, %v122, 0
    %v205 = vsel %vm140, %v123, 0
    %v208 = vsel %vm140, %v124, 0
    %v211 = vsel %vm140, %v125, 0
    %v214 = vsel %vm140, %v126, 0
    %v217 = vsel %vm140, %v127, 0
    %v220 = vsel %vm140, %v128, 0
    %v223 = vsel %vm140, %v129, 0
    %v226 = vsel %vm140, %v130, 0
    %v229 = vsel %vm140, %v131, 0
    %v232 = vsel %vm140, %v132, 0
    %v235 = vsel %vm140, %v133, 0
    %237 = vmatprep.subr.mxu0 0.0
    %238 = vmatpush1.msra.mxu0 %v134
    %239 = vmatprep.subr.mxu0 0.0
    %240 = vmatpush1.msra.mxu0 %v135
    %241 = vmatprep.subr.mxu0 0.0
    %242 = vmatpush1.msra.mxu0 %v136
    %243 = vmatprep.subr.mxu0 0.0
    %244 = vmatpush1.msra.mxu0 %v137
    %245 = vmatprep.subr.mxu0 0.0
    %246 = vmatpush1.msra.mxu0 %v138
    %247 = vmatprep.subr.mxu0 0.0
    %248 = vmatpush1.msra.mxu0 %v139
    %249 = vmatprep.subr.mxu0 0.0
    %250 = vmatpush1.msra.mxu0 0.0
    %251 = vmatprep.subr.mxu0 0.0
    %252 = vmatpush1.msra.mxu0 0.0
    %253 = vmatprep.subr.mxu0 0.0
    %254 = vmatpush1.msra.mxu0 0.0
    %255 = vmatprep.subr.mxu0 0.0
    %256 = vmatpush1.msra.mxu0 0.0
    %257 = vmatprep.subr.mxu0 0.0
    %258 = vmatpush1.msra.mxu0 0.0
    %259 = vmatprep.subr.mxu0 0.0
    %260 = vmatpush1.msra.mxu0 0.0
    %261 = vmatprep.subr.mxu0 0.0
    %262 = vmatpush1.msra.mxu0 0.0
    %263 = vmatprep.subr.mxu0 0.0
    %264 = vmatpush1.msra.mxu0 0.0
    %265 = vmatprep.subr.mxu0 0.0
    %266 = vmatpush1.msra.mxu0 0.0
    %267 = vmatprep.subr.mxu0 0.0
    %268 = vmatpush1.msra.mxu0 0.0
    %269 = vmatprep.subr.mxu0 0.0
    %270 = vmatpush1.msra.mxu0 0.0
    %271 = vmatprep.subr.mxu0 0.0
    %272 = vmatpush1.msra.mxu0 0.0
    %273 = vmatprep.subr.mxu0 0.0
    %274 = vmatpush1.msra.mxu0 0.0
    %275 = vmatprep.subr.mxu0 0.0
    %276 = vmatpush1.msra.mxu0 0.0
    %277 = vmatprep.subr.mxu0 0.0
    %278 = vmatpush1.msra.mxu0 0.0
    %279 = vmatprep.subr.mxu0 0.0
    %280 = vmatpush1.msra.mxu0 0.0
    %281 = vmatprep.subr.mxu0 0.0
    %282 = vmatpush1.msra.mxu0 0.0
    %283 = vmatprep.subr.mxu0 0.0
    %284 = vmatpush1.msra.mxu0 0.0
    %285 = vmatprep.subr.mxu0 0.0
    %286 = vmatpush1.msra.mxu0 0.0
    %287 = vmatprep.subr.mxu0 0.0
    %288 = vmatpush1.msra.mxu0 0.0
    %289 = vmatprep.subr.mxu0 0.0
    %290 = vmatpush1.msra.mxu0 0.0
    %291 = vmatprep.subr.mxu0 0.0
    %292 = vmatpush1.msra.mxu0 0.0
    %293 = vmatprep.subr.mxu0 0.0
    %294 = vmatpush1.msra.mxu0 0.0
    %295 = vmatprep.subr.mxu0 0.0
    %296 = vmatpush1.msra.mxu0 0.0
    %297 = vmatprep.subr.mxu0 0.0
    %298 = vmatpush1.msra.mxu0 0.0
    %299 = vmatprep.subr.mxu0 0.0
    %300 = vmatpush1.msra.mxu0 0.0
    %301 = vmatprep.mubr.f32.mxu0 0.0
    %302 = vmatmul.mubr.f32.gmra.mrb[0].mxu0 %v142
    %v303 = vpop.f32.mrb[0].mxu0
    %v304 = vadd.f32 0.0, %v303
    %v305 = vpop.f32.mrb[0].mxu0
    %306 = vmatprep.mubr.f32.mxu0 0.0
    %307 = vmatmul.mubr.f32.gmra.mrb[0].mxu0 %v145
    %v308 = vpop.f32.mrb[0].mxu0
    %v309 = vadd.f32 0.0, %v308
    %v310 = vpop.f32.mrb[0].mxu0
    %311 = vmatprep.mubr.f32.mxu0 0.0
    %312 = vmatmul.mubr.f32.gmra.mrb[0].mxu0 %v148
    %v313 = vpop.f32.mrb[0].mxu0
    %v314 = vadd.f32 0.0, %v313
    %v315 = vpop.f32.mrb[0].mxu0
    %316 = vmatprep.mubr.f32.mxu0 0.0
    %317 = vmatmul.mubr.f32.gmra.mrb[0].mxu0 %v151
    %v318 = vpop.f32.mrb[0].mxu0
    %v319 = vadd.f32 0.0, %v318
    %v320 = vpop.f32.mrb[0].mxu0
    %321 = vmatprep.mubr.f32.mxu0 0.0
    %322 = vmatmul.mubr.f32.gmra.mrb[0].mxu0 %v154
    %v323 = vpop.f32.mrb[0].mxu0
    %v324 = vadd.f32 0.0, %v323
    %v325 = vpop.f32.mrb[0].mxu0
    %326 = vmatprep.mubr.f32.mxu0 0.0
    %327 = vmatmul.mubr.f32.gmra.mrb[0].mxu0 %v157
    %v328 = vpop.f32.mrb[0].mxu0
    %v329 = vadd.f32 0.0, %v328
    %v330 = vpop.f32.mrb[0].mxu0
    %331 = vmatprep.mubr.f32.mxu0 0.0
    %332 = vmatmul.mubr.f32.gmra.mrb[0].mxu0 %v160
    %v333 = vpop.f32.mrb[0].mxu0
    %v334 = vadd.f32 0.0, %v333
    %v335 = vpop.f32.mrb[0].mxu0
    %336 = vmatprep.mubr.f32.mxu0 0.0
    %337 = vmatmul.mubr.f32.gmra.mrb[0].mxu0 %v163
    %v338 = vpop.f32.mrb[0].mxu0
    %v339 = vadd.f32 0.0, %v338
    %v340 = vpop.f32.mrb[0].mxu0
    %341 = vmatprep.mubr.f32.mxu0 0.0
    %342 = vmatmul.mubr.f32.gmra.mrb[0].mxu0 %v166
    %v343 = vpop.f32.mrb[0].mxu0
    %v344 = vadd.f32 0.0, %v343
    %v345 = vpop.f32.mrb[0].mxu0
    %346 = vmatprep.mubr.f32.mxu0 0.0
    %347 = vmatmul.mubr.f32.gmra.mrb[0].mxu0 %v169
    %v348 = vpop.f32.mrb[0].mxu0
    %v349 = vadd.f32 0.0, %v348
    %v350 = vpop.f32.mrb[0].mxu0
    %351 = vmatprep.mubr.f32.mxu0 0.0
    %352 = vmatmul.mubr.f32.gmra.mrb[0].mxu0 %v172
    %v353 = vpop.f32.mrb[0].mxu0
    %v354 = vadd.f32 0.0, %v353
    %v355 = vpop.f32.mrb[0].mxu0
    %356 = vmatprep.mubr.f32.mxu0 0.0
    %357 = vmatmul.mubr.f32.gmra.mrb[0].mxu0 %v175
    %v358 = vpop.f32.mrb[0].mxu0
    %v359 = vadd.f32 0.0, %v358
    %v360 = vpop.f32.mrb[0].mxu0
    %361 = vmatprep.mubr.f32.mxu0 0.0
    %362 = vmatmul.mubr.f32.gmra.mrb[0].mxu0 %v178
    %v363 = vpop.f32.mrb[0].mxu0
    %v364 = vadd.f32 0.0, %v363
    %v365 = vpop.f32.mrb[0].mxu0
    %366 = vmatprep.mubr.f32.mxu0 0.0
    %367 = vmatmul.mubr.f32.gmra.mrb[0].mxu0 %v181
    %v368 = vpop.f32.mrb[0].mxu0
    %v369 = vadd.f32 0.0, %v368
    %v370 = vpop.f32.mrb[0].mxu0
    %371 = vmatprep.mubr.f32.mxu0 0.0
    %372 = vmatmul.mubr.f32.gmra.mrb[0].mxu0 %v184
    %v373 = vpop.f32.mrb[0].mxu0
    %v374 = vadd.f32 0.0, %v373
    %v375 = vpop.f32.mrb[0].mxu0
    %376 = vmatprep.mubr.f32.mxu0 0.0
    %377 = vmatmul.mubr.f32.gmra.mrb[0].mxu0 %v187
    %v378 = vpop.f32.mrb[0].mxu0
    %v379 = vadd.f32 0.0, %v378
    %v380 = vpop.f32.mrb[0].mxu0
    %381 = vmatprep.mubr.f32.mxu0 0.0
    %382 = vmatmul.mubr.f32.gmra.mrb[0].mxu0 %v190
    %v383 = vpop.f32.mrb[0].mxu0
    %v384 = vadd.f32 0.0, %v383
    %v385 = vpop.f32.mrb[0].mxu0
    %386 = vmatprep.mubr.f32.mxu0 0.0
    %387 = vmatmul.mubr.f32.gmra.mrb[0].mxu0 %v193
    %v388 = vpop.f32.mrb[0].mxu0
    %v389 = vadd.f32 0.0, %v388
    %v390 = vpop.f32.mrb[0].mxu0
    %391 = vmatprep.mubr.f32.mxu0 0.0
    %392 = vmatmul.mubr.f32.gmra.mrb[0].mxu0 %v196
    %v393 = vpop.f32.mrb[0].mxu0
    %v394 = vadd.f32 0.0, %v393
    %v395 = vpop.f32.mrb[0].mxu0
    %396 = vmatprep.mubr.f32.mxu0 0.0
    %397 = vmatmul.mubr.f32.gmra.mrb[0].mxu0 %v199
    %v398 = vpop.f32.mrb[0].mxu0
    %v399 = vadd.f32 0.0, %v398
    %v400 = vpop.f32.mrb[0].mxu0
    %401 = vmatprep.mubr.f32.mxu0 0.0
    %402 = vmatmul.mubr.f32.gmra.mrb[0].mxu0 %v202
    %v403 = vpop.f32.mrb[0].mxu0
    %v404 = vadd.f32 0.0, %v403
    %v405 = vpop.f32.mrb[0].mxu0
    %406 = vmatprep.mubr.f32.mxu0 0.0
    %407 = vmatmul.mubr.f32.gmra.mrb[0].mxu0 %v205
    %v408 = vpop.f32.mrb[0].mxu0
    %v409 = vadd.f32 0.0, %v408
    %v410 = vpop.f32.mrb[0].mxu0
    %411 = vmatprep.mubr.f32.mxu0 0.0
    %412 = vmatmul.mubr.f32.gmra.mrb[0].mxu0 %v208
    %v413 = vpop.f32.mrb[0].mxu0
    %v414 = vadd.f32 0.0, %v413
    %v415 = vpop.f32.mrb[0].mxu0
    %416 = vmatprep.mubr.f32.mxu0 0.0
    %417 = vmatmul.mubr.f32.gmra.mrb[0].mxu0 %v211
    %v418 = vpop.f32.mrb[0].mxu0
    %v419 = vadd.f32 0.0, %v418
    %v420 = vpop.f32.mrb[0].mxu0
    %421 = vmatprep.mubr.f32.mxu0 0.0
    %422 = vmatmul.mubr.f32.gmra.mrb[0].mxu0 %v214
    %v423 = vpop.f32.mrb[0].mxu0
    %v424 = vadd.f32 0.0, %v423
    %v425 = vpop.f32.mrb[0].mxu0
    %426 = vmatprep.mubr.f32.mxu0 0.0
    %427 = vmatmul.mubr.f32.gmra.mrb[0].mxu0 %v217
    %v428 = vpop.f32.mrb[0].mxu0
    %v429 = vadd.f32 0.0, %v428
    %v430 = vpop.f32.mrb[0].mxu0
    %431 = vmatprep.mubr.f32.mxu0 0.0
    %432 = vmatmul.mubr.f32.gmra.mrb[0].mxu0 %v220
    %v433 = vpop.f32.mrb[0].mxu0
    %v434 = vadd.f32 0.0, %v433
    %v435 = vpop.f32.mrb[0].mxu0
    %436 = vmatprep.mubr.f32.mxu0 0.0
    %437 = vmatmul.mubr.f32.gmra.mrb[0].mxu0 %v223
    %v438 = vpop.f32.mrb[0].mxu0
    %v439 = vadd.f32 0.0, %v438
    %v440 = vpop.f32.mrb[0].mxu0
    %441 = vmatprep.mubr.f32.mxu0 0.0
    %442 = vmatmul.mubr.f32.gmra.mrb[0].mxu0 %v226
    %v443 = vpop.f32.mrb[0].mxu0
    %v444 = vadd.f32 0.0, %v443
    %v445 = vpop.f32.mrb[0].mxu0
    %446 = vmatprep.mubr.f32.mxu0 0.0
    %447 = vmatmul.mubr.f32.gmra.mrb[0].mxu0 %v229
    %v448 = vpop.f32.mrb[0].mxu0
    %v449 = vadd.f32 0.0, %v448
    %v450 = vpop.f32.mrb[0].mxu0
    %451 = vmatprep.mubr.f32.mxu0 0.0
    %452 = vmatmul.mubr.f32.gmra.mrb[0].mxu0 %v232
    %v453 = vpop.f32.mrb[0].mxu0
    %v454 = vadd.f32 0.0, %v453
    %v455 = vpop.f32.mrb[0].mxu0
    %456 = vmatprep.mubr.f32.mxu0 0.0
    %457 = vmatmul.mubr.f32.gmra.mrb[0].mxu0 %v235
    %v458 = vpop.f32.mrb[0].mxu0
    %v459 = vadd.f32 0.0, %v458
    %v460 = vpop.f32.mrb[0].mxu0
    %461 = vdwg.mxu0
    %vm462 = vcmask 130048
    %v463 = vsel %vm462, %v304, 0.0
    %v464 = vsel %vm462, %v309, 0.0
    %v465 = vadd.f32 %v463, %v464
    %v466 = vsel %vm462, %v314, 0.0
    %v467 = vadd.f32 %v465, %v466
    %v468 = vsel %vm462, %v319, 0.0
    %v469 = vadd.f32 %v467, %v468
    %v470 = vsel %vm462, %v324, 0.0
    %v471 = vadd.f32 %v469, %v470
    %v472 = vsel %vm462, %v329, 0.0
    %v473 = vadd.f32 %v471, %v472
    %v474 = vsel %vm462, %v334, 0.0
    %v475 = vadd.f32 %v473, %v474
    %v476 = vsel %vm462, %v339, 0.0
    %v477 = vadd.f32 %v475, %v476
    %v478 = vsel %vm462, %v344, 0.0
    %v479 = vadd.f32 %v477, %v478
    %v480 = vsel %vm462, %v349, 0.0
    %v481 = vadd.f32 %v479, %v480
    %v482 = vsel %vm462, %v354, 0.0
    %v483 = vadd.f32 %v481, %v482
    %v484 = vsel %vm462, %v359, 0.0
    %v485 = vadd.f32 %v483, %v484
    %v486 = vsel %vm462, %v364, 0.0
    %v487 = vadd.f32 %v485, %v486
    %v488 = vsel %vm462, %v369, 0.0
    %v489 = vadd.f32 %v487, %v488
    %v490 = vsel %vm462, %v374, 0.0
    %v491 = vadd.f32 %v489, %v490
    %v492 = vsel %vm462, %v379, 0.0
    %v493 = vadd.f32 %v491, %v492
    %494 = vadd.xlane.f32.xlu0 %v493
    %v495 = vpop.xlane.xlu0 %494
    %v496 = vrot.slane %v495, 4
    %v497 = vadd.f32 %v495, %v496
    %v498 = vrot.slane %v497, 2
    %v499 = vadd.f32 %v497, %v498
    %v500 = vrot.slane %v499, 1
    %v501 = vadd.f32 %v499, %v500
    %s502 = vtos %v501
    %v503 = vrcp.pop 2048.0
    %s504 = vtos %v503
    %s505 = smul.f32 %s502, %s504
    %v506 = vstv %s505
    %v507 = vsub.f32 %v304, %v506
    %v508 = vsub.f32 %v309, %v506
    %v509 = vsub.f32 %v314, %v506
    %v510 = vsub.f32 %v319, %v506
    %v511 = vsub.f32 %v324, %v506
    %v512 = vsub.f32 %v329, %v506
    %v513 = vsub.f32 %v334, %v506
    %v514 = vsub.f32 %v339, %v506
    %v515 = vsub.f32 %v344, %v506
    %v516 = vsub.f32 %v349, %v506
    %v517 = vsub.f32 %v354, %v506
    %v518 = vsub.f32 %v359, %v506
    %v519 = vsub.f32 %v364, %v506
    %v520 = vsub.f32 %v369, %v506
    %v521 = vsub.f32 %v374, %v506
    %v522 = vsub.f32 %v379, %v506
    %v523 = vmul.f32 %v507, %v507
    %v524 = vmul.f32 %v508, %v508
    %v525 = vmul.f32 %v509, %v509
    %v526 = vmul.f32 %v510, %v510
    %v527 = vmul.f32 %v511, %v511
    %v528 = vmul.f32 %v512, %v512
    %v529 = vmul.f32 %v513, %v513
    %v530 = vmul.f32 %v514, %v514
    %v531 = vmul.f32 %v515, %v515
    %v532 = vmul.f32 %v516, %v516
    %v533 = vmul.f32 %v517, %v517
    %v534 = vmul.f32 %v518, %v518
    %v535 = vmul.f32 %v519, %v519
    %v536 = vmul.f32 %v520, %v520
    %v537 = vmul.f32 %v521, %v521
    %v538 = vmul.f32 %v522, %v522
    %v539 = vsel %vm462, %v523, 0.0
    %v540 = vsel %vm462, %v524, 0.0
    %v541 = vadd.f32 %v539, %v540
    %v542 = vsel %vm462, %v525, 0.0
    %v543 = vadd.f32 %v541, %v542
    %v544 = vsel %vm462, %v526, 0.0
    %v545 = vadd.f32 %v543, %v544
    %v546 = vsel %vm462, %v527, 0.0
    %v547 = vadd.f32 %v545, %v546
    %v548 = vsel %vm462, %v528, 0.0
    %v549 = vadd.f32 %v547, %v548
    %v550 = vsel %vm462, %v529, 0.0
    %v551 = vadd.f32 %v549, %v550
    %v552 = vsel %vm462, %v530, 0.0
    %v553 = vadd.f32 %v551, %v552
    %v554 = vsel %vm462, %v531, 0.0
    %v555 = vadd.f32 %v553, %v554
    %v556 = vsel %vm462, %v532, 0.0
    %v557 = vadd.f32 %v555, %v556
    %v558 = vsel %vm462, %v533, 0.0
    %v559 = vadd.f32 %v557, %v558
    %v560 = vsel %vm462, %v534, 0.0
    %v561 = vadd.f32 %v559, %v560
    %v562 = vsel %vm462, %v535, 0.0
    %v563 = vadd.f32 %v561, %v562
    %v564 = vsel %vm462, %v536, 0.0
    %v565 = vadd.f32 %v563, %v564
    %v566 = vsel %vm462, %v537, 0.0
    %v567 = vadd.f32 %v565, %v566
    %v568 = vsel %vm462, %v538, 0.0
    %v569 = vadd.f32 %v567, %v568
    %570 = vadd.xlane.f32.xlu0 %v569
    %v571 = vpop.xlane.xlu0 %570
    %v572 = vrot.slane %v571, 4
    %v573 = vadd.f32 %v571, %v572
    %v574 = vrot.slane %v573, 2
    %v575 = vadd.f32 %v573, %v574
    %v576 = vrot.slane %v575, 1
    %v577 = vadd.f32 %v575, %v576
    %s578 = vtos %v577
    %v579 = vrcp.pop 2048.0
    %s580 = vtos %v579
    %s581 = smul.f32 %s578, %s580
    %v582 = vsel %vm462, %v384, 0.0
    %v583 = vsel %vm462, %v389, 0.0
    %v584 = vadd.f32 %v582, %v583
    %v585 = vsel %vm462, %v394, 0.0
    %v586 = vadd.f32 %v584, %v585
    %v587 = vsel %vm462, %v399, 0.0
    %v588 = vadd.f32 %v586, %v587
    %v589 = vsel %vm462, %v404, 0.0
    %v590 = vadd.f32 %v588, %v589
    %v591 = vsel %vm462, %v409, 0.0
    %v592 = vadd.f32 %v590, %v591
    %v593 = vsel %vm462, %v414, 0.0
    %v594 = vadd.f32 %v592, %v593
    %v595 = vsel %vm462, %v419, 0.0
    %v596 = vadd.f32 %v594, %v595
    %v597 = vsel %vm462, %v424, 0.0
    %v598 = vadd.f32 %v596, %v597
    %v599 = vsel %vm462, %v429, 0.0
    %v600 = vadd.f32 %v598, %v599
    %v601 = vsel %vm462, %v434, 0.0
    %v602 = vadd.f32 %v600, %v601
    %v603 = vsel %vm462, %v439, 0.0
    %v604 = vadd.f32 %v602, %v603
    %v605 = vsel %vm462, %v444, 0.0
    %v606 = vadd.f32 %v604, %v605
    %v607 = vsel %vm462, %v449, 0.0
    %v608 = vadd.f32 %v606, %v607
    %v609 = vsel %vm462, %v454, 0.0
    %v610 = vadd.f32 %v608, %v609
    %v611 = vsel %vm462, %v459, 0.0
    %v612 = vadd.f32 %v610, %v611
    %613 = vadd.xlane.f32.xlu0 %v612
    %v614 = vpop.xlane.xlu0 %613
    %v615 = vrot.slane %v614, 4
    %v616 = vadd.f32 %v614, %v615
    %v617 = vrot.slane %v616, 2
    %v618 = vadd.f32 %v616, %v617
    %v619 = vrot.slane %v618, 1
    %v620 = vadd.f32 %v618, %v619
    %s621 = vtos %v620
    %v622 = vrcp.pop 2048.0
    %s623 = vtos %v622
    %s624 = smul.f32 %s621, %s623
    %v625 = vstv %s624
    %v626 = vsub.f32 %v384, %v625
    %v627 = vsub.f32 %v389, %v625
    %v628 = vsub.f32 %v394, %v625
    %v629 = vsub.f32 %v399, %v625
    %v630 = vsub.f32 %v404, %v625
    %v631 = vsub.f32 %v409, %v625
    %v632 = vsub.f32 %v414, %v625
    %v633 = vsub.f32 %v419, %v625
    %v634 = vsub.f32 %v424, %v625
    %v635 = vsub.f32 %v429, %v625
    %v636 = vsub.f32 %v434, %v625
    %v637 = vsub.f32 %v439, %v625
    %v638 = vsub.f32 %v444, %v625
    %v639 = vsub.f32 %v449, %v625
    %v640 = vsub.f32 %v454, %v625
    %v641 = vsub.f32 %v459, %v625
    %v642 = vmul.f32 %v626, %v626
    %v643 = vmul.f32 %v627, %v627
    %v644 = vmul.f32 %v628, %v628
    %v645 = vmul.f32 %v629, %v629
    %v646 = vmul.f32 %v630, %v630
    %v647 = vmul.f32 %v631, %v631
    %v648 = vmul.f32 %v632, %v632
    %v649 = vmul.f32 %v633, %v633
    %v650 = vmul.f32 %v634, %v634
    %v651 = vmul.f32 %v635, %v635
    %v652 = vmul.f32 %v636, %v636
    %v653 = vmul.f32 %v637, %v637
    %v654 = vmul.f32 %v638, %v638
    %v655 = vmul.f32 %v639, %v639
    %v656 = vmul.f32 %v640, %v640
    %v657 = vmul.f32 %v641, %v641
    %v658 = vsel %vm462, %v642, 0.0
    %v659 = vsel %vm462, %v643, 0.0
    %v660 = vadd.f32 %v658, %v659
    %v661 = vsel %vm462, %v644, 0.0
    %v662 = vadd.f32 %v660, %v661
    %v663 = vsel %vm462, %v645, 0.0
    %v664 = vadd.f32 %v662, %v663
    %v665 = vsel %vm462, %v646, 0.0
    %v666 = vadd.f32 %v664, %v665
    %v667 = vsel %vm462, %v647, 0.0
    %v668 = vadd.f32 %v666, %v667
    %v669 = vsel %vm462, %v648, 0.0
    %v670 = vadd.f32 %v668, %v669
    %v671 = vsel %vm462, %v649, 0.0
    %v672 = vadd.f32 %v670, %v671
    %v673 = vsel %vm462, %v650, 0.0
    %v674 = vadd.f32 %v672, %v673
    %v675 = vsel %vm462, %v651, 0.0
    %v676 = vadd.f32 %v674, %v675
    %v677 = vsel %vm462, %v652, 0.0
    %v678 = vadd.f32 %v676, %v677
    %v679 = vsel %vm462, %v653, 0.0
    %v680 = vadd.f32 %v678, %v679
    %v681 = vsel %vm462, %v654, 0.0
    %v682 = vadd.f32 %v680, %v681
    %v683 = vsel %vm462, %v655, 0.0
    %v684 = vadd.f32 %v682, %v683
    %v685 = vsel %vm462, %v656, 0.0
    %v686 = vadd.f32 %v684, %v685
    %v687 = vsel %vm462, %v657, 0.0
    %v688 = vadd.f32 %v686, %v687
    %689 = vadd.xlane.f32.xlu0 %v688
    %v690 = vpop.xlane.xlu0 %689
    %v691 = vrot.slane %v690, 4
    %v692 = vadd.f32 %v690, %v691
    %v693 = vrot.slane %v692, 2
    %v694 = vadd.f32 %v692, %v693
    %v695 = vrot.slane %v694, 1
    %v696 = vadd.f32 %v694, %v695
    %s697 = vtos %v696
    %v698 = vrcp.pop 2048.0
    %s699 = vtos %v698
    %s700 = smul.f32 %s697, %s699
    %s701 = sadd.f32 %s581, 1e-05
    %v702 = vstv %s701
    %v703 = vrsqrt.pop %v702
    %s704 = vtos %v703
    %v705 = vstv %s704
    %v706 = vmul.f32 %v507, %v705
    %v707 = vmul.f32 %v508, %v705
    %v708 = vmul.f32 %v509, %v705
    %v709 = vmul.f32 %v510, %v705
    %v710 = vmul.f32 %v511, %v705
    %v711 = vmul.f32 %v512, %v705
    %v712 = vmul.f32 %v513, %v705
    %v713 = vmul.f32 %v514, %v705
    %v714 = vmul.f32 %v515, %v705
    %v715 = vmul.f32 %v516, %v705
    %v716 = vmul.f32 %v517, %v705
    %v717 = vmul.f32 %v518, %v705
    %v718 = vmul.f32 %v519, %v705
    %v719 = vmul.f32 %v520, %v705
    %v720 = vmul.f32 %v521, %v705
    %v721 = vmul.f32 %v522, %v705
    %s722 = sadd.f32 %s700, 1e-05
    %v723 = vstv %s722
    %v724 = vrsqrt.pop %v723
    %s725 = vtos %v724
    %v726 = vstv %s725
    %v727 = vmul.f32 %v626, %v726
    %v728 = vmul.f32 %v627, %v726
    %v729 = vmul.f32 %v628, %v726
    %v730 = vmul.f32 %v629, %v726
    %v731 = vmul.f32 %v630, %v726
    %v732 = vmul.f32 %v631, %v726
    %v733 = vmul.f32 %v632, %v726
    %v734 = vmul.f32 %v633, %v726
    %v735 = vmul.f32 %v634, %v726
    %v736 = vmul.f32 %v635, %v726
    %v737 = vmul.f32 %v636, %v726
    %v738 = vmul.f32 %v637, %v726
    %v739 = vmul.f32 %v638, %v726
    %v740 = vmul.f32 %v639, %v726
    %v741 = vmul.f32 %v640, %v726
    %v742 = vmul.f32 %v641, %v726
    %v743 = vld [vmem:[%s3] sm:$0xff]
    %v744 = vld [vmem:[%s3 + $0x8] sm:$0xff]
    %v745 = vld [vmem:[%s3 + $0x10] sm:$0xff]
    %v746 = vld [vmem:[%s3 + $0x18] sm:$0xff]
    %v747 = vld [vmem:[%s3 + $0x20] sm:$0xff]
    %v748 = vld [vmem:[%s3 + $0x28] sm:$0xff]
    %v749 = vld [vmem:[%s3 + $0x30] sm:$0xff]
    %v750 = vld [vmem:[%s3 + $0x38] sm:$0xff]
    %v751 = vld [vmem:[%s3 + $0x40] sm:$0xff]
    %v752 = vld [vmem:[%s3 + $0x48] sm:$0xff]
    %v753 = vld [vmem:[%s3 + $0x50] sm:$0xff]
    %v754 = vld [vmem:[%s3 + $0x58] sm:$0xff]
    %v755 = vld [vmem:[%s3 + $0x60] sm:$0xff]
    %v756 = vld [vmem:[%s3 + $0x68] sm:$0xff]
    %v757 = vld [vmem:[%s3 + $0x70] sm:$0xff]
    %v758 = vld [vmem:[%s3 + $0x78] sm:$0xff]
    %v759 = vld [vmem:[%s3 + $0x80] sm:$0xff]
    %v760 = vld [vmem:[%s3 + $0x88] sm:$0xff]
    %v761 = vld [vmem:[%s3 + $0x90] sm:$0xff]
    %v762 = vld [vmem:[%s3 + $0x98] sm:$0xff]
    %v763 = vld [vmem:[%s3 + $0xa0] sm:$0xff]
    %v764 = vld [vmem:[%s3 + $0xa8] sm:$0xff]
    %v765 = vld [vmem:[%s3 + $0xb0] sm:$0xff]
    %v766 = vld [vmem:[%s3 + $0xb8] sm:$0xff]
    %v767 = vld [vmem:[%s3 + $0xc0] sm:$0xff]
    %v768 = vld [vmem:[%s3 + $0xc8] sm:$0xff]
    %v769 = vld [vmem:[%s3 + $0xd0] sm:$0xff]
    %v770 = vld [vmem:[%s3 + $0xd8] sm:$0xff]
    %v771 = vld [vmem:[%s3 + $0xe0] sm:$0xff]
    %v772 = vld [vmem:[%s3 + $0xe8] sm:$0xff]
    %v773 = vld [vmem:[%s3 + $0xf0] sm:$0xff]
    %v774 = vld [vmem:[%s3 + $0xf8] sm:$0xff]
    %776 = vset.pattern.permute.xlu0 0
    %777 = vperm.xlu0 %776, %v743
    %v778 = vpop.permute.xlu0 %777
    %781 = vset.pattern.permute.xlu0 0
    %782 = vperm.xlu0 %781, %v744
    %v783 = vpop.permute.xlu0 %782
    %786 = vset.pattern.permute.xlu0 0
    %787 = vperm.xlu0 %786, %v745
    %v788 = vpop.permute.xlu0 %787
    %791 = vset.pattern.permute.xlu0 0
    %792 = vperm.xlu0 %791, %v746
    %v793 = vpop.permute.xlu0 %792
    %796 = vset.pattern.permute.xlu0 0
    %797 = vperm.xlu0 %796, %v747
    %v798 = vpop.permute.xlu0 %797
    %801 = vset.pattern.permute.xlu0 0
    %802 = vperm.xlu0 %801, %v748
    %v803 = vpop.permute.xlu0 %802
    %806 = vset.pattern.permute.xlu0 0
    %807 = vperm.xlu0 %806, %v749
    %v808 = vpop.permute.xlu0 %807
    %811 = vset.pattern.permute.xlu0 0
    %812 = vperm.xlu0 %811, %v750
    %v813 = vpop.permute.xlu0 %812
    %816 = vset.pattern.permute.xlu0 0
    %817 = vperm.xlu0 %816, %v751
    %v818 = vpop.permute.xlu0 %817
    %821 = vset.pattern.permute.xlu0 0
    %822 = vperm.xlu0 %821, %v752
    %v823 = vpop.permute.xlu0 %822
    %826 = vset.pattern.permute.xlu0 0
    %827 = vperm.xlu0 %826, %v753
    %v828 = vpop.permute.xlu0 %827
    %831 = vset.pattern.permute.xlu0 0
    %832 = vperm.xlu0 %831, %v754
    %v833 = vpop.permute.xlu0 %832
    %836 = vset.pattern.permute.xlu0 0
    %837 = vperm.xlu0 %836, %v755
    %v838 = vpop.permute.xlu0 %837
    %841 = vset.pattern.permute.xlu0 0
    %842 = vperm.xlu0 %841, %v756
    %v843 = vpop.permute.xlu0 %842
    %846 = vset.pattern.permute.xlu0 0
    %847 = vperm.xlu0 %846, %v757
    %v848 = vpop.permute.xlu0 %847
    %851 = vset.pattern.permute.xlu0 0
    %852 = vperm.xlu0 %851, %v758
    %v853 = vpop.permute.xlu0 %852
    %856 = vset.pattern.permute.xlu0 0
    %857 = vperm.xlu0 %856, %v759
    %v858 = vpop.permute.xlu0 %857
    %861 = vset.pattern.permute.xlu0 0
    %862 = vperm.xlu0 %861, %v760
    %v863 = vpop.permute.xlu0 %862
    %866 = vset.pattern.permute.xlu0 0
    %867 = vperm.xlu0 %866, %v761
    %v868 = vpop.permute.xlu0 %867
    %871 = vset.pattern.permute.xlu0 0
    %872 = vperm.xlu0 %871, %v762
    %v873 = vpop.permute.xlu0 %872
    %876 = vset.pattern.permute.xlu0 0
    %877 = vperm.xlu0 %876, %v763
    %v878 = vpop.permute.xlu0 %877
    %881 = vset.pattern.permute.xlu0 0
    %882 = vperm.xlu0 %881, %v764
    %v883 = vpop.permute.xlu0 %882
    %886 = vset.pattern.permute.xlu0 0
    %887 = vperm.xlu0 %886, %v765
    %v888 = vpop.permute.xlu0 %887
    %891 = vset.pattern.permute.xlu0 0
    %892 = vperm.xlu0 %891, %v766
    %v893 = vpop.permute.xlu0 %892
    %896 = vset.pattern.permute.xlu0 0
    %897 = vperm.xlu0 %896, %v767
    %v898 = vpop.permute.xlu0 %897
    %901 = vset.pattern.permute.xlu0 0
    %902 = vperm.xlu0 %901, %v768
    %v903 = vpop.permute.xlu0 %902
    %906 = vset.pattern.permute.xlu0 0
    %907 = vperm.xlu0 %906, %v769
    %v908 = vpop.permute.xlu0 %907
    %911 = vset.pattern.permute.xlu0 0
    %912 = vperm.xlu0 %911, %v770
    %v913 = vpop.permute.xlu0 %912
    %916 = vset.pattern.permute.xlu0 0
    %917 = vperm.xlu0 %916, %v771
    %v918 = vpop.permute.xlu0 %917
    %921 = vset.pattern.permute.xlu0 0
    %922 = vperm.xlu0 %921, %v772
    %v923 = vpop.permute.xlu0 %922
    %926 = vset.pattern.permute.xlu0 0
    %927 = vperm.xlu0 %926, %v773
    %v928 = vpop.permute.xlu0 %927
    %931 = vset.pattern.permute.xlu0 0
    %932 = vperm.xlu0 %931, %v774
    %v933 = vpop.permute.xlu0 %932
    %v935 = vmul.f32 %v706, %v778
    %v936 = vmul.f32 %v707, %v783
    %v937 = vmul.f32 %v708, %v788
    %v938 = vmul.f32 %v709, %v793
    %v939 = vmul.f32 %v710, %v798
    %v940 = vmul.f32 %v711, %v803
    %v941 = vmul.f32 %v712, %v808
    %v942 = vmul.f32 %v713, %v813
    %v943 = vmul.f32 %v714, %v818
    %v944 = vmul.f32 %v715, %v823
    %v945 = vmul.f32 %v716, %v828
    %v946 = vmul.f32 %v717, %v833
    %v947 = vmul.f32 %v718, %v838
    %v948 = vmul.f32 %v719, %v843
    %v949 = vmul.f32 %v720, %v848
    %v950 = vmul.f32 %v721, %v853
    %v951 = vmul.f32 %v727, %v858
    %v952 = vmul.f32 %v728, %v863
    %v953 = vmul.f32 %v729, %v868
    %v954 = vmul.f32 %v730, %v873
    %v955 = vmul.f32 %v731, %v878
    %v956 = vmul.f32 %v732, %v883
    %v957 = vmul.f32 %v733, %v888
    %v958 = vmul.f32 %v734, %v893
    %v959 = vmul.f32 %v735, %v898
    %v960 = vmul.f32 %v736, %v903
    %v961 = vmul.f32 %v737, %v908
    %v962 = vmul.f32 %v738, %v913
    %v963 = vmul.f32 %v739, %v918
    %v964 = vmul.f32 %v740, %v923
    %v965 = vmul.f32 %v741, %v928
    %v966 = vmul.f32 %v742, %v933
    %v967 = vld [vmem:[%s4] sm:$0xff]
    %v968 = vld [vmem:[%s4 + $0x8] sm:$0xff]
    %v969 = vld [vmem:[%s4 + $0x10] sm:$0xff]
    %v970 = vld [vmem:[%s4 + $0x18] sm:$0xff]
    %v971 = vld [vmem:[%s4 + $0x20] sm:$0xff]
    %v972 = vld [vmem:[%s4 + $0x28] sm:$0xff]
    %v973 = vld [vmem:[%s4 + $0x30] sm:$0xff]
    %v974 = vld [vmem:[%s4 + $0x38] sm:$0xff]
    %v975 = vld [vmem:[%s4 + $0x40] sm:$0xff]
    %v976 = vld [vmem:[%s4 + $0x48] sm:$0xff]
    %v977 = vld [vmem:[%s4 + $0x50] sm:$0xff]
    %v978 = vld [vmem:[%s4 + $0x58] sm:$0xff]
    %v979 = vld [vmem:[%s4 + $0x60] sm:$0xff]
    %v980 = vld [vmem:[%s4 + $0x68] sm:$0xff]
    %v981 = vld [vmem:[%s4 + $0x70] sm:$0xff]
    %v982 = vld [vmem:[%s4 + $0x78] sm:$0xff]
    %v983 = vld [vmem:[%s4 + $0x80] sm:$0xff]
    %v984 = vld [vmem:[%s4 + $0x88] sm:$0xff]
    %v985 = vld [vmem:[%s4 + $0x90] sm:$0xff]
    %v986 = vld [vmem:[%s4 + $0x98] sm:$0xff]
    %v987 = vld [vmem:[%s4 + $0xa0] sm:$0xff]
    %v988 = vld [vmem:[%s4 + $0xa8] sm:$0xff]
    %v989 = vld [vmem:[%s4 + $0xb0] sm:$0xff]
    %v990 = vld [vmem:[%s4 + $0xb8] sm:$0xff]
    %v991 = vld [vmem:[%s4 + $0xc0] sm:$0xff]
    %v992 = vld [vmem:[%s4 + $0xc8] sm:$0xff]
    %v993 = vld [vmem:[%s4 + $0xd0] sm:$0xff]
    %v994 = vld [vmem:[%s4 + $0xd8] sm:$0xff]
    %v995 = vld [vmem:[%s4 + $0xe0] sm:$0xff]
    %v996 = vld [vmem:[%s4 + $0xe8] sm:$0xff]
    %v997 = vld [vmem:[%s4 + $0xf0] sm:$0xff]
    %v998 = vld [vmem:[%s4 + $0xf8] sm:$0xff]
    %1000 = vset.pattern.permute.xlu0 0
    %1001 = vperm.xlu0 %1000, %v967
    %v1002 = vpop.permute.xlu0 %1001
    %1005 = vset.pattern.permute.xlu0 0
    %1006 = vperm.xlu0 %1005, %v968
    %v1007 = vpop.permute.xlu0 %1006
    %1010 = vset.pattern.permute.xlu0 0
    %1011 = vperm.xlu0 %1010, %v969
    %v1012 = vpop.permute.xlu0 %1011
    %1015 = vset.pattern.permute.xlu0 0
    %1016 = vperm.xlu0 %1015, %v970
    %v1017 = vpop.permute.xlu0 %1016
    %1020 = vset.pattern.permute.xlu0 0
    %1021 = vperm.xlu0 %1020, %v971
    %v1022 = vpop.permute.xlu0 %1021
    %1025 = vset.pattern.permute.xlu0 0
    %1026 = vperm.xlu0 %1025, %v972
    %v1027 = vpop.permute.xlu0 %1026
    %1030 = vset.pattern.permute.xlu0 0
    %1031 = vperm.xlu0 %1030, %v973
    %v1032 = vpop.permute.xlu0 %1031
    %1035 = vset.pattern.permute.xlu0 0
    %1036 = vperm.xlu0 %1035, %v974
    %v1037 = vpop.permute.xlu0 %1036
    %1040 = vset.pattern.permute.xlu0 0
    %1041 = vperm.xlu0 %1040, %v975
    %v1042 = vpop.permute.xlu0 %1041
    %1045 = vset.pattern.permute.xlu0 0
    %1046 = vperm.xlu0 %1045, %v976
    %v1047 = vpop.permute.xlu0 %1046
    %1050 = vset.pattern.permute.xlu0 0
    %1051 = vperm.xlu0 %1050, %v977
    %v1052 = vpop.permute.xlu0 %1051
    %1055 = vset.pattern.permute.xlu0 0
    %1056 = vperm.xlu0 %1055, %v978
    %v1057 = vpop.permute.xlu0 %1056
    %1060 = vset.pattern.permute.xlu0 0
    %1061 = vperm.xlu0 %1060, %v979
    %v1062 = vpop.permute.xlu0 %1061
    %1065 = vset.pattern.permute.xlu0 0
    %1066 = vperm.xlu0 %1065, %v980
    %v1067 = vpop.permute.xlu0 %1066
    %1070 = vset.pattern.permute.xlu0 0
    %1071 = vperm.xlu0 %1070, %v981
    %v1072 = vpop.permute.xlu0 %1071
    %1075 = vset.pattern.permute.xlu0 0
    %1076 = vperm.xlu0 %1075, %v982
    %v1077 = vpop.permute.xlu0 %1076
    %1080 = vset.pattern.permute.xlu0 0
    %1081 = vperm.xlu0 %1080, %v983
    %v1082 = vpop.permute.xlu0 %1081
    %1085 = vset.pattern.permute.xlu0 0
    %1086 = vperm.xlu0 %1085, %v984
    %v1087 = vpop.permute.xlu0 %1086
    %1090 = vset.pattern.permute.xlu0 0
    %1091 = vperm.xlu0 %1090, %v985
    %v1092 = vpop.permute.xlu0 %1091
    %1095 = vset.pattern.permute.xlu0 0
    %1096 = vperm.xlu0 %1095, %v986
    %v1097 = vpop.permute.xlu0 %1096
    %1100 = vset.pattern.permute.xlu0 0
    %1101 = vperm.xlu0 %1100, %v987
    %v1102 = vpop.permute.xlu0 %1101
    %1105 = vset.pattern.permute.xlu0 0
    %1106 = vperm.xlu0 %1105, %v988
    %v1107 = vpop.permute.xlu0 %1106
    %1110 = vset.pattern.permute.xlu0 0
    %1111 = vperm.xlu0 %1110, %v989
    %v1112 = vpop.permute.xlu0 %1111
    %1115 = vset.pattern.permute.xlu0 0
    %1116 = vperm.xlu0 %1115, %v990
    %v1117 = vpop.permute.xlu0 %1116
    %1120 = vset.pattern.permute.xlu0 0
    %1121 = vperm.xlu0 %1120, %v991
    %v1122 = vpop.permute.xlu0 %1121
    %1125 = vset.pattern.permute.xlu0 0
    %1126 = vperm.xlu0 %1125, %v992
    %v1127 = vpop.permute.xlu0 %1126
    %1130 = vset.pattern.permute.xlu0 0
    %1131 = vperm.xlu0 %1130, %v993
    %v1132 = vpop.permute.xlu0 %1131
    %1135 = vset.pattern.permute.xlu0 0
    %1136 = vperm.xlu0 %1135, %v994
    %v1137 = vpop.permute.xlu0 %1136
    %1140 = vset.pattern.permute.xlu0 0
    %1141 = vperm.xlu0 %1140, %v995
    %v1142 = vpop.permute.xlu0 %1141
    %1145 = vset.pattern.permute.xlu0 0
    %1146 = vperm.xlu0 %1145, %v996
    %v1147 = vpop.permute.xlu0 %1146
    %1150 = vset.pattern.permute.xlu0 0
    %1151 = vperm.xlu0 %1150, %v997
    %v1152 = vpop.permute.xlu0 %1151
    %1155 = vset.pattern.permute.xlu0 0
    %1156 = vperm.xlu0 %1155, %v998
    %v1157 = vpop.permute.xlu0 %1156
    %v1159 = vadd.f32 %v935, %v1002
    %v1160 = vadd.f32 %v936, %v1007
    %v1161 = vadd.f32 %v937, %v1012
    %v1162 = vadd.f32 %v938, %v1017
    %v1163 = vadd.f32 %v939, %v1022
    %v1164 = vadd.f32 %v940, %v1027
    %v1165 = vadd.f32 %v941, %v1032
    %v1166 = vadd.f32 %v942, %v1037
    %v1167 = vadd.f32 %v943, %v1042
    %v1168 = vadd.f32 %v944, %v1047
    %v1169 = vadd.f32 %v945, %v1052
    %v1170 = vadd.f32 %v946, %v1057
    %v1171 = vadd.f32 %v947, %v1062
    %v1172 = vadd.f32 %v948, %v1067
    %v1173 = vadd.f32 %v949, %v1072
    %v1174 = vadd.f32 %v950, %v1077
    %v1175 = vadd.f32 %v951, %v1082
    %v1176 = vadd.f32 %v952, %v1087
    %v1177 = vadd.f32 %v953, %v1092
    %v1178 = vadd.f32 %v954, %v1097
    %v1179 = vadd.f32 %v955, %v1102
    %v1180 = vadd.f32 %v956, %v1107
    %v1181 = vadd.f32 %v957, %v1112
    %v1182 = vadd.f32 %v958, %v1117
    %v1183 = vadd.f32 %v959, %v1122
    %v1184 = vadd.f32 %v960, %v1127
    %v1185 = vadd.f32 %v961, %v1132
    %v1186 = vadd.f32 %v962, %v1137
    %v1187 = vadd.f32 %v963, %v1142
    %v1188 = vadd.f32 %v964, %v1147
    %v1189 = vadd.f32 %v965, %v1152
    %v1190 = vadd.f32 %v966, %v1157
    %v1191 = vmax.f32 %v1159, 0.0
    %v1192 = vmax.f32 %v1160, 0.0
    %v1193 = vmax.f32 %v1161, 0.0
    %v1194 = vmax.f32 %v1162, 0.0
    %v1195 = vmax.f32 %v1163, 0.0
    %v1196 = vmax.f32 %v1164, 0.0
    %v1197 = vmax.f32 %v1165, 0.0
    %v1198 = vmax.f32 %v1166, 0.0
    %v1199 = vmax.f32 %v1167, 0.0
    %v1200 = vmax.f32 %v1168, 0.0
    %v1201 = vmax.f32 %v1169, 0.0
    %v1202 = vmax.f32 %v1170, 0.0
    %v1203 = vmax.f32 %v1171, 0.0
    %v1204 = vmax.f32 %v1172, 0.0
    %v1205 = vmax.f32 %v1173, 0.0
    %v1206 = vmax.f32 %v1174, 0.0
    %v1207 = vmax.f32 %v1175, 0.0
    %v1208 = vmax.f32 %v1176, 0.0
    %v1209 = vmax.f32 %v1177, 0.0
    %v1210 = vmax.f32 %v1178, 0.0
    %v1211 = vmax.f32 %v1179, 0.0
    %v1212 = vmax.f32 %v1180, 0.0
    %v1213 = vmax.f32 %v1181, 0.0
    %v1214 = vmax.f32 %v1182, 0.0
    %v1215 = vmax.f32 %v1183, 0.0
    %v1216 = vmax.f32 %v1184, 0.0
    %v1217 = vmax.f32 %v1185, 0.0
    %v1218 = vmax.f32 %v1186, 0.0
    %v1219 = vmax.f32 %v1187, 0.0
    %v1220 = vmax.f32 %v1188, 0.0
    %v1221 = vmax.f32 %v1189, 0.0
    %v1222 = vmax.f32 %v1190, 0.0
    %v1223 = vld [vmem:[%s5] sm:$0xff]
    %v1224 = vld [vmem:[%s5 + $0x8] sm:$0xff]
    %v1225 = vld [vmem:[%s5 + $0x10] sm:$0xff]
    %v1226 = vld [vmem:[%s5 + $0x18] sm:$0xff]
    %1227 = vmatprep.subr.mxu0 0.0
    %1228 = vmatpush1.msra.mxu0 %v1191
    %1229 = vmatprep.subr.mxu0 0.0
    %1230 = vmatpush1.msra.mxu0 %v1192
    %1231 = vmatprep.subr.mxu0 0.0
    %1232 = vmatpush1.msra.mxu0 %v1193
    %1233 = vmatprep.subr.mxu0 0.0
    %1234 = vmatpush1.msra.mxu0 %v1194
    %1235 = vmatprep.subr.mxu0 0.0
    %1236 = vmatpush1.msra.mxu0 %v1195
    %1237 = vmatprep.subr.mxu0 0.0
    %1238 = vmatpush1.msra.mxu0 %v1196
    %1239 = vmatprep.subr.mxu0 0.0
    %1240 = vmatpush1.msra.mxu0 %v1197
    %1241 = vmatprep.subr.mxu0 0.0
    %1242 = vmatpush1.msra.mxu0 %v1198
    %1243 = vmatprep.subr.mxu0 0.0
    %1244 = vmatpush1.msra.mxu0 %v1199
    %1245 = vmatprep.subr.mxu0 0.0
    %1246 = vmatpush1.msra.mxu0 %v1200
    %1247 = vmatprep.subr.mxu0 0.0
    %1248 = vmatpush1.msra.mxu0 %v1201
    %1249 = vmatprep.subr.mxu0 0.0
    %1250 = vmatpush1.msra.mxu0 %v1202
    %1251 = vmatprep.subr.mxu0 0.0
    %1252 = vmatpush1.msra.mxu0 %v1203
    %1253 = vmatprep.subr.mxu0 0.0
    %1254 = vmatpush1.msra.mxu0 %v1204
    %1255 = vmatprep.subr.mxu0 0.0
    %1256 = vmatpush1.msra.mxu0 %v1205
    %1257 = vmatprep.subr.mxu0 0.0
    %1258 = vmatpush1.msra.mxu0 %v1206
    %1259 = vmatprep.subr.mxu0 0.0
    %1260 = vmatpush1.msra.mxu0 %v1207
    %1261 = vmatprep.subr.mxu0 0.0
    %1262 = vmatpush1.msra.mxu0 %v1208
    %1263 = vmatprep.subr.mxu0 0.0
    %1264 = vmatpush1.msra.mxu0 %v1209
    %1265 = vmatprep.subr.mxu0 0.0
    %1266 = vmatpush1.msra.mxu0 %v1210
    %1267 = vmatprep.subr.mxu0 0.0
    %1268 = vmatpush1.msra.mxu0 %v1211
    %1269 = vmatprep.subr.mxu0 0.0
    %1270 = vmatpush1.msra.mxu0 %v1212
    %1271 = vmatprep.subr.mxu0 0.0
    %1272 = vmatpush1.msra.mxu0 %v1213
    %1273 = vmatprep.subr.mxu0 0.0
    %1274 = vmatpush1.msra.mxu0 %v1214
    %1275 = vmatprep.subr.mxu0 0.0
    %1276 = vmatpush1.msra.mxu0 %v1215
    %1277 = vmatprep.subr.mxu0 0.0
    %1278 = vmatpush1.msra.mxu0 %v1216
    %1279 = vmatprep.subr.mxu0 0.0
    %1280 = vmatpush1.msra.mxu0 %v1217
    %1281 = vmatprep.subr.mxu0 0.0
    %1282 = vmatpush1.msra.mxu0 %v1218
    %1283 = vmatprep.subr.mxu0 0.0
    %1284 = vmatpush1.msra.mxu0 %v1219
    %1285 = vmatprep.subr.mxu0 0.0
    %1286 = vmatpush1.msra.mxu0 %v1220
    %1287 = vmatprep.subr.mxu0 0.0
    %1288 = vmatpush1.msra.mxu0 %v1221
    %1289 = vmatprep.subr.mxu0 0.0
    %1290 = vmatpush1.msra.mxu0 %v1222
    %1291 = vmatprep.mubr.f32.mxu0 %v1224
    %1292 = vmatmul.mubr.f32.gmra.mrb[0].mxu0 %v1223
    %v1293 = vpop.f32.mrb[0].mxu0
    %v1294 = vadd.f32 0.0, %v1293
    %v1295 = vpop.f32.mrb[0].mxu0
    %1296 = vmatprep.mubr.f32.mxu0 %v1226
    %1297 = vmatmul.mubr.f32.gmra.mrb[0].mxu0 %v1225
    %v1298 = vpop.f32.mrb[0].mxu0
    %v1299 = vadd.f32 0.0, %v1298
    %v1300 = vpop.f32.mrb[0].mxu0
    %1301 = vdwg.mxu0
    %v1302 = vld [vmem:[#allocation5] sm:$0xff]
    %1303 = vxpose.xlu0.b32.start [1/16] %v1294, 128
    %1304 = vxpose.xlu0.b32.cont [2/16] %v1299, 128
    %1305 = vxpose.xlu0.b32.cont [3/16] %v1302, 128
    %1306 = vxpose.xlu0.b32.cont [4/16] 0.0, 128
    %1307 = vxpose.xlu0.b32.cont [5/16] 0.0, 128
    %1308 = vxpose.xlu0.b32.cont [6/16] 0.0, 128
    %1309 = vxpose.xlu0.b32.cont [7/16] 0.0, 128
    %1310 = vxpose.xlu0.b32.cont [8/16] 0.0, 128
    %1311 = vxpose.xlu0.b32.cont [9/16] 0.0, 128
    %1312 = vxpose.xlu0.b32.cont [10/16] 0.0, 128
    %1313 = vxpose.xlu0.b32.cont [11/16] 0.0, 128
    %1314 = vxpose.xlu0.b32.cont [12/16] 0.0, 128
    %1315 = vxpose.xlu0.b32.cont [13/16] 0.0, 128
    %1316 = vxpose.xlu0.b32.cont [14/16] 0.0, 128
    %1317 = vxpose.xlu0.b32.cont [15/16] 0.0, 128
    %1318 = vxpose.xlu0.b32.end [16/16] 0.0, 128
    %v1319 = vpop.trf.xlu0
    %v1320 = vpop.trf.xlu0
    %v1321 = vpop.trf.xlu0
    %v1322 = vpop.trf.xlu0
    %v1323 = vpop.trf.xlu0
    %v1324 = vpop.trf.xlu0
    %v1325 = vpop.trf.xlu0
    %v1326 = vpop.trf.xlu0
    %v1327 = vpop.trf.xlu0
    %v1328 = vpop.trf.xlu0
    %v1329 = vpop.trf.xlu0
    %v1330 = vpop.trf.xlu0
    %v1331 = vpop.trf.xlu0
    %v1332 = vpop.trf.xlu0
    %v1333 = vpop.trf.xlu0
    %v1334 = vpop.trf.xlu0
    %v1335 = vld [vmem:[#allocation8] sm:$0xff]
    %v1336 = vld [vmem:[#allocation8 + $0x8] sm:$0xff]
    %v1337 = vld [vmem:[#allocation8 + $0x10] sm:$0xff]
    %v1338 = vld [vmem:[%s8] sm:$0x1]
    %v1340 = vlaneseq
    %v1341 = vshrl.u32 %v1340, 7
    %v1342 = vsub.s32 0, %v1341
    %v1343 = vrot.slane %v1338, %v1342
    %vm1345 = vcmask 195584
    %v1347 = vsel %vm1345, %v1319, 0
    %v1350 = vsel %vm1345, %v1320, 0
    %1352 = vmatprep.subr.mxu0 0.0
    %1353 = vmatpush1.msra.mxu0 %v1335
    %1354 = vmatprep.subr.mxu0 0.0
    %1355 = vmatpush1.msra.mxu0 %v1336
    %1356 = vmatprep.subr.mxu0 0.0
    %1357 = vmatpush1.msra.mxu0 %v1337
    %1358 = vmatprep.subr.mxu0 0.0
    %1359 = vmatpush1.msra.mxu0 0.0
    %1360 = vmatprep.subr.mxu0 0.0
    %1361 = vmatpush1.msra.mxu0 0.0
    %1362 = vmatprep.subr.mxu0 0.0
    %1363 = vmatpush1.msra.mxu0 0.0
    %1364 = vmatprep.subr.mxu0 0.0
    %1365 = vmatpush1.msra.mxu0 0.0
    %1366 = vmatprep.subr.mxu0 0.0
    %1367 = vmatpush1.msra.mxu0 0.0
    %1368 = vmatprep.subr.mxu0 0.0
    %1369 = vmatpush1.msra.mxu0 0.0
    %1370 = vmatprep.subr.mxu0 0.0
    %1371 = vmatpush1.msra.mxu0 0.0
    %1372 = vmatprep.subr.mxu0 0.0
    %1373 = vmatpush1.msra.mxu0 0.0
    %1374 = vmatprep.subr.mxu0 0.0
    %1375 = vmatpush1.msra.mxu0 0.0
    %1376 = vmatprep.subr.mxu0 0.0
    %1377 = vmatpush1.msra.mxu0 0.0
    %1378 = vmatprep.subr.mxu0 0.0
    %1379 = vmatpush1.msra.mxu0 0.0
    %1380 = vmatprep.subr.mxu0 0.0
    %1381 = vmatpush1.msra.mxu0 0.0
    %1382 = vmatprep.subr.mxu0 0.0
    %1383 = vmatpush1.msra.mxu0 0.0
    %1384 = vmatprep.subr.mxu0 0.0
    %1385 = vmatpush1.msra.mxu0 0.0
    %1386 = vmatprep.subr.mxu0 0.0
    %1387 = vmatpush1.msra.mxu0 0.0
    %1388 = vmatprep.subr.mxu0 0.0
    %1389 = vmatpush1.msra.mxu0 0.0
    %1390 = vmatprep.subr.mxu0 0.0
    %1391 = vmatpush1.msra.mxu0 0.0
    %1392 = vmatprep.subr.mxu0 0.0
    %1393 = vmatpush1.msra.mxu0 0.0
    %1394 = vmatprep.subr.mxu0 0.0
    %1395 = vmatpush1.msra.mxu0 0.0
    %1396 = vmatprep.subr.mxu0 0.0
    %1397 = vmatpush1.msra.mxu0 0.0
    %1398 = vmatprep.subr.mxu0 0.0
    %1399 = vmatpush1.msra.mxu0 0.0
    %1400 = vmatprep.subr.mxu0 0.0
    %1401 = vmatpush1.msra.mxu0 0.0
    %1402 = vmatprep.subr.mxu0 0.0
    %1403 = vmatpush1.msra.mxu0 0.0
    %1404 = vmatprep.subr.mxu0 0.0
    %1405 = vmatpush1.msra.mxu0 0.0
    %1406 = vmatprep.subr.mxu0 0.0
    %1407 = vmatpush1.msra.mxu0 0.0
    %1408 = vmatprep.subr.mxu0 0.0
    %1409 = vmatpush1.msra.mxu0 0.0
    %1410 = vmatprep.subr.mxu0 0.0
    %1411 = vmatpush1.msra.mxu0 0.0
    %1412 = vmatprep.subr.mxu0 0.0
    %1413 = vmatpush1.msra.mxu0 0.0
    %1414 = vmatprep.subr.mxu0 0.0
    %1415 = vmatpush1.msra.mxu0 0.0
    %1416 = vmatprep.mubr.f32.mxu0 0.0
    %1417 = vmatmul.mubr.f32.gmra.mrb[0].mxu0 %v1347
    %v1418 = vpop.f32.mrb[0].mxu0
    %v1419 = vadd.f32 %v1343, %v1418
    %v1420 = vpop.f32.mrb[0].mxu0
    %1421 = vmatprep.mubr.f32.mxu0 0.0
    %1422 = vmatmul.mubr.f32.gmra.mrb[0].mxu0 %v1350
    %v1423 = vpop.f32.mrb[0].mxu0
    %v1424 = vadd.f32 %v1343, %v1423
    %v1425 = vpop.f32.mrb[0].mxu0
    %1426 = vdwg.mxu0
    %1427 = vst [vmem:[#allocation3] sm:$0xff] %v1419
    %1428 = vst [vmem:[#allocation3 + $0x8] sm:$0xff] %v1424
    %v1429 = vld [vmem:[#allocation3] sm:$0x1]
    %v1430 = vld [vmem:[#allocation3 + $0xf] sm:$0x1]
    %v1432 = vrot.slane %v1430, 7
    %1433 = vrot.lane.b32.xlu0 %v1432, 64
    %v1434 = vpop.permute.xlu0 %1433
    %vm1436 = vcmask 1040384
    %v1437 = vsel %vm1436, %v1429, %v1434
    %v1438 = vld [vmem:[#allocation10] sm:$0xff]
    %v1439 = vld [vmem:[#allocation10 + $0x8] sm:$0xff]
    %v1441 = vsel %vm462, 0.0, 0
    %1443 = vmatprep.subr.mxu0 0.0
    %1444 = vmatpush1.msra.mxu0 %v1438
    %1445 = vmatprep.subr.mxu0 0.0
    %1446 = vmatpush1.msra.mxu0 %v1439
    %1447 = vmatprep.subr.mxu0 0.0
    %1448 = vmatpush1.msra.mxu0 0.0
    %1449 = vmatprep.subr.mxu0 0.0
    %1450 = vmatpush1.msra.mxu0 0.0
    %1451 = vmatprep.subr.mxu0 0.0
    %1452 = vmatpush1.msra.mxu0 0.0
    %1453 = vmatprep.subr.mxu0 0.0
    %1454 = vmatpush1.msra.mxu0 0.0
    %1455 = vmatprep.subr.mxu0 0.0
    %1456 = vmatpush1.msra.mxu0 0.0
    %1457 = vmatprep.subr.mxu0 0.0
    %1458 = vmatpush1.msra.mxu0 0.0
    %1459 = vmatprep.subr.mxu0 0.0
    %1460 = vmatpush1.msra.mxu0 0.0
    %1461 = vmatprep.subr.mxu0 0.0
    %1462 = vmatpush1.msra.mxu0 0.0
    %1463 = vmatprep.subr.mxu0 0.0
    %1464 = vmatpush1.msra.mxu0 0.0
    %1465 = vmatprep.subr.mxu0 0.0
    %1466 = vmatpush1.msra.mxu0 0.0
    %1467 = vmatprep.subr.mxu0 0.0
    %1468 = vmatpush1.msra.mxu0 0.0
    %1469 = vmatprep.subr.mxu0 0.0
    %1470 = vmatpush1.msra.mxu0 0.0
    %1471 = vmatprep.subr.mxu0 0.0
    %1472 = vmatpush1.msra.mxu0 0.0
    %1473 = vmatprep.subr.mxu0 0.0
    %1474 = vmatpush1.msra.mxu0 0.0
    %1475 = vmatprep.subr.mxu0 0.0
    %1476 = vmatpush1.msra.mxu0 0.0
    %1477 = vmatprep.subr.mxu0 0.0
    %1478 = vmatpush1.msra.mxu0 0.0
    %1479 = vmatprep.subr.mxu0 0.0
    %1480 = vmatpush1.msra.mxu0 0.0
    %1481 = vmatprep.subr.mxu0 0.0
    %1482 = vmatpush1.msra.mxu0 0.0
    %1483 = vmatprep.subr.mxu0 0.0
    %1484 = vmatpush1.msra.mxu0 0.0
    %1485 = vmatprep.subr.mxu0 0.0
    %1486 = vmatpush1.msra.mxu0 0.0
    %1487 = vmatprep.subr.mxu0 0.0
    %1488 = vmatpush1.msra.mxu0 0.0
    %1489 = vmatprep.subr.mxu0 0.0
    %1490 = vmatpush1.msra.mxu0 0.0
    %1491 = vmatprep.subr.mxu0 0.0
    %1492 = vmatpush1.msra.mxu0 0.0
    %1493 = vmatprep.subr.mxu0 0.0
    %1494 = vmatpush1.msra.mxu0 0.0
    %1495 = vmatprep.subr.mxu0 0.0
    %1496 = vmatpush1.msra.mxu0 0.0
    %1497 = vmatprep.subr.mxu0 0.0
    %1498 = vmatpush1.msra.mxu0 0.0
    %1499 = vmatprep.subr.mxu0 0.0
    %1500 = vmatpush1.msra.mxu0 0.0
    %1501 = vmatprep.subr.mxu0 0.0
    %1502 = vmatpush1.msra.mxu0 0.0
    %1503 = vmatprep.subr.mxu0 0.0
    %1504 = vmatpush1.msra.mxu0 0.0
    %1505 = vmatprep.subr.mxu0 0.0
    %1506 = vmatpush1.msra.mxu0 0.0
    %1507 = vmatprep.mubr.f32.mxu0 0.0
    %1508 = vmatmul.mubr.f32.gmra.mrb[0].mxu0 %v1441
    %v1509 = vpop.f32.mrb[0].mxu0
    %v1510 = vadd.f32 0.0, %v1509
    %v1511 = vpop.f32.mrb[0].mxu0
    %1512 = vdwg.mxu0
    %1514 = vrot.lane.b32.xlu0 %v1510, 64
    %v1515 = vpop.permute.xlu0 %1514
    %v1517 = vsel %vm1436, %v1510, %v1515
    %v1518 = vadd.f32 %v1437, %v1517
    %v1519 = vxor.u32 %v1518, 2147483648
    %v1520 = vmul.f32 %v1519, 1.442695
    %v1521 = vpow.pop %v1520
    %v1522 = vadd.f32 %v1521, 1.0
    %v1523 = vrcp.pop %v1522
    %v1524 = vmul.f32 1.0, %v1523
    %v1525 = vtanh.pop %v1518
    %v1526 = vmul.f32 %v1524, 0.0
    %1528 = vrot.lane.b32.xlu0 %v1525, 80
    %v1529 = vpop.permute.xlu0 %1528
    %v1531 = vmul.f32 %v1524, %v1529
    %1533 = vrot.lane.b32.xlu0 %v1531, 16
    %v1534 = vpop.permute.xlu0 %1533
    %v1536 = vadd.f32 %v1526, %v1534
    %v1537 = vtanh.pop %v1536
    %1539 = vrot.lane.b32.xlu0 %v1537, 16
    %v1540 = vpop.permute.xlu0 %1539
    %v1542 = vmul.f32 %v1524, %v1540
    %1544 = vrot.lane.b32.xlu0 %v1542, 96
    %v1545 = vpop.permute.xlu0 %1544
    %vm1547 = vcmask 122880
    %1548 = vst.msk [vmem:[#allocation2] sm:$0x1] %vm1547, %v1545
    %1549 = vrot.lane.b32.xlu0 %v1542, 112
    %v1550 = vpop.permute.xlu0 %1549
    %vm1552 = vcmask 255105
    %1553 = vst.msk [vmem:[#allocation2 + $0xe] sm:$0x2] %vm1552, %v1550
    %v1554 = vld [vmem:[#allocation3 + $0x1] sm:$0x1]
    %v1555 = vld [vmem:[#allocation3 + $0xe] sm:$0x1]
    %v1557 = vrot.slane %v1555, 7
    %1558 = vrot.lane.b32.xlu0 %v1557, 64
    %v1559 = vpop.permute.xlu0 %1558
    %v1561 = vsel %vm1436, %v1554, %v1559
    %v1562 = vld [vmem:[#allocation10] sm:$0xff]
    %v1563 = vld [vmem:[#allocation10 + $0x8] sm:$0xff]
    %v1564 = vsel %vm462, %v1545, 0
    %1566 = vmatprep.subr.mxu0 0.0
    %1567 = vmatpush1.msra.mxu0 %v1562
    %1568 = vmatprep.subr.mxu0 0.0
    %1569 = vmatpush1.msra.mxu0 %v1563
    %1570 = vmatprep.subr.mxu0 0.0
    %1571 = vmatpush1.msra.mxu0 0.0
    %1572 = vmatprep.subr.mxu0 0.0
    %1573 = vmatpush1.msra.mxu0 0.0
    %1574 = vmatprep.subr.mxu0 0.0
    %1575 = vmatpush1.msra.mxu0 0.0
    %1576 = vmatprep.subr.mxu0 0.0
    %1577 = vmatpush1.msra.mxu0 0.0
    %1578 = vmatprep.subr.mxu0 0.0
    %1579 = vmatpush1.msra.mxu0 0.0
    %1580 = vmatprep.subr.mxu0 0.0
    %1581 = vmatpush1.msra.mxu0 0.0
    %1582 = vmatprep.subr.mxu0 0.0
    %1583 = vmatpush1.msra.mxu0 0.0
    %1584 = vmatprep.subr.mxu0 0.0
    %1585 = vmatpush1.msra.mxu0 0.0
    %1586 = vmatprep.subr.mxu0 0.0
    %1587 = vmatpush1.msra.mxu0 0.0
    %1588 = vmatprep.subr.mxu0 0.0
    %1589 = vmatpush1.msra.mxu0 0.0
    %1590 = vmatprep.subr.mxu0 0.0
    %1591 = vmatpush1.msra.mxu0 0.0
    %1592 = vmatprep.subr.mxu0 0.0
    %1593 = vmatpush1.msra.mxu0 0.0
    %1594 = vmatprep.subr.mxu0 0.0
    %1595 = vmatpush1.msra.mxu0 0.0
    %1596 = vmatprep.subr.mxu0 0.0
    %1597 = vmatpush1.msra.mxu0 0.0
    %1598 = vmatprep.subr.mxu0 0.0
    %1599 = vmatpush1.msra.mxu0 0.0
    %1600 = vmatprep.subr.mxu0 0.0
    %1601 = vmatpush1.msra.mxu0 0.0
    %1602 = vmatprep.subr.mxu0 0.0
    %1603 = vmatpush1.msra.mxu0 0.0
    %1604 = vmatprep.subr.mxu0 0.0
    %1605 = vmatpush1.msra.mxu0 0.0
    %1606 = vmatprep.subr.mxu0 0.0
    %1607 = vmatpush1.msra.mxu0 0.0
    %1608 = vmatprep.subr.mxu0 0.0
    %1609 = vmatpush1.msra.mxu0 0.0
    %1610 = vmatprep.subr.mxu0 0.0
    %1611 = vmatpush1.msra.mxu0 0.0
    %1612 = vmatprep.subr.mxu0 0.0
    %1613 = vmatpush1.msra.mxu0 0.0
    %1614 = vmatprep.subr.mxu0 0.0
    %1615 = vmatpush1.msra.mxu0 0.0
    %1616 = vmatprep.subr.mxu0 0.0
    %1617 = vmatpush1.msra.mxu0 0.0
    %1618 = vmatprep.subr.mxu0 0.0
    %1619 = vmatpush1.msra.mxu0 0.0
    %1620 = vmatprep.subr.mxu0 0.0
    %1621 = vmatpush1.msra.mxu0 0.0
    %1622 = vmatprep.subr.mxu0 0.0
    %1623 = vmatpush1.msra.mxu0 0.0
    %1624 = vmatprep.subr.mxu0 0.0
    %1625 = vmatpush1.msra.mxu0 0.0
    %1626 = vmatprep.subr.mxu0 0.0
    %1627 = vmatpush1.msra.mxu0 0.0
    %1628 = vmatprep.subr.mxu0 0.0
    %1629 = vmatpush1.msra.mxu0 0.0
    %1630 = vmatprep.mubr.f32.mxu0 0.0
    %1631 = vmatmul.mubr.f32.gmra.mrb[0].mxu0 %v1564
    %v1632 = vpop.f32.mrb[0].mxu0
    %v1633 = vadd.f32 0.0, %v1632
    %v1634 = vpop.f32.mrb[0].mxu0
    %1635 = vdwg.mxu0
    %1637 = vrot.lane.b32.xlu0 %v1633, 64
    %v1638 = vpop.permute.xlu0 %1637
    %v1640 = vsel %vm1436, %v1633, %v1638
    %v1641 = vadd.f32 %v1561, %v1640
    %v1642 = vxor.u32 %v1641, 2147483648
    %v1643 = vmul.f32 %v1642, 1.442695
    %v1644 = vpow.pop %v1643
    %v1645 = vadd.f32 %v1644, 1.0
    %v1646 = vrcp.pop %v1645
    %v1647 = vmul.f32 1.0, %v1646
    %v1648 = vtanh.pop %v1641
    %v1649 = vmul.f32 %v1647, %v1536
    %1651 = vrot.lane.b32.xlu0 %v1648, 80
    %v1652 = vpop.permute.xlu0 %1651
    %v1654 = vmul.f32 %v1647, %v1652
    %1656 = vrot.lane.b32.xlu0 %v1654, 16
    %v1657 = vpop.permute.xlu0 %1656
    %v1659 = vadd.f32 %v1649, %v1657
    %v1660 = vtanh.pop %v1659
    %1662 = vrot.lane.b32.xlu0 %v1660, 16
    %v1663 = vpop.permute.xlu0 %1662
    %v1665 = vmul.f32 %v1647, %v1663
    %1667 = vrot.lane.b32.xlu0 %v1665, 96
    %v1668 = vpop.permute.xlu0 %1667
    %1670 = vst.msk [vmem:[#allocation2 + $0x1] sm:$0x1] %vm1547, %v1668
    %1671 = vrot.lane.b32.xlu0 %v1665, 112
    %v1672 = vpop.permute.xlu0 %1671
    %1674 = vst.msk [vmem:[#allocation2 + $0xd] sm:$0x2] %vm1552, %v1672
    %v1675 = vld [vmem:[#allocation3 + $0x2] sm:$0x1]
    %v1676 = vld [vmem:[#allocation3 + $0xd] sm:$0x1]
    %v1678 = vrot.slane %v1676, 7
    %1679 = vrot.lane.b32.xlu0 %v1678, 64
    %v1680 = vpop.permute.xlu0 %1679
    %v1682 = vsel %vm1436, %v1675, %v1680
    %v1683 = vld [vmem:[#allocation10] sm:$0xff]
    %v1684 = vld [vmem:[#allocation10 + $0x8] sm:$0xff]
    %v1685 = vsel %vm462, %v1668, 0
    %1687 = vmatprep.subr.mxu0 0.0
    %1688 = vmatpush1.msra.mxu0 %v1683
    %1689 = vmatprep.subr.mxu0 0.0
    %1690 = vmatpush1.msra.mxu0 %v1684
    %1691 = vmatprep.subr.mxu0 0.0
    %1692 = vmatpush1.msra.mxu0 0.0
    %1693 = vmatprep.subr.mxu0 0.0
    %1694 = vmatpush1.msra.mxu0 0.0
    %1695 = vmatprep.subr.mxu0 0.0
    %1696 = vmatpush1.msra.mxu0 0.0
    %1697 = vmatprep.subr.mxu0 0.0
    %1698 = vmatpush1.msra.mxu0 0.0
    %1699 = vmatprep.subr.mxu0 0.0
    %1700 = vmatpush1.msra.mxu0 0.0
    %1701 = vmatprep.subr.mxu0 0.0
    %1702 = vmatpush1.msra.mxu0 0.0
    %1703 = vmatprep.subr.mxu0 0.0
    %1704 = vmatpush1.msra.mxu0 0.0
    %1705 = vmatprep.subr.mxu0 0.0
    %1706 = vmatpush1.msra.mxu0 0.0
    %1707 = vmatprep.subr.mxu0 0.0
    %1708 = vmatpush1.msra.mxu0 0.0
    %1709 = vmatprep.subr.mxu0 0.0
    %1710 = vmatpush1.msra.mxu0 0.0
    %1711 = vmatprep.subr.mxu0 0.0
    %1712 = vmatpush1.msra.mxu0 0.0
    %1713 = vmatprep.subr.mxu0 0.0
    %1714 = vmatpush1.msra.mxu0 0.0
    %1715 = vmatprep.subr.mxu0 0.0
    %1716 = vmatpush1.msra.mxu0 0.0
    %1717 = vmatprep.subr.mxu0 0.0
    %1718 = vmatpush1.msra.mxu0 0.0
    %1719 = vmatprep.subr.mxu0 0.0
    %1720 = vmatpush1.msra.mxu0 0.0
    %1721 = vmatprep.subr.mxu0 0.0
    %1722 = vmatpush1.msra.mxu0 0.0
    %1723 = vmatprep.subr.mxu0 0.0
    %1724 = vmatpush1.msra.mxu0 0.0
    %1725 = vmatprep.subr.mxu0 0.0
    %1726 = vmatpush1.msra.mxu0 0.0
    %1727 = vmatprep.subr.mxu0 0.0
    %1728 = vmatpush1.msra.mxu0 0.0
    %1729 = vmatprep.subr.mxu0 0.0
    %1730 = vmatpush1.msra.mxu0 0.0
    %1731 = vmatprep.subr.mxu0 0.0
    %1732 = vmatpush1.msra.mxu0 0.0
    %1733 = vmatprep.subr.mxu0 0.0
    %1734 = vmatpush1.msra.mxu0 0.0
    %1735 = vmatprep.subr.mxu0 0.0
    %1736 = vmatpush1.msra.mxu0 0.0
    %1737 = vmatprep.subr.mxu0 0.0
    %1738 = vmatpush1.msra.mxu0 0.0
    %1739 = vmatprep.subr.mxu0 0.0
    %1740 = vmatpush1.msra.mxu0 0.0
    %1741 = vmatprep.subr.mxu0 0.0
    %1742 = vmatpush1.msra.mxu0 0.0
    %1743 = vmatprep.subr.mxu0 0.0
    %1744 = vmatpush1.msra.mxu0 0.0
    %1745 = vmatprep.subr.mxu0 0.0
    %1746 = vmatpush1.msra.mxu0 0.0
    %1747 = vmatprep.subr.mxu0 0.0
    %1748 = vmatpush1.msra.mxu0 0.0
    %1749 = vmatprep.subr.mxu0 0.0
    %1750 = vmatpush1.msra.mxu0 0.0
    %1751 = vmatprep.mubr.f32.mxu0 0.0
    %1752 = vmatmul.mubr.f32.gmra.mrb[0].mxu0 %v1685
    %v1753 = vpop.f32.mrb[0].mxu0
    %v1754 = vadd.f32 0.0, %v1753
    %v1755 = vpop.f32.mrb[0].mxu0
    %1756 = vdwg.mxu0
    %1758 = vrot.lane.b32.xlu0 %v1754, 64
    %v1759 = vpop.permute.xlu0 %1758
    %v1761 = vsel %vm1436, %v1754, %v1759
    %v1762 = vadd.f32 %v1682, %v1761
    %v1763 = vxor.u32 %v1762, 2147483648
    %v1764 = vmul.f32 %v1763, 1.442695
    %v1765 = vpow.pop %v1764
    %v1766 = vadd.f32 %v1765, 1.0
    %v1767 = vrcp.pop %v1766
    %v1768 = vmul.f32 1.0, %v1767
    %v1769 = vtanh.pop %v1762
    %v1770 = vmul.f32 %v1768, %v1659
    %1772 = vrot.lane.b32.xlu0 %v1769, 80
    %v1773 = vpop.permute.xlu0 %1772
    %v1775 = vmul.f32 %v1768, %v1773
    %1777 = vrot.lane.b32.xlu0 %v1775, 16
    %v1778 = vpop.permute.xlu0 %1777
    %v1780 = vadd.f32 %v1770, %v1778
    %v1781 = vtanh.pop %v1780
    %1783 = vrot.lane.b32.xlu0 %v1781, 16
    %v1784 = vpop.permute.xlu0 %1783
    %v1786 = vmul.f32 %v1768, %v1784
    %1788 = vrot.lane.b32.xlu0 %v1786, 96
    %v1789 = vpop.permute.xlu0 %1788
    %1791 = vst.msk [vmem:[#allocation2 + $0x2] sm:$0x1] %vm1547, %v1789
    %1792 = vrot.lane.b32.xlu0 %v1786, 112
    %v1793 = vpop.permute.xlu0 %1792
    %1795 = vst.msk [vmem:[#allocation2 + $0xc] sm:$0x2] %vm1552, %v1793
    %v1796 = vld [vmem:[#allocation3 + $0x3] sm:$0x1]
    %v1797 = vld [vmem:[#allocation3 + $0xc] sm:$0x1]
    %v1799 = vrot.slane %v1797, 7
    %1800 = vrot.lane.b32.xlu0 %v1799, 64
    %v1801 = vpop.permute.xlu0 %1800
    %v1803 = vsel %vm1436, %v1796, %v1801
    %v1804 = vld [vmem:[#allocation10] sm:$0xff]
    %v1805 = vld [vmem:[#allocation10 + $0x8] sm:$0xff]
    %v1806 = vsel %vm462, %v1789, 0
    %1808 = vmatprep.subr.mxu0 0.0
    %1809 = vmatpush1.msra.mxu0 %v1804
    %1810 = vmatprep.subr.mxu0 0.0
    %1811 = vmatpush1.msra.mxu0 %v1805
    %1812 = vmatprep.subr.mxu0 0.0
    %1813 = vmatpush1.msra.mxu0 0.0
    %1814 = vmatprep.subr.mxu0 0.0
    %1815 = vmatpush1.msra.mxu0 0.0
    %1816 = vmatprep.subr.mxu0 0.0
    %1817 = vmatpush1.msra.mxu0 0.0
    %1818 = vmatprep.subr.mxu0 0.0
    %1819 = vmatpush1.msra.mxu0 0.0
    %1820 = vmatprep.subr.mxu0 0.0
    %1821 = vmatpush1.msra.mxu0 0.0
    %1822 = vmatprep.subr.mxu0 0.0
    %1823 = vmatpush1.msra.mxu0 0.0
    %1824 = vmatprep.subr.mxu0 0.0
    %1825 = vmatpush1.msra.mxu0 0.0
    %1826 = vmatprep.subr.mxu0 0.0
    %1827 = vmatpush1.msra.mxu0 0.0
    %1828 = vmatprep.subr.mxu0 0.0
    %1829 = vmatpush1.msra.mxu0 0.0
    %1830 = vmatprep.subr.mxu0 0.0
    %1831 = vmatpush1.msra.mxu0 0.0
    %1832 = vmatprep.subr.mxu0 0.0
    %1833 = vmatpush1.msra.mxu0 0.0
    %1834 = vmatprep.subr.mxu0 0.0
    %1835 = vmatpush1.msra.mxu0 0.0
    %1836 = vmatprep.subr.mxu0 0.0
    %1837 = vmatpush1.msra.mxu0 0.0
    %1838 = vmatprep.subr.mxu0 0.0
    %1839 = vmatpush1.msra.mxu0 0.0
    %1840 = vmatprep.subr.mxu0 0.0
    %1841 = vmatpush1.msra.mxu0 0.0
    %1842 = vmatprep.subr.mxu0 0.0
    %1843 = vmatpush1.msra.mxu0 0.0
    %1844 = vmatprep.subr.mxu0 0.0
    %1845 = vmatpush1.msra.mxu0 0.0
    %1846 = vmatprep.subr.mxu0 0.0
    %1847 = vmatpush1.msra.mxu0 0.0
    %1848 = vmatprep.subr.mxu0 0.0
    %1849 = vmatpush1.msra.mxu0 0.0
    %1850 = vmatprep.subr.mxu0 0.0
    %1851 = vmatpush1.msra.mxu0 0.0
    %1852 = vmatprep.subr.mxu0 0.0
    %1853 = vmatpush1.msra.mxu0 0.0
    %1854 = vmatprep.subr.mxu0 0.0
    %1855 = vmatpush1.msra.mxu0 0.0
    %1856 = vmatprep.subr.mxu0 0.0
    %1857 = vmatpush1.msra.mxu0 0.0
    %1858 = vmatprep.subr.mxu0 0.0
    %1859 = vmatpush1.msra.mxu0 0.0
    %1860 = vmatprep.subr.mxu0 0.0
    %1861 = vmatpush1.msra.mxu0 0.0
    %1862 = vmatprep.subr.mxu0 0.0
    %1863 = vmatpush1.msra.mxu0 0.0
    %1864 = vmatprep.subr.mxu0 0.0
    %1865 = vmatpush1.msra.mxu0 0.0
    %1866 = vmatprep.subr.mxu0 0.0
    %1867 = vmatpush1.msra.mxu0 0.0
    %1868 = vmatprep.subr.mxu0 0.0
    %1869 = vmatpush1.msra.mxu0 0.0
    %1870 = vmatprep.subr.mxu0 0.0
    %1871 = vmatpush1.msra.mxu0 0.0
    %1872 = vmatprep.mubr.f32.mxu0 0.0
    %1873 = vmatmul.mubr.f32.gmra.mrb[0].mxu0 %v1806
    %v1874 = vpop.f32.mrb[0].mxu0
    %v1875 = vadd.f32 0.0, %v1874
    %v1876 = vpop.f32.mrb[0].mxu0
    %1877 = vdwg.mxu0
    %1879 = vrot.lane.b32.xlu0 %v1875, 64
    %v1880 = vpop.permute.xlu0 %1879
    %v1882 = vsel %vm1436, %v1875, %v1880
    %v1883 = vadd.f32 %v1803, %v1882
    %v1884 = vxor.u32 %v1883, 2147483648
    %v1885 = vmul.f32 %v1884, 1.442695
    %v1886 = vpow.pop %v1885
    %v1887 = vadd.f32 %v1886, 1.0
    %v1888 = vrcp.pop %v1887
    %v1889 = vmul.f32 1.0, %v1888
    %v1890 = vtanh.pop %v1883
    %v1891 = vmul.f32 %v1889, %v1780
    %1893 = vrot.lane.b32.xlu0 %v1890, 80
    %v1894 = vpop.permute.xlu0 %1893
    %v1896 = vmul.f32 %v1889, %v1894
    %1898 = vrot.lane.b32.xlu0 %v1896, 16
    %v1899 = vpop.permute.xlu0 %1898
    %v1901 = vadd.f32 %v1891, %v1899
    %v1902 = vtanh.pop %v1901
    %1904 = vrot.lane.b32.xlu0 %v1902, 16
    %v1905 = vpop.permute.xlu0 %1904
    %v1907 = vmul.f32 %v1889, %v1905
    %1909 = vrot.lane.b32.xlu0 %v1907, 96
    %v1910 = vpop.permute.xlu0 %1909
    %1912 = vst.msk [vmem:[#allocation2 + $0x3] sm:$0x1] %vm1547, %v1910
    %1913 = vrot.lane.b32.xlu0 %v1907, 112
    %v1914 = vpop.permute.xlu0 %1913
    %1916 = vst.msk [vmem:[#allocation2 + $0xb] sm:$0x2] %vm1552, %v1914
    %v1917 = vld [vmem:[#allocation3 + $0x4] sm:$0x1]
    %v1918 = vld [vmem:[#allocation3 + $0xb] sm:$0x1]
    %v1920 = vrot.slane %v1918, 7
    %1921 = vrot.lane.b32.xlu0 %v1920, 64
    %v1922 = vpop.permute.xlu0 %1921
    %v1924 = vsel %vm1436, %v1917, %v1922
    %v1925 = vld [vmem:[#allocation10] sm:$0xff]
    %v1926 = vld [vmem:[#allocation10 + $0x8] sm:$0xff]
    %v1927 = vsel %vm462, %v1910, 0
    %1929 = vmatprep.subr.mxu0 0.0
    %1930 = vmatpush1.msra.mxu0 %v1925
    %1931 = vmatprep.subr.mxu0 0.0
    %1932 = vmatpush1.msra.mxu0 %v1926
    %1933 = vmatprep.subr.mxu0 0.0
    %1934 = vmatpush1.msra.mxu0 0.0
    %1935 = vmatprep.subr.mxu0 0.0
    %1936 = vmatpush1.msra.mxu0 0.0
    %1937 = vmatprep.subr.mxu0 0.0
    %1938 = vmatpush1.msra.mxu0 0.0
    %1939 = vmatprep.subr.mxu0 0.0
    %1940 = vmatpush1.msra.mxu0 0.0
    %1941 = vmatprep.subr.mxu0 0.0
    %1942 = vmatpush1.msra.mxu0 0.0
    %1943 = vmatprep.subr.mxu0 0.0
    %1944 = vmatpush1.msra.mxu0 0.0
    %1945 = vmatprep.subr.mxu0 0.0
    %1946 = vmatpush1.msra.mxu0 0.0
    %1947 = vmatprep.subr.mxu0 0.0
    %1948 = vmatpush1.msra.mxu0 0.0
    %1949 = vmatprep.subr.mxu0 0.0
    %1950 = vmatpush1.msra.mxu0 0.0
    %1951 = vmatprep.subr.mxu0 0.0
    %1952 = vmatpush1.msra.mxu0 0.0
    %1953 = vmatprep.subr.mxu0 0.0
    %1954 = vmatpush1.msra.mxu0 0.0
    %1955 = vmatprep.subr.mxu0 0.0
    %1956 = vmatpush1.msra.mxu0 0.0
    %1957 = vmatprep.subr.mxu0 0.0
    %1958 = vmatpush1.msra.mxu0 0.0
    %1959 = vmatprep.subr.mxu0 0.0
    %1960 = vmatpush1.msra.mxu0 0.0
    %1961 = vmatprep.subr.mxu0 0.0
    %1962 = vmatpush1.msra.mxu0 0.0
    %1963 = vmatprep.subr.mxu0 0.0
    %1964 = vmatpush1.msra.mxu0 0.0
    %1965 = vmatprep.subr.mxu0 0.0
    %1966 = vmatpush1.msra.mxu0 0.0
    %1967 = vmatprep.subr.mxu0 0.0
    %1968 = vmatpush1.msra.mxu0 0.0
    %1969 = vmatprep.subr.mxu0 0.0
    %1970 = vmatpush1.msra.mxu0 0.0
    %1971 = vmatprep.subr.mxu0 0.0
    %1972 = vmatpush1.msra.mxu0 0.0
    %1973 = vmatprep.subr.mxu0 0.0
    %1974 = vmatpush1.msra.mxu0 0.0
    %1975 = vmatprep.subr.mxu0 0.0
    %1976 = vmatpush1.msra.mxu0 0.0
    %1977 = vmatprep.subr.mxu0 0.0
    %1978 = vmatpush1.msra.mxu0 0.0
    %1979 = vmatprep.subr.mxu0 0.0
    %1980 = vmatpush1.msra.mxu0 0.0
    %1981 = vmatprep.subr.mxu0 0.0
    %1982 = vmatpush1.msra.mxu0 0.0
    %1983 = vmatprep.subr.mxu0 0.0
    %1984 = vmatpush1.msra.mxu0 0.0
    %1985 = vmatprep.subr.mxu0 0.0
    %1986 = vmatpush1.msra.mxu0 0.0
    %1987 = vmatprep.subr.mxu0 0.0
    %1988 = vmatpush1.msra.mxu0 0.0
    %1989 = vmatprep.subr.mxu0 0.0
    %1990 = vmatpush1.msra.mxu0 0.0
    %1991 = vmatprep.subr.mxu0 0.0
    %1992 = vmatpush1.msra.mxu0 0.0
    %1993 = vmatprep.mubr.f32.mxu0 0.0
    %1994 = vmatmul.mubr.f32.gmra.mrb[0].mxu0 %v1927
    %v1995 = vpop.f32.mrb[0].mxu0
    %v1996 = vadd.f32 0.0, %v1995
    %v1997 = vpop.f32.mrb[0].mxu0
    %1998 = vdwg.mxu0
    %2000 = vrot.lane.b32.xlu0 %v1996, 64
    %v2001 = vpop.permute.xlu0 %2000
    %v2003 = vsel %vm1436, %v1996, %v2001
    %v2004 = vadd.f32 %v1924, %v2003
    %v2005 = vxor.u32 %v2004, 2147483648
    %v2006 = vmul.f32 %v2005, 1.442695
    %v2007 = vpow.pop %v2006
    %v2008 = vadd.f32 %v2007, 1.0
    %v2009 = vrcp.pop %v2008
    %v2010 = vmul.f32 1.0, %v2009
    %v2011 = vtanh.pop %v2004
    %v2012 = vmul.f32 %v2010, %v1901
    %2014 = vrot.lane.b32.xlu0 %v2011, 80
    %v2015 = vpop.permute.xlu0 %2014
    %v2017 = vmul.f32 %v2010, %v2015
    %2019 = vrot.lane.b32.xlu0 %v2017, 16
    %v2020 = vpop.permute.xlu0 %2019
    %v2022 = vadd.f32 %v2012, %v2020
    %v2023 = vtanh.pop %v2022
    %2025 = vrot.lane.b32.xlu0 %v2023, 16
    %v2026 = vpop.permute.xlu0 %2025
    %v2028 = vmul.f32 %v2010, %v2026
    %2030 = vrot.lane.b32.xlu0 %v2028, 96
    %v2031 = vpop.permute.xlu0 %2030
    %2033 = vst.msk [vmem:[#allocation2 + $0x4] sm:$0x1] %vm1547, %v2031
    %2034 = vrot.lane.b32.xlu0 %v2028, 112
    %v2035 = vpop.permute.xlu0 %2034
    %2037 = vst.msk [vmem:[#allocation2 + $0xa] sm:$0x2] %vm1552, %v2035
    %v2038 = vld [vmem:[#allocation3 + $0x5] sm:$0x1]
    %v2039 = vld [vmem:[#allocation3 + $0xa] sm:$0x1]
    %v2041 = vrot.slane %v2039, 7
    %2042 = vrot.lane.b32.xlu0 %v2041, 64
    %v2043 = vpop.permute.xlu0 %2042
    %v2045 = vsel %vm1436, %v2038, %v2043
    %v2046 = vld [vmem:[#allocation10] sm:$0xff]
    %v2047 = vld [vmem:[#allocation10 + $0x8] sm:$0xff]
    %v2048 = vsel %vm462, %v2031, 0
    %2050 = vmatprep.subr.mxu0 0.0
    %2051 = vmatpush1.msra.mxu0 %v2046
    %2052 = vmatprep.subr.mxu0 0.0
    %2053 = vmatpush1.msra.mxu0 %v2047
    %2054 = vmatprep.subr.mxu0 0.0
    %2055 = vmatpush1.msra.mxu0 0.0
    %2056 = vmatprep.subr.mxu0 0.0
    %2057 = vmatpush1.msra.mxu0 0.0
    %2058 = vmatprep.subr.mxu0 0.0
    %2059 = vmatpush1.msra.mxu0 0.0
    %2060 = vmatprep.subr.mxu0 0.0
    %2061 = vmatpush1.msra.mxu0 0.0
    %2062 = vmatprep.subr.mxu0 0.0
    %2063 = vmatpush1.msra.mxu0 0.0
    %2064 = vmatprep.subr.mxu0 0.0
    %2065 = vmatpush1.msra.mxu0 0.0
    %2066 = vmatprep.subr.mxu0 0.0
    %2067 = vmatpush1.msra.mxu0 0.0
    %2068 = vmatprep.subr.mxu0 0.0
    %2069 = vmatpush1.msra.mxu0 0.0
    %2070 = vmatprep.subr.mxu0 0.0
    %2071 = vmatpush1.msra.mxu0 0.0
    %2072 = vmatprep.subr.mxu0 0.0
    %2073 = vmatpush1.msra.mxu0 0.0
    %2074 = vmatprep.subr.mxu0 0.0
    %2075 = vmatpush1.msra.mxu0 0.0
    %2076 = vmatprep.subr.mxu0 0.0
    %2077 = vmatpush1.msra.mxu0 0.0
    %2078 = vmatprep.subr.mxu0 0.0
    %2079 = vmatpush1.msra.mxu0 0.0
    %2080 = vmatprep.subr.mxu0 0.0
    %2081 = vmatpush1.msra.mxu0 0.0
    %2082 = vmatprep.subr.mxu0 0.0
    %2083 = vmatpush1.msra.mxu0 0.0
    %2084 = vmatprep.subr.mxu0 0.0
    %2085 = vmatpush1.msra.mxu0 0.0
    %2086 = vmatprep.subr.mxu0 0.0
    %2087 = vmatpush1.msra.mxu0 0.0
    %2088 = vmatprep.subr.mxu0 0.0
    %2089 = vmatpush1.msra.mxu0 0.0
    %2090 = vmatprep.subr.mxu0 0.0
    %2091 = vmatpush1.msra.mxu0 0.0
    %2092 = vmatprep.subr.mxu0 0.0
    %2093 = vmatpush1.msra.mxu0 0.0
    %2094 = vmatprep.subr.mxu0 0.0
    %2095 = vmatpush1.msra.mxu0 0.0
    %2096 = vmatprep.subr.mxu0 0.0
    %2097 = vmatpush1.msra.mxu0 0.0
    %2098 = vmatprep.subr.mxu0 0.0
    %2099 = vmatpush1.msra.mxu0 0.0
    %2100 = vmatprep.subr.mxu0 0.0
    %2101 = vmatpush1.msra.mxu0 0.0
    %2102 = vmatprep.subr.mxu0 0.0
    %2103 = vmatpush1.msra.mxu0 0.0
    %2104 = vmatprep.subr.mxu0 0.0
    %2105 = vmatpush1.msra.mxu0 0.0
    %2106 = vmatprep.subr.mxu0 0.0
    %2107 = vmatpush1.msra.mxu0 0.0
    %2108 = vmatprep.subr.mxu0 0.0
    %2109 = vmatpush1.msra.mxu0 0.0
    %2110 = vmatprep.subr.mxu0 0.0
    %2111 = vmatpush1.msra.mxu0 0.0
    %2112 = vmatprep.subr.mxu0 0.0
    %2113 = vmatpush1.msra.mxu0 0.0
    %2114 = vmatprep.mubr.f32.mxu0 0.0
    %2115 = vmatmul.mubr.f32.gmra.mrb[0].mxu0 %v2048
    %v2116 = vpop.f32.mrb[0].mxu0
    %v2117 = vadd.f32 0.0, %v2116
    %v2118 = vpop.f32.mrb[0].mxu0
    %2119 = vdwg.mxu0
    %2121 = vrot.lane.b32.xlu0 %v2117, 64
    %v2122 = vpop.permute.xlu0 %2121
    %v2124 = vsel %vm1436, %v2117, %v2122
    %v2125 = vadd.f32 %v2045, %v2124
    %v2126 = vxor.u32 %v2125, 2147483648
    %v2127 = vmul.f32 %v2126, 1.442695
    %v2128 = vpow.pop %v2127
    %v2129 = vadd.f32 %v2128, 1.0
    %v2130 = vrcp.pop %v2129
    %v2131 = vmul.f32 1.0, %v2130
    %v2132 = vtanh.pop %v2125
    %v2133 = vmul.f32 %v2131, %v2022
    %2135 = vrot.lane.b32.xlu0 %v2132, 80
    %v2136 = vpop.permute.xlu0 %2135
    %v2138 = vmul.f32 %v2131, %v2136
    %2140 = vrot.lane.b32.xlu0 %v2138, 16
    %v2141 = vpop.permute.xlu0 %2140
    %v2143 = vadd.f32 %v2133, %v2141
    %v2144 = vtanh.pop %v2143
    %2146 = vrot.lane.b32.xlu0 %v2144, 16
    %v2147 = vpop.permute.xlu0 %2146
    %v2149 = vmul.f32 %v2131, %v2147
    %2151 = vrot.lane.b32.xlu0 %v2149, 96
    %v2152 = vpop.permute.xlu0 %2151
    %2154 = vst.msk [vmem:[#allocation2 + $0x5] sm:$0x1] %vm1547, %v2152
    %2155 = vrot.lane.b32.xlu0 %v2149, 112
    %v2156 = vpop.permute.xlu0 %2155
    %2158 = vst.msk [vmem:[#allocation2 + $0x9] sm:$0x2] %vm1552, %v2156
    %v2159 = vld [vmem:[#allocation3 + $0x6] sm:$0x1]
    %v2160 = vld [vmem:[#allocation3 + $0x9] sm:$0x1]
    %v2162 = vrot.slane %v2160, 7
    %2163 = vrot.lane.b32.xlu0 %v2162, 64
    %v2164 = vpop.permute.xlu0 %2163
    %v2166 = vsel %vm1436, %v2159, %v2164
    %v2167 = vld [vmem:[#allocation10] sm:$0xff]
    %v2168 = vld [vmem:[#allocation10 + $0x8] sm:$0xff]
    %v2169 = vsel %vm462, %v2152, 0
    %2171 = vmatprep.subr.mxu0 0.0
    %2172 = vmatpush1.msra.mxu0 %v2167
    %2173 = vmatprep.subr.mxu0 0.0
    %2174 = vmatpush1.msra.mxu0 %v2168
    %2175 = vmatprep.subr.mxu0 0.0
    %2176 = vmatpush1.msra.mxu0 0.0
    %2177 = vmatprep.subr.mxu0 0.0
    %2178 = vmatpush1.msra.mxu0 0.0
    %2179 = vmatprep.subr.mxu0 0.0
    %2180 = vmatpush1.msra.mxu0 0.0
    %2181 = vmatprep.subr.mxu0 0.0
    %2182 = vmatpush1.msra.mxu0 0.0
    %2183 = vmatprep.subr.mxu0 0.0
    %2184 = vmatpush1.msra.mxu0 0.0
    %2185 = vmatprep.subr.mxu0 0.0
    %2186 = vmatpush1.msra.mxu0 0.0
    %2187 = vmatprep.subr.mxu0 0.0
    %2188 = vmatpush1.msra.mxu0 0.0
    %2189 = vmatprep.subr.mxu0 0.0
    %2190 = vmatpush1.msra.mxu0 0.0
    %2191 = vmatprep.subr.mxu0 0.0
    %2192 = vmatpush1.msra.mxu0 0.0
    %2193 = vmatprep.subr.mxu0 0.0
    %2194 = vmatpush1.msra.mxu0 0.0
    %2195 = vmatprep.subr.mxu0 0.0
    %2196 = vmatpush1.msra.mxu0 0.0
    %2197 = vmatprep.subr.mxu0 0.0
    %2198 = vmatpush1.msra.mxu0 0.0
    %2199 = vmatprep.subr.mxu0 0.0
    %2200 = vmatpush1.msra.mxu0 0.0
    %2201 = vmatprep.subr.mxu0 0.0
    %2202 = vmatpush1.msra.mxu0 0.0
    %2203 = vmatprep.subr.mxu0 0.0
    %2204 = vmatpush1.msra.mxu0 0.0
    %2205 = vmatprep.subr.mxu0 0.0
    %2206 = vmatpush1.msra.mxu0 0.0
    %2207 = vmatprep.subr.mxu0 0.0
    %2208 = vmatpush1.msra.mxu0 0.0
    %2209 = vmatprep.subr.mxu0 0.0
    %2210 = vmatpush1.msra.mxu0 0.0
    %2211 = vmatprep.subr.mxu0 0.0
    %2212 = vmatpush1.msra.mxu0 0.0
    %2213 = vmatprep.subr.mxu0 0.0
    %2214 = vmatpush1.msra.mxu0 0.0
    %2215 = vmatprep.subr.mxu0 0.0
    %2216 = vmatpush1.msra.mxu0 0.0
    %2217 = vmatprep.subr.mxu0 0.0
    %2218 = vmatpush1.msra.mxu0 0.0
    %2219 = vmatprep.subr.mxu0 0.0
    %2220 = vmatpush1.msra.mxu0 0.0
    %2221 = vmatprep.subr.mxu0 0.0
    %2222 = vmatpush1.msra.mxu0 0.0
    %2223 = vmatprep.subr.mxu0 0.0
    %2224 = vmatpush1.msra.mxu0 0.0
    %2225 = vmatprep.subr.mxu0 0.0
    %2226 = vmatpush1.msra.mxu0 0.0
    %2227 = vmatprep.subr.mxu0 0.0
    %2228 = vmatpush1.msra.mxu0 0.0
    %2229 = vmatprep.subr.mxu0 0.0
    %2230 = vmatpush1.msra.mxu0 0.0
    %2231 = vmatprep.subr.mxu0 0.0
    %2232 = vmatpush1.msra.mxu0 0.0
    %2233 = vmatprep.subr.mxu0 0.0
    %2234 = vmatpush1.msra.mxu0 0.0
    %2235 = vmatprep.mubr.f32.mxu0 0.0
    %2236 = vmatmul.mubr.f32.gmra.mrb[0].mxu0 %v2169
    %v2237 = vpop.f32.mrb[0].mxu0
    %v2238 = vadd.f32 0.0, %v2237
    %v2239 = vpop.f32.mrb[0].mxu0
    %2240 = vdwg.mxu0
    %2242 = vrot.lane.b32.xlu0 %v2238, 64
    %v2243 = vpop.permute.xlu0 %2242
    %v2245 = vsel %vm1436, %v2238, %v2243
    %v2246 = vadd.f32 %v2166, %v2245
    %v2247 = vxor.u32 %v2246, 2147483648
    %v2248 = vmul.f32 %v2247, 1.442695
    %v2249 = vpow.pop %v2248
    %v2250 = vadd.f32 %v2249, 1.0
    %v2251 = vrcp.pop %v2250
    %v2252 = vmul.f32 1.0, %v2251
    %v2253 = vtanh.pop %v2246
    %v2254 = vmul.f32 %v2252, %v2143
    %2256 = vrot.lane.b32.xlu0 %v2253, 80
    %v2257 = vpop.permute.xlu0 %2256
    %v2259 = vmul.f32 %v2252, %v2257
    %2261 = vrot.lane.b32.xlu0 %v2259, 16
    %v2262 = vpop.permute.xlu0 %2261
    %v2264 = vadd.f32 %v2254, %v2262
    %v2265 = vtanh.pop %v2264
    %2267 = vrot.lane.b32.xlu0 %v2265, 16
    %v2268 = vpop.permute.xlu0 %2267
    %v2270 = vmul.f32 %v2252, %v2268
    %2272 = vrot.lane.b32.xlu0 %v2270, 96
    %v2273 = vpop.permute.xlu0 %2272
    %2275 = vst.msk [vmem:[#allocation2 + $0x6] sm:$0x1] %vm1547, %v2273
    %2276 = vrot.lane.b32.xlu0 %v2270, 112
    %v2277 = vpop.permute.xlu0 %2276
    %2279 = vst.msk [vmem:[#allocation2 + $0x8] sm:$0x2] %vm1552, %v2277
    %v2280 = vld [vmem:[#allocation3 + $0x7] sm:$0x1]
    %v2281 = vld [vmem:[#allocation3 + $0x8] sm:$0x1]
    %v2283 = vrot.slane %v2281, 7
    %2284 = vrot.lane.b32.xlu0 %v2283, 64
    %v2285 = vpop.permute.xlu0 %2284
    %v2287 = vsel %vm1436, %v2280, %v2285
    %v2288 = vld [vmem:[#allocation10] sm:$0xff]
    %v2289 = vld [vmem:[#allocation10 + $0x8] sm:$0xff]
    %v2290 = vsel %vm462, %v2273, 0
    %2292 = vmatprep.subr.mxu0 0.0
    %2293 = vmatpush1.msra.mxu0 %v2288
    %2294 = vmatprep.subr.mxu0 0.0
    %2295 = vmatpush1.msra.mxu0 %v2289
    %2296 = vmatprep.subr.mxu0 0.0
    %2297 = vmatpush1.msra.mxu0 0.0
    %2298 = vmatprep.subr.mxu0 0.0
    %2299 = vmatpush1.msra.mxu0 0.0
    %2300 = vmatprep.subr.mxu0 0.0
    %2301 = vmatpush1.msra.mxu0 0.0
    %2302 = vmatprep.subr.mxu0 0.0
    %2303 = vmatpush1.msra.mxu0 0.0
    %2304 = vmatprep.subr.mxu0 0.0
    %2305 = vmatpush1.msra.mxu0 0.0
    %2306 = vmatprep.subr.mxu0 0.0
    %2307 = vmatpush1.msra.mxu0 0.0
    %2308 = vmatprep.subr.mxu0 0.0
    %2309 = vmatpush1.msra.mxu0 0.0
    %2310 = vmatprep.subr.mxu0 0.0
    %2311 = vmatpush1.msra.mxu0 0.0
    %2312 = vmatprep.subr.mxu0 0.0
    %2313 = vmatpush1.msra.mxu0 0.0
    %2314 = vmatprep.subr.mxu0 0.0
    %2315 = vmatpush1.msra.mxu0 0.0
    %2316 = vmatprep.subr.mxu0 0.0
    %2317 = vmatpush1.msra.mxu0 0.0
    %2318 = vmatprep.subr.mxu0 0.0
    %2319 = vmatpush1.msra.mxu0 0.0
    %2320 = vmatprep.subr.mxu0 0.0
    %2321 = vmatpush1.msra.mxu0 0.0
    %2322 = vmatprep.subr.mxu0 0.0
    %2323 = vmatpush1.msra.mxu0 0.0
    %2324 = vmatprep.subr.mxu0 0.0
    %2325 = vmatpush1.msra.mxu0 0.0
    %2326 = vmatprep.subr.mxu0 0.0
    %2327 = vmatpush1.msra.mxu0 0.0
    %2328 = vmatprep.subr.mxu0 0.0
    %2329 = vmatpush1.msra.mxu0 0.0
    %2330 = vmatprep.subr.mxu0 0.0
    %2331 = vmatpush1.msra.mxu0 0.0
    %2332 = vmatprep.subr.mxu0 0.0
    %2333 = vmatpush1.msra.mxu0 0.0
    %2334 = vmatprep.subr.mxu0 0.0
    %2335 = vmatpush1.msra.mxu0 0.0
    %2336 = vmatprep.subr.mxu0 0.0
    %2337 = vmatpush1.msra.mxu0 0.0
    %2338 = vmatprep.subr.mxu0 0.0
    %2339 = vmatpush1.msra.mxu0 0.0
    %2340 = vmatprep.subr.mxu0 0.0
    %2341 = vmatpush1.msra.mxu0 0.0
    %2342 = vmatprep.subr.mxu0 0.0
    %2343 = vmatpush1.msra.mxu0 0.0
    %2344 = vmatprep.subr.mxu0 0.0
    %2345 = vmatpush1.msra.mxu0 0.0
    %2346 = vmatprep.subr.mxu0 0.0
    %2347 = vmatpush1.msra.mxu0 0.0
    %2348 = vmatprep.subr.mxu0 0.0
    %2349 = vmatpush1.msra.mxu0 0.0
    %2350 = vmatprep.subr.mxu0 0.0
    %2351 = vmatpush1.msra.mxu0 0.0
    %2352 = vmatprep.subr.mxu0 0.0
    %2353 = vmatpush1.msra.mxu0 0.0
    %2354 = vmatprep.subr.mxu0 0.0
    %2355 = vmatpush1.msra.mxu0 0.0
    %2356 = vmatprep.mubr.f32.mxu0 0.0
    %2357 = vmatmul.mubr.f32.gmra.mrb[0].mxu0 %v2290
    %v2358 = vpop.f32.mrb[0].mxu0
    %v2359 = vadd.f32 0.0, %v2358
    %v2360 = vpop.f32.mrb[0].mxu0
    %2361 = vdwg.mxu0
    %2363 = vrot.lane.b32.xlu0 %v2359, 64
    %v2364 = vpop.permute.xlu0 %2363
    %v2366 = vsel %vm1436, %v2359, %v2364
    %v2367 = vadd.f32 %v2287, %v2366
    %v2368 = vxor.u32 %v2367, 2147483648
    %v2369 = vmul.f32 %v2368, 1.442695
    %v2370 = vpow.pop %v2369
    %v2371 = vadd.f32 %v2370, 1.0
    %v2372 = vrcp.pop %v2371
    %v2373 = vmul.f32 1.0, %v2372
    %v2374 = vtanh.pop %v2367
    %v2375 = vmul.f32 %v2373, %v2264
    %2377 = vrot.lane.b32.xlu0 %v2374, 80
    %v2378 = vpop.permute.xlu0 %2377
    %v2380 = vmul.f32 %v2373, %v2378
    %2382 = vrot.lane.b32.xlu0 %v2380, 16
    %v2383 = vpop.permute.xlu0 %2382
    %v2385 = vadd.f32 %v2375, %v2383
    %v2386 = vtanh.pop %v2385
    %2388 = vrot.lane.b32.xlu0 %v2386, 16
    %v2389 = vpop.permute.xlu0 %2388
    %v2391 = vmul.f32 %v2373, %v2389
    %2393 = vrot.lane.b32.xlu0 %v2391, 96
    %v2394 = vpop.permute.xlu0 %2393
    %2396 = vst.msk [vmem:[#allocation2 + $0x7] sm:$0x1] %vm1547, %v2394
    %2397 = vrot.lane.b32.xlu0 %v2391, 112
    %v2398 = vpop.permute.xlu0 %2397
    %2400 = vst.msk [vmem:[#allocation2 + $0x7] sm:$0x2] %vm1552, %v2398
    %v2401 = vld [vmem:[#allocation3 + $0x8] sm:$0x1]
    %v2402 = vld [vmem:[#allocation3 + $0x7] sm:$0x1]
    %v2404 = vrot.slane %v2402, 7
    %2405 = vrot.lane.b32.xlu0 %v2404, 64
    %v2406 = vpop.permute.xlu0 %2405
    %v2408 = vsel %vm1436, %v2401, %v2406
    %v2409 = vld [vmem:[#allocation10] sm:$0xff]
    %v2410 = vld [vmem:[#allocation10 + $0x8] sm:$0xff]
    %v2411 = vsel %vm462, %v2394, 0
    %2413 = vmatprep.subr.mxu0 0.0
    %2414 = vmatpush1.msra.mxu0 %v2409
    %2415 = vmatprep.subr.mxu0 0.0
    %2416 = vmatpush1.msra.mxu0 %v2410
    %2417 = vmatprep.subr.mxu0 0.0
    %2418 = vmatpush1.msra.mxu0 0.0
    %2419 = vmatprep.subr.mxu0 0.0
    %2420 = vmatpush1.msra.mxu0 0.0
    %2421 = vmatprep.subr.mxu0 0.0
    %2422 = vmatpush1.msra.mxu0 0.0
    %2423 = vmatprep.subr.mxu0 0.0
    %2424 = vmatpush1.msra.mxu0 0.0
    %2425 = vmatprep.subr.mxu0 0.0
    %2426 = vmatpush1.msra.mxu0 0.0
    %2427 = vmatprep.subr.mxu0 0.0
    %2428 = vmatpush1.msra.mxu0 0.0
    %2429 = vmatprep.subr.mxu0 0.0
    %2430 = vmatpush1.msra.mxu0 0.0
    %2431 = vmatprep.subr.mxu0 0.0
    %2432 = vmatpush1.msra.mxu0 0.0
    %2433 = vmatprep.subr.mxu0 0.0
    %2434 = vmatpush1.msra.mxu0 0.0
    %2435 = vmatprep.subr.mxu0 0.0
    %2436 = vmatpush1.msra.mxu0 0.0
    %2437 = vmatprep.subr.mxu0 0.0
    %2438 = vmatpush1.msra.mxu0 0.0
    %2439 = vmatprep.subr.mxu0 0.0
    %2440 = vmatpush1.msra.mxu0 0.0
    %2441 = vmatprep.subr.mxu0 0.0
    %2442 = vmatpush1.msra.mxu0 0.0
    %2443 = vmatprep.subr.mxu0 0.0
    %2444 = vmatpush1.msra.mxu0 0.0
    %2445 = vmatprep.subr.mxu0 0.0
    %2446 = vmatpush1.msra.mxu0 0.0
    %2447 = vmatprep.subr.mxu0 0.0
    %2448 = vmatpush1.msra.mxu0 0.0
    %2449 = vmatprep.subr.mxu0 0.0
    %2450 = vmatpush1.msra.mxu0 0.0
    %2451 = vmatprep.subr.mxu0 0.0
    %2452 = vmatpush1.msra.mxu0 0.0
    %2453 = vmatprep.subr.mxu0 0.0
    %2454 = vmatpush1.msra.mxu0 0.0
    %2455 = vmatprep.subr.mxu0 0.0
    %2456 = vmatpush1.msra.mxu0 0.0
    %2457 = vmatprep.subr.mxu0 0.0
    %2458 = vmatpush1.msra.mxu0 0.0
    %2459 = vmatprep.subr.mxu0 0.0
    %2460 = vmatpush1.msra.mxu0 0.0
    %2461 = vmatprep.subr.mxu0 0.0
    %2462 = vmatpush1.msra.mxu0 0.0
    %2463 = vmatprep.subr.mxu0 0.0
    %2464 = vmatpush1.msra.mxu0 0.0
    %2465 = vmatprep.subr.mxu0 0.0
    %2466 = vmatpush1.msra.mxu0 0.0
    %2467 = vmatprep.subr.mxu0 0.0
    %2468 = vmatpush1.msra.mxu0 0.0
    %2469 = vmatprep.subr.mxu0 0.0
    %2470 = vmatpush1.msra.mxu0 0.0
    %2471 = vmatprep.subr.mxu0 0.0
    %2472 = vmatpush1.msra.mxu0 0.0
    %2473 = vmatprep.subr.mxu0 0.0
    %2474 = vmatpush1.msra.mxu0 0.0
    %2475 = vmatprep.subr.mxu0 0.0
    %2476 = vmatpush1.msra.mxu0 0.0
    %2477 = vmatprep.mubr.f32.mxu0 0.0
    %2478 = vmatmul.mubr.f32.gmra.mrb[0].mxu0 %v2411
    %v2479 = vpop.f32.mrb[0].mxu0
    %v2480 = vadd.f32 0.0, %v2479
    %v2481 = vpop.f32.mrb[0].mxu0
    %2482 = vdwg.mxu0
    %2484 = vrot.lane.b32.xlu0 %v2480, 64
    %v2485 = vpop.permute.xlu0 %2484
    %v2487 = vsel %vm1436, %v2480, %v2485
    %v2488 = vadd.f32 %v2408, %v2487
    %v2489 = vxor.u32 %v2488, 2147483648
    %v2490 = vmul.f32 %v2489, 1.442695
    %v2491 = vpow.pop %v2490
    %v2492 = vadd.f32 %v2491, 1.0
    %v2493 = vrcp.pop %v2492
    %v2494 = vmul.f32 1.0, %v2493
    %v2495 = vtanh.pop %v2488
    %v2496 = vmul.f32 %v2494, %v2385
    %2498 = vrot.lane.b32.xlu0 %v2495, 80
    %v2499 = vpop.permute.xlu0 %2498
    %v2501 = vmul.f32 %v2494, %v2499
    %2503 = vrot.lane.b32.xlu0 %v2501, 16
    %v2504 = vpop.permute.xlu0 %2503
    %v2506 = vadd.f32 %v2496, %v2504
    %v2507 = vtanh.pop %v2506
    %2509 = vrot.lane.b32.xlu0 %v2507, 16
    %v2510 = vpop.permute.xlu0 %2509
    %v2512 = vmul.f32 %v2494, %v2510
    %2514 = vrot.lane.b32.xlu0 %v2512, 96
    %v2515 = vpop.permute.xlu0 %2514
    %2517 = vst.msk [vmem:[#allocation2 + $0x8] sm:$0x1] %vm1547, %v2515
    %2518 = vrot.lane.b32.xlu0 %v2512, 112
    %v2519 = vpop.permute.xlu0 %2518
    %2521 = vst.msk [vmem:[#allocation2 + $0x6] sm:$0x2] %vm1552, %v2519
    %v2522 = vld [vmem:[#allocation3 + $0x9] sm:$0x1]
    %v2523 = vld [vmem:[#allocation3 + $0x6] sm:$0x1]
    %v2525 = vrot.slane %v2523, 7
    %2526 = vrot.lane.b32.xlu0 %v2525, 64
    %v2527 = vpop.permute.xlu0 %2526
    %v2529 = vsel %vm1436, %v2522, %v2527
    %v2530 = vld [vmem:[#allocation10] sm:$0xff]
    %v2531 = vld [vmem:[#allocation10 + $0x8] sm:$0xff]
    %v2532 = vsel %vm462, %v2515, 0
    %2534 = vmatprep.subr.mxu0 0.0
    %2535 = vmatpush1.msra.mxu0 %v2530
    %2536 = vmatprep.subr.mxu0 0.0
    %2537 = vmatpush1.msra.mxu0 %v2531
    %2538 = vmatprep.subr.mxu0 0.0
    %2539 = vmatpush1.msra.mxu0 0.0
    %2540 = vmatprep.subr.mxu0 0.0
    %2541 = vmatpush1.msra.mxu0 0.0
    %2542 = vmatprep.subr.mxu0 0.0
    %2543 = vmatpush1.msra.mxu0 0.0
    %2544 = vmatprep.subr.mxu0 0.0
    %2545 = vmatpush1.msra.mxu0 0.0
    %2546 = vmatprep.subr.mxu0 0.0
    %2547 = vmatpush1.msra.mxu0 0.0
    %2548 = vmatprep.subr.mxu0 0.0
    %2549 = vmatpush1.msra.mxu0 0.0
    %2550 = vmatprep.subr.mxu0 0.0
    %2551 = vmatpush1.msra.mxu0 0.0
    %2552 = vmatprep.subr.mxu0 0.0
    %2553 = vmatpush1.msra.mxu0 0.0
    %2554 = vmatprep.subr.mxu0 0.0
    %2555 = vmatpush1.msra.mxu0 0.0
    %2556 = vmatprep.subr.mxu0 0.0
    %2557 = vmatpush1.msra.mxu0 0.0
    %2558 = vmatprep.subr.mxu0 0.0
    %2559 = vmatpush1.msra.mxu0 0.0
    %2560 = vmatprep.subr.mxu0 0.0
    %2561 = vmatpush1.msra.mxu0 0.0
    %2562 = vmatprep.subr.mxu0 0.0
    %2563 = vmatpush1.msra.mxu0 0.0
    %2564 = vmatprep.subr.mxu0 0.0
    %2565 = vmatpush1.msra.mxu0 0.0
    %2566 = vmatprep.subr.mxu0 0.0
    %2567 = vmatpush1.msra.mxu0 0.0
    %2568 = vmatprep.subr.mxu0 0.0
    %2569 = vmatpush1.msra.mxu0 0.0
    %2570 = vmatprep.subr.mxu0 0.0
    %2571 = vmatpush1.msra.mxu0 0.0
    %2572 = vmatprep.subr.mxu0 0.0
    %2573 = vmatpush1.msra.mxu0 0.0
    %2574 = vmatprep.subr.mxu0 0.0
    %2575 = vmatpush1.msra.mxu0 0.0
    %2576 = vmatprep.subr.mxu0 0.0
    %2577 = vmatpush1.msra.mxu0 0.0
    %2578 = vmatprep.subr.mxu0 0.0
    %2579 = vmatpush1.msra.mxu0 0.0
    %2580 = vmatprep.subr.mxu0 0.0
    %2581 = vmatpush1.msra.mxu0 0.0
    %2582 = vmatprep.subr.mxu0 0.0
    %2583 = vmatpush1.msra.mxu0 0.0
    %2584 = vmatprep.subr.mxu0 0.0
    %2585 = vmatpush1.msra.mxu0 0.0
    %2586 = vmatprep.subr.mxu0 0.0
    %2587 = vmatpush1.msra.mxu0 0.0
    %2588 = vmatprep.subr.mxu0 0.0
    %2589 = vmatpush1.msra.mxu0 0.0
    %2590 = vmatprep.subr.mxu0 0.0
    %2591 = vmatpush1.msra.mxu0 0.0
    %2592 = vmatprep.subr.mxu0 0.0
    %2593 = vmatpush1.msra.mxu0 0.0
    %2594 = vmatprep.subr.mxu0 0.0
    %2595 = vmatpush1.msra.mxu0 0.0
    %2596 = vmatprep.subr.mxu0 0.0
    %2597 = vmatpush1.msra.mxu0 0.0
    %2598 = vmatprep.mubr.f32.mxu0 0.0
    %2599 = vmatmul.mubr.f32.gmra.mrb[0].mxu0 %v2532
    %v2600 = vpop.f32.mrb[0].mxu0
    %v2601 = vadd.f32 0.0, %v2600
    %v2602 = vpop.f32.mrb[0].mxu0
    %2603 = vdwg.mxu0
    %2605 = vrot.lane.b32.xlu0 %v2601, 64
    %v2606 = vpop.permute.xlu0 %2605
    %v2608 = vsel %vm1436, %v2601, %v2606
    %v2609 = vadd.f32 %v2529, %v2608
    %v2610 = vxor.u32 %v2609, 2147483648
    %v2611 = vmul.f32 %v2610, 1.442695
    %v2612 = vpow.pop %v2611
    %v2613 = vadd.f32 %v2612, 1.0
    %v2614 = vrcp.pop %v2613
    %v2615 = vmul.f32 1.0, %v2614
    %v2616 = vtanh.pop %v2609
    %v2617 = vmul.f32 %v2615, %v2506
    %2619 = vrot.lane.b32.xlu0 %v2616, 80
    %v2620 = vpop.permute.xlu0 %2619
    %v2622 = vmul.f32 %v2615, %v2620
    %2624 = vrot.lane.b32.xlu0 %v2622, 16
    %v2625 = vpop.permute.xlu0 %2624
    %v2627 = vadd.f32 %v2617, %v2625
    %v2628 = vtanh.pop %v2627
    %2630 = vrot.lane.b32.xlu0 %v2628, 16
    %v2631 = vpop.permute.xlu0 %2630
    %v2633 = vmul.f32 %v2615, %v2631
    %2635 = vrot.lane.b32.xlu0 %v2633, 96
    %v2636 = vpop.permute.xlu0 %2635
    %2638 = vst.msk [vmem:[#allocation2 + $0x9] sm:$0x1] %vm1547, %v2636
    %2639 = vrot.lane.b32.xlu0 %v2633, 112
    %v2640 = vpop.permute.xlu0 %2639
    %2642 = vst.msk [vmem:[#allocation2 + $0x5] sm:$0x2] %vm1552, %v2640
    %v2643 = vld [vmem:[#allocation3 + $0xa] sm:$0x1]
    %v2644 = vld [vmem:[#allocation3 + $0x5] sm:$0x1]
    %v2646 = vrot.slane %v2644, 7
    %2647 = vrot.lane.b32.xlu0 %v2646, 64
    %v2648 = vpop.permute.xlu0 %2647
    %v2650 = vsel %vm1436, %v2643, %v2648
    %v2651 = vld [vmem:[#allocation10] sm:$0xff]
    %v2652 = vld [vmem:[#allocation10 + $0x8] sm:$0xff]
    %v2653 = vsel %vm462, %v2636, 0
    %2655 = vmatprep.subr.mxu0 0.0
    %2656 = vmatpush1.msra.mxu0 %v2651
    %2657 = vmatprep.subr.mxu0 0.0
    %2658 = vmatpush1.msra.mxu0 %v2652
    %2659 = vmatprep.subr.mxu0 0.0
    %2660 = vmatpush1.msra.mxu0 0.0
    %2661 = vmatprep.subr.mxu0 0.0
    %2662 = vmatpush1.msra.mxu0 0.0
    %2663 = vmatprep.subr.mxu0 0.0
    %2664 = vmatpush1.msra.mxu0 0.0
    %2665 = vmatprep.subr.mxu0 0.0
    %2666 = vmatpush1.msra.mxu0 0.0
    %2667 = vmatprep.subr.mxu0 0.0
    %2668 = vmatpush1.msra.mxu0 0.0
    %2669 = vmatprep.subr.mxu0 0.0
    %2670 = vmatpush1.msra.mxu0 0.0
    %2671 = vmatprep.subr.mxu0 0.0
    %2672 = vmatpush1.msra.mxu0 0.0
    %2673 = vmatprep.subr.mxu0 0.0
    %2674 = vmatpush1.msra.mxu0 0.0
    %2675 = vmatprep.subr.mxu0 0.0
    %2676 = vmatpush1.msra.mxu0 0.0
    %2677 = vmatprep.subr.mxu0 0.0
    %2678 = vmatpush1.msra.mxu0 0.0
    %2679 = vmatprep.subr.mxu0 0.0
    %2680 = vmatpush1.msra.mxu0 0.0
    %2681 = vmatprep.subr.mxu0 0.0
    %2682 = vmatpush1.msra.mxu0 0.0
    %2683 = vmatprep.subr.mxu0 0.0
    %2684 = vmatpush1.msra.mxu0 0.0
    %2685 = vmatprep.subr.mxu0 0.0
    %2686 = vmatpush1.msra.mxu0 0.0
    %2687 = vmatprep.subr.mxu0 0.0
    %2688 = vmatpush1.msra.mxu0 0.0
    %2689 = vmatprep.subr.mxu0 0.0
    %2690 = vmatpush1.msra.mxu0 0.0
    %2691 = vmatprep.subr.mxu0 0.0
    %2692 = vmatpush1.msra.mxu0 0.0
    %2693 = vmatprep.subr.mxu0 0.0
    %2694 = vmatpush1.msra.mxu0 0.0
    %2695 = vmatprep.subr.mxu0 0.0
    %2696 = vmatpush1.msra.mxu0 0.0
    %2697 = vmatprep.subr.mxu0 0.0
    %2698 = vmatpush1.msra.mxu0 0.0
    %2699 = vmatprep.subr.mxu0 0.0
    %2700 = vmatpush1.msra.mxu0 0.0
    %2701 = vmatprep.subr.mxu0 0.0
    %2702 = vmatpush1.msra.mxu0 0.0
    %2703 = vmatprep.subr.mxu0 0.0
    %2704 = vmatpush1.msra.mxu0 0.0
    %2705 = vmatprep.subr.mxu0 0.0
    %2706 = vmatpush1.msra.mxu0 0.0
    %2707 = vmatprep.subr.mxu0 0.0
    %2708 = vmatpush1.msra.mxu0 0.0
    %2709 = vmatprep.subr.mxu0 0.0
    %2710 = vmatpush1.msra.mxu0 0.0
    %2711 = vmatprep.subr.mxu0 0.0
    %2712 = vmatpush1.msra.mxu0 0.0
    %2713 = vmatprep.subr.mxu0 0.0
    %2714 = vmatpush1.msra.mxu0 0.0
    %2715 = vmatprep.subr.mxu0 0.0
    %2716 = vmatpush1.msra.mxu0 0.0
    %2717 = vmatprep.subr.mxu0 0.0
    %2718 = vmatpush1.msra.mxu0 0.0
    %2719 = vmatprep.mubr.f32.mxu0 0.0
    %2720 = vmatmul.mubr.f32.gmra.mrb[0].mxu0 %v2653
    %v2721 = vpop.f32.mrb[0].mxu0
    %v2722 = vadd.f32 0.0, %v2721
    %v2723 = vpop.f32.mrb[0].mxu0
    %2724 = vdwg.mxu0
    %2726 = vrot.lane.b32.xlu0 %v2722, 64
    %v2727 = vpop.permute.xlu0 %2726
    %v2729 = vsel %vm1436, %v2722, %v2727
    %v2730 = vadd.f32 %v2650, %v2729
    %v2731 = vxor.u32 %v2730, 2147483648
    %v2732 = vmul.f32 %v2731, 1.442695
    %v2733 = vpow.pop %v2732
    %v2734 = vadd.f32 %v2733, 1.0
    %v2735 = vrcp.pop %v2734
    %v2736 = vmul.f32 1.0, %v2735
    %v2737 = vtanh.pop %v2730
    %v2738 = vmul.f32 %v2736, %v2627
    %2740 = vrot.lane.b32.xlu0 %v2737, 80
    %v2741 = vpop.permute.xlu0 %2740
    %v2743 = vmul.f32 %v2736, %v2741
    %2745 = vrot.lane.b32.xlu0 %v2743, 16
    %v2746 = vpop.permute.xlu0 %2745
    %v2748 = vadd.f32 %v2738, %v2746
    %v2749 = vtanh.pop %v2748
    %2751 = vrot.lane.b32.xlu0 %v2749, 16
    %v2752 = vpop.permute.xlu0 %2751
    %v2754 = vmul.f32 %v2736, %v2752
    %2756 = vrot.lane.b32.xlu0 %v2754, 96
    %v2757 = vpop.permute.xlu0 %2756
    %2759 = vst.msk [vmem:[#allocation2 + $0xa] sm:$0x1] %vm1547, %v2757
    %2760 = vrot.lane.b32.xlu0 %v2754, 112
    %v2761 = vpop.permute.xlu0 %2760
    %2763 = vst.msk [vmem:[#allocation2 + $0x4] sm:$0x2] %vm1552, %v2761
    %v2764 = vld [vmem:[#allocation3 + $0xb] sm:$0x1]
    %v2765 = vld [vmem:[#allocation3 + $0x4] sm:$0x1]
    %v2767 = vrot.slane %v2765, 7
    %2768 = vrot.lane.b32.xlu0 %v2767, 64
    %v2769 = vpop.permute.xlu0 %2768
    %v2771 = vsel %vm1436, %v2764, %v2769
    %v2772 = vld [vmem:[#allocation10] sm:$0xff]
    %v2773 = vld [vmem:[#allocation10 + $0x8] sm:$0xff]
    %v2774 = vsel %vm462, %v2757, 0
    %2776 = vmatprep.subr.mxu0 0.0
    %2777 = vmatpush1.msra.mxu0 %v2772
    %2778 = vmatprep.subr.mxu0 0.0
    %2779 = vmatpush1.msra.mxu0 %v2773
    %2780 = vmatprep.subr.mxu0 0.0
    %2781 = vmatpush1.msra.mxu0 0.0
    %2782 = vmatprep.subr.mxu0 0.0
    %2783 = vmatpush1.msra.mxu0 0.0
    %2784 = vmatprep.subr.mxu0 0.0
    %2785 = vmatpush1.msra.mxu0 0.0
    %2786 = vmatprep.subr.mxu0 0.0
    %2787 = vmatpush1.msra.mxu0 0.0
    %2788 = vmatprep.subr.mxu0 0.0
    %2789 = vmatpush1.msra.mxu0 0.0
    %2790 = vmatprep.subr.mxu0 0.0
    %2791 = vmatpush1.msra.mxu0 0.0
    %2792 = vmatprep.subr.mxu0 0.0
    %2793 = vmatpush1.msra.mxu0 0.0
    %2794 = vmatprep.subr.mxu0 0.0
    %2795 = vmatpush1.msra.mxu0 0.0
    %2796 = vmatprep.subr.mxu0 0.0
    %2797 = vmatpush1.msra.mxu0 0.0
    %2798 = vmatprep.subr.mxu0 0.0
    %2799 = vmatpush1.msra.mxu0 0.0
    %2800 = vmatprep.subr.mxu0 0.0
    %2801 = vmatpush1.msra.mxu0 0.0
    %2802 = vmatprep.subr.mxu0 0.0
    %2803 = vmatpush1.msra.mxu0 0.0
    %2804 = vmatprep.subr.mxu0 0.0
    %2805 = vmatpush1.msra.mxu0 0.0
    %2806 = vmatprep.subr.mxu0 0.0
    %2807 = vmatpush1.msra.mxu0 0.0
    %2808 = vmatprep.subr.mxu0 0.0
    %2809 = vmatpush1.msra.mxu0 0.0
    %2810 = vmatprep.subr.mxu0 0.0
    %2811 = vmatpush1.msra.mxu0 0.0
    %2812 = vmatprep.subr.mxu0 0.0
    %2813 = vmatpush1.msra.mxu0 0.0
    %2814 = vmatprep.subr.mxu0 0.0
    %2815 = vmatpush1.msra.mxu0 0.0
    %2816 = vmatprep.subr.mxu0 0.0
    %2817 = vmatpush1.msra.mxu0 0.0
    %2818 = vmatprep.subr.mxu0 0.0
    %2819 = vmatpush1.msra.mxu0 0.0
    %2820 = vmatprep.subr.mxu0 0.0
    %2821 = vmatpush1.msra.mxu0 0.0
    %2822 = vmatprep.subr.mxu0 0.0
    %2823 = vmatpush1.msra.mxu0 0.0
    %2824 = vmatprep.subr.mxu0 0.0
    %2825 = vmatpush1.msra.mxu0 0.0
    %2826 = vmatprep.subr.mxu0 0.0
    %2827 = vmatpush1.msra.mxu0 0.0
    %2828 = vmatprep.subr.mxu0 0.0
    %2829 = vmatpush1.msra.mxu0 0.0
    %2830 = vmatprep.subr.mxu0 0.0
    %2831 = vmatpush1.msra.mxu0 0.0
    %2832 = vmatprep.subr.mxu0 0.0
    %2833 = vmatpush1.msra.mxu0 0.0
    %2834 = vmatprep.subr.mxu0 0.0
    %2835 = vmatpush1.msra.mxu0 0.0
    %2836 = vmatprep.subr.mxu0 0.0
    %2837 = vmatpush1.msra.mxu0 0.0
    %2838 = vmatprep.subr.mxu0 0.0
    %2839 = vmatpush1.msra.mxu0 0.0
    %2840 = vmatprep.mubr.f32.mxu0 0.0
    %2841 = vmatmul.mubr.f32.gmra.mrb[0].mxu0 %v2774
    %v2842 = vpop.f32.mrb[0].mxu0
    %v2843 = vadd.f32 0.0, %v2842
    %v2844 = vpop.f32.mrb[0].mxu0
    %2845 = vdwg.mxu0
    %2847 = vrot.lane.b32.xlu0 %v2843, 64
    %v2848 = vpop.permute.xlu0 %2847
    %v2850 = vsel %vm1436, %v2843, %v2848
    %v2851 = vadd.f32 %v2771, %v2850
    %v2852 = vxor.u32 %v2851, 2147483648
    %v2853 = vmul.f32 %v2852, 1.442695
    %v2854 = vpow.pop %v2853
    %v2855 = vadd.f32 %v2854, 1.0
    %v2856 = vrcp.pop %v2855
    %v2857 = vmul.f32 1.0, %v2856
    %v2858 = vtanh.pop %v2851
    %v2859 = vmul.f32 %v2857, %v2748
    %2861 = vrot.lane.b32.xlu0 %v2858, 80
    %v2862 = vpop.permute.xlu0 %2861
    %v2864 = vmul.f32 %v2857, %v2862
    %2866 = vrot.lane.b32.xlu0 %v2864, 16
    %v2867 = vpop.permute.xlu0 %2866
    %v2869 = vadd.f32 %v2859, %v2867
    %v2870 = vtanh.pop %v2869
    %2872 = vrot.lane.b32.xlu0 %v2870, 16
    %v2873 = vpop.permute.xlu0 %2872
    %v2875 = vmul.f32 %v2857, %v2873
    %2877 = vrot.lane.b32.xlu0 %v2875, 96
    %v2878 = vpop.permute.xlu0 %2877
    %2880 = vst.msk [vmem:[#allocation2 + $0xb] sm:$0x1] %vm1547, %v2878
    %2881 = vrot.lane.b32.xlu0 %v2875, 112
    %v2882 = vpop.permute.xlu0 %2881
    %2884 = vst.msk [vmem:[#allocation2 + $0x3] sm:$0x2] %vm1552, %v2882
    %v2885 = vld [vmem:[#allocation3 + $0xc] sm:$0x1]
    %v2886 = vld [vmem:[#allocation3 + $0x3] sm:$0x1]
    %v2888 = vrot.slane %v2886, 7
    %2889 = vrot.lane.b32.xlu0 %v2888, 64
    %v2890 = vpop.permute.xlu0 %2889
    %v2892 = vsel %vm1436, %v2885, %v2890
    %v2893 = vld [vmem:[#allocation10] sm:$0xff]
    %v2894 = vld [vmem:[#allocation10 + $0x8] sm:$0xff]
    %v2895 = vsel %vm462, %v2878, 0
    %2897 = vmatprep.subr.mxu0 0.0
    %2898 = vmatpush1.msra.mxu0 %v2893
    %2899 = vmatprep.subr.mxu0 0.0
    %2900 = vmatpush1.msra.mxu0 %v2894
    %2901 = vmatprep.subr.mxu0 0.0
    %2902 = vmatpush1.msra.mxu0 0.0
    %2903 = vmatprep.subr.mxu0 0.0
    %2904 = vmatpush1.msra.mxu0 0.0
    %2905 = vmatprep.subr.mxu0 0.0
    %2906 = vmatpush1.msra.mxu0 0.0
    %2907 = vmatprep.subr.mxu0 0.0
    %2908 = vmatpush1.msra.mxu0 0.0
    %2909 = vmatprep.subr.mxu0 0.0
    %2910 = vmatpush1.msra.mxu0 0.0
    %2911 = vmatprep.subr.mxu0 0.0
    %2912 = vmatpush1.msra.mxu0 0.0
    %2913 = vmatprep.subr.mxu0 0.0
    %2914 = vmatpush1.msra.mxu0 0.0
    %2915 = vmatprep.subr.mxu0 0.0
    %2916 = vmatpush1.msra.mxu0 0.0
    %2917 = vmatprep.subr.mxu0 0.0
    %2918 = vmatpush1.msra.mxu0 0.0
    %2919 = vmatprep.subr.mxu0 0.0
    %2920 = vmatpush1.msra.mxu0 0.0
    %2921 = vmatprep.subr.mxu0 0.0
    %2922 = vmatpush1.msra.mxu0 0.0
    %2923 = vmatprep.subr.mxu0 0.0
    %2924 = vmatpush1.msra.mxu0 0.0
    %2925 = vmatprep.subr.mxu0 0.0
    %2926 = vmatpush1.msra.mxu0 0.0
    %2927 = vmatprep.subr.mxu0 0.0
    %2928 = vmatpush1.msra.mxu0 0.0
    %2929 = vmatprep.subr.mxu0 0.0
    %2930 = vmatpush1.msra.mxu0 0.0
    %2931 = vmatprep.subr.mxu0 0.0
    %2932 = vmatpush1.msra.mxu0 0.0
    %2933 = vmatprep.subr.mxu0 0.0
    %2934 = vmatpush1.msra.mxu0 0.0
    %2935 = vmatprep.subr.mxu0 0.0
    %2936 = vmatpush1.msra.mxu0 0.0
    %2937 = vmatprep.subr.mxu0 0.0
    %2938 = vmatpush1.msra.mxu0 0.0
    %2939 = vmatprep.subr.mxu0 0.0
    %2940 = vmatpush1.msra.mxu0 0.0
    %2941 = vmatprep.subr.mxu0 0.0
    %2942 = vmatpush1.msra.mxu0 0.0
    %2943 = vmatprep.subr.mxu0 0.0
    %2944 = vmatpush1.msra.mxu0 0.0
    %2945 = vmatprep.subr.mxu0 0.0
    %2946 = vmatpush1.msra.mxu0 0.0
    %2947 = vmatprep.subr.mxu0 0.0
    %2948 = vmatpush1.msra.mxu0 0.0
    %2949 = vmatprep.subr.mxu0 0.0
    %2950 = vmatpush1.msra.mxu0 0.0
    %2951 = vmatprep.subr.mxu0 0.0
    %2952 = vmatpush1.msra.mxu0 0.0
    %2953 = vmatprep.subr.mxu0 0.0
    %2954 = vmatpush1.msra.mxu0 0.0
    %2955 = vmatprep.subr.mxu0 0.0
    %2956 = vmatpush1.msra.mxu0 0.0
    %2957 = vmatprep.subr.mxu0 0.0
    %2958 = vmatpush1.msra.mxu0 0.0
    %2959 = vmatprep.subr.mxu0 0.0
    %2960 = vmatpush1.msra.mxu0 0.0
    %2961 = vmatprep.mubr.f32.mxu0 0.0
    %2962 = vmatmul.mubr.f32.gmra.mrb[0].mxu0 %v2895
    %v2963 = vpop.f32.mrb[0].mxu0
    %v2964 = vadd.f32 0.0, %v2963
    %v2965 = vpop.f32.mrb[0].mxu0
    %2966 = vdwg.mxu0
    %2968 = vrot.lane.b32.xlu0 %v2964, 64
    %v2969 = vpop.permute.xlu0 %2968
    %v2971 = vsel %vm1436, %v2964, %v2969
    %v2972 = vadd.f32 %v2892, %v2971
    %v2973 = vxor.u32 %v2972, 2147483648
    %v2974 = vmul.f32 %v2973, 1.442695
    %v2975 = vpow.pop %v2974
    %v2976 = vadd.f32 %v2975, 1.0
    %v2977 = vrcp.pop %v2976
    %v2978 = vmul.f32 1.0, %v2977
    %v2979 = vtanh.pop %v2972
    %v2980 = vmul.f32 %v2978, %v2869
    %2982 = vrot.lane.b32.xlu0 %v2979, 80
    %v2983 = vpop.permute.xlu0 %2982
    %v2985 = vmul.f32 %v2978, %v2983
    %2987 = vrot.lane.b32.xlu0 %v2985, 16
    %v2988 = vpop.permute.xlu0 %2987
    %v2990 = vadd.f32 %v2980, %v2988
    %v2991 = vtanh.pop %v2990
    %2993 = vrot.lane.b32.xlu0 %v2991, 16
    %v2994 = vpop.permute.xlu0 %2993
    %v2996 = vmul.f32 %v2978, %v2994
    %2998 = vrot.lane.b32.xlu0 %v2996, 96
    %v2999 = vpop.permute.xlu0 %2998
    %3001 = vst.msk [vmem:[#allocation2 + $0xc] sm:$0x1] %vm1547, %v2999
    %3002 = vrot.lane.b32.xlu0 %v2996, 112
    %v3003 = vpop.permute.xlu0 %3002
    %3005 = vst.msk [vmem:[#allocation2 + $0x2] sm:$0x2] %vm1552, %v3003
    %v3006 = vld [vmem:[#allocation3 + $0xd] sm:$0x1]
    %v3007 = vld [vmem:[#allocation3 + $0x2] sm:$0x1]
    %v3009 = vrot.slane %v3007, 7
    %3010 = vrot.lane.b32.xlu0 %v3009, 64
    %v3011 = vpop.permute.xlu0 %3010
    %v3013 = vsel %vm1436, %v3006, %v3011
    %v3014 = vld [vmem:[#allocation10] sm:$0xff]
    %v3015 = vld [vmem:[#allocation10 + $0x8] sm:$0xff]
    %v3016 = vsel %vm462, %v2999, 0
    %3018 = vmatprep.subr.mxu0 0.0
    %3019 = vmatpush1.msra.mxu0 %v3014
    %3020 = vmatprep.subr.mxu0 0.0
    %3021 = vmatpush1.msra.mxu0 %v3015
    %3022 = vmatprep.subr.mxu0 0.0
    %3023 = vmatpush1.msra.mxu0 0.0
    %3024 = vmatprep.subr.mxu0 0.0
    %3025 = vmatpush1.msra.mxu0 0.0
    %3026 = vmatprep.subr.mxu0 0.0
    %3027 = vmatpush1.msra.mxu0 0.0
    %3028 = vmatprep.subr.mxu0 0.0
    %3029 = vmatpush1.msra.mxu0 0.0
    %3030 = vmatprep.subr.mxu0 0.0
    %3031 = vmatpush1.msra.mxu0 0.0
    %3032 = vmatprep.subr.mxu0 0.0
    %3033 = vmatpush1.msra.mxu0 0.0
    %3034 = vmatprep.subr.mxu0 0.0
    %3035 = vmatpush1.msra.mxu0 0.0
    %3036 = vmatprep.subr.mxu0 0.0
    %3037 = vmatpush1.msra.mxu0 0.0
    %3038 = vmatprep.subr.mxu0 0.0
    %3039 = vmatpush1.msra.mxu0 0.0
    %3040 = vmatprep.subr.mxu0 0.0
    %3041 = vmatpush1.msra.mxu0 0.0
    %3042 = vmatprep.subr.mxu0 0.0
    %3043 = vmatpush1.msra.mxu0 0.0
    %3044 = vmatprep.subr.mxu0 0.0
    %3045 = vmatpush1.msra.mxu0 0.0
    %3046 = vmatprep.subr.mxu0 0.0
    %3047 = vmatpush1.msra.mxu0 0.0
    %3048 = vmatprep.subr.mxu0 0.0
    %3049 = vmatpush1.msra.mxu0 0.0
    %3050 = vmatprep.subr.mxu0 0.0
    %3051 = vmatpush1.msra.mxu0 0.0
    %3052 = vmatprep.subr.mxu0 0.0
    %3053 = vmatpush1.msra.mxu0 0.0
    %3054 = vmatprep.subr.mxu0 0.0
    %3055 = vmatpush1.msra.mxu0 0.0
    %3056 = vmatprep.subr.mxu0 0.0
    %3057 = vmatpush1.msra.mxu0 0.0
    %3058 = vmatprep.subr.mxu0 0.0
    %3059 = vmatpush1.msra.mxu0 0.0
    %3060 = vmatprep.subr.mxu0 0.0
    %3061 = vmatpush1.msra.mxu0 0.0
    %3062 = vmatprep.subr.mxu0 0.0
    %3063 = vmatpush1.msra.mxu0 0.0
    %3064 = vmatprep.subr.mxu0 0.0
    %3065 = vmatpush1.msra.mxu0 0.0
    %3066 = vmatprep.subr.mxu0 0.0
    %3067 = vmatpush1.msra.mxu0 0.0
    %3068 = vmatprep.subr.mxu0 0.0
    %3069 = vmatpush1.msra.mxu0 0.0
    %3070 = vmatprep.subr.mxu0 0.0
    %3071 = vmatpush1.msra.mxu0 0.0
    %3072 = vmatprep.subr.mxu0 0.0
    %3073 = vmatpush1.msra.mxu0 0.0
    %3074 = vmatprep.subr.mxu0 0.0
    %3075 = vmatpush1.msra.mxu0 0.0
    %3076 = vmatprep.subr.mxu0 0.0
    %3077 = vmatpush1.msra.mxu0 0.0
    %3078 = vmatprep.subr.mxu0 0.0
    %3079 = vmatpush1.msra.mxu0 0.0
    %3080 = vmatprep.subr.mxu0 0.0
    %3081 = vmatpush1.msra.mxu0 0.0
    %3082 = vmatprep.mubr.f32.mxu0 0.0
    %3083 = vmatmul.mubr.f32.gmra.mrb[0].mxu0 %v3016
    %v3084 = vpop.f32.mrb[0].mxu0
    %v3085 = vadd.f32 0.0, %v3084
    %v3086 = vpop.f32.mrb[0].mxu0
    %3087 = vdwg.mxu0
    %3089 = vrot.lane.b32.xlu0 %v3085, 64
    %v3090 = vpop.permute.xlu0 %3089
    %v3092 = vsel %vm1436, %v3085, %v3090
    %v3093 = vadd.f32 %v3013, %v3092
    %v3094 = vxor.u32 %v3093, 2147483648
    %v3095 = vmul.f32 %v3094, 1.442695
    %v3096 = vpow.pop %v3095
    %v3097 = vadd.f32 %v3096, 1.0
    %v3098 = vrcp.pop %v3097
    %v3099 = vmul.f32 1.0, %v3098
    %v3100 = vtanh.pop %v3093
    %v3101 = vmul.f32 %v3099, %v2990
    %3103 = vrot.lane.b32.xlu0 %v3100, 80
    %v3104 = vpop.permute.xlu0 %3103
    %v3106 = vmul.f32 %v3099, %v3104
    %3108 = vrot.lane.b32.xlu0 %v3106, 16
    %v3109 = vpop.permute.xlu0 %3108
    %v3111 = vadd.f32 %v3101, %v3109
    %v3112 = vtanh.pop %v3111
    %3114 = vrot.lane.b32.xlu0 %v3112, 16
    %v3115 = vpop.permute.xlu0 %3114
    %v3117 = vmul.f32 %v3099, %v3115
    %3119 = vrot.lane.b32.xlu0 %v3117, 96
    %v3120 = vpop.permute.xlu0 %3119
    %3122 = vst.msk [vmem:[#allocation2 + $0xd] sm:$0x1] %vm1547, %v3120
    %3123 = vrot.lane.b32.xlu0 %v3117, 112
    %v3124 = vpop.permute.xlu0 %3123
    %3126 = vst.msk [vmem:[#allocation2 + $0x1] sm:$0x2] %vm1552, %v3124
    %v3127 = vld [vmem:[#allocation3 + $0xe] sm:$0x1]
    %v3128 = vld [vmem:[#allocation3 + $0x1] sm:$0x1]
    %v3130 = vrot.slane %v3128, 7
    %3131 = vrot.lane.b32.xlu0 %v3130, 64
    %v3132 = vpop.permute.xlu0 %3131
    %v3134 = vsel %vm1436, %v3127, %v3132
    %v3135 = vld [vmem:[#allocation10] sm:$0xff]
    %v3136 = vld [vmem:[#allocation10 + $0x8] sm:$0xff]
    %v3137 = vsel %vm462, %v3120, 0
    %3139 = vmatprep.subr.mxu0 0.0
    %3140 = vmatpush1.msra.mxu0 %v3135
    %3141 = vmatprep.subr.mxu0 0.0
    %3142 = vmatpush1.msra.mxu0 %v3136
    %3143 = vmatprep.subr.mxu0 0.0
    %3144 = vmatpush1.msra.mxu0 0.0
    %3145 = vmatprep.subr.mxu0 0.0
    %3146 = vmatpush1.msra.mxu0 0.0
    %3147 = vmatprep.subr.mxu0 0.0
    %3148 = vmatpush1.msra.mxu0 0.0
    %3149 = vmatprep.subr.mxu0 0.0
    %3150 = vmatpush1.msra.mxu0 0.0
    %3151 = vmatprep.subr.mxu0 0.0
    %3152 = vmatpush1.msra.mxu0 0.0
    %3153 = vmatprep.subr.mxu0 0.0
    %3154 = vmatpush1.msra.mxu0 0.0
    %3155 = vmatprep.subr.mxu0 0.0
    %3156 = vmatpush1.msra.mxu0 0.0
    %3157 = vmatprep.subr.mxu0 0.0
    %3158 = vmatpush1.msra.mxu0 0.0
    %3159 = vmatprep.subr.mxu0 0.0
    %3160 = vmatpush1.msra.mxu0 0.0
    %3161 = vmatprep.subr.mxu0 0.0
    %3162 = vmatpush1.msra.mxu0 0.0
    %3163 = vmatprep.subr.mxu0 0.0
    %3164 = vmatpush1.msra.mxu0 0.0
    %3165 = vmatprep.subr.mxu0 0.0
    %3166 = vmatpush1.msra.mxu0 0.0
    %3167 = vmatprep.subr.mxu0 0.0
    %3168 = vmatpush1.msra.mxu0 0.0
    %3169 = vmatprep.subr.mxu0 0.0
    %3170 = vmatpush1.msra.mxu0 0.0
    %3171 = vmatprep.subr.mxu0 0.0
    %3172 = vmatpush1.msra.mxu0 0.0
    %3173 = vmatprep.subr.mxu0 0.0
    %3174 = vmatpush1.msra.mxu0 0.0
    %3175 = vmatprep.subr.mxu0 0.0
    %3176 = vmatpush1.msra.mxu0 0.0
    %3177 = vmatprep.subr.mxu0 0.0
    %3178 = vmatpush1.msra.mxu0 0.0
    %3179 = vmatprep.subr.mxu0 0.0
    %3180 = vmatpush1.msra.mxu0 0.0
    %3181 = vmatprep.subr.mxu0 0.0
    %3182 = vmatpush1.msra.mxu0 0.0
    %3183 = vmatprep.subr.mxu0 0.0
    %3184 = vmatpush1.msra.mxu0 0.0
    %3185 = vmatprep.subr.mxu0 0.0
    %3186 = vmatpush1.msra.mxu0 0.0
    %3187 = vmatprep.subr.mxu0 0.0
    %3188 = vmatpush1.msra.mxu0 0.0
    %3189 = vmatprep.subr.mxu0 0.0
    %3190 = vmatpush1.msra.mxu0 0.0
    %3191 = vmatprep.subr.mxu0 0.0
    %3192 = vmatpush1.msra.mxu0 0.0
    %3193 = vmatprep.subr.mxu0 0.0
    %3194 = vmatpush1.msra.mxu0 0.0
    %3195 = vmatprep.subr.mxu0 0.0
    %3196 = vmatpush1.msra.mxu0 0.0
    %3197 = vmatprep.subr.mxu0 0.0
    %3198 = vmatpush1.msra.mxu0 0.0
    %3199 = vmatprep.subr.mxu0 0.0
    %3200 = vmatpush1.msra.mxu0 0.0
    %3201 = vmatprep.subr.mxu0 0.0
    %3202 = vmatpush1.msra.mxu0 0.0
    %3203 = vmatprep.mubr.f32.mxu0 0.0
    %3204 = vmatmul.mubr.f32.gmra.mrb[0].mxu0 %v3137
    %v3205 = vpop.f32.mrb[0].mxu0
    %v3206 = vadd.f32 0.0, %v3205
    %v3207 = vpop.f32.mrb[0].mxu0
    %3208 = vdwg.mxu0
    %3210 = vrot.lane.b32.xlu0 %v3206, 64
    %v3211 = vpop.permute.xlu0 %3210
    %v3213 = vsel %vm1436, %v3206, %v3211
    %v3214 = vadd.f32 %v3134, %v3213
    %v3215 = vxor.u32 %v3214, 2147483648
    %v3216 = vmul.f32 %v3215, 1.442695
    %v3217 = vpow.pop %v3216
    %v3218 = vadd.f32 %v3217, 1.0
    %v3219 = vrcp.pop %v3218
    %v3220 = vmul.f32 1.0, %v3219
    %v3221 = vtanh.pop %v3214
    %v3222 = vmul.f32 %v3220, %v3111
    %3224 = vrot.lane.b32.xlu0 %v3221, 80
    %v3225 = vpop.permute.xlu0 %3224
    %v3227 = vmul.f32 %v3220, %v3225
    %3229 = vrot.lane.b32.xlu0 %v3227, 16
    %v3230 = vpop.permute.xlu0 %3229
    %v3232 = vadd.f32 %v3222, %v3230
    %v3233 = vtanh.pop %v3232
    %3235 = vrot.lane.b32.xlu0 %v3233, 16
    %v3236 = vpop.permute.xlu0 %3235
    %v3238 = vmul.f32 %v3220, %v3236
    %3240 = vrot.lane.b32.xlu0 %v3238, 96
    %v3241 = vpop.permute.xlu0 %3240
    %3243 = vst.msk [vmem:[#allocation2 + $0xe] sm:$0x1] %vm1547, %v3241
    %3244 = vrot.lane.b32.xlu0 %v3238, 112
    %v3245 = vpop.permute.xlu0 %3244
    %3247 = vst.msk [vmem:[#allocation2] sm:$0x2] %vm1552, %v3245
    %v3248 = vld [vmem:[#allocation3 + $0xf] sm:$0x1]
    %v3249 = vld [vmem:[#allocation3] sm:$0x1]
    %v3251 = vrot.slane %v3249, 7
    %3252 = vrot.lane.b32.xlu0 %v3251, 64
    %v3253 = vpop.permute.xlu0 %3252
    %v3255 = vsel %vm1436, %v3248, %v3253
    %v3256 = vld [vmem:[#allocation10] sm:$0xff]
    %v3257 = vld [vmem:[#allocation10 + $0x8] sm:$0xff]
    %v3258 = vsel %vm462, %v3241, 0
    %3260 = vmatprep.subr.mxu0 0.0
    %3261 = vmatpush1.msra.mxu0 %v3256
    %3262 = vmatprep.subr.mxu0 0.0
    %3263 = vmatpush1.msra.mxu0 %v3257
    %3264 = vmatprep.subr.mxu0 0.0
    %3265 = vmatpush1.msra.mxu0 0.0
    %3266 = vmatprep.subr.mxu0 0.0
    %3267 = vmatpush1.msra.mxu0 0.0
    %3268 = vmatprep.subr.mxu0 0.0
    %3269 = vmatpush1.msra.mxu0 0.0
    %3270 = vmatprep.subr.mxu0 0.0
    %3271 = vmatpush1.msra.mxu0 0.0
    %3272 = vmatprep.subr.mxu0 0.0
    %3273 = vmatpush1.msra.mxu0 0.0
    %3274 = vmatprep.subr.mxu0 0.0
    %3275 = vmatpush1.msra.mxu0 0.0
    %3276 = vmatprep.subr.mxu0 0.0
    %3277 = vmatpush1.msra.mxu0 0.0
    %3278 = vmatprep.subr.mxu0 0.0
    %3279 = vmatpush1.msra.mxu0 0.0
    %3280 = vmatprep.subr.mxu0 0.0
    %3281 = vmatpush1.msra.mxu0 0.0
    %3282 = vmatprep.subr.mxu0 0.0
    %3283 = vmatpush1.msra.mxu0 0.0
    %3284 = vmatprep.subr.mxu0 0.0
    %3285 = vmatpush1.msra.mxu0 0.0
    %3286 = vmatprep.subr.mxu0 0.0
    %3287 = vmatpush1.msra.mxu0 0.0
    %3288 = vmatprep.subr.mxu0 0.0
    %3289 = vmatpush1.msra.mxu0 0.0
    %3290 = vmatprep.subr.mxu0 0.0
    %3291 = vmatpush1.msra.mxu0 0.0
    %3292 = vmatprep.subr.mxu0 0.0
    %3293 = vmatpush1.msra.mxu0 0.0
    %3294 = vmatprep.subr.mxu0 0.0
    %3295 = vmatpush1.msra.mxu0 0.0
    %3296 = vmatprep.subr.mxu0 0.0
    %3297 = vmatpush1.msra.mxu0 0.0
    %3298 = vmatprep.subr.mxu0 0.0
    %3299 = vmatpush1.msra.mxu0 0.0
    %3300 = vmatprep.subr.mxu0 0.0
    %3301 = vmatpush1.msra.mxu0 0.0
    %3302 = vmatprep.subr.mxu0 0.0
    %3303 = vmatpush1.msra.mxu0 0.0
    %3304 = vmatprep.subr.mxu0 0.0
    %3305 = vmatpush1.msra.mxu0 0.0
    %3306 = vmatprep.subr.mxu0 0.0
    %3307 = vmatpush1.msra.mxu0 0.0
    %3308 = vmatprep.subr.mxu0 0.0
    %3309 = vmatpush1.msra.mxu0 0.0
    %3310 = vmatprep.subr.mxu0 0.0
    %3311 = vmatpush1.msra.mxu0 0.0
    %3312 = vmatprep.subr.mxu0 0.0
    %3313 = vmatpush1.msra.mxu0 0.0
    %3314 = vmatprep.subr.mxu0 0.0
    %3315 = vmatpush1.msra.mxu0 0.0
    %3316 = vmatprep.subr.mxu0 0.0
    %3317 = vmatpush1.msra.mxu0 0.0
    %3318 = vmatprep.subr.mxu0 0.0
    %3319 = vmatpush1.msra.mxu0 0.0
    %3320 = vmatprep.subr.mxu0 0.0
    %3321 = vmatpush1.msra.mxu0 0.0
    %3322 = vmatprep.subr.mxu0 0.0
    %3323 = vmatpush1.msra.mxu0 0.0
    %3324 = vmatprep.mubr.f32.mxu0 0.0
    %3325 = vmatmul.mubr.f32.gmra.mrb[0].mxu0 %v3258
    %v3326 = vpop.f32.mrb[0].mxu0
    %v3327 = vadd.f32 0.0, %v3326
    %v3328 = vpop.f32.mrb[0].mxu0
    %3329 = vdwg.mxu0
    %3331 = vrot.lane.b32.xlu0 %v3327, 64
    %v3332 = vpop.permute.xlu0 %3331
    %v3334 = vsel %vm1436, %v3327, %v3332
    %v3335 = vadd.f32 %v3255, %v3334
    %v3336 = vxor.u32 %v3335, 2147483648
    %v3337 = vmul.f32 %v3336, 1.442695
    %v3338 = vpow.pop %v3337
    %v3339 = vadd.f32 %v3338, 1.0
    %v3340 = vrcp.pop %v3339
    %v3341 = vmul.f32 1.0, %v3340
    %v3342 = vtanh.pop %v3335
    %v3343 = vmul.f32 %v3341, %v3232
    %3345 = vrot.lane.b32.xlu0 %v3342, 80
    %v3346 = vpop.permute.xlu0 %3345
    %v3348 = vmul.f32 %v3341, %v3346
    %3350 = vrot.lane.b32.xlu0 %v3348, 16
    %v3351 = vpop.permute.xlu0 %3350
    %v3353 = vadd.f32 %v3343, %v3351
    %v3354 = vtanh.pop %v3353
    %3356 = vrot.lane.b32.xlu0 %v3354, 16
    %v3357 = vpop.permute.xlu0 %3356
    %v3359 = vmul.f32 %v3341, %v3357
    %3361 = vrot.lane.b32.xlu0 %v3359, 96
    %v3362 = vpop.permute.xlu0 %3361
    %3364 = vst.msk [vmem:[#allocation2 + $0xf] sm:$0x1] %vm1547, %v3362
    %3365 = vrot.lane.b32.xlu0 %v3359, 112
    %v3366 = vpop.permute.xlu0 %3365
    %3368 = vst.msk [vmem:[#allocation2 - $0x1] sm:$0x2] %vm1552, %v3366
    %v3369 = vld [vmem:[#allocation2] sm:$0xff]
    %v3370 = vld [vmem:[#allocation2 + $0x8] sm:$0xff]
    %v3371 = vld [vmem:[%s9] sm:$0xff]
    %v3372 = vld [vmem:[%s9 + $0x8] sm:$0xff]
    %v3373 = vld [vmem:[%s9 + $0x10] sm:$0xff]
    %v3374 = vld [vmem:[%s9 + $0x18] sm:$0xff]
    %v3375 = vld [vmem:[%s11] sm:$0x1]
    %v3377 = vlaneseq
    %v3378 = vshrl.u32 %v3377, 7
    %v3379 = vsub.s32 0, %v3378
    %v3380 = vrot.slane %v3375, %v3379
    %vm3382 = vcmask 261120
    %v3384 = vsel %vm3382, %v3369, 0
    %v3387 = vsel %vm3382, %v3370, 0
    %3389 = vmatprep.subr.mxu0 0.0
    %3390 = vmatpush1.msra.mxu0 %v3371
    %3391 = vmatprep.subr.mxu0 0.0
    %3392 = vmatpush1.msra.mxu0 %v3372
    %3393 = vmatprep.subr.mxu0 0.0
    %3394 = vmatpush1.msra.mxu0 %v3373
    %3395 = vmatprep.subr.mxu0 0.0
    %3396 = vmatpush1.msra.mxu0 %v3374
    %3397 = vmatprep.subr.mxu0 0.0
    %3398 = vmatpush1.msra.mxu0 0.0
    %3399 = vmatprep.subr.mxu0 0.0
    %3400 = vmatpush1.msra.mxu0 0.0
    %3401 = vmatprep.subr.mxu0 0.0
    %3402 = vmatpush1.msra.mxu0 0.0
    %3403 = vmatprep.subr.mxu0 0.0
    %3404 = vmatpush1.msra.mxu0 0.0
    %3405 = vmatprep.subr.mxu0 0.0
    %3406 = vmatpush1.msra.mxu0 0.0
    %3407 = vmatprep.subr.mxu0 0.0
    %3408 = vmatpush1.msra.mxu0 0.0
    %3409 = vmatprep.subr.mxu0 0.0
    %3410 = vmatpush1.msra.mxu0 0.0
    %3411 = vmatprep.subr.mxu0 0.0
    %3412 = vmatpush1.msra.mxu0 0.0
    %3413 = vmatprep.subr.mxu0 0.0
    %3414 = vmatpush1.msra.mxu0 0.0
    %3415 = vmatprep.subr.mxu0 0.0
    %3416 = vmatpush1.msra.mxu0 0.0
    %3417 = vmatprep.subr.mxu0 0.0
    %3418 = vmatpush1.msra.mxu0 0.0
    %3419 = vmatprep.subr.mxu0 0.0
    %3420 = vmatpush1.msra.mxu0 0.0
    %3421 = vmatprep.subr.mxu0 0.0
    %3422 = vmatpush1.msra.mxu0 0.0
    %3423 = vmatprep.subr.mxu0 0.0
    %3424 = vmatpush1.msra.mxu0 0.0
    %3425 = vmatprep.subr.mxu0 0.0
    %3426 = vmatpush1.msra.mxu0 0.0
    %3427 = vmatprep.subr.mxu0 0.0
    %3428 = vmatpush1.msra.mxu0 0.0
    %3429 = vmatprep.subr.mxu0 0.0
    %3430 = vmatpush1.msra.mxu0 0.0
    %3431 = vmatprep.subr.mxu0 0.0
    %3432 = vmatpush1.msra.mxu0 0.0
    %3433 = vmatprep.subr.mxu0 0.0
    %3434 = vmatpush1.msra.mxu0 0.0
    %3435 = vmatprep.subr.mxu0 0.0
    %3436 = vmatpush1.msra.mxu0 0.0
    %3437 = vmatprep.subr.mxu0 0.0
    %3438 = vmatpush1.msra.mxu0 0.0
    %3439 = vmatprep.subr.mxu0 0.0
    %3440 = vmatpush1.msra.mxu0 0.0
    %3441 = vmatprep.subr.mxu0 0.0
    %3442 = vmatpush1.msra.mxu0 0.0
    %3443 = vmatprep.subr.mxu0 0.0
    %3444 = vmatpush1.msra.mxu0 0.0
    %3445 = vmatprep.subr.mxu0 0.0
    %3446 = vmatpush1.msra.mxu0 0.0
    %3447 = vmatprep.subr.mxu0 0.0
    %3448 = vmatpush1.msra.mxu0 0.0
    %3449 = vmatprep.subr.mxu0 0.0
    %3450 = vmatpush1.msra.mxu0 0.0
    %3451 = vmatprep.subr.mxu0 0.0
    %3452 = vmatpush1.msra.mxu0 0.0
    %3453 = vmatprep.mubr.f32.mxu0 0.0
    %3454 = vmatmul.mubr.f32.gmra.mrb[0].mxu0 %v3384
    %v3455 = vpop.f32.mrb[0].mxu0
    %v3456 = vadd.f32 %v3380, %v3455
    %v3457 = vpop.f32.mrb[0].mxu0
    %3458 = vmatprep.mubr.f32.mxu0 0.0
    %3459 = vmatmul.mubr.f32.gmra.mrb[0].mxu0 %v3387
    %v3460 = vpop.f32.mrb[0].mxu0
    %v3461 = vadd.f32 %v3380, %v3460
    %v3462 = vpop.f32.mrb[0].mxu0
    %3463 = vdwg.mxu0
    %3464 = vst [vmem:[#allocation3] sm:$0xff] %v3456
    %3465 = vst [vmem:[#allocation3 + $0x8] sm:$0xff] %v3461
    %v3466 = vld [vmem:[#allocation3] sm:$0x1]
    %v3467 = vld [vmem:[#allocation3 + $0xf] sm:$0x1]
    %v3469 = vrot.slane %v3467, 7
    %3470 = vrot.lane.b32.xlu0 %v3469, 64
    %v3471 = vpop.permute.xlu0 %3470
    %v3473 = vsel %vm1436, %v3466, %v3471
    %v3474 = vld [vmem:[%s10] sm:$0xff]
    %v3475 = vld [vmem:[%s10 + $0x8] sm:$0xff]
    %3476 = vmatprep.subr.mxu0 0.0
    %3477 = vmatpush1.msra.mxu0 %v3474
    %3478 = vmatprep.subr.mxu0 0.0
    %3479 = vmatpush1.msra.mxu0 %v3475
    %3480 = vmatprep.subr.mxu0 0.0
    %3481 = vmatpush1.msra.mxu0 0.0
    %3482 = vmatprep.subr.mxu0 0.0
    %3483 = vmatpush1.msra.mxu0 0.0
    %3484 = vmatprep.subr.mxu0 0.0
    %3485 = vmatpush1.msra.mxu0 0.0
    %3486 = vmatprep.subr.mxu0 0.0
    %3487 = vmatpush1.msra.mxu0 0.0
    %3488 = vmatprep.subr.mxu0 0.0
    %3489 = vmatpush1.msra.mxu0 0.0
    %3490 = vmatprep.subr.mxu0 0.0
    %3491 = vmatpush1.msra.mxu0 0.0
    %3492 = vmatprep.subr.mxu0 0.0
    %3493 = vmatpush1.msra.mxu0 0.0
    %3494 = vmatprep.subr.mxu0 0.0
    %3495 = vmatpush1.msra.mxu0 0.0
    %3496 = vmatprep.subr.mxu0 0.0
    %3497 = vmatpush1.msra.mxu0 0.0
    %3498 = vmatprep.subr.mxu0 0.0
    %3499 = vmatpush1.msra.mxu0 0.0
    %3500 = vmatprep.subr.mxu0 0.0
    %3501 = vmatpush1.msra.mxu0 0.0
    %3502 = vmatprep.subr.mxu0 0.0
    %3503 = vmatpush1.msra.mxu0 0.0
    %3504 = vmatprep.subr.mxu0 0.0
    %3505 = vmatpush1.msra.mxu0 0.0
    %3506 = vmatprep.subr.mxu0 0.0
    %3507 = vmatpush1.msra.mxu0 0.0
    %3508 = vmatprep.subr.mxu0 0.0
    %3509 = vmatpush1.msra.mxu0 0.0
    %3510 = vmatprep.subr.mxu0 0.0
    %3511 = vmatpush1.msra.mxu0 0.0
    %3512 = vmatprep.subr.mxu0 0.0
    %3513 = vmatpush1.msra.mxu0 0.0
    %3514 = vmatprep.subr.mxu0 0.0
    %3515 = vmatpush1.msra.mxu0 0.0
    %3516 = vmatprep.subr.mxu0 0.0
    %3517 = vmatpush1.msra.mxu0 0.0
    %3518 = vmatprep.subr.mxu0 0.0
    %3519 = vmatpush1.msra.mxu0 0.0
    %3520 = vmatprep.subr.mxu0 0.0
    %3521 = vmatpush1.msra.mxu0 0.0
    %3522 = vmatprep.subr.mxu0 0.0
    %3523 = vmatpush1.msra.mxu0 0.0
    %3524 = vmatprep.subr.mxu0 0.0
    %3525 = vmatpush1.msra.mxu0 0.0
    %3526 = vmatprep.subr.mxu0 0.0
    %3527 = vmatpush1.msra.mxu0 0.0
    %3528 = vmatprep.subr.mxu0 0.0
    %3529 = vmatpush1.msra.mxu0 0.0
    %3530 = vmatprep.subr.mxu0 0.0
    %3531 = vmatpush1.msra.mxu0 0.0
    %3532 = vmatprep.subr.mxu0 0.0
    %3533 = vmatpush1.msra.mxu0 0.0
    %3534 = vmatprep.subr.mxu0 0.0
    %3535 = vmatpush1.msra.mxu0 0.0
    %3536 = vmatprep.subr.mxu0 0.0
    %3537 = vmatpush1.msra.mxu0 0.0
    %3538 = vmatprep.subr.mxu0 0.0
    %3539 = vmatpush1.msra.mxu0 0.0
    %3540 = vmatprep.mubr.f32.mxu0 0.0
    %3541 = vmatmul.mubr.f32.gmra.mrb[0].mxu0 %v1441
    %v3542 = vpop.f32.mrb[0].mxu0
    %v3543 = vadd.f32 0.0, %v3542
    %v3544 = vpop.f32.mrb[0].mxu0
    %3545 = vdwg.mxu0
    %3547 = vrot.lane.b32.xlu0 %v3543, 64
    %v3548 = vpop.permute.xlu0 %3547
    %v3550 = vsel %vm1436, %v3543, %v3548
    %v3551 = vadd.f32 %v3473, %v3550
    %v3552 = vxor.u32 %v3551, 2147483648
    %v3553 = vmul.f32 %v3552, 1.442695
    %v3554 = vpow.pop %v3553
    %v3555 = vadd.f32 %v3554, 1.0
    %v3556 = vrcp.pop %v3555
    %v3557 = vmul.f32 1.0, %v3556
    %v3558 = vtanh.pop %v3551
    %v3559 = vmul.f32 %v3557, 0.0
    %3561 = vrot.lane.b32.xlu0 %v3558, 80
    %v3562 = vpop.permute.xlu0 %3561
    %v3564 = vmul.f32 %v3557, %v3562
    %3566 = vrot.lane.b32.xlu0 %v3564, 16
    %v3567 = vpop.permute.xlu0 %3566
    %v3569 = vadd.f32 %v3559, %v3567
    %v3570 = vtanh.pop %v3569
    %3572 = vrot.lane.b32.xlu0 %v3570, 16
    %v3573 = vpop.permute.xlu0 %3572
    %v3575 = vmul.f32 %v3557, %v3573
    %v3576 = vld [vmem:[#allocation3 + $0x1] sm:$0x1]
    %v3577 = vld [vmem:[#allocation3 + $0xe] sm:$0x1]
    %v3579 = vrot.slane %v3577, 7
    %3580 = vrot.lane.b32.xlu0 %v3579, 64
    %v3581 = vpop.permute.xlu0 %3580
    %v3583 = vsel %vm1436, %v3576, %v3581
    %3585 = vrot.lane.b32.xlu0 %v3575, 96
    %v3586 = vpop.permute.xlu0 %3585
    %v3587 = vsel %vm462, %v3586, 0
    %3589 = vmatprep.subr.mxu0 0.0
    %3590 = vmatpush1.msra.mxu0 %v3474
    %3591 = vmatprep.subr.mxu0 0.0
    %3592 = vmatpush1.msra.mxu0 %v3475
    %3593 = vmatprep.subr.mxu0 0.0
    %3594 = vmatpush1.msra.mxu0 0.0
    %3595 = vmatprep.subr.mxu0 0.0
    %3596 = vmatpush1.msra.mxu0 0.0
    %3597 = vmatprep.subr.mxu0 0.0
    %3598 = vmatpush1.msra.mxu0 0.0
    %3599 = vmatprep.subr.mxu0 0.0
    %3600 = vmatpush1.msra.mxu0 0.0
    %3601 = vmatprep.subr.mxu0 0.0
    %3602 = vmatpush1.msra.mxu0 0.0
    %3603 = vmatprep.subr.mxu0 0.0
    %3604 = vmatpush1.msra.mxu0 0.0
    %3605 = vmatprep.subr.mxu0 0.0
    %3606 = vmatpush1.msra.mxu0 0.0
    %3607 = vmatprep.subr.mxu0 0.0
    %3608 = vmatpush1.msra.mxu0 0.0
    %3609 = vmatprep.subr.mxu0 0.0
    %3610 = vmatpush1.msra.mxu0 0.0
    %3611 = vmatprep.subr.mxu0 0.0
    %3612 = vmatpush1.msra.mxu0 0.0
    %3613 = vmatprep.subr.mxu0 0.0
    %3614 = vmatpush1.msra.mxu0 0.0
    %3615 = vmatprep.subr.mxu0 0.0
    %3616 = vmatpush1.msra.mxu0 0.0
    %3617 = vmatprep.subr.mxu0 0.0
    %3618 = vmatpush1.msra.mxu0 0.0
    %3619 = vmatprep.subr.mxu0 0.0
    %3620 = vmatpush1.msra.mxu0 0.0
    %3621 = vmatprep.subr.mxu0 0.0
    %3622 = vmatpush1.msra.mxu0 0.0
    %3623 = vmatprep.subr.mxu0 0.0
    %3624 = vmatpush1.msra.mxu0 0.0
    %3625 = vmatprep.subr.mxu0 0.0
    %3626 = vmatpush1.msra.mxu0 0.0
    %3627 = vmatprep.subr.mxu0 0.0
    %3628 = vmatpush1.msra.mxu0 0.0
    %3629 = vmatprep.subr.mxu0 0.0
    %3630 = vmatpush1.msra.mxu0 0.0
    %3631 = vmatprep.subr.mxu0 0.0
    %3632 = vmatpush1.msra.mxu0 0.0
    %3633 = vmatprep.subr.mxu0 0.0
    %3634 = vmatpush1.msra.mxu0 0.0
    %3635 = vmatprep.subr.mxu0 0.0
    %3636 = vmatpush1.msra.mxu0 0.0
    %3637 = vmatprep.subr.mxu0 0.0
    %3638 = vmatpush1.msra.mxu0 0.0
    %3639 = vmatprep.subr.mxu0 0.0
    %3640 = vmatpush1.msra.mxu0 0.0
    %3641 = vmatprep.subr.mxu0 0.0
    %3642 = vmatpush1.msra.mxu0 0.0
    %3643 = vmatprep.subr.mxu0 0.0
    %3644 = vmatpush1.msra.mxu0 0.0
    %3645 = vmatprep.subr.mxu0 0.0
    %3646 = vmatpush1.msra.mxu0 0.0
    %3647 = vmatprep.subr.mxu0 0.0
    %3648 = vmatpush1.msra.mxu0 0.0
    %3649 = vmatprep.subr.mxu0 0.0
    %3650 = vmatpush1.msra.mxu0 0.0
    %3651 = vmatprep.subr.mxu0 0.0
    %3652 = vmatpush1.msra.mxu0 0.0
    %3653 = vmatprep.mubr.f32.mxu0 0.0
    %3654 = vmatmul.mubr.f32.gmra.mrb[0].mxu0 %v3587
    %v3655 = vpop.f32.mrb[0].mxu0
    %v3656 = vadd.f32 0.0, %v3655
    %v3657 = vpop.f32.mrb[0].mxu0
    %3658 = vdwg.mxu0
    %3660 = vrot.lane.b32.xlu0 %v3656, 64
    %v3661 = vpop.permute.xlu0 %3660
    %v3663 = vsel %vm1436, %v3656, %v3661
    %v3664 = vadd.f32 %v3583, %v3663
    %v3665 = vxor.u32 %v3664, 2147483648
    %v3666 = vmul.f32 %v3665, 1.442695
    %v3667 = vpow.pop %v3666
    %v3668 = vadd.f32 %v3667, 1.0
    %v3669 = vrcp.pop %v3668
    %v3670 = vmul.f32 1.0, %v3669
    %v3671 = vtanh.pop %v3664
    %v3672 = vmul.f32 %v3670, %v3569
    %3674 = vrot.lane.b32.xlu0 %v3671, 80
    %v3675 = vpop.permute.xlu0 %3674
    %v3677 = vmul.f32 %v3670, %v3675
    %3679 = vrot.lane.b32.xlu0 %v3677, 16
    %v3680 = vpop.permute.xlu0 %3679
    %v3682 = vadd.f32 %v3672, %v3680
    %v3683 = vtanh.pop %v3682
    %3685 = vrot.lane.b32.xlu0 %v3683, 16
    %v3686 = vpop.permute.xlu0 %3685
    %v3688 = vmul.f32 %v3670, %v3686
    %v3689 = vld [vmem:[#allocation3 + $0x2] sm:$0x1]
    %v3690 = vld [vmem:[#allocation3 + $0xd] sm:$0x1]
    %v3692 = vrot.slane %v3690, 7
    %3693 = vrot.lane.b32.xlu0 %v3692, 64
    %v3694 = vpop.permute.xlu0 %3693
    %v3696 = vsel %vm1436, %v3689, %v3694
    %3698 = vrot.lane.b32.xlu0 %v3688, 96
    %v3699 = vpop.permute.xlu0 %3698
    %v3700 = vsel %vm462, %v3699, 0
    %3702 = vmatprep.subr.mxu0 0.0
    %3703 = vmatpush1.msra.mxu0 %v3474
    %3704 = vmatprep.subr.mxu0 0.0
    %3705 = vmatpush1.msra.mxu0 %v3475
    %3706 = vmatprep.subr.mxu0 0.0
    %3707 = vmatpush1.msra.mxu0 0.0
    %3708 = vmatprep.subr.mxu0 0.0
    %3709 = vmatpush1.msra.mxu0 0.0
    %3710 = vmatprep.subr.mxu0 0.0
    %3711 = vmatpush1.msra.mxu0 0.0
    %3712 = vmatprep.subr.mxu0 0.0
    %3713 = vmatpush1.msra.mxu0 0.0
    %3714 = vmatprep.subr.mxu0 0.0
    %3715 = vmatpush1.msra.mxu0 0.0
    %3716 = vmatprep.subr.mxu0 0.0
    %3717 = vmatpush1.msra.mxu0 0.0
    %3718 = vmatprep.subr.mxu0 0.0
    %3719 = vmatpush1.msra.mxu0 0.0
    %3720 = vmatprep.subr.mxu0 0.0
    %3721 = vmatpush1.msra.mxu0 0.0
    %3722 = vmatprep.subr.mxu0 0.0
    %3723 = vmatpush1.msra.mxu0 0.0
    %3724 = vmatprep.subr.mxu0 0.0
    %3725 = vmatpush1.msra.mxu0 0.0
    %3726 = vmatprep.subr.mxu0 0.0
    %3727 = vmatpush1.msra.mxu0 0.0
    %3728 = vmatprep.subr.mxu0 0.0
    %3729 = vmatpush1.msra.mxu0 0.0
    %3730 = vmatprep.subr.mxu0 0.0
    %3731 = vmatpush1.msra.mxu0 0.0
    %3732 = vmatprep.subr.mxu0 0.0
    %3733 = vmatpush1.msra.mxu0 0.0
    %3734 = vmatprep.subr.mxu0 0.0
    %3735 = vmatpush1.msra.mxu0 0.0
    %3736 = vmatprep.subr.mxu0 0.0
    %3737 = vmatpush1.msra.mxu0 0.0
    %3738 = vmatprep.subr.mxu0 0.0
    %3739 = vmatpush1.msra.mxu0 0.0
    %3740 = vmatprep.subr.mxu0 0.0
    %3741 = vmatpush1.msra.mxu0 0.0
    %3742 = vmatprep.subr.mxu0 0.0
    %3743 = vmatpush1.msra.mxu0 0.0
    %3744 = vmatprep.subr.mxu0 0.0
    %3745 = vmatpush1.msra.mxu0 0.0
    %3746 = vmatprep.subr.mxu0 0.0
    %3747 = vmatpush1.msra.mxu0 0.0
    %3748 = vmatprep.subr.mxu0 0.0
    %3749 = vmatpush1.msra.mxu0 0.0
    %3750 = vmatprep.subr.mxu0 0.0
    %3751 = vmatpush1.msra.mxu0 0.0
    %3752 = vmatprep.subr.mxu0 0.0
    %3753 = vmatpush1.msra.mxu0 0.0
    %3754 = vmatprep.subr.mxu0 0.0
    %3755 = vmatpush1.msra.mxu0 0.0
    %3756 = vmatprep.subr.mxu0 0.0
    %3757 = vmatpush1.msra.mxu0 0.0
    %3758 = vmatprep.subr.mxu0 0.0
    %3759 = vmatpush1.msra.mxu0 0.0
    %3760 = vmatprep.subr.mxu0 0.0
    %3761 = vmatpush1.msra.mxu0 0.0
    %3762 = vmatprep.subr.mxu0 0.0
    %3763 = vmatpush1.msra.mxu0 0.0
    %3764 = vmatprep.subr.mxu0 0.0
    %3765 = vmatpush1.msra.mxu0 0.0
    %3766 = vmatprep.mubr.f32.mxu0 0.0
    %3767 = vmatmul.mubr.f32.gmra.mrb[0].mxu0 %v3700
    %v3768 = vpop.f32.mrb[0].mxu0
    %v3769 = vadd.f32 0.0, %v3768
    %v3770 = vpop.f32.mrb[0].mxu0
    %3771 = vdwg.mxu0
    %3773 = vrot.lane.b32.xlu0 %v3769, 64
    %v3774 = vpop.permute.xlu0 %3773
    %v3776 = vsel %vm1436, %v3769, %v3774
    %v3777 = vadd.f32 %v3696, %v3776
    %v3778 = vxor.u32 %v3777, 2147483648
    %v3779 = vmul.f32 %v3778, 1.442695
    %v3780 = vpow.pop %v3779
    %v3781 = vadd.f32 %v3780, 1.0
    %v3782 = vrcp.pop %v3781
    %v3783 = vmul.f32 1.0, %v3782
    %v3784 = vtanh.pop %v3777
    %v3785 = vmul.f32 %v3783, %v3682
    %3787 = vrot.lane.b32.xlu0 %v3784, 80
    %v3788 = vpop.permute.xlu0 %3787
    %v3790 = vmul.f32 %v3783, %v3788
    %3792 = vrot.lane.b32.xlu0 %v3790, 16
    %v3793 = vpop.permute.xlu0 %3792
    %v3795 = vadd.f32 %v3785, %v3793
    %v3796 = vtanh.pop %v3795
    %3798 = vrot.lane.b32.xlu0 %v3796, 16
    %v3799 = vpop.permute.xlu0 %3798
    %v3801 = vmul.f32 %v3783, %v3799
    %v3802 = vld [vmem:[#allocation3 + $0x3] sm:$0x1]
    %v3803 = vld [vmem:[#allocation3 + $0xc] sm:$0x1]
    %v3805 = vrot.slane %v3803, 7
    %3806 = vrot.lane.b32.xlu0 %v3805, 64
    %v3807 = vpop.permute.xlu0 %3806
    %v3809 = vsel %vm1436, %v3802, %v3807
    %3811 = vrot.lane.b32.xlu0 %v3801, 96
    %v3812 = vpop.permute.xlu0 %3811
    %v3813 = vsel %vm462, %v3812, 0
    %3815 = vmatprep.subr.mxu0 0.0
    %3816 = vmatpush1.msra.mxu0 %v3474
    %3817 = vmatprep.subr.mxu0 0.0
    %3818 = vmatpush1.msra.mxu0 %v3475
    %3819 = vmatprep.subr.mxu0 0.0
    %3820 = vmatpush1.msra.mxu0 0.0
    %3821 = vmatprep.subr.mxu0 0.0
    %3822 = vmatpush1.msra.mxu0 0.0
    %3823 = vmatprep.subr.mxu0 0.0
    %3824 = vmatpush1.msra.mxu0 0.0
    %3825 = vmatprep.subr.mxu0 0.0
    %3826 = vmatpush1.msra.mxu0 0.0
    %3827 = vmatprep.subr.mxu0 0.0
    %3828 = vmatpush1.msra.mxu0 0.0
    %3829 = vmatprep.subr.mxu0 0.0
    %3830 = vmatpush1.msra.mxu0 0.0
    %3831 = vmatprep.subr.mxu0 0.0
    %3832 = vmatpush1.msra.mxu0 0.0
    %3833 = vmatprep.subr.mxu0 0.0
    %3834 = vmatpush1.msra.mxu0 0.0
    %3835 = vmatprep.subr.mxu0 0.0
    %3836 = vmatpush1.msra.mxu0 0.0
    %3837 = vmatprep.subr.mxu0 0.0
    %3838 = vmatpush1.msra.mxu0 0.0
    %3839 = vmatprep.subr.mxu0 0.0
    %3840 = vmatpush1.msra.mxu0 0.0
    %3841 = vmatprep.subr.mxu0 0.0
    %3842 = vmatpush1.msra.mxu0 0.0
    %3843 = vmatprep.subr.mxu0 0.0
    %3844 = vmatpush1.msra.mxu0 0.0
    %3845 = vmatprep.subr.mxu0 0.0
    %3846 = vmatpush1.msra.mxu0 0.0
    %3847 = vmatprep.subr.mxu0 0.0
    %3848 = vmatpush1.msra.mxu0 0.0
    %3849 = vmatprep.subr.mxu0 0.0
    %3850 = vmatpush1.msra.mxu0 0.0
    %3851 = vmatprep.subr.mxu0 0.0
    %3852 = vmatpush1.msra.mxu0 0.0
    %3853 = vmatprep.subr.mxu0 0.0
    %3854 = vmatpush1.msra.mxu0 0.0
    %3855 = vmatprep.subr.mxu0 0.0
    %3856 = vmatpush1.msra.mxu0 0.0
    %3857 = vmatprep.subr.mxu0 0.0
    %3858 = vmatpush1.msra.mxu0 0.0
    %3859 = vmatprep.subr.mxu0 0.0
    %3860 = vmatpush1.msra.mxu0 0.0
    %3861 = vmatprep.subr.mxu0 0.0
    %3862 = vmatpush1.msra.mxu0 0.0
    %3863 = vmatprep.subr.mxu0 0.0
    %3864 = vmatpush1.msra.mxu0 0.0
    %3865 = vmatprep.subr.mxu0 0.0
    %3866 = vmatpush1.msra.mxu0 0.0
    %3867 = vmatprep.subr.mxu0 0.0
    %3868 = vmatpush1.msra.mxu0 0.0
    %3869 = vmatprep.subr.mxu0 0.0
    %3870 = vmatpush1.msra.mxu0 0.0
    %3871 = vmatprep.subr.mxu0 0.0
    %3872 = vmatpush1.msra.mxu0 0.0
    %3873 = vmatprep.subr.mxu0 0.0
    %3874 = vmatpush1.msra.mxu0 0.0
    %3875 = vmatprep.subr.mxu0 0.0
    %3876 = vmatpush1.msra.mxu0 0.0
    %3877 = vmatprep.subr.mxu0 0.0
    %3878 = vmatpush1.msra.mxu0 0.0
    %3879 = vmatprep.mubr.f32.mxu0 0.0
    %3880 = vmatmul.mubr.f32.gmra.mrb[0].mxu0 %v3813
    %v3881 = vpop.f32.mrb[0].mxu0
    %v3882 = vadd.f32 0.0, %v3881
    %v3883 = vpop.f32.mrb[0].mxu0
    %3884 = vdwg.mxu0
    %3886 = vrot.lane.b32.xlu0 %v3882, 64
    %v3887 = vpop.permute.xlu0 %3886
    %v3889 = vsel %vm1436, %v3882, %v3887
    %v3890 = vadd.f32 %v3809, %v3889
    %v3891 = vxor.u32 %v3890, 2147483648
    %v3892 = vmul.f32 %v3891, 1.442695
    %v3893 = vpow.pop %v3892
    %v3894 = vadd.f32 %v3893, 1.0
    %v3895 = vrcp.pop %v3894
    %v3896 = vmul.f32 1.0, %v3895
    %v3897 = vtanh.pop %v3890
    %v3898 = vmul.f32 %v3896, %v3795
    %3900 = vrot.lane.b32.xlu0 %v3897, 80
    %v3901 = vpop.permute.xlu0 %3900
    %v3903 = vmul.f32 %v3896, %v3901
    %3905 = vrot.lane.b32.xlu0 %v3903, 16
    %v3906 = vpop.permute.xlu0 %3905
    %v3908 = vadd.f32 %v3898, %v3906
    %v3909 = vtanh.pop %v3908
    %3911 = vrot.lane.b32.xlu0 %v3909, 16
    %v3912 = vpop.permute.xlu0 %3911
    %v3914 = vmul.f32 %v3896, %v3912
    %v3915 = vld [vmem:[#allocation3 + $0x4] sm:$0x1]
    %v3916 = vld [vmem:[#allocation3 + $0xb] sm:$0x1]
    %v3918 = vrot.slane %v3916, 7
    %3919 = vrot.lane.b32.xlu0 %v3918, 64
    %v3920 = vpop.permute.xlu0 %3919
    %v3922 = vsel %vm1436, %v3915, %v3920
    %3924 = vrot.lane.b32.xlu0 %v3914, 96
    %v3925 = vpop.permute.xlu0 %3924
    %v3926 = vsel %vm462, %v3925, 0
    %3928 = vmatprep.subr.mxu0 0.0
    %3929 = vmatpush1.msra.mxu0 %v3474
    %3930 = vmatprep.subr.mxu0 0.0
    %3931 = vmatpush1.msra.mxu0 %v3475
    %3932 = vmatprep.subr.mxu0 0.0
    %3933 = vmatpush1.msra.mxu0 0.0
    %3934 = vmatprep.subr.mxu0 0.0
    %3935 = vmatpush1.msra.mxu0 0.0
    %3936 = vmatprep.subr.mxu0 0.0
    %3937 = vmatpush1.msra.mxu0 0.0
    %3938 = vmatprep.subr.mxu0 0.0
    %3939 = vmatpush1.msra.mxu0 0.0
    %3940 = vmatprep.subr.mxu0 0.0
    %3941 = vmatpush1.msra.mxu0 0.0
    %3942 = vmatprep.subr.mxu0 0.0
    %3943 = vmatpush1.msra.mxu0 0.0
    %3944 = vmatprep.subr.mxu0 0.0
    %3945 = vmatpush1.msra.mxu0 0.0
    %3946 = vmatprep.subr.mxu0 0.0
    %3947 = vmatpush1.msra.mxu0 0.0
    %3948 = vmatprep.subr.mxu0 0.0
    %3949 = vmatpush1.msra.mxu0 0.0
    %3950 = vmatprep.subr.mxu0 0.0
    %3951 = vmatpush1.msra.mxu0 0.0
    %3952 = vmatprep.subr.mxu0 0.0
    %3953 = vmatpush1.msra.mxu0 0.0
    %3954 = vmatprep.subr.mxu0 0.0
    %3955 = vmatpush1.msra.mxu0 0.0
    %3956 = vmatprep.subr.mxu0 0.0
    %3957 = vmatpush1.msra.mxu0 0.0
    %3958 = vmatprep.subr.mxu0 0.0
    %3959 = vmatpush1.msra.mxu0 0.0
    %3960 = vmatprep.subr.mxu0 0.0
    %3961 = vmatpush1.msra.mxu0 0.0
    %3962 = vmatprep.subr.mxu0 0.0
    %3963 = vmatpush1.msra.mxu0 0.0
    %3964 = vmatprep.subr.mxu0 0.0
    %3965 = vmatpush1.msra.mxu0 0.0
    %3966 = vmatprep.subr.mxu0 0.0
    %3967 = vmatpush1.msra.mxu0 0.0
    %3968 = vmatprep.subr.mxu0 0.0
    %3969 = vmatpush1.msra.mxu0 0.0
    %3970 = vmatprep.subr.mxu0 0.0
    %3971 = vmatpush1.msra.mxu0 0.0
    %3972 = vmatprep.subr.mxu0 0.0
    %3973 = vmatpush1.msra.mxu0 0.0
    %3974 = vmatprep.subr.mxu0 0.0
    %3975 = vmatpush1.msra.mxu0 0.0
    %3976 = vmatprep.subr.mxu0 0.0
    %3977 = vmatpush1.msra.mxu0 0.0
    %3978 = vmatprep.subr.mxu0 0.0
    %3979 = vmatpush1.msra.mxu0 0.0
    %3980 = vmatprep.subr.mxu0 0.0
    %3981 = vmatpush1.msra.mxu0 0.0
    %3982 = vmatprep.subr.mxu0 0.0
    %3983 = vmatpush1.msra.mxu0 0.0
    %3984 = vmatprep.subr.mxu0 0.0
    %3985 = vmatpush1.msra.mxu0 0.0
    %3986 = vmatprep.subr.mxu0 0.0
    %3987 = vmatpush1.msra.mxu0 0.0
    %3988 = vmatprep.subr.mxu0 0.0
    %3989 = vmatpush1.msra.mxu0 0.0
    %3990 = vmatprep.subr.mxu0 0.0
    %3991 = vmatpush1.msra.mxu0 0.0
    %3992 = vmatprep.mubr.f32.mxu0 0.0
    %3993 = vmatmul.mubr.f32.gmra.mrb[0].mxu0 %v3926
    %v3994 = vpop.f32.mrb[0].mxu0
    %v3995 = vadd.f32 0.0, %v3994
    %v3996 = vpop.f32.mrb[0].mxu0
    %3997 = vdwg.mxu0
    %3999 = vrot.lane.b32.xlu0 %v3995, 64
    %v4000 = vpop.permute.xlu0 %3999
    %v4002 = vsel %vm1436, %v3995, %v4000
    %v4003 = vadd.f32 %v3922, %v4002
    %v4004 = vxor.u32 %v4003, 2147483648
    %v4005 = vmul.f32 %v4004, 1.442695
    %v4006 = vpow.pop %v4005
    %v4007 = vadd.f32 %v4006, 1.0
    %v4008 = vrcp.pop %v4007
    %v4009 = vmul.f32 1.0, %v4008
    %v4010 = vtanh.pop %v4003
    %v4011 = vmul.f32 %v4009, %v3908
    %4013 = vrot.lane.b32.xlu0 %v4010, 80
    %v4014 = vpop.permute.xlu0 %4013
    %v4016 = vmul.f32 %v4009, %v4014
    %4018 = vrot.lane.b32.xlu0 %v4016, 16
    %v4019 = vpop.permute.xlu0 %4018
    %v4021 = vadd.f32 %v4011, %v4019
    %v4022 = vtanh.pop %v4021
    %4024 = vrot.lane.b32.xlu0 %v4022, 16
    %v4025 = vpop.permute.xlu0 %4024
    %v4027 = vmul.f32 %v4009, %v4025
    %v4028 = vld [vmem:[#allocation3 + $0x5] sm:$0x1]
    %v4029 = vld [vmem:[#allocation3 + $0xa] sm:$0x1]
    %v4031 = vrot.slane %v4029, 7
    %4032 = vrot.lane.b32.xlu0 %v4031, 64
    %v4033 = vpop.permute.xlu0 %4032
    %v4035 = vsel %vm1436, %v4028, %v4033
    %4037 = vrot.lane.b32.xlu0 %v4027, 96
    %v4038 = vpop.permute.xlu0 %4037
    %v4039 = vsel %vm462, %v4038, 0
    %4041 = vmatprep.subr.mxu0 0.0
    %4042 = vmatpush1.msra.mxu0 %v3474
    %4043 = vmatprep.subr.mxu0 0.0
    %4044 = vmatpush1.msra.mxu0 %v3475
    %4045 = vmatprep.subr.mxu0 0.0
    %4046 = vmatpush1.msra.mxu0 0.0
    %4047 = vmatprep.subr.mxu0 0.0
    %4048 = vmatpush1.msra.mxu0 0.0
    %4049 = vmatprep.subr.mxu0 0.0
    %4050 = vmatpush1.msra.mxu0 0.0
    %4051 = vmatprep.subr.mxu0 0.0
    %4052 = vmatpush1.msra.mxu0 0.0
    %4053 = vmatprep.subr.mxu0 0.0
    %4054 = vmatpush1.msra.mxu0 0.0
    %4055 = vmatprep.subr.mxu0 0.0
    %4056 = vmatpush1.msra.mxu0 0.0
    %4057 = vmatprep.subr.mxu0 0.0
    %4058 = vmatpush1.msra.mxu0 0.0
    %4059 = vmatprep.subr.mxu0 0.0
    %4060 = vmatpush1.msra.mxu0 0.0
    %4061 = vmatprep.subr.mxu0 0.0
    %4062 = vmatpush1.msra.mxu0 0.0
    %4063 = vmatprep.subr.mxu0 0.0
    %4064 = vmatpush1.msra.mxu0 0.0
    %4065 = vmatprep.subr.mxu0 0.0
    %4066 = vmatpush1.msra.mxu0 0.0
    %4067 = vmatprep.subr.mxu0 0.0
    %4068 = vmatpush1.msra.mxu0 0.0
    %4069 = vmatprep.subr.mxu0 0.0
    %4070 = vmatpush1.msra.mxu0 0.0
    %4071 = vmatprep.subr.mxu0 0.0
    %4072 = vmatpush1.msra.mxu0 0.0
    %4073 = vmatprep.subr.mxu0 0.0
    %4074 = vmatpush1.msra.mxu0 0.0
    %4075 = vmatprep.subr.mxu0 0.0
    %4076 = vmatpush1.msra.mxu0 0.0
    %4077 = vmatprep.subr.mxu0 0.0
    %4078 = vmatpush1.msra.mxu0 0.0
    %4079 = vmatprep.subr.mxu0 0.0
    %4080 = vmatpush1.msra.mxu0 0.0
    %4081 = vmatprep.subr.mxu0 0.0
    %4082 = vmatpush1.msra.mxu0 0.0
    %4083 = vmatprep.subr.mxu0 0.0
    %4084 = vmatpush1.msra.mxu0 0.0
    %4085 = vmatprep.subr.mxu0 0.0
    %4086 = vmatpush1.msra.mxu0 0.0
    %4087 = vmatprep.subr.mxu0 0.0
    %4088 = vmatpush1.msra.mxu0 0.0
    %4089 = vmatprep.subr.mxu0 0.0
    %4090 = vmatpush1.msra.mxu0 0.0
    %4091 = vmatprep.subr.mxu0 0.0
    %4092 = vmatpush1.msra.mxu0 0.0
    %4093 = vmatprep.subr.mxu0 0.0
    %4094 = vmatpush1.msra.mxu0 0.0
    %4095 = vmatprep.subr.mxu0 0.0
    %4096 = vmatpush1.msra.mxu0 0.0
    %4097 = vmatprep.subr.mxu0 0.0
    %4098 = vmatpush1.msra.mxu0 0.0
    %4099 = vmatprep.subr.mxu0 0.0
    %4100 = vmatpush1.msra.mxu0 0.0
    %4101 = vmatprep.subr.mxu0 0.0
    %4102 = vmatpush1.msra.mxu0 0.0
    %4103 = vmatprep.subr.mxu0 0.0
    %4104 = vmatpush1.msra.mxu0 0.0
    %4105 = vmatprep.mubr.f32.mxu0 0.0
    %4106 = vmatmul.mubr.f32.gmra.mrb[0].mxu0 %v4039
    %v4107 = vpop.f32.mrb[0].mxu0
    %v4108 = vadd.f32 0.0, %v4107
    %v4109 = vpop.f32.mrb[0].mxu0
    %4110 = vdwg.mxu0
    %4112 = vrot.lane.b32.xlu0 %v4108, 64
    %v4113 = vpop.permute.xlu0 %4112
    %v4115 = vsel %vm1436, %v4108, %v4113
    %v4116 = vadd.f32 %v4035, %v4115
    %v4117 = vxor.u32 %v4116, 2147483648
    %v4118 = vmul.f32 %v4117, 1.442695
    %v4119 = vpow.pop %v4118
    %v4120 = vadd.f32 %v4119, 1.0
    %v4121 = vrcp.pop %v4120
    %v4122 = vmul.f32 1.0, %v4121
    %v4123 = vtanh.pop %v4116
    %v4124 = vmul.f32 %v4122, %v4021
    %4126 = vrot.lane.b32.xlu0 %v4123, 80
    %v4127 = vpop.permute.xlu0 %4126
    %v4129 = vmul.f32 %v4122, %v4127
    %4131 = vrot.lane.b32.xlu0 %v4129, 16
    %v4132 = vpop.permute.xlu0 %4131
    %v4134 = vadd.f32 %v4124, %v4132
    %v4135 = vtanh.pop %v4134
    %4137 = vrot.lane.b32.xlu0 %v4135, 16
    %v4138 = vpop.permute.xlu0 %4137
    %v4140 = vmul.f32 %v4122, %v4138
    %v4141 = vld [vmem:[#allocation3 + $0x6] sm:$0x1]
    %v4142 = vld [vmem:[#allocation3 + $0x9] sm:$0x1]
    %v4144 = vrot.slane %v4142, 7
    %4145 = vrot.lane.b32.xlu0 %v4144, 64
    %v4146 = vpop.permute.xlu0 %4145
    %v4148 = vsel %vm1436, %v4141, %v4146
    %4150 = vrot.lane.b32.xlu0 %v4140, 96
    %v4151 = vpop.permute.xlu0 %4150
    %v4152 = vsel %vm462, %v4151, 0
    %4154 = vmatprep.subr.mxu0 0.0
    %4155 = vmatpush1.msra.mxu0 %v3474
    %4156 = vmatprep.subr.mxu0 0.0
    %4157 = vmatpush1.msra.mxu0 %v3475
    %4158 = vmatprep.subr.mxu0 0.0
    %4159 = vmatpush1.msra.mxu0 0.0
    %4160 = vmatprep.subr.mxu0 0.0
    %4161 = vmatpush1.msra.mxu0 0.0
    %4162 = vmatprep.subr.mxu0 0.0
    %4163 = vmatpush1.msra.mxu0 0.0
    %4164 = vmatprep.subr.mxu0 0.0
    %4165 = vmatpush1.msra.mxu0 0.0
    %4166 = vmatprep.subr.mxu0 0.0
    %4167 = vmatpush1.msra.mxu0 0.0
    %4168 = vmatprep.subr.mxu0 0.0
    %4169 = vmatpush1.msra.mxu0 0.0
    %4170 = vmatprep.subr.mxu0 0.0
    %4171 = vmatpush1.msra.mxu0 0.0
    %4172 = vmatprep.subr.mxu0 0.0
    %4173 = vmatpush1.msra.mxu0 0.0
    %4174 = vmatprep.subr.mxu0 0.0
    %4175 = vmatpush1.msra.mxu0 0.0
    %4176 = vmatprep.subr.mxu0 0.0
    %4177 = vmatpush1.msra.mxu0 0.0
    %4178 = vmatprep.subr.mxu0 0.0
    %4179 = vmatpush1.msra.mxu0 0.0
    %4180 = vmatprep.subr.mxu0 0.0
    %4181 = vmatpush1.msra.mxu0 0.0
    %4182 = vmatprep.subr.mxu0 0.0
    %4183 = vmatpush1.msra.mxu0 0.0
    %4184 = vmatprep.subr.mxu0 0.0
    %4185 = vmatpush1.msra.mxu0 0.0
    %4186 = vmatprep.subr.mxu0 0.0
    %4187 = vmatpush1.msra.mxu0 0.0
    %4188 = vmatprep.subr.mxu0 0.0
    %4189 = vmatpush1.msra.mxu0 0.0
    %4190 = vmatprep.subr.mxu0 0.0
    %4191 = vmatpush1.msra.mxu0 0.0
    %4192 = vmatprep.subr.mxu0 0.0
    %4193 = vmatpush1.msra.mxu0 0.0
    %4194 = vmatprep.subr.mxu0 0.0
    %4195 = vmatpush1.msra.mxu0 0.0
    %4196 = vmatprep.subr.mxu0 0.0
    %4197 = vmatpush1.msra.mxu0 0.0
    %4198 = vmatprep.subr.mxu0 0.0
    %4199 = vmatpush1.msra.mxu0 0.0
    %4200 = vmatprep.subr.mxu0 0.0
    %4201 = vmatpush1.msra.mxu0 0.0
    %4202 = vmatprep.subr.mxu0 0.0
    %4203 = vmatpush1.msra.mxu0 0.0
    %4204 = vmatprep.subr.mxu0 0.0
    %4205 = vmatpush1.msra.mxu0 0.0
    %4206 = vmatprep.subr.mxu0 0.0
    %4207 = vmatpush1.msra.mxu0 0.0
    %4208 = vmatprep.subr.mxu0 0.0
    %4209 = vmatpush1.msra.mxu0 0.0
    %4210 = vmatprep.subr.mxu0 0.0
    %4211 = vmatpush1.msra.mxu0 0.0
    %4212 = vmatprep.subr.mxu0 0.0
    %4213 = vmatpush1.msra.mxu0 0.0
    %4214 = vmatprep.subr.mxu0 0.0
    %4215 = vmatpush1.msra.mxu0 0.0
    %4216 = vmatprep.subr.mxu0 0.0
    %4217 = vmatpush1.msra.mxu0 0.0
    %4218 = vmatprep.mubr.f32.mxu0 0.0
    %4219 = vmatmul.mubr.f32.gmra.mrb[0].mxu0 %v4152
    %v4220 = vpop.f32.mrb[0].mxu0
    %v4221 = vadd.f32 0.0, %v4220
    %v4222 = vpop.f32.mrb[0].mxu0
    %4223 = vdwg.mxu0
    %4225 = vrot.lane.b32.xlu0 %v4221, 64
    %v4226 = vpop.permute.xlu0 %4225
    %v4228 = vsel %vm1436, %v4221, %v4226
    %v4229 = vadd.f32 %v4148, %v4228
    %v4230 = vxor.u32 %v4229, 2147483648
    %v4231 = vmul.f32 %v4230, 1.442695
    %v4232 = vpow.pop %v4231
    %v4233 = vadd.f32 %v4232, 1.0
    %v4234 = vrcp.pop %v4233
    %v4235 = vmul.f32 1.0, %v4234
    %v4236 = vtanh.pop %v4229
    %v4237 = vmul.f32 %v4235, %v4134
    %4239 = vrot.lane.b32.xlu0 %v4236, 80
    %v4240 = vpop.permute.xlu0 %4239
    %v4242 = vmul.f32 %v4235, %v4240
    %4244 = vrot.lane.b32.xlu0 %v4242, 16
    %v4245 = vpop.permute.xlu0 %4244
    %v4247 = vadd.f32 %v4237, %v4245
    %v4248 = vtanh.pop %v4247
    %4250 = vrot.lane.b32.xlu0 %v4248, 16
    %v4251 = vpop.permute.xlu0 %4250
    %v4253 = vmul.f32 %v4235, %v4251
    %v4254 = vld [vmem:[#allocation3 + $0x7] sm:$0x1]
    %v4255 = vld [vmem:[#allocation3 + $0x8] sm:$0x1]
    %v4257 = vrot.slane %v4255, 7
    %4258 = vrot.lane.b32.xlu0 %v4257, 64
    %v4259 = vpop.permute.xlu0 %4258
    %v4261 = vsel %vm1436, %v4254, %v4259
    %4263 = vrot.lane.b32.xlu0 %v4253, 96
    %v4264 = vpop.permute.xlu0 %4263
    %v4265 = vsel %vm462, %v4264, 0
    %4267 = vmatprep.subr.mxu0 0.0
    %4268 = vmatpush1.msra.mxu0 %v3474
    %4269 = vmatprep.subr.mxu0 0.0
    %4270 = vmatpush1.msra.mxu0 %v3475
    %4271 = vmatprep.subr.mxu0 0.0
    %4272 = vmatpush1.msra.mxu0 0.0
    %4273 = vmatprep.subr.mxu0 0.0
    %4274 = vmatpush1.msra.mxu0 0.0
    %4275 = vmatprep.subr.mxu0 0.0
    %4276 = vmatpush1.msra.mxu0 0.0
    %4277 = vmatprep.subr.mxu0 0.0
    %4278 = vmatpush1.msra.mxu0 0.0
    %4279 = vmatprep.subr.mxu0 0.0
    %4280 = vmatpush1.msra.mxu0 0.0
    %4281 = vmatprep.subr.mxu0 0.0
    %4282 = vmatpush1.msra.mxu0 0.0
    %4283 = vmatprep.subr.mxu0 0.0
    %4284 = vmatpush1.msra.mxu0 0.0
    %4285 = vmatprep.subr.mxu0 0.0
    %4286 = vmatpush1.msra.mxu0 0.0
    %4287 = vmatprep.subr.mxu0 0.0
    %4288 = vmatpush1.msra.mxu0 0.0
    %4289 = vmatprep.subr.mxu0 0.0
    %4290 = vmatpush1.msra.mxu0 0.0
    %4291 = vmatprep.subr.mxu0 0.0
    %4292 = vmatpush1.msra.mxu0 0.0
    %4293 = vmatprep.subr.mxu0 0.0
    %4294 = vmatpush1.msra.mxu0 0.0
    %4295 = vmatprep.subr.mxu0 0.0
    %4296 = vmatpush1.msra.mxu0 0.0
    %4297 = vmatprep.subr.mxu0 0.0
    %4298 = vmatpush1.msra.mxu0 0.0
    %4299 = vmatprep.subr.mxu0 0.0
    %4300 = vmatpush1.msra.mxu0 0.0
    %4301 = vmatprep.subr.mxu0 0.0
    %4302 = vmatpush1.msra.mxu0 0.0
    %4303 = vmatprep.subr.mxu0 0.0
    %4304 = vmatpush1.msra.mxu0 0.0
    %4305 = vmatprep.subr.mxu0 0.0
    %4306 = vmatpush1.msra.mxu0 0.0
    %4307 = vmatprep.subr.mxu0 0.0
    %4308 = vmatpush1.msra.mxu0 0.0
    %4309 = vmatprep.subr.mxu0 0.0
    %4310 = vmatpush1.msra.mxu0 0.0
    %4311 = vmatprep.subr.mxu0 0.0
    %4312 = vmatpush1.msra.mxu0 0.0
    %4313 = vmatprep.subr.mxu0 0.0
    %4314 = vmatpush1.msra.mxu0 0.0
    %4315 = vmatprep.subr.mxu0 0.0
    %4316 = vmatpush1.msra.mxu0 0.0
    %4317 = vmatprep.subr.mxu0 0.0
    %4318 = vmatpush1.msra.mxu0 0.0
    %4319 = vmatprep.subr.mxu0 0.0
    %4320 = vmatpush1.msra.mxu0 0.0
    %4321 = vmatprep.subr.mxu0 0.0
    %4322 = vmatpush1.msra.mxu0 0.0
    %4323 = vmatprep.subr.mxu0 0.0
    %4324 = vmatpush1.msra.mxu0 0.0
    %4325 = vmatprep.subr.mxu0 0.0
    %4326 = vmatpush1.msra.mxu0 0.0
    %4327 = vmatprep.subr.mxu0 0.0
    %4328 = vmatpush1.msra.mxu0 0.0
    %4329 = vmatprep.subr.mxu0 0.0
    %4330 = vmatpush1.msra.mxu0 0.0
    %4331 = vmatprep.mubr.f32.mxu0 0.0
    %4332 = vmatmul.mubr.f32.gmra.mrb[0].mxu0 %v4265
    %v4333 = vpop.f32.mrb[0].mxu0
    %v4334 = vadd.f32 0.0, %v4333
    %v4335 = vpop.f32.mrb[0].mxu0
    %4336 = vdwg.mxu0
    %4338 = vrot.lane.b32.xlu0 %v4334, 64
    %v4339 = vpop.permute.xlu0 %4338
    %v4341 = vsel %vm1436, %v4334, %v4339
    %v4342 = vadd.f32 %v4261, %v4341
    %v4343 = vxor.u32 %v4342, 2147483648
    %v4344 = vmul.f32 %v4343, 1.442695
    %v4345 = vpow.pop %v4344
    %v4346 = vadd.f32 %v4345, 1.0
    %v4347 = vrcp.pop %v4346
    %v4348 = vmul.f32 1.0, %v4347
    %v4349 = vtanh.pop %v4342
    %v4350 = vmul.f32 %v4348, %v4247
    %4352 = vrot.lane.b32.xlu0 %v4349, 80
    %v4353 = vpop.permute.xlu0 %4352
    %v4355 = vmul.f32 %v4348, %v4353
    %4357 = vrot.lane.b32.xlu0 %v4355, 16
    %v4358 = vpop.permute.xlu0 %4357
    %v4360 = vadd.f32 %v4350, %v4358
    %v4361 = vtanh.pop %v4360
    %4363 = vrot.lane.b32.xlu0 %v4361, 16
    %v4364 = vpop.permute.xlu0 %4363
    %v4366 = vmul.f32 %v4348, %v4364
    %v4368 = vrot.slane %v4254, 7
    %4369 = vrot.lane.b32.xlu0 %v4368, 64
    %v4370 = vpop.permute.xlu0 %4369
    %v4372 = vsel %vm1436, %v4255, %v4370
    %4374 = vrot.lane.b32.xlu0 %v4366, 96
    %v4375 = vpop.permute.xlu0 %4374
    %v4376 = vsel %vm462, %v4375, 0
    %4378 = vmatprep.subr.mxu0 0.0
    %4379 = vmatpush1.msra.mxu0 %v3474
    %4380 = vmatprep.subr.mxu0 0.0
    %4381 = vmatpush1.msra.mxu0 %v3475
    %4382 = vmatprep.subr.mxu0 0.0
    %4383 = vmatpush1.msra.mxu0 0.0
    %4384 = vmatprep.subr.mxu0 0.0
    %4385 = vmatpush1.msra.mxu0 0.0
    %4386 = vmatprep.subr.mxu0 0.0
    %4387 = vmatpush1.msra.mxu0 0.0
    %4388 = vmatprep.subr.mxu0 0.0
    %4389 = vmatpush1.msra.mxu0 0.0
    %4390 = vmatprep.subr.mxu0 0.0
    %4391 = vmatpush1.msra.mxu0 0.0
    %4392 = vmatprep.subr.mxu0 0.0
    %4393 = vmatpush1.msra.mxu0 0.0
    %4394 = vmatprep.subr.mxu0 0.0
    %4395 = vmatpush1.msra.mxu0 0.0
    %4396 = vmatprep.subr.mxu0 0.0
    %4397 = vmatpush1.msra.mxu0 0.0
    %4398 = vmatprep.subr.mxu0 0.0
    %4399 = vmatpush1.msra.mxu0 0.0
    %4400 = vmatprep.subr.mxu0 0.0
    %4401 = vmatpush1.msra.mxu0 0.0
    %4402 = vmatprep.subr.mxu0 0.0
    %4403 = vmatpush1.msra.mxu0 0.0
    %4404 = vmatprep.subr.mxu0 0.0
    %4405 = vmatpush1.msra.mxu0 0.0
    %4406 = vmatprep.subr.mxu0 0.0
    %4407 = vmatpush1.msra.mxu0 0.0
    %4408 = vmatprep.subr.mxu0 0.0
    %4409 = vmatpush1.msra.mxu0 0.0
    %4410 = vmatprep.subr.mxu0 0.0
    %4411 = vmatpush1.msra.mxu0 0.0
    %4412 = vmatprep.subr.mxu0 0.0
    %4413 = vmatpush1.msra.mxu0 0.0
    %4414 = vmatprep.subr.mxu0 0.0
    %4415 = vmatpush1.msra.mxu0 0.0
    %4416 = vmatprep.subr.mxu0 0.0
    %4417 = vmatpush1.msra.mxu0 0.0
    %4418 = vmatprep.subr.mxu0 0.0
    %4419 = vmatpush1.msra.mxu0 0.0
    %4420 = vmatprep.subr.mxu0 0.0
    %4421 = vmatpush1.msra.mxu0 0.0
    %4422 = vmatprep.subr.mxu0 0.0
    %4423 = vmatpush1.msra.mxu0 0.0
    %4424 = vmatprep.subr.mxu0 0.0
    %4425 = vmatpush1.msra.mxu0 0.0
    %4426 = vmatprep.subr.mxu0 0.0
    %4427 = vmatpush1.msra.mxu0 0.0
    %4428 = vmatprep.subr.mxu0 0.0
    %4429 = vmatpush1.msra.mxu0 0.0
    %4430 = vmatprep.subr.mxu0 0.0
    %4431 = vmatpush1.msra.mxu0 0.0
    %4432 = vmatprep.subr.mxu0 0.0
    %4433 = vmatpush1.msra.mxu0 0.0
    %4434 = vmatprep.subr.mxu0 0.0
    %4435 = vmatpush1.msra.mxu0 0.0
    %4436 = vmatprep.subr.mxu0 0.0
    %4437 = vmatpush1.msra.mxu0 0.0
    %4438 = vmatprep.subr.mxu0 0.0
    %4439 = vmatpush1.msra.mxu0 0.0
    %4440 = vmatprep.subr.mxu0 0.0
    %4441 = vmatpush1.msra.mxu0 0.0
    %4442 = vmatprep.mubr.f32.mxu0 0.0
    %4443 = vmatmul.mubr.f32.gmra.mrb[0].mxu0 %v4376
    %v4444 = vpop.f32.mrb[0].mxu0
    %v4445 = vadd.f32 0.0, %v4444
    %v4446 = vpop.f32.mrb[0].mxu0
    %4447 = vdwg.mxu0
    %4449 = vrot.lane.b32.xlu0 %v4445, 64
    %v4450 = vpop.permute.xlu0 %4449
    %v4452 = vsel %vm1436, %v4445, %v4450
    %v4453 = vadd.f32 %v4372, %v4452
    %v4454 = vxor.u32 %v4453, 2147483648
    %v4455 = vmul.f32 %v4454, 1.442695
    %v4456 = vpow.pop %v4455
    %v4457 = vadd.f32 %v4456, 1.0
    %v4458 = vrcp.pop %v4457
    %v4459 = vmul.f32 1.0, %v4458
    %v4460 = vtanh.pop %v4453
    %v4461 = vmul.f32 %v4459, %v4360
    %4463 = vrot.lane.b32.xlu0 %v4460, 80
    %v4464 = vpop.permute.xlu0 %4463
    %v4466 = vmul.f32 %v4459, %v4464
    %4468 = vrot.lane.b32.xlu0 %v4466, 16
    %v4469 = vpop.permute.xlu0 %4468
    %v4471 = vadd.f32 %v4461, %v4469
    %v4472 = vtanh.pop %v4471
    %4474 = vrot.lane.b32.xlu0 %v4472, 16
    %v4475 = vpop.permute.xlu0 %4474
    %v4477 = vmul.f32 %v4459, %v4475
    %v4479 = vrot.slane %v4141, 7
    %4480 = vrot.lane.b32.xlu0 %v4479, 64
    %v4481 = vpop.permute.xlu0 %4480
    %v4483 = vsel %vm1436, %v4142, %v4481
    %4485 = vrot.lane.b32.xlu0 %v4477, 96
    %v4486 = vpop.permute.xlu0 %4485
    %v4487 = vsel %vm462, %v4486, 0
    %4489 = vmatprep.subr.mxu0 0.0
    %4490 = vmatpush1.msra.mxu0 %v3474
    %4491 = vmatprep.subr.mxu0 0.0
    %4492 = vmatpush1.msra.mxu0 %v3475
    %4493 = vmatprep.subr.mxu0 0.0
    %4494 = vmatpush1.msra.mxu0 0.0
    %4495 = vmatprep.subr.mxu0 0.0
    %4496 = vmatpush1.msra.mxu0 0.0
    %4497 = vmatprep.subr.mxu0 0.0
    %4498 = vmatpush1.msra.mxu0 0.0
    %4499 = vmatprep.subr.mxu0 0.0
    %4500 = vmatpush1.msra.mxu0 0.0
    %4501 = vmatprep.subr.mxu0 0.0
    %4502 = vmatpush1.msra.mxu0 0.0
    %4503 = vmatprep.subr.mxu0 0.0
    %4504 = vmatpush1.msra.mxu0 0.0
    %4505 = vmatprep.subr.mxu0 0.0
    %4506 = vmatpush1.msra.mxu0 0.0
    %4507 = vmatprep.subr.mxu0 0.0
    %4508 = vmatpush1.msra.mxu0 0.0
    %4509 = vmatprep.subr.mxu0 0.0
    %4510 = vmatpush1.msra.mxu0 0.0
    %4511 = vmatprep.subr.mxu0 0.0
    %4512 = vmatpush1.msra.mxu0 0.0
    %4513 = vmatprep.subr.mxu0 0.0
    %4514 = vmatpush1.msra.mxu0 0.0
    %4515 = vmatprep.subr.mxu0 0.0
    %4516 = vmatpush1.msra.mxu0 0.0
    %4517 = vmatprep.subr.mxu0 0.0
    %4518 = vmatpush1.msra.mxu0 0.0
    %4519 = vmatprep.subr.mxu0 0.0
    %4520 = vmatpush1.msra.mxu0 0.0
    %4521 = vmatprep.subr.mxu0 0.0
    %4522 = vmatpush1.msra.mxu0 0.0
    %4523 = vmatprep.subr.mxu0 0.0
    %4524 = vmatpush1.msra.mxu0 0.0
    %4525 = vmatprep.subr.mxu0 0.0
    %4526 = vmatpush1.msra.mxu0 0.0
    %4527 = vmatprep.subr.mxu0 0.0
    %4528 = vmatpush1.msra.mxu0 0.0
    %4529 = vmatprep.subr.mxu0 0.0
    %4530 = vmatpush1.msra.mxu0 0.0
    %4531 = vmatprep.subr.mxu0 0.0
    %4532 = vmatpush1.msra.mxu0 0.0
    %4533 = vmatprep.subr.mxu0 0.0
    %4534 = vmatpush1.msra.mxu0 0.0
    %4535 = vmatprep.subr.mxu0 0.0
    %4536 = vmatpush1.msra.mxu0 0.0
    %4537 = vmatprep.subr.mxu0 0.0
    %4538 = vmatpush1.msra.mxu0 0.0
    %4539 = vmatprep.subr.mxu0 0.0
    %4540 = vmatpush1.msra.mxu0 0.0
    %4541 = vmatprep.subr.mxu0 0.0
    %4542 = vmatpush1.msra.mxu0 0.0
    %4543 = vmatprep.subr.mxu0 0.0
    %4544 = vmatpush1.msra.mxu0 0.0
    %4545 = vmatprep.subr.mxu0 0.0
    %4546 = vmatpush1.msra.mxu0 0.0
    %4547 = vmatprep.subr.mxu0 0.0
    %4548 = vmatpush1.msra.mxu0 0.0
    %4549 = vmatprep.subr.mxu0 0.0
    %4550 = vmatpush1.msra.mxu0 0.0
    %4551 = vmatprep.subr.mxu0 0.0
    %4552 = vmatpush1.msra.mxu0 0.0
    %4553 = vmatprep.mubr.f32.mxu0 0.0
    %4554 = vmatmul.mubr.f32.gmra.mrb[0].mxu0 %v4487
    %v4555 = vpop.f32.mrb[0].mxu0
    %v4556 = vadd.f32 0.0, %v4555
    %v4557 = vpop.f32.mrb[0].mxu0
    %4558 = vdwg.mxu0
    %4560 = vrot.lane.b32.xlu0 %v4556, 64
    %v4561 = vpop.permute.xlu0 %4560
    %v4563 = vsel %vm1436, %v4556, %v4561
    %v4564 = vadd.f32 %v4483, %v4563
    %v4565 = vxor.u32 %v4564, 2147483648
    %v4566 = vmul.f32 %v4565, 1.442695
    %v4567 = vpow.pop %v4566
    %v4568 = vadd.f32 %v4567, 1.0
    %v4569 = vrcp.pop %v4568
    %v4570 = vmul.f32 1.0, %v4569
    %v4571 = vtanh.pop %v4564
    %v4572 = vmul.f32 %v4570, %v4471
    %4574 = vrot.lane.b32.xlu0 %v4571, 80
    %v4575 = vpop.permute.xlu0 %4574
    %v4577 = vmul.f32 %v4570, %v4575
    %4579 = vrot.lane.b32.xlu0 %v4577, 16
    %v4580 = vpop.permute.xlu0 %4579
    %v4582 = vadd.f32 %v4572, %v4580
    %v4583 = vtanh.pop %v4582
    %4585 = vrot.lane.b32.xlu0 %v4583, 16
    %v4586 = vpop.permute.xlu0 %4585
    %v4588 = vmul.f32 %v4570, %v4586
    %v4590 = vrot.slane %v4028, 7
    %4591 = vrot.lane.b32.xlu0 %v4590, 64
    %v4592 = vpop.permute.xlu0 %4591
    %v4594 = vsel %vm1436, %v4029, %v4592
    %4596 = vrot.lane.b32.xlu0 %v4588, 96
    %v4597 = vpop.permute.xlu0 %4596
    %v4598 = vsel %vm462, %v4597, 0
    %4600 = vmatprep.subr.mxu0 0.0
    %4601 = vmatpush1.msra.mxu0 %v3474
    %4602 = vmatprep.subr.mxu0 0.0
    %4603 = vmatpush1.msra.mxu0 %v3475
    %4604 = vmatprep.subr.mxu0 0.0
    %4605 = vmatpush1.msra.mxu0 0.0
    %4606 = vmatprep.subr.mxu0 0.0
    %4607 = vmatpush1.msra.mxu0 0.0
    %4608 = vmatprep.subr.mxu0 0.0
    %4609 = vmatpush1.msra.mxu0 0.0
    %4610 = vmatprep.subr.mxu0 0.0
    %4611 = vmatpush1.msra.mxu0 0.0
    %4612 = vmatprep.subr.mxu0 0.0
    %4613 = vmatpush1.msra.mxu0 0.0
    %4614 = vmatprep.subr.mxu0 0.0
    %4615 = vmatpush1.msra.mxu0 0.0
    %4616 = vmatprep.subr.mxu0 0.0
    %4617 = vmatpush1.msra.mxu0 0.0
    %4618 = vmatprep.subr.mxu0 0.0
    %4619 = vmatpush1.msra.mxu0 0.0
    %4620 = vmatprep.subr.mxu0 0.0
    %4621 = vmatpush1.msra.mxu0 0.0
    %4622 = vmatprep.subr.mxu0 0.0
    %4623 = vmatpush1.msra.mxu0 0.0
    %4624 = vmatprep.subr.mxu0 0.0
    %4625 = vmatpush1.msra.mxu0 0.0
    %4626 = vmatprep.subr.mxu0 0.0
    %4627 = vmatpush1.msra.mxu0 0.0
    %4628 = vmatprep.subr.mxu0 0.0
    %4629 = vmatpush1.msra.mxu0 0.0
    %4630 = vmatprep.subr.mxu0 0.0
    %4631 = vmatpush1.msra.mxu0 0.0
    %4632 = vmatprep.subr.mxu0 0.0
    %4633 = vmatpush1.msra.mxu0 0.0
    %4634 = vmatprep.subr.mxu0 0.0
    %4635 = vmatpush1.msra.mxu0 0.0
    %4636 = vmatprep.subr.mxu0 0.0
    %4637 = vmatpush1.msra.mxu0 0.0
    %4638 = vmatprep.subr.mxu0 0.0
    %4639 = vmatpush1.msra.mxu0 0.0
    %4640 = vmatprep.subr.mxu0 0.0
    %4641 = vmatpush1.msra.mxu0 0.0
    %4642 = vmatprep.subr.mxu0 0.0
    %4643 = vmatpush1.msra.mxu0 0.0
    %4644 = vmatprep.subr.mxu0 0.0
    %4645 = vmatpush1.msra.mxu0 0.0
    %4646 = vmatprep.subr.mxu0 0.0
    %4647 = vmatpush1.msra.mxu0 0.0
    %4648 = vmatprep.subr.mxu0 0.0
    %4649 = vmatpush1.msra.mxu0 0.0
    %4650 = vmatprep.subr.mxu0 0.0
    %4651 = vmatpush1.msra.mxu0 0.0
    %4652 = vmatprep.subr.mxu0 0.0
    %4653 = vmatpush1.msra.mxu0 0.0
    %4654 = vmatprep.subr.mxu0 0.0
    %4655 = vmatpush1.msra.mxu0 0.0
    %4656 = vmatprep.subr.mxu0 0.0
    %4657 = vmatpush1.msra.mxu0 0.0
    %4658 = vmatprep.subr.mxu0 0.0
    %4659 = vmatpush1.msra.mxu0 0.0
    %4660 = vmatprep.subr.mxu0 0.0
    %4661 = vmatpush1.msra.mxu0 0.0
    %4662 = vmatprep.subr.mxu0 0.0
    %4663 = vmatpush1.msra.mxu0 0.0
    %4664 = vmatprep.mubr.f32.mxu0 0.0
    %4665 = vmatmul.mubr.f32.gmra.mrb[0].mxu0 %v4598
    %v4666 = vpop.f32.mrb[0].mxu0
    %v4667 = vadd.f32 0.0, %v4666
    %v4668 = vpop.f32.mrb[0].mxu0
    %4669 = vdwg.mxu0
    %4671 = vrot.lane.b32.xlu0 %v4667, 64
    %v4672 = vpop.permute.xlu0 %4671
    %v4674 = vsel %vm1436, %v4667, %v4672
    %v4675 = vadd.f32 %v4594, %v4674
    %v4676 = vxor.u32 %v4675, 2147483648
    %v4677 = vmul.f32 %v4676, 1.442695
    %v4678 = vpow.pop %v4677
    %v4679 = vadd.f32 %v4678, 1.0
    %v4680 = vrcp.pop %v4679
    %v4681 = vmul.f32 1.0, %v4680
    %v4682 = vtanh.pop %v4675
    %v4683 = vmul.f32 %v4681, %v4582
    %4685 = vrot.lane.b32.xlu0 %v4682, 80
    %v4686 = vpop.permute.xlu0 %4685
    %v4688 = vmul.f32 %v4681, %v4686
    %4690 = vrot.lane.b32.xlu0 %v4688, 16
    %v4691 = vpop.permute.xlu0 %4690
    %v4693 = vadd.f32 %v4683, %v4691
    %v4694 = vtanh.pop %v4693
    %4696 = vrot.lane.b32.xlu0 %v4694, 16
    %v4697 = vpop.permute.xlu0 %4696
    %v4699 = vmul.f32 %v4681, %v4697
    %v4701 = vrot.slane %v3915, 7
    %4702 = vrot.lane.b32.xlu0 %v4701, 64
    %v4703 = vpop.permute.xlu0 %4702
    %v4705 = vsel %vm1436, %v3916, %v4703
    %4707 = vrot.lane.b32.xlu0 %v4699, 96
    %v4708 = vpop.permute.xlu0 %4707
    %v4709 = vsel %vm462, %v4708, 0
    %4711 = vmatprep.subr.mxu0 0.0
    %4712 = vmatpush1.msra.mxu0 %v3474
    %4713 = vmatprep.subr.mxu0 0.0
    %4714 = vmatpush1.msra.mxu0 %v3475
    %4715 = vmatprep.subr.mxu0 0.0
    %4716 = vmatpush1.msra.mxu0 0.0
    %4717 = vmatprep.subr.mxu0 0.0
    %4718 = vmatpush1.msra.mxu0 0.0
    %4719 = vmatprep.subr.mxu0 0.0
    %4720 = vmatpush1.msra.mxu0 0.0
    %4721 = vmatprep.subr.mxu0 0.0
    %4722 = vmatpush1.msra.mxu0 0.0
    %4723 = vmatprep.subr.mxu0 0.0
    %4724 = vmatpush1.msra.mxu0 0.0
    %4725 = vmatprep.subr.mxu0 0.0
    %4726 = vmatpush1.msra.mxu0 0.0
    %4727 = vmatprep.subr.mxu0 0.0
    %4728 = vmatpush1.msra.mxu0 0.0
    %4729 = vmatprep.subr.mxu0 0.0
    %4730 = vmatpush1.msra.mxu0 0.0
    %4731 = vmatprep.subr.mxu0 0.0
    %4732 = vmatpush1.msra.mxu0 0.0
    %4733 = vmatprep.subr.mxu0 0.0
    %4734 = vmatpush1.msra.mxu0 0.0
    %4735 = vmatprep.subr.mxu0 0.0
    %4736 = vmatpush1.msra.mxu0 0.0
    %4737 = vmatprep.subr.mxu0 0.0
    %4738 = vmatpush1.msra.mxu0 0.0
    %4739 = vmatprep.subr.mxu0 0.0
    %4740 = vmatpush1.msra.mxu0 0.0
    %4741 = vmatprep.subr.mxu0 0.0
    %4742 = vmatpush1.msra.mxu0 0.0
    %4743 = vmatprep.subr.mxu0 0.0
    %4744 = vmatpush1.msra.mxu0 0.0
    %4745 = vmatprep.subr.mxu0 0.0
    %4746 = vmatpush1.msra.mxu0 0.0
    %4747 = vmatprep.subr.mxu0 0.0
    %4748 = vmatpush1.msra.mxu0 0.0
    %4749 = vmatprep.subr.mxu0 0.0
    %4750 = vmatpush1.msra.mxu0 0.0
    %4751 = vmatprep.subr.mxu0 0.0
    %4752 = vmatpush1.msra.mxu0 0.0
    %4753 = vmatprep.subr.mxu0 0.0
    %4754 = vmatpush1.msra.mxu0 0.0
    %4755 = vmatprep.subr.mxu0 0.0
    %4756 = vmatpush1.msra.mxu0 0.0
    %4757 = vmatprep.subr.mxu0 0.0
    %4758 = vmatpush1.msra.mxu0 0.0
    %4759 = vmatprep.subr.mxu0 0.0
    %4760 = vmatpush1.msra.mxu0 0.0
    %4761 = vmatprep.subr.mxu0 0.0
    %4762 = vmatpush1.msra.mxu0 0.0
    %4763 = vmatprep.subr.mxu0 0.0
    %4764 = vmatpush1.msra.mxu0 0.0
    %4765 = vmatprep.subr.mxu0 0.0
    %4766 = vmatpush1.msra.mxu0 0.0
    %4767 = vmatprep.subr.mxu0 0.0
    %4768 = vmatpush1.msra.mxu0 0.0
    %4769 = vmatprep.subr.mxu0 0.0
    %4770 = vmatpush1.msra.mxu0 0.0
    %4771 = vmatprep.subr.mxu0 0.0
    %4772 = vmatpush1.msra.mxu0 0.0
    %4773 = vmatprep.subr.mxu0 0.0
    %4774 = vmatpush1.msra.mxu0 0.0
    %4775 = vmatprep.mubr.f32.mxu0 0.0
    %4776 = vmatmul.mubr.f32.gmra.mrb[0].mxu0 %v4709
    %v4777 = vpop.f32.mrb[0].mxu0
    %v4778 = vadd.f32 0.0, %v4777
    %v4779 = vpop.f32.mrb[0].mxu0
    %4780 = vdwg.mxu0
    %4782 = vrot.lane.b32.xlu0 %v4778, 64
    %v4783 = vpop.permute.xlu0 %4782
    %v4785 = vsel %vm1436, %v4778, %v4783
    %v4786 = vadd.f32 %v4705, %v4785
    %v4787 = vxor.u32 %v4786, 2147483648
    %v4788 = vmul.f32 %v4787, 1.442695
    %v4789 = vpow.pop %v4788
    %v4790 = vadd.f32 %v4789, 1.0
    %v4791 = vrcp.pop %v4790
    %v4792 = vmul.f32 1.0, %v4791
    %v4793 = vtanh.pop %v4786
    %v4794 = vmul.f32 %v4792, %v4693
    %4796 = vrot.lane.b32.xlu0 %v4793, 80
    %v4797 = vpop.permute.xlu0 %4796
    %v4799 = vmul.f32 %v4792, %v4797
    %4801 = vrot.lane.b32.xlu0 %v4799, 16
    %v4802 = vpop.permute.xlu0 %4801
    %v4804 = vadd.f32 %v4794, %v4802
    %v4805 = vtanh.pop %v4804
    %4807 = vrot.lane.b32.xlu0 %v4805, 16
    %v4808 = vpop.permute.xlu0 %4807
    %v4810 = vmul.f32 %v4792, %v4808
    %v4812 = vrot.slane %v3802, 7
    %4813 = vrot.lane.b32.xlu0 %v4812, 64
    %v4814 = vpop.permute.xlu0 %4813
    %v4816 = vsel %vm1436, %v3803, %v4814
    %4818 = vrot.lane.b32.xlu0 %v4810, 96
    %v4819 = vpop.permute.xlu0 %4818
    %v4820 = vsel %vm462, %v4819, 0
    %4822 = vmatprep.subr.mxu0 0.0
    %4823 = vmatpush1.msra.mxu0 %v3474
    %4824 = vmatprep.subr.mxu0 0.0
    %4825 = vmatpush1.msra.mxu0 %v3475
    %4826 = vmatprep.subr.mxu0 0.0
    %4827 = vmatpush1.msra.mxu0 0.0
    %4828 = vmatprep.subr.mxu0 0.0
    %4829 = vmatpush1.msra.mxu0 0.0
    %4830 = vmatprep.subr.mxu0 0.0
    %4831 = vmatpush1.msra.mxu0 0.0
    %4832 = vmatprep.subr.mxu0 0.0
    %4833 = vmatpush1.msra.mxu0 0.0
    %4834 = vmatprep.subr.mxu0 0.0
    %4835 = vmatpush1.msra.mxu0 0.0
    %4836 = vmatprep.subr.mxu0 0.0
    %4837 = vmatpush1.msra.mxu0 0.0
    %4838 = vmatprep.subr.mxu0 0.0
    %4839 = vmatpush1.msra.mxu0 0.0
    %4840 = vmatprep.subr.mxu0 0.0
    %4841 = vmatpush1.msra.mxu0 0.0
    %4842 = vmatprep.subr.mxu0 0.0
    %4843 = vmatpush1.msra.mxu0 0.0
    %4844 = vmatprep.subr.mxu0 0.0
    %4845 = vmatpush1.msra.mxu0 0.0
    %4846 = vmatprep.subr.mxu0 0.0
    %4847 = vmatpush1.msra.mxu0 0.0
    %4848 = vmatprep.subr.mxu0 0.0
    %4849 = vmatpush1.msra.mxu0 0.0
    %4850 = vmatprep.subr.mxu0 0.0
    %4851 = vmatpush1.msra.mxu0 0.0
    %4852 = vmatprep.subr.mxu0 0.0
    %4853 = vmatpush1.msra.mxu0 0.0
    %4854 = vmatprep.subr.mxu0 0.0
    %4855 = vmatpush1.msra.mxu0 0.0
    %4856 = vmatprep.subr.mxu0 0.0
    %4857 = vmatpush1.msra.mxu0 0.0
    %4858 = vmatprep.subr.mxu0 0.0
    %4859 = vmatpush1.msra.mxu0 0.0
    %4860 = vmatprep.subr.mxu0 0.0
    %4861 = vmatpush1.msra.mxu0 0.0
    %4862 = vmatprep.subr.mxu0 0.0
    %4863 = vmatpush1.msra.mxu0 0.0
    %4864 = vmatprep.subr.mxu0 0.0
    %4865 = vmatpush1.msra.mxu0 0.0
    %4866 = vmatprep.subr.mxu0 0.0
    %4867 = vmatpush1.msra.mxu0 0.0
    %4868 = vmatprep.subr.mxu0 0.0
    %4869 = vmatpush1.msra.mxu0 0.0
    %4870 = vmatprep.subr.mxu0 0.0
    %4871 = vmatpush1.msra.mxu0 0.0
    %4872 = vmatprep.subr.mxu0 0.0
    %4873 = vmatpush1.msra.mxu0 0.0
    %4874 = vmatprep.subr.mxu0 0.0
    %4875 = vmatpush1.msra.mxu0 0.0
    %4876 = vmatprep.subr.mxu0 0.0
    %4877 = vmatpush1.msra.mxu0 0.0
    %4878 = vmatprep.subr.mxu0 0.0
    %4879 = vmatpush1.msra.mxu0 0.0
    %4880 = vmatprep.subr.mxu0 0.0
    %4881 = vmatpush1.msra.mxu0 0.0
    %4882 = vmatprep.subr.mxu0 0.0
    %4883 = vmatpush1.msra.mxu0 0.0
    %4884 = vmatprep.subr.mxu0 0.0
    %4885 = vmatpush1.msra.mxu0 0.0
    %4886 = vmatprep.mubr.f32.mxu0 0.0
    %4887 = vmatmul.mubr.f32.gmra.mrb[0].mxu0 %v4820
    %v4888 = vpop.f32.mrb[0].mxu0
    %v4889 = vadd.f32 0.0, %v4888
    %v4890 = vpop.f32.mrb[0].mxu0
    %4891 = vdwg.mxu0
    %4893 = vrot.lane.b32.xlu0 %v4889, 64
    %v4894 = vpop.permute.xlu0 %4893
    %v4896 = vsel %vm1436, %v4889, %v4894
    %v4897 = vadd.f32 %v4816, %v4896
    %v4898 = vxor.u32 %v4897, 2147483648
    %v4899 = vmul.f32 %v4898, 1.442695
    %v4900 = vpow.pop %v4899
    %v4901 = vadd.f32 %v4900, 1.0
    %v4902 = vrcp.pop %v4901
    %v4903 = vmul.f32 1.0, %v4902
    %v4904 = vtanh.pop %v4897
    %v4905 = vmul.f32 %v4903, %v4804
    %4907 = vrot.lane.b32.xlu0 %v4904, 80
    %v4908 = vpop.permute.xlu0 %4907
    %v4910 = vmul.f32 %v4903, %v4908
    %4912 = vrot.lane.b32.xlu0 %v4910, 16
    %v4913 = vpop.permute.xlu0 %4912
    %v4915 = vadd.f32 %v4905, %v4913
    %v4916 = vtanh.pop %v4915
    %4918 = vrot.lane.b32.xlu0 %v4916, 16
    %v4919 = vpop.permute.xlu0 %4918
    %v4921 = vmul.f32 %v4903, %v4919
    %v4923 = vrot.slane %v3689, 7
    %4924 = vrot.lane.b32.xlu0 %v4923, 64
    %v4925 = vpop.permute.xlu0 %4924
    %v4927 = vsel %vm1436, %v3690, %v4925
    %4929 = vrot.lane.b32.xlu0 %v4921, 96
    %v4930 = vpop.permute.xlu0 %4929
    %v4931 = vsel %vm462, %v4930, 0
    %4933 = vmatprep.subr.mxu0 0.0
    %4934 = vmatpush1.msra.mxu0 %v3474
    %4935 = vmatprep.subr.mxu0 0.0
    %4936 = vmatpush1.msra.mxu0 %v3475
    %4937 = vmatprep.subr.mxu0 0.0
    %4938 = vmatpush1.msra.mxu0 0.0
    %4939 = vmatprep.subr.mxu0 0.0
    %4940 = vmatpush1.msra.mxu0 0.0
    %4941 = vmatprep.subr.mxu0 0.0
    %4942 = vmatpush1.msra.mxu0 0.0
    %4943 = vmatprep.subr.mxu0 0.0
    %4944 = vmatpush1.msra.mxu0 0.0
    %4945 = vmatprep.subr.mxu0 0.0
    %4946 = vmatpush1.msra.mxu0 0.0
    %4947 = vmatprep.subr.mxu0 0.0
    %4948 = vmatpush1.msra.mxu0 0.0
    %4949 = vmatprep.subr.mxu0 0.0
    %4950 = vmatpush1.msra.mxu0 0.0
    %4951 = vmatprep.subr.mxu0 0.0
    %4952 = vmatpush1.msra.mxu0 0.0
    %4953 = vmatprep.subr.mxu0 0.0
    %4954 = vmatpush1.msra.mxu0 0.0
    %4955 = vmatprep.subr.mxu0 0.0
    %4956 = vmatpush1.msra.mxu0 0.0
    %4957 = vmatprep.subr.mxu0 0.0
    %4958 = vmatpush1.msra.mxu0 0.0
    %4959 = vmatprep.subr.mxu0 0.0
    %4960 = vmatpush1.msra.mxu0 0.0
    %4961 = vmatprep.subr.mxu0 0.0
    %4962 = vmatpush1.msra.mxu0 0.0
    %4963 = vmatprep.subr.mxu0 0.0
    %4964 = vmatpush1.msra.mxu0 0.0
    %4965 = vmatprep.subr.mxu0 0.0
    %4966 = vmatpush1.msra.mxu0 0.0
    %4967 = vmatprep.subr.mxu0 0.0
    %4968 = vmatpush1.msra.mxu0 0.0
    %4969 = vmatprep.subr.mxu0 0.0
    %4970 = vmatpush1.msra.mxu0 0.0
    %4971 = vmatprep.subr.mxu0 0.0
    %4972 = vmatpush1.msra.mxu0 0.0
    %4973 = vmatprep.subr.mxu0 0.0
    %4974 = vmatpush1.msra.mxu0 0.0
    %4975 = vmatprep.subr.mxu0 0.0
    %4976 = vmatpush1.msra.mxu0 0.0
    %4977 = vmatprep.subr.mxu0 0.0
    %4978 = vmatpush1.msra.mxu0 0.0
    %4979 = vmatprep.subr.mxu0 0.0
    %4980 = vmatpush1.msra.mxu0 0.0
    %4981 = vmatprep.subr.mxu0 0.0
    %4982 = vmatpush1.msra.mxu0 0.0
    %4983 = vmatprep.subr.mxu0 0.0
    %4984 = vmatpush1.msra.mxu0 0.0
    %4985 = vmatprep.subr.mxu0 0.0
    %4986 = vmatpush1.msra.mxu0 0.0
    %4987 = vmatprep.subr.mxu0 0.0
    %4988 = vmatpush1.msra.mxu0 0.0
    %4989 = vmatprep.subr.mxu0 0.0
    %4990 = vmatpush1.msra.mxu0 0.0
    %4991 = vmatprep.subr.mxu0 0.0
    %4992 = vmatpush1.msra.mxu0 0.0
    %4993 = vmatprep.subr.mxu0 0.0
    %4994 = vmatpush1.msra.mxu0 0.0
    %4995 = vmatprep.subr.mxu0 0.0
    %4996 = vmatpush1.msra.mxu0 0.0
    %4997 = vmatprep.mubr.f32.mxu0 0.0
    %4998 = vmatmul.mubr.f32.gmra.mrb[0].mxu0 %v4931
    %v4999 = vpop.f32.mrb[0].mxu0
    %v5000 = vadd.f32 0.0, %v4999
    %v5001 = vpop.f32.mrb[0].mxu0
    %5002 = vdwg.mxu0
    %5004 = vrot.lane.b32.xlu0 %v5000, 64
    %v5005 = vpop.permute.xlu0 %5004
    %v5007 = vsel %vm1436, %v5000, %v5005
    %v5008 = vadd.f32 %v4927, %v5007
    %v5009 = vxor.u32 %v5008, 2147483648
    %v5010 = vmul.f32 %v5009, 1.442695
    %v5011 = vpow.pop %v5010
    %v5012 = vadd.f32 %v5011, 1.0
    %v5013 = vrcp.pop %v5012
    %v5014 = vmul.f32 1.0, %v5013
    %v5015 = vtanh.pop %v5008
    %v5016 = vmul.f32 %v5014, %v4915
    %5018 = vrot.lane.b32.xlu0 %v5015, 80
    %v5019 = vpop.permute.xlu0 %5018
    %v5021 = vmul.f32 %v5014, %v5019
    %5023 = vrot.lane.b32.xlu0 %v5021, 16
    %v5024 = vpop.permute.xlu0 %5023
    %v5026 = vadd.f32 %v5016, %v5024
    %v5027 = vtanh.pop %v5026
    %5029 = vrot.lane.b32.xlu0 %v5027, 16
    %v5030 = vpop.permute.xlu0 %5029
    %v5032 = vmul.f32 %v5014, %v5030
    %v5034 = vrot.slane %v3576, 7
    %5035 = vrot.lane.b32.xlu0 %v5034, 64
    %v5036 = vpop.permute.xlu0 %5035
    %v5038 = vsel %vm1436, %v3577, %v5036
    %5040 = vrot.lane.b32.xlu0 %v5032, 96
    %v5041 = vpop.permute.xlu0 %5040
    %v5042 = vsel %vm462, %v5041, 0
    %5044 = vmatprep.subr.mxu0 0.0
    %5045 = vmatpush1.msra.mxu0 %v3474
    %5046 = vmatprep.subr.mxu0 0.0
    %5047 = vmatpush1.msra.mxu0 %v3475
    %5048 = vmatprep.subr.mxu0 0.0
    %5049 = vmatpush1.msra.mxu0 0.0
    %5050 = vmatprep.subr.mxu0 0.0
    %5051 = vmatpush1.msra.mxu0 0.0
    %5052 = vmatprep.subr.mxu0 0.0
    %5053 = vmatpush1.msra.mxu0 0.0
    %5054 = vmatprep.subr.mxu0 0.0
    %5055 = vmatpush1.msra.mxu0 0.0
    %5056 = vmatprep.subr.mxu0 0.0
    %5057 = vmatpush1.msra.mxu0 0.0
    %5058 = vmatprep.subr.mxu0 0.0
    %5059 = vmatpush1.msra.mxu0 0.0
    %5060 = vmatprep.subr.mxu0 0.0
    %5061 = vmatpush1.msra.mxu0 0.0
    %5062 = vmatprep.subr.mxu0 0.0
    %5063 = vmatpush1.msra.mxu0 0.0
    %5064 = vmatprep.subr.mxu0 0.0
    %5065 = vmatpush1.msra.mxu0 0.0
    %5066 = vmatprep.subr.mxu0 0.0
    %5067 = vmatpush1.msra.mxu0 0.0
    %5068 = vmatprep.subr.mxu0 0.0
    %5069 = vmatpush1.msra.mxu0 0.0
    %5070 = vmatprep.subr.mxu0 0.0
    %5071 = vmatpush1.msra.mxu0 0.0
    %5072 = vmatprep.subr.mxu0 0.0
    %5073 = vmatpush1.msra.mxu0 0.0
    %5074 = vmatprep.subr.mxu0 0.0
    %5075 = vmatpush1.msra.mxu0 0.0
    %5076 = vmatprep.subr.mxu0 0.0
    %5077 = vmatpush1.msra.mxu0 0.0
    %5078 = vmatprep.subr.mxu0 0.0
    %5079 = vmatpush1.msra.mxu0 0.0
    %5080 = vmatprep.subr.mxu0 0.0
    %5081 = vmatpush1.msra.mxu0 0.0
    %5082 = vmatprep.subr.mxu0 0.0
    %5083 = vmatpush1.msra.mxu0 0.0
    %5084 = vmatprep.subr.mxu0 0.0
    %5085 = vmatpush1.msra.mxu0 0.0
    %5086 = vmatprep.subr.mxu0 0.0
    %5087 = vmatpush1.msra.mxu0 0.0
    %5088 = vmatprep.subr.mxu0 0.0
    %5089 = vmatpush1.msra.mxu0 0.0
    %5090 = vmatprep.subr.mxu0 0.0
    %5091 = vmatpush1.msra.mxu0 0.0
    %5092 = vmatprep.subr.mxu0 0.0
    %5093 = vmatpush1.msra.mxu0 0.0
    %5094 = vmatprep.subr.mxu0 0.0
    %5095 = vmatpush1.msra.mxu0 0.0
    %5096 = vmatprep.subr.mxu0 0.0
    %5097 = vmatpush1.msra.mxu0 0.0
    %5098 = vmatprep.subr.mxu0 0.0
    %5099 = vmatpush1.msra.mxu0 0.0
    %5100 = vmatprep.subr.mxu0 0.0
    %5101 = vmatpush1.msra.mxu0 0.0
    %5102 = vmatprep.subr.mxu0 0.0
    %5103 = vmatpush1.msra.mxu0 0.0
    %5104 = vmatprep.subr.mxu0 0.0
    %5105 = vmatpush1.msra.mxu0 0.0
    %5106 = vmatprep.subr.mxu0 0.0
    %5107 = vmatpush1.msra.mxu0 0.0
    %5108 = vmatprep.mubr.f32.mxu0 0.0
    %5109 = vmatmul.mubr.f32.gmra.mrb[0].mxu0 %v5042
    %v5110 = vpop.f32.mrb[0].mxu0
    %v5111 = vadd.f32 0.0, %v5110
    %v5112 = vpop.f32.mrb[0].mxu0
    %5113 = vdwg.mxu0
    %5115 = vrot.lane.b32.xlu0 %v5111, 64
    %v5116 = vpop.permute.xlu0 %5115
    %v5118 = vsel %vm1436, %v5111, %v5116
    %v5119 = vadd.f32 %v5038, %v5118
    %v5120 = vxor.u32 %v5119, 2147483648
    %v5121 = vmul.f32 %v5120, 1.442695
    %v5122 = vpow.pop %v5121
    %v5123 = vadd.f32 %v5122, 1.0
    %v5124 = vrcp.pop %v5123
    %v5125 = vmul.f32 1.0, %v5124
    %v5126 = vtanh.pop %v5119
    %v5127 = vmul.f32 %v5125, %v5026
    %5129 = vrot.lane.b32.xlu0 %v5126, 80
    %v5130 = vpop.permute.xlu0 %5129
    %v5132 = vmul.f32 %v5125, %v5130
    %5134 = vrot.lane.b32.xlu0 %v5132, 16
    %v5135 = vpop.permute.xlu0 %5134
    %v5137 = vadd.f32 %v5127, %v5135
    %v5138 = vtanh.pop %v5137
    %5140 = vrot.lane.b32.xlu0 %v5138, 16
    %v5141 = vpop.permute.xlu0 %5140
    %v5143 = vmul.f32 %v5125, %v5141
    %v5145 = vrot.slane %v3466, 7
    %5146 = vrot.lane.b32.xlu0 %v5145, 64
    %v5147 = vpop.permute.xlu0 %5146
    %v5149 = vsel %vm1436, %v3467, %v5147
    %5151 = vrot.lane.b32.xlu0 %v5143, 96
    %v5152 = vpop.permute.xlu0 %5151
    %v5153 = vsel %vm462, %v5152, 0
    %5155 = vmatprep.subr.mxu0 0.0
    %5156 = vmatpush1.msra.mxu0 %v3474
    %5157 = vmatprep.subr.mxu0 0.0
    %5158 = vmatpush1.msra.mxu0 %v3475
    %5159 = vmatprep.subr.mxu0 0.0
    %5160 = vmatpush1.msra.mxu0 0.0
    %5161 = vmatprep.subr.mxu0 0.0
    %5162 = vmatpush1.msra.mxu0 0.0
    %5163 = vmatprep.subr.mxu0 0.0
    %5164 = vmatpush1.msra.mxu0 0.0
    %5165 = vmatprep.subr.mxu0 0.0
    %5166 = vmatpush1.msra.mxu0 0.0
    %5167 = vmatprep.subr.mxu0 0.0
    %5168 = vmatpush1.msra.mxu0 0.0
    %5169 = vmatprep.subr.mxu0 0.0
    %5170 = vmatpush1.msra.mxu0 0.0
    %5171 = vmatprep.subr.mxu0 0.0
    %5172 = vmatpush1.msra.mxu0 0.0
    %5173 = vmatprep.subr.mxu0 0.0
    %5174 = vmatpush1.msra.mxu0 0.0
    %5175 = vmatprep.subr.mxu0 0.0
    %5176 = vmatpush1.msra.mxu0 0.0
    %5177 = vmatprep.subr.mxu0 0.0
    %5178 = vmatpush1.msra.mxu0 0.0
    %5179 = vmatprep.subr.mxu0 0.0
    %5180 = vmatpush1.msra.mxu0 0.0
    %5181 = vmatprep.subr.mxu0 0.0
    %5182 = vmatpush1.msra.mxu0 0.0
    %5183 = vmatprep.subr.mxu0 0.0
    %5184 = vmatpush1.msra.mxu0 0.0
    %5185 = vmatprep.subr.mxu0 0.0
    %5186 = vmatpush1.msra.mxu0 0.0
    %5187 = vmatprep.subr.mxu0 0.0
    %5188 = vmatpush1.msra.mxu0 0.0
    %5189 = vmatprep.subr.mxu0 0.0
    %5190 = vmatpush1.msra.mxu0 0.0
    %5191 = vmatprep.subr.mxu0 0.0
    %5192 = vmatpush1.msra.mxu0 0.0
    %5193 = vmatprep.subr.mxu0 0.0
    %5194 = vmatpush1.msra.mxu0 0.0
    %5195 = vmatprep.subr.mxu0 0.0
    %5196 = vmatpush1.msra.mxu0 0.0
    %5197 = vmatprep.subr.mxu0 0.0
    %5198 = vmatpush1.msra.mxu0 0.0
    %5199 = vmatprep.subr.mxu0 0.0
    %5200 = vmatpush1.msra.mxu0 0.0
    %5201 = vmatprep.subr.mxu0 0.0
    %5202 = vmatpush1.msra.mxu0 0.0
    %5203 = vmatprep.subr.mxu0 0.0
    %5204 = vmatpush1.msra.mxu0 0.0
    %5205 = vmatprep.subr.mxu0 0.0
    %5206 = vmatpush1.msra.mxu0 0.0
    %5207 = vmatprep.subr.mxu0 0.0
    %5208 = vmatpush1.msra.mxu0 0.0
    %5209 = vmatprep.subr.mxu0 0.0
    %5210 = vmatpush1.msra.mxu0 0.0
    %5211 = vmatprep.subr.mxu0 0.0
    %5212 = vmatpush1.msra.mxu0 0.0
    %5213 = vmatprep.subr.mxu0 0.0
    %5214 = vmatpush1.msra.mxu0 0.0
    %5215 = vmatprep.subr.mxu0 0.0
    %5216 = vmatpush1.msra.mxu0 0.0
    %5217 = vmatprep.subr.mxu0 0.0
    %5218 = vmatpush1.msra.mxu0 0.0
    %5219 = vmatprep.mubr.f32.mxu0 0.0
    %5220 = vmatmul.mubr.f32.gmra.mrb[0].mxu0 %v5153
    %v5221 = vpop.f32.mrb[0].mxu0
    %v5222 = vadd.f32 0.0, %v5221
    %v5223 = vpop.f32.mrb[0].mxu0
    %5224 = vdwg.mxu0
    %5226 = vrot.lane.b32.xlu0 %v5222, 64
    %v5227 = vpop.permute.xlu0 %5226
    %v5229 = vsel %vm1436, %v5222, %v5227
    %v5230 = vadd.f32 %v5149, %v5229
    %v5231 = vxor.u32 %v5230, 2147483648
    %v5232 = vmul.f32 %v5231, 1.442695
    %v5233 = vpow.pop %v5232
    %v5234 = vadd.f32 %v5233, 1.0
    %v5235 = vrcp.pop %v5234
    %v5236 = vmul.f32 1.0, %v5235
    %v5237 = vtanh.pop %v5230
    %v5238 = vmul.f32 %v5236, %v5137
    %5240 = vrot.lane.b32.xlu0 %v5237, 80
    %v5241 = vpop.permute.xlu0 %5240
    %v5243 = vmul.f32 %v5236, %v5241
    %5245 = vrot.lane.b32.xlu0 %v5243, 16
    %v5246 = vpop.permute.xlu0 %5245
    %v5248 = vadd.f32 %v5238, %v5246
    %v5249 = vtanh.pop %v5248
    %5251 = vrot.lane.b32.xlu0 %v5249, 16
    %v5252 = vpop.permute.xlu0 %5251
    %v5254 = vmul.f32 %v5236, %v5252
    %v5255 = vrot.slane %v3359, 1
    %5256 = vrot.lane.b32.xlu0 %v5255, 112
    %v5257 = vpop.permute.xlu0 %5256
    %v5260 = vrot.slane %v5254, 1
    %5261 = vrot.lane.b32.xlu0 %v5260, 16
    %v5262 = vpop.permute.xlu0 %5261
    %v5264 = vsel %vm462, %v3362, %v5257
    %v5265 = vsel %vm3382, %v5264, %v5254
    %v5266 = vsel %vm140, %v5265, %v5262
    %v5267 = vld [vmem:[%s12] sm:$0xff]
    %v5268 = vld [vmem:[%s12 + $0x8] sm:$0xff]
    %v5269 = vld [vmem:[%s12 + $0x10] sm:$0xff]
    %v5270 = vld [vmem:[%s12 + $0x18] sm:$0xff]
    %v5271 = vld [vmem:[%s12 + $0x20] sm:$0xff]
    %v5272 = vld [vmem:[%s12 + $0x28] sm:$0xff]
    %v5273 = vld [vmem:[%s12 + $0x30] sm:$0xff]
    %v5274 = vld [vmem:[%s12 + $0x38] sm:$0xff]
    %v5275 = vld [vmem:[%s13] sm:$0x1]
    %vm5276 = vcmask 523264
    %v5278 = vsel %vm5276, %v5266, 0
    %5280 = vmatprep.subr.mxu0 0.0
    %5281 = vmatpush1.msra.mxu0 %v5267
    %5282 = vmatprep.subr.mxu0 0.0
    %5283 = vmatpush1.msra.mxu0 %v5268
    %5284 = vmatprep.subr.mxu0 0.0
    %5285 = vmatpush1.msra.mxu0 %v5269
    %5286 = vmatprep.subr.mxu0 0.0
    %5287 = vmatpush1.msra.mxu0 %v5270
    %5288 = vmatprep.subr.mxu0 0.0
    %5289 = vmatpush1.msra.mxu0 %v5271
    %5290 = vmatprep.subr.mxu0 0.0
    %5291 = vmatpush1.msra.mxu0 %v5272
    %5292 = vmatprep.subr.mxu0 0.0
    %5293 = vmatpush1.msra.mxu0 %v5273
    %5294 = vmatprep.subr.mxu0 0.0
    %5295 = vmatpush1.msra.mxu0 %v5274
    %5296 = vmatprep.subr.mxu0 0.0
    %5297 = vmatpush1.msra.mxu0 0.0
    %5298 = vmatprep.subr.mxu0 0.0
    %5299 = vmatpush1.msra.mxu0 0.0
    %5300 = vmatprep.subr.mxu0 0.0
    %5301 = vmatpush1.msra.mxu0 0.0
    %5302 = vmatprep.subr.mxu0 0.0
    %5303 = vmatpush1.msra.mxu0 0.0
    %5304 = vmatprep.subr.mxu0 0.0
    %5305 = vmatpush1.msra.mxu0 0.0
    %5306 = vmatprep.subr.mxu0 0.0
    %5307 = vmatpush1.msra.mxu0 0.0
    %5308 = vmatprep.subr.mxu0 0.0
    %5309 = vmatpush1.msra.mxu0 0.0
    %5310 = vmatprep.subr.mxu0 0.0
    %5311 = vmatpush1.msra.mxu0 0.0
    %5312 = vmatprep.subr.mxu0 0.0
    %5313 = vmatpush1.msra.mxu0 0.0
    %5314 = vmatprep.subr.mxu0 0.0
    %5315 = vmatpush1.msra.mxu0 0.0
    %5316 = vmatprep.subr.mxu0 0.0
    %5317 = vmatpush1.msra.mxu0 0.0
    %5318 = vmatprep.subr.mxu0 0.0
    %5319 = vmatpush1.msra.mxu0 0.0
    %5320 = vmatprep.subr.mxu0 0.0
    %5321 = vmatpush1.msra.mxu0 0.0
    %5322 = vmatprep.subr.mxu0 0.0
    %5323 = vmatpush1.msra.mxu0 0.0
    %5324 = vmatprep.subr.mxu0 0.0
    %5325 = vmatpush1.msra.mxu0 0.0
    %5326 = vmatprep.subr.mxu0 0.0
    %5327 = vmatpush1.msra.mxu0 0.0
    %5328 = vmatprep.subr.mxu0 0.0
    %5329 = vmatpush1.msra.mxu0 0.0
    %5330 = vmatprep.subr.mxu0 0.0
    %5331 = vmatpush1.msra.mxu0 0.0
    %5332 = vmatprep.subr.mxu0 0.0
    %5333 = vmatpush1.msra.mxu0 0.0
    %5334 = vmatprep.subr.mxu0 0.0
    %5335 = vmatpush1.msra.mxu0 0.0
    %5336 = vmatprep.subr.mxu0 0.0
    %5337 = vmatpush1.msra.mxu0 0.0
    %5338 = vmatprep.subr.mxu0 0.0
    %5339 = vmatpush1.msra.mxu0 0.0
    %5340 = vmatprep.subr.mxu0 0.0
    %5341 = vmatpush1.msra.mxu0 0.0
    %5342 = vmatprep.subr.mxu0 0.0
    %5343 = vmatpush1.msra.mxu0 0.0
    %5344 = vmatprep.mubr.f32.mxu0 0.0
    %5345 = vmatmul.mubr.f32.gmra.mrb[0].mxu0 %v5278
    %v5346 = vpop.f32.mrb[0].mxu0
    %v5347 = vadd.f32 %v5275, %v5346
    %v5348 = vpop.f32.mrb[0].mxu0
    %5349 = vdwg.mxu0
    %vm5350 = vcmask 253952
    %5351 = vst.msk [vmem:[#allocation12] sm:$0x1] %vm5350, %v5347
    %5353 = vrot.lane.b32.xlu0 %v5347, 32
    %v5354 = vpop.permute.xlu0 %5353
    %v5356 = vsel %vm3382, 0.0, %v5354
    %v5357 = vld [vmem:[%s14] sm:$0xff]
    %v5358 = vld [vmem:[%s14 + $0x8] sm:$0xff]
    %v5359 = vld [vmem:[%s14 + $0x10] sm:$0xff]
    %v5360 = vld [vmem:[%s14 + $0x18] sm:$0xff]
    %v5361 = vld [vmem:[%s14 + $0x20] sm:$0xff]
    %v5362 = vld [vmem:[%s14 + $0x28] sm:$0xff]
    %v5363 = vld [vmem:[%s14 + $0x30] sm:$0xff]
    %v5364 = vld [vmem:[%s14 + $0x38] sm:$0xff]
    %v5365 = vld [vmem:[%s15] sm:$0x1]
    %v5367 = vsel %vm5276, %v5356, 0
    %5369 = vmatprep.subr.mxu0 0.0
    %5370 = vmatpush1.msra.mxu0 %v5357
    %5371 = vmatprep.subr.mxu0 0.0
    %5372 = vmatpush1.msra.mxu0 %v5358
    %5373 = vmatprep.subr.mxu0 0.0
    %5374 = vmatpush1.msra.mxu0 %v5359
    %5375 = vmatprep.subr.mxu0 0.0
    %5376 = vmatpush1.msra.mxu0 %v5360
    %5377 = vmatprep.subr.mxu0 0.0
    %5378 = vmatpush1.msra.mxu0 %v5361
    %5379 = vmatprep.subr.mxu0 0.0
    %5380 = vmatpush1.msra.mxu0 %v5362
    %5381 = vmatprep.subr.mxu0 0.0
    %5382 = vmatpush1.msra.mxu0 %v5363
    %5383 = vmatprep.subr.mxu0 0.0
    %5384 = vmatpush1.msra.mxu0 %v5364
    %5385 = vmatprep.subr.mxu0 0.0
    %5386 = vmatpush1.msra.mxu0 0.0
    %5387 = vmatprep.subr.mxu0 0.0
    %5388 = vmatpush1.msra.mxu0 0.0
    %5389 = vmatprep.subr.mxu0 0.0
    %5390 = vmatpush1.msra.mxu0 0.0
    %5391 = vmatprep.subr.mxu0 0.0
    %5392 = vmatpush1.msra.mxu0 0.0
    %5393 = vmatprep.subr.mxu0 0.0
    %5394 = vmatpush1.msra.mxu0 0.0
    %5395 = vmatprep.subr.mxu0 0.0
    %5396 = vmatpush1.msra.mxu0 0.0
    %5397 = vmatprep.subr.mxu0 0.0
    %5398 = vmatpush1.msra.mxu0 0.0
    %5399 = vmatprep.subr.mxu0 0.0
    %5400 = vmatpush1.msra.mxu0 0.0
    %5401 = vmatprep.subr.mxu0 0.0
    %5402 = vmatpush1.msra.mxu0 0.0
    %5403 = vmatprep.subr.mxu0 0.0
    %5404 = vmatpush1.msra.mxu0 0.0
    %5405 = vmatprep.subr.mxu0 0.0
    %5406 = vmatpush1.msra.mxu0 0.0
    %5407 = vmatprep.subr.mxu0 0.0
    %5408 = vmatpush1.msra.mxu0 0.0
    %5409 = vmatprep.subr.mxu0 0.0
    %5410 = vmatpush1.msra.mxu0 0.0
    %5411 = vmatprep.subr.mxu0 0.0
    %5412 = vmatpush1.msra.mxu0 0.0
    %5413 = vmatprep.subr.mxu0 0.0
    %5414 = vmatpush1.msra.mxu0 0.0
    %5415 = vmatprep.subr.mxu0 0.0
    %5416 = vmatpush1.msra.mxu0 0.0
    %5417 = vmatprep.subr.mxu0 0.0
    %5418 = vmatpush1.msra.mxu0 0.0
    %5419 = vmatprep.subr.mxu0 0.0
    %5420 = vmatpush1.msra.mxu0 0.0
    %5421 = vmatprep.subr.mxu0 0.0
    %5422 = vmatpush1.msra.mxu0 0.0
    %5423 = vmatprep.subr.mxu0 0.0
    %5424 = vmatpush1.msra.mxu0 0.0
    %5425 = vmatprep.subr.mxu0 0.0
    %5426 = vmatpush1.msra.mxu0 0.0
    %5427 = vmatprep.subr.mxu0 0.0
    %5428 = vmatpush1.msra.mxu0 0.0
    %5429 = vmatprep.subr.mxu0 0.0
    %5430 = vmatpush1.msra.mxu0 0.0
    %5431 = vmatprep.subr.mxu0 0.0
    %5432 = vmatpush1.msra.mxu0 0.0
    %5433 = vmatprep.mubr.f32.mxu0 0.0
    %5434 = vmatmul.mubr.f32.gmra.mrb[0].mxu0 %v5367
    %v5435 = vpop.f32.mrb[0].mxu0
    %v5436 = vadd.f32 %v5365, %v5435
    %v5437 = vpop.f32.mrb[0].mxu0
    %5438 = vdwg.mxu0
    %v5439 = vxor.u32 %v5436, 2147483648
    %v5440 = vmul.f32 %v5439, 1.442695
    %v5441 = vpow.pop %v5440
    %v5442 = vadd.f32 %v5441, 1.0
    %v5443 = vrcp.pop %v5442
    %v5444 = vmul.f32 1.0, %v5443
    %v5445 = vtanh.pop %v5436
    %v5446 = vmul.f32 %v5444, 0.0
    %5448 = vrot.lane.b32.xlu0 %v5445, 32
    %v5449 = vpop.permute.xlu0 %5448
    %v5451 = vmul.f32 %v5444, %v5449
    %5453 = vrot.lane.b32.xlu0 %v5451, 32
    %v5454 = vpop.permute.xlu0 %5453
    %v5456 = vadd.f32 %v5446, %v5454
    %v5457 = vtanh.pop %v5456
    %5459 = vrot.lane.b32.xlu0 %v5457, 32
    %v5460 = vpop.permute.xlu0 %5459
    %v5462 = vmul.f32 %v5444, %v5460
    %5464 = vrot.lane.b32.xlu0 %v5462, 64
    %v5465 = vpop.permute.xlu0 %5464
    %5467 = vst.msk [vmem:[#allocation4] sm:$0x1] %vm5350, %v5465
    %5468 = vrot.lane.b32.xlu0 %v5462, 96
    %v5469 = vpop.permute.xlu0 %5468
    %v5471 = vsel %vm3382, %v5465, %v5469
    %v5472 = vld [vmem:[%s14] sm:$0xff]
    %v5473 = vld [vmem:[%s14 + $0x8] sm:$0xff]
    %v5474 = vld [vmem:[%s14 + $0x10] sm:$0xff]
    %v5475 = vld [vmem:[%s14 + $0x18] sm:$0xff]
    %v5476 = vld [vmem:[%s14 + $0x20] sm:$0xff]
    %v5477 = vld [vmem:[%s14 + $0x28] sm:$0xff]
    %v5478 = vld [vmem:[%s14 + $0x30] sm:$0xff]
    %v5479 = vld [vmem:[%s14 + $0x38] sm:$0xff]
    %v5480 = vld [vmem:[%s15] sm:$0x1]
    %v5482 = vsel %vm5276, %v5471, 0
    %5484 = vmatprep.subr.mxu0 0.0
    %5485 = vmatpush1.msra.mxu0 %v5472
    %5486 = vmatprep.subr.mxu0 0.0
    %5487 = vmatpush1.msra.mxu0 %v5473
    %5488 = vmatprep.subr.mxu0 0.0
    %5489 = vmatpush1.msra.mxu0 %v5474
    %5490 = vmatprep.subr.mxu0 0.0
    %5491 = vmatpush1.msra.mxu0 %v5475
    %5492 = vmatprep.subr.mxu0 0.0
    %5493 = vmatpush1.msra.mxu0 %v5476
    %5494 = vmatprep.subr.mxu0 0.0
    %5495 = vmatpush1.msra.mxu0 %v5477
    %5496 = vmatprep.subr.mxu0 0.0
    %5497 = vmatpush1.msra.mxu0 %v5478
    %5498 = vmatprep.subr.mxu0 0.0
    %5499 = vmatpush1.msra.mxu0 %v5479
    %5500 = vmatprep.subr.mxu0 0.0
    %5501 = vmatpush1.msra.mxu0 0.0
    %5502 = vmatprep.subr.mxu0 0.0
    %5503 = vmatpush1.msra.mxu0 0.0
    %5504 = vmatprep.subr.mxu0 0.0
    %5505 = vmatpush1.msra.mxu0 0.0
    %5506 = vmatprep.subr.mxu0 0.0
    %5507 = vmatpush1.msra.mxu0 0.0
    %5508 = vmatprep.subr.mxu0 0.0
    %5509 = vmatpush1.msra.mxu0 0.0
    %5510 = vmatprep.subr.mxu0 0.0
    %5511 = vmatpush1.msra.mxu0 0.0
    %5512 = vmatprep.subr.mxu0 0.0
    %5513 = vmatpush1.msra.mxu0 0.0
    %5514 = vmatprep.subr.mxu0 0.0
    %5515 = vmatpush1.msra.mxu0 0.0
    %5516 = vmatprep.subr.mxu0 0.0
    %5517 = vmatpush1.msra.mxu0 0.0
    %5518 = vmatprep.subr.mxu0 0.0
    %5519 = vmatpush1.msra.mxu0 0.0
    %5520 = vmatprep.subr.mxu0 0.0
    %5521 = vmatpush1.msra.mxu0 0.0
    %5522 = vmatprep.subr.mxu0 0.0
    %5523 = vmatpush1.msra.mxu0 0.0
    %5524 = vmatprep.subr.mxu0 0.0
    %5525 = vmatpush1.msra.mxu0 0.0
    %5526 = vmatprep.subr.mxu0 0.0
    %5527 = vmatpush1.msra.mxu0 0.0
    %5528 = vmatprep.subr.mxu0 0.0
    %5529 = vmatpush1.msra.mxu0 0.0
    %5530 = vmatprep.subr.mxu0 0.0
    %5531 = vmatpush1.msra.mxu0 0.0
    %5532 = vmatprep.subr.mxu0 0.0
    %5533 = vmatpush1.msra.mxu0 0.0
    %5534 = vmatprep.subr.mxu0 0.0
    %5535 = vmatpush1.msra.mxu0 0.0
    %5536 = vmatprep.subr.mxu0 0.0
    %5537 = vmatpush1.msra.mxu0 0.0
    %5538 = vmatprep.subr.mxu0 0.0
    %5539 = vmatpush1.msra.mxu0 0.0
    %5540 = vmatprep.subr.mxu0 0.0
    %5541 = vmatpush1.msra.mxu0 0.0
    %5542 = vmatprep.subr.mxu0 0.0
    %5543 = vmatpush1.msra.mxu0 0.0
    %5544 = vmatprep.subr.mxu0 0.0
    %5545 = vmatpush1.msra.mxu0 0.0
    %5546 = vmatprep.subr.mxu0 0.0
    %5547 = vmatpush1.msra.mxu0 0.0
    %5548 = vmatprep.mubr.f32.mxu0 0.0
    %5549 = vmatmul.mubr.f32.gmra.mrb[0].mxu0 %v5482
    %v5550 = vpop.f32.mrb[0].mxu0
    %v5551 = vadd.f32 %v5480, %v5550
    %v5552 = vpop.f32.mrb[0].mxu0
    %5553 = vdwg.mxu0
    %v5554 = vxor.u32 %v5551, 2147483648
    %v5555 = vmul.f32 %v5554, 1.442695
    %v5556 = vpow.pop %v5555
    %v5557 = vadd.f32 %v5556, 1.0
    %v5558 = vrcp.pop %v5557
    %v5559 = vmul.f32 1.0, %v5558
    %v5560 = vtanh.pop %v5551
    %v5561 = vmul.f32 %v5559, %v5456
    %5563 = vrot.lane.b32.xlu0 %v5560, 32
    %v5564 = vpop.permute.xlu0 %5563
    %v5566 = vmul.f32 %v5559, %v5564
    %5568 = vrot.lane.b32.xlu0 %v5566, 32
    %v5569 = vpop.permute.xlu0 %5568
    %v5571 = vadd.f32 %v5561, %v5569
    %v5572 = vtanh.pop %v5571
    %5574 = vrot.lane.b32.xlu0 %v5572, 32
    %v5575 = vpop.permute.xlu0 %5574
    %v5577 = vmul.f32 %v5559, %v5575
    %5579 = vrot.lane.b32.xlu0 %v5577, 64
    %v5580 = vpop.permute.xlu0 %5579
    %5582 = vst.msk [vmem:[#allocation4 + $0x1] sm:$0x1] %vm5350, %v5580
    %5583 = vrot.lane.b32.xlu0 %v5577, 96
    %v5584 = vpop.permute.xlu0 %5583
    %v5586 = vsel %vm3382, %v5580, %v5584
    %v5587 = vld [vmem:[%s14] sm:$0xff]
    %v5588 = vld [vmem:[%s14 + $0x8] sm:$0xff]
    %v5589 = vld [vmem:[%s14 + $0x10] sm:$0xff]
    %v5590 = vld [vmem:[%s14 + $0x18] sm:$0xff]
    %v5591 = vld [vmem:[%s14 + $0x20] sm:$0xff]
    %v5592 = vld [vmem:[%s14 + $0x28] sm:$0xff]
    %v5593 = vld [vmem:[%s14 + $0x30] sm:$0xff]
    %v5594 = vld [vmem:[%s14 + $0x38] sm:$0xff]
    %v5595 = vld [vmem:[%s15] sm:$0x1]
    %v5597 = vsel %vm5276, %v5586, 0
    %5599 = vmatprep.subr.mxu0 0.0
    %5600 = vmatpush1.msra.mxu0 %v5587
    %5601 = vmatprep.subr.mxu0 0.0
    %5602 = vmatpush1.msra.mxu0 %v5588
    %5603 = vmatprep.subr.mxu0 0.0
    %5604 = vmatpush1.msra.mxu0 %v5589
    %5605 = vmatprep.subr.mxu0 0.0
    %5606 = vmatpush1.msra.mxu0 %v5590
    %5607 = vmatprep.subr.mxu0 0.0
    %5608 = vmatpush1.msra.mxu0 %v5591
    %5609 = vmatprep.subr.mxu0 0.0
    %5610 = vmatpush1.msra.mxu0 %v5592
    %5611 = vmatprep.subr.mxu0 0.0
    %5612 = vmatpush1.msra.mxu0 %v5593
    %5613 = vmatprep.subr.mxu0 0.0
    %5614 = vmatpush1.msra.mxu0 %v5594
    %5615 = vmatprep.subr.mxu0 0.0
    %5616 = vmatpush1.msra.mxu0 0.0
    %5617 = vmatprep.subr.mxu0 0.0
    %5618 = vmatpush1.msra.mxu0 0.0
    %5619 = vmatprep.subr.mxu0 0.0
    %5620 = vmatpush1.msra.mxu0 0.0
    %5621 = vmatprep.subr.mxu0 0.0
    %5622 = vmatpush1.msra.mxu0 0.0
    %5623 = vmatprep.subr.mxu0 0.0
    %5624 = vmatpush1.msra.mxu0 0.0
    %5625 = vmatprep.subr.mxu0 0.0
    %5626 = vmatpush1.msra.mxu0 0.0
    %5627 = vmatprep.subr.mxu0 0.0
    %5628 = vmatpush1.msra.mxu0 0.0
    %5629 = vmatprep.subr.mxu0 0.0
    %5630 = vmatpush1.msra.mxu0 0.0
    %5631 = vmatprep.subr.mxu0 0.0
    %5632 = vmatpush1.msra.mxu0 0.0
    %5633 = vmatprep.subr.mxu0 0.0
    %5634 = vmatpush1.msra.mxu0 0.0
    %5635 = vmatprep.subr.mxu0 0.0
    %5636 = vmatpush1.msra.mxu0 0.0
    %5637 = vmatprep.subr.mxu0 0.0
    %5638 = vmatpush1.msra.mxu0 0.0
    %5639 = vmatprep.subr.mxu0 0.0
    %5640 = vmatpush1.msra.mxu0 0.0
    %5641 = vmatprep.subr.mxu0 0.0
    %5642 = vmatpush1.msra.mxu0 0.0
    %5643 = vmatprep.subr.mxu0 0.0
    %5644 = vmatpush1.msra.mxu0 0.0
    %5645 = vmatprep.subr.mxu0 0.0
    %5646 = vmatpush1.msra.mxu0 0.0
    %5647 = vmatprep.subr.mxu0 0.0
    %5648 = vmatpush1.msra.mxu0 0.0
    %5649 = vmatprep.subr.mxu0 0.0
    %5650 = vmatpush1.msra.mxu0 0.0
    %5651 = vmatprep.subr.mxu0 0.0
    %5652 = vmatpush1.msra.mxu0 0.0
    %5653 = vmatprep.subr.mxu0 0.0
    %5654 = vmatpush1.msra.mxu0 0.0
    %5655 = vmatprep.subr.mxu0 0.0
    %5656 = vmatpush1.msra.mxu0 0.0
    %5657 = vmatprep.subr.mxu0 0.0
    %5658 = vmatpush1.msra.mxu0 0.0
    %5659 = vmatprep.subr.mxu0 0.0
    %5660 = vmatpush1.msra.mxu0 0.0
    %5661 = vmatprep.subr.mxu0 0.0
    %5662 = vmatpush1.msra.mxu0 0.0
    %5663 = vmatprep.mubr.f32.mxu0 0.0
    %5664 = vmatmul.mubr.f32.gmra.mrb[0].mxu0 %v5597
    %v5665 = vpop.f32.mrb[0].mxu0
    %v5666 = vadd.f32 %v5595, %v5665
    %v5667 = vpop.f32.mrb[0].mxu0
    %5668 = vdwg.mxu0
    %v5669 = vxor.u32 %v5666, 2147483648
    %v5670 = vmul.f32 %v5669, 1.442695
    %v5671 = vpow.pop %v5670
    %v5672 = vadd.f32 %v5671, 1.0
    %v5673 = vrcp.pop %v5672
    %v5674 = vmul.f32 1.0, %v5673
    %v5675 = vtanh.pop %v5666
    %v5676 = vmul.f32 %v5674, %v5571
    %5678 = vrot.lane.b32.xlu0 %v5675, 32
    %v5679 = vpop.permute.xlu0 %5678
    %v5681 = vmul.f32 %v5674, %v5679
    %5683 = vrot.lane.b32.xlu0 %v5681, 32
    %v5684 = vpop.permute.xlu0 %5683
    %v5686 = vadd.f32 %v5676, %v5684
    %v5687 = vtanh.pop %v5686
    %5689 = vrot.lane.b32.xlu0 %v5687, 32
    %v5690 = vpop.permute.xlu0 %5689
    %v5692 = vmul.f32 %v5674, %v5690
    %5694 = vrot.lane.b32.xlu0 %v5692, 64
    %v5695 = vpop.permute.xlu0 %5694
    %5697 = vst.msk [vmem:[#allocation4 + $0x2] sm:$0x1] %vm5350, %v5695
    %5698 = vrot.lane.b32.xlu0 %v5692, 96
    %v5699 = vpop.permute.xlu0 %5698
    %v5701 = vsel %vm3382, %v5695, %v5699
    %v5702 = vld [vmem:[%s14] sm:$0xff]
    %v5703 = vld [vmem:[%s14 + $0x8] sm:$0xff]
    %v5704 = vld [vmem:[%s14 + $0x10] sm:$0xff]
    %v5705 = vld [vmem:[%s14 + $0x18] sm:$0xff]
    %v5706 = vld [vmem:[%s14 + $0x20] sm:$0xff]
    %v5707 = vld [vmem:[%s14 + $0x28] sm:$0xff]
    %v5708 = vld [vmem:[%s14 + $0x30] sm:$0xff]
    %v5709 = vld [vmem:[%s14 + $0x38] sm:$0xff]
    %v5710 = vld [vmem:[%s15] sm:$0x1]
    %v5712 = vsel %vm5276, %v5701, 0
    %5714 = vmatprep.subr.mxu0 0.0
    %5715 = vmatpush1.msra.mxu0 %v5702
    %5716 = vmatprep.subr.mxu0 0.0
    %5717 = vmatpush1.msra.mxu0 %v5703
    %5718 = vmatprep.subr.mxu0 0.0
    %5719 = vmatpush1.msra.mxu0 %v5704
    %5720 = vmatprep.subr.mxu0 0.0
    %5721 = vmatpush1.msra.mxu0 %v5705
    %5722 = vmatprep.subr.mxu0 0.0
    %5723 = vmatpush1.msra.mxu0 %v5706
    %5724 = vmatprep.subr.mxu0 0.0
    %5725 = vmatpush1.msra.mxu0 %v5707
    %5726 = vmatprep.subr.mxu0 0.0
    %5727 = vmatpush1.msra.mxu0 %v5708
    %5728 = vmatprep.subr.mxu0 0.0
    %5729 = vmatpush1.msra.mxu0 %v5709
    %5730 = vmatprep.subr.mxu0 0.0
    %5731 = vmatpush1.msra.mxu0 0.0
    %5732 = vmatprep.subr.mxu0 0.0
    %5733 = vmatpush1.msra.mxu0 0.0
    %5734 = vmatprep.subr.mxu0 0.0
    %5735 = vmatpush1.msra.mxu0 0.0
    %5736 = vmatprep.subr.mxu0 0.0
    %5737 = vmatpush1.msra.mxu0 0.0
    %5738 = vmatprep.subr.mxu0 0.0
    %5739 = vmatpush1.msra.mxu0 0.0
    %5740 = vmatprep.subr.mxu0 0.0
    %5741 = vmatpush1.msra.mxu0 0.0
    %5742 = vmatprep.subr.mxu0 0.0
    %5743 = vmatpush1.msra.mxu0 0.0
    %5744 = vmatprep.subr.mxu0 0.0
    %5745 = vmatpush1.msra.mxu0 0.0
    %5746 = vmatprep.subr.mxu0 0.0
    %5747 = vmatpush1.msra.mxu0 0.0
    %5748 = vmatprep.subr.mxu0 0.0
    %5749 = vmatpush1.msra.mxu0 0.0
    %5750 = vmatprep.subr.mxu0 0.0
    %5751 = vmatpush1.msra.mxu0 0.0
    %5752 = vmatprep.subr.mxu0 0.0
    %5753 = vmatpush1.msra.mxu0 0.0
    %5754 = vmatprep.subr.mxu0 0.0
    %5755 = vmatpush1.msra.mxu0 0.0
    %5756 = vmatprep.subr.mxu0 0.0
    %5757 = vmatpush1.msra.mxu0 0.0
    %5758 = vmatprep.subr.mxu0 0.0
    %5759 = vmatpush1.msra.mxu0 0.0
    %5760 = vmatprep.subr.mxu0 0.0
    %5761 = vmatpush1.msra.mxu0 0.0
    %5762 = vmatprep.subr.mxu0 0.0
    %5763 = vmatpush1.msra.mxu0 0.0
    %5764 = vmatprep.subr.mxu0 0.0
    %5765 = vmatpush1.msra.mxu0 0.0
    %5766 = vmatprep.subr.mxu0 0.0
    %5767 = vmatpush1.msra.mxu0 0.0
    %5768 = vmatprep.subr.mxu0 0.0
    %5769 = vmatpush1.msra.mxu0 0.0
    %5770 = vmatprep.subr.mxu0 0.0
    %5771 = vmatpush1.msra.mxu0 0.0
    %5772 = vmatprep.subr.mxu0 0.0
    %5773 = vmatpush1.msra.mxu0 0.0
    %5774 = vmatprep.subr.mxu0 0.0
    %5775 = vmatpush1.msra.mxu0 0.0
    %5776 = vmatprep.subr.mxu0 0.0
    %5777 = vmatpush1.msra.mxu0 0.0
    %5778 = vmatprep.mubr.f32.mxu0 0.0
    %5779 = vmatmul.mubr.f32.gmra.mrb[0].mxu0 %v5712
    %v5780 = vpop.f32.mrb[0].mxu0
    %v5781 = vadd.f32 %v5710, %v5780
    %v5782 = vpop.f32.mrb[0].mxu0
    %5783 = vdwg.mxu0
    %v5784 = vxor.u32 %v5781, 2147483648
    %v5785 = vmul.f32 %v5784, 1.442695
    %v5786 = vpow.pop %v5785
    %v5787 = vadd.f32 %v5786, 1.0
    %v5788 = vrcp.pop %v5787
    %v5789 = vmul.f32 1.0, %v5788
    %v5790 = vtanh.pop %v5781
    %v5791 = vmul.f32 %v5789, %v5686
    %5793 = vrot.lane.b32.xlu0 %v5790, 32
    %v5794 = vpop.permute.xlu0 %5793
    %v5796 = vmul.f32 %v5789, %v5794
    %5798 = vrot.lane.b32.xlu0 %v5796, 32
    %v5799 = vpop.permute.xlu0 %5798
    %v5801 = vadd.f32 %v5791, %v5799
    %v5802 = vtanh.pop %v5801
    %5804 = vrot.lane.b32.xlu0 %v5802, 32
    %v5805 = vpop.permute.xlu0 %5804
    %v5807 = vmul.f32 %v5789, %v5805
    %5809 = vrot.lane.b32.xlu0 %v5807, 64
    %v5810 = vpop.permute.xlu0 %5809
    %5812 = vst.msk [vmem:[#allocation4 + $0x3] sm:$0x1] %vm5350, %v5810
    %5813 = vrot.lane.b32.xlu0 %v5807, 96
    %v5814 = vpop.permute.xlu0 %5813
    %v5816 = vsel %vm3382, %v5810, %v5814
    %v5817 = vld [vmem:[%s14] sm:$0xff]
    %v5818 = vld [vmem:[%s14 + $0x8] sm:$0xff]
    %v5819 = vld [vmem:[%s14 + $0x10] sm:$0xff]
    %v5820 = vld [vmem:[%s14 + $0x18] sm:$0xff]
    %v5821 = vld [vmem:[%s14 + $0x20] sm:$0xff]
    %v5822 = vld [vmem:[%s14 + $0x28] sm:$0xff]
    %v5823 = vld [vmem:[%s14 + $0x30] sm:$0xff]
    %v5824 = vld [vmem:[%s14 + $0x38] sm:$0xff]
    %v5825 = vld [vmem:[%s15] sm:$0x1]
    %v5827 = vsel %vm5276, %v5816, 0
    %5829 = vmatprep.subr.mxu0 0.0
    %5830 = vmatpush1.msra.mxu0 %v5817
    %5831 = vmatprep.subr.mxu0 0.0
    %5832 = vmatpush1.msra.mxu0 %v5818
    %5833 = vmatprep.subr.mxu0 0.0
    %5834 = vmatpush1.msra.mxu0 %v5819
    %5835 = vmatprep.subr.mxu0 0.0
    %5836 = vmatpush1.msra.mxu0 %v5820
    %5837 = vmatprep.subr.mxu0 0.0
    %5838 = vmatpush1.msra.mxu0 %v5821
    %5839 = vmatprep.subr.mxu0 0.0
    %5840 = vmatpush1.msra.mxu0 %v5822
    %5841 = vmatprep.subr.mxu0 0.0
    %5842 = vmatpush1.msra.mxu0 %v5823
    %5843 = vmatprep.subr.mxu0 0.0
    %5844 = vmatpush1.msra.mxu0 %v5824
    %5845 = vmatprep.subr.mxu0 0.0
    %5846 = vmatpush1.msra.mxu0 0.0
    %5847 = vmatprep.subr.mxu0 0.0
    %5848 = vmatpush1.msra.mxu0 0.0
    %5849 = vmatprep.subr.mxu0 0.0
    %5850 = vmatpush1.msra.mxu0 0.0
    %5851 = vmatprep.subr.mxu0 0.0
    %5852 = vmatpush1.msra.mxu0 0.0
    %5853 = vmatprep.subr.mxu0 0.0
    %5854 = vmatpush1.msra.mxu0 0.0
    %5855 = vmatprep.subr.mxu0 0.0
    %5856 = vmatpush1.msra.mxu0 0.0
    %5857 = vmatprep.subr.mxu0 0.0
    %5858 = vmatpush1.msra.mxu0 0.0
    %5859 = vmatprep.subr.mxu0 0.0
    %5860 = vmatpush1.msra.mxu0 0.0
    %5861 = vmatprep.subr.mxu0 0.0
    %5862 = vmatpush1.msra.mxu0 0.0
    %5863 = vmatprep.subr.mxu0 0.0
    %5864 = vmatpush1.msra.mxu0 0.0
    %5865 = vmatprep.subr.mxu0 0.0
    %5866 = vmatpush1.msra.mxu0 0.0
    %5867 = vmatprep.subr.mxu0 0.0
    %5868 = vmatpush1.msra.mxu0 0.0
    %5869 = vmatprep.subr.mxu0 0.0
    %5870 = vmatpush1.msra.mxu0 0.0
    %5871 = vmatprep.subr.mxu0 0.0
    %5872 = vmatpush1.msra.mxu0 0.0
    %5873 = vmatprep.subr.mxu0 0.0
    %5874 = vmatpush1.msra.mxu0 0.0
    %5875 = vmatprep.subr.mxu0 0.0
    %5876 = vmatpush1.msra.mxu0 0.0
    %5877 = vmatprep.subr.mxu0 0.0
    %5878 = vmatpush1.msra.mxu0 0.0
    %5879 = vmatprep.subr.mxu0 0.0
    %5880 = vmatpush1.msra.mxu0 0.0
    %5881 = vmatprep.subr.mxu0 0.0
    %5882 = vmatpush1.msra.mxu0 0.0
    %5883 = vmatprep.subr.mxu0 0.0
    %5884 = vmatpush1.msra.mxu0 0.0
    %5885 = vmatprep.subr.mxu0 0.0
    %5886 = vmatpush1.msra.mxu0 0.0
    %5887 = vmatprep.subr.mxu0 0.0
    %5888 = vmatpush1.msra.mxu0 0.0
    %5889 = vmatprep.subr.mxu0 0.0
    %5890 = vmatpush1.msra.mxu0 0.0
    %5891 = vmatprep.subr.mxu0 0.0
    %5892 = vmatpush1.msra.mxu0 0.0
    %5893 = vmatprep.mubr.f32.mxu0 0.0
    %5894 = vmatmul.mubr.f32.gmra.mrb[0].mxu0 %v5827
    %v5895 = vpop.f32.mrb[0].mxu0
    %v5896 = vadd.f32 %v5825, %v5895
    %v5897 = vpop.f32.mrb[0].mxu0
    %5898 = vdwg.mxu0
    %v5899 = vxor.u32 %v5896, 2147483648
    %v5900 = vmul.f32 %v5899, 1.442695
    %v5901 = vpow.pop %v5900
    %v5902 = vadd.f32 %v5901, 1.0
    %v5903 = vrcp.pop %v5902
    %v5904 = vmul.f32 1.0, %v5903
    %v5905 = vtanh.pop %v5896
    %v5906 = vmul.f32 %v5904, %v5801
    %5908 = vrot.lane.b32.xlu0 %v5905, 32
    %v5909 = vpop.permute.xlu0 %5908
    %v5911 = vmul.f32 %v5904, %v5909
    %5913 = vrot.lane.b32.xlu0 %v5911, 32
    %v5914 = vpop.permute.xlu0 %5913
    %v5916 = vadd.f32 %v5906, %v5914
    %v5917 = vtanh.pop %v5916
    %5919 = vrot.lane.b32.xlu0 %v5917, 32
    %v5920 = vpop.permute.xlu0 %5919
    %v5922 = vmul.f32 %v5904, %v5920
    %5924 = vrot.lane.b32.xlu0 %v5922, 64
    %v5925 = vpop.permute.xlu0 %5924
    %5927 = vst.msk [vmem:[#allocation4 + $0x4] sm:$0x1] %vm5350, %v5925
    %5928 = vrot.lane.b32.xlu0 %v5922, 96
    %v5929 = vpop.permute.xlu0 %5928
    %v5931 = vsel %vm3382, %v5925, %v5929
    %v5932 = vld [vmem:[%s14] sm:$0xff]
    %v5933 = vld [vmem:[%s14 + $0x8] sm:$0xff]
    %v5934 = vld [vmem:[%s14 + $0x10] sm:$0xff]
    %v5935 = vld [vmem:[%s14 + $0x18] sm:$0xff]
    %v5936 = vld [vmem:[%s14 + $0x20] sm:$0xff]
    %v5937 = vld [vmem:[%s14 + $0x28] sm:$0xff]
    %v5938 = vld [vmem:[%s14 + $0x30] sm:$0xff]
    %v5939 = vld [vmem:[%s14 + $0x38] sm:$0xff]
    %v5940 = vld [vmem:[%s15] sm:$0x1]
    %v5942 = vsel %vm5276, %v5931, 0
    %5944 = vmatprep.subr.mxu0 0.0
    %5945 = vmatpush1.msra.mxu0 %v5932
    %5946 = vmatprep.subr.mxu0 0.0
    %5947 = vmatpush1.msra.mxu0 %v5933
    %5948 = vmatprep.subr.mxu0 0.0
    %5949 = vmatpush1.msra.mxu0 %v5934
    %5950 = vmatprep.subr.mxu0 0.0
    %5951 = vmatpush1.msra.mxu0 %v5935
    %5952 = vmatprep.subr.mxu0 0.0
    %5953 = vmatpush1.msra.mxu0 %v5936
    %5954 = vmatprep.subr.mxu0 0.0
    %5955 = vmatpush1.msra.mxu0 %v5937
    %5956 = vmatprep.subr.mxu0 0.0
    %5957 = vmatpush1.msra.mxu0 %v5938
    %5958 = vmatprep.subr.mxu0 0.0
    %5959 = vmatpush1.msra.mxu0 %v5939
    %5960 = vmatprep.subr.mxu0 0.0
    %5961 = vmatpush1.msra.mxu0 0.0
    %5962 = vmatprep.subr.mxu0 0.0
    %5963 = vmatpush1.msra.mxu0 0.0
    %5964 = vmatprep.subr.mxu0 0.0
    %5965 = vmatpush1.msra.mxu0 0.0
    %5966 = vmatprep.subr.mxu0 0.0
    %5967 = vmatpush1.msra.mxu0 0.0
    %5968 = vmatprep.subr.mxu0 0.0
    %5969 = vmatpush1.msra.mxu0 0.0
    %5970 = vmatprep.subr.mxu0 0.0
    %5971 = vmatpush1.msra.mxu0 0.0
    %5972 = vmatprep.subr.mxu0 0.0
    %5973 = vmatpush1.msra.mxu0 0.0
    %5974 = vmatprep.subr.mxu0 0.0
    %5975 = vmatpush1.msra.mxu0 0.0
    %5976 = vmatprep.subr.mxu0 0.0
    %5977 = vmatpush1.msra.mxu0 0.0
    %5978 = vmatprep.subr.mxu0 0.0
    %5979 = vmatpush1.msra.mxu0 0.0
    %5980 = vmatprep.subr.mxu0 0.0
    %5981 = vmatpush1.msra.mxu0 0.0
    %5982 = vmatprep.subr.mxu0 0.0
    %5983 = vmatpush1.msra.mxu0 0.0
    %5984 = vmatprep.subr.mxu0 0.0
    %5985 = vmatpush1.msra.mxu0 0.0
    %5986 = vmatprep.subr.mxu0 0.0
    %5987 = vmatpush1.msra.mxu0 0.0
    %5988 = vmatprep.subr.mxu0 0.0
    %5989 = vmatpush1.msra.mxu0 0.0
    %5990 = vmatprep.subr.mxu0 0.0
    %5991 = vmatpush1.msra.mxu0 0.0
    %5992 = vmatprep.subr.mxu0 0.0
    %5993 = vmatpush1.msra.mxu0 0.0
    %5994 = vmatprep.subr.mxu0 0.0
    %5995 = vmatpush1.msra.mxu0 0.0
    %5996 = vmatprep.subr.mxu0 0.0
    %5997 = vmatpush1.msra.mxu0 0.0
    %5998 = vmatprep.subr.mxu0 0.0
    %5999 = vmatpush1.msra.mxu0 0.0
    %6000 = vmatprep.subr.mxu0 0.0
    %6001 = vmatpush1.msra.mxu0 0.0
    %6002 = vmatprep.subr.mxu0 0.0
    %6003 = vmatpush1.msra.mxu0 0.0
    %6004 = vmatprep.subr.mxu0 0.0
    %6005 = vmatpush1.msra.mxu0 0.0
    %6006 = vmatprep.subr.mxu0 0.0
    %6007 = vmatpush1.msra.mxu0 0.0
    %6008 = vmatprep.mubr.f32.mxu0 0.0
    %6009 = vmatmul.mubr.f32.gmra.mrb[0].mxu0 %v5942
    %v6010 = vpop.f32.mrb[0].mxu0
    %v6011 = vadd.f32 %v5940, %v6010
    %v6012 = vpop.f32.mrb[0].mxu0
    %6013 = vdwg.mxu0
    %v6014 = vxor.u32 %v6011, 2147483648
    %v6015 = vmul.f32 %v6014, 1.442695
    %v6016 = vpow.pop %v6015
    %v6017 = vadd.f32 %v6016, 1.0
    %v6018 = vrcp.pop %v6017
    %v6019 = vmul.f32 1.0, %v6018
    %v6020 = vtanh.pop %v6011
    %v6021 = vmul.f32 %v6019, %v5916
    %6023 = vrot.lane.b32.xlu0 %v6020, 32
    %v6024 = vpop.permute.xlu0 %6023
    %v6026 = vmul.f32 %v6019, %v6024
    %6028 = vrot.lane.b32.xlu0 %v6026, 32
    %v6029 = vpop.permute.xlu0 %6028
    %v6031 = vadd.f32 %v6021, %v6029
    %v6032 = vtanh.pop %v6031
    %6034 = vrot.lane.b32.xlu0 %v6032, 32
    %v6035 = vpop.permute.xlu0 %6034
    %v6037 = vmul.f32 %v6019, %v6035
    %6039 = vrot.lane.b32.xlu0 %v6037, 64
    %v6040 = vpop.permute.xlu0 %6039
    %6042 = vst.msk [vmem:[#allocation4 + $0x5] sm:$0x1] %vm5350, %v6040
    %6043 = vrot.lane.b32.xlu0 %v6037, 96
    %v6044 = vpop.permute.xlu0 %6043
    %v6046 = vsel %vm3382, %v6040, %v6044
    %v6047 = vld [vmem:[%s14] sm:$0xff]
    %v6048 = vld [vmem:[%s14 + $0x8] sm:$0xff]
    %v6049 = vld [vmem:[%s14 + $0x10] sm:$0xff]
    %v6050 = vld [vmem:[%s14 + $0x18] sm:$0xff]
    %v6051 = vld [vmem:[%s14 + $0x20] sm:$0xff]
    %v6052 = vld [vmem:[%s14 + $0x28] sm:$0xff]
    %v6053 = vld [vmem:[%s14 + $0x30] sm:$0xff]
    %v6054 = vld [vmem:[%s14 + $0x38] sm:$0xff]
    %v6055 = vld [vmem:[%s15] sm:$0x1]
    %v6057 = vsel %vm5276, %v6046, 0
    %6059 = vmatprep.subr.mxu0 0.0
    %6060 = vmatpush1.msra.mxu0 %v6047
    %6061 = vmatprep.subr.mxu0 0.0
    %6062 = vmatpush1.msra.mxu0 %v6048
    %6063 = vmatprep.subr.mxu0 0.0
    %6064 = vmatpush1.msra.mxu0 %v6049
    %6065 = vmatprep.subr.mxu0 0.0
    %6066 = vmatpush1.msra.mxu0 %v6050
    %6067 = vmatprep.subr.mxu0 0.0
    %6068 = vmatpush1.msra.mxu0 %v6051
    %6069 = vmatprep.subr.mxu0 0.0
    %6070 = vmatpush1.msra.mxu0 %v6052
    %6071 = vmatprep.subr.mxu0 0.0
    %6072 = vmatpush1.msra.mxu0 %v6053
    %6073 = vmatprep.subr.mxu0 0.0
    %6074 = vmatpush1.msra.mxu0 %v6054
    %6075 = vmatprep.subr.mxu0 0.0
    %6076 = vmatpush1.msra.mxu0 0.0
    %6077 = vmatprep.subr.mxu0 0.0
    %6078 = vmatpush1.msra.mxu0 0.0
    %6079 = vmatprep.subr.mxu0 0.0
    %6080 = vmatpush1.msra.mxu0 0.0
    %6081 = vmatprep.subr.mxu0 0.0
    %6082 = vmatpush1.msra.mxu0 0.0
    %6083 = vmatprep.subr.mxu0 0.0
    %6084 = vmatpush1.msra.mxu0 0.0
    %6085 = vmatprep.subr.mxu0 0.0
    %6086 = vmatpush1.msra.mxu0 0.0
    %6087 = vmatprep.subr.mxu0 0.0
    %6088 = vmatpush1.msra.mxu0 0.0
    %6089 = vmatprep.subr.mxu0 0.0
    %6090 = vmatpush1.msra.mxu0 0.0
    %6091 = vmatprep.subr.mxu0 0.0
    %6092 = vmatpush1.msra.mxu0 0.0
    %6093 = vmatprep.subr.mxu0 0.0
    %6094 = vmatpush1.msra.mxu0 0.0
    %6095 = vmatprep.subr.mxu0 0.0
    %6096 = vmatpush1.msra.mxu0 0.0
    %6097 = vmatprep.subr.mxu0 0.0
    %6098 = vmatpush1.msra.mxu0 0.0
    %6099 = vmatprep.subr.mxu0 0.0
    %6100 = vmatpush1.msra.mxu0 0.0
    %6101 = vmatprep.subr.mxu0 0.0
    %6102 = vmatpush1.msra.mxu0 0.0
    %6103 = vmatprep.subr.mxu0 0.0
    %6104 = vmatpush1.msra.mxu0 0.0
    %6105 = vmatprep.subr.mxu0 0.0
    %6106 = vmatpush1.msra.mxu0 0.0
    %6107 = vmatprep.subr.mxu0 0.0
    %6108 = vmatpush1.msra.mxu0 0.0
    %6109 = vmatprep.subr.mxu0 0.0
    %6110 = vmatpush1.msra.mxu0 0.0
    %6111 = vmatprep.subr.mxu0 0.0
    %6112 = vmatpush1.msra.mxu0 0.0
    %6113 = vmatprep.subr.mxu0 0.0
    %6114 = vmatpush1.msra.mxu0 0.0
    %6115 = vmatprep.subr.mxu0 0.0
    %6116 = vmatpush1.msra.mxu0 0.0
    %6117 = vmatprep.subr.mxu0 0.0
    %6118 = vmatpush1.msra.mxu0 0.0
    %6119 = vmatprep.subr.mxu0 0.0
    %6120 = vmatpush1.msra.mxu0 0.0
    %6121 = vmatprep.subr.mxu0 0.0
    %6122 = vmatpush1.msra.mxu0 0.0
    %6123 = vmatprep.mubr.f32.mxu0 0.0
    %6124 = vmatmul.mubr.f32.gmra.mrb[0].mxu0 %v6057
    %v6125 = vpop.f32.mrb[0].mxu0
    %v6126 = vadd.f32 %v6055, %v6125
    %v6127 = vpop.f32.mrb[0].mxu0
    %6128 = vdwg.mxu0
    %v6129 = vxor.u32 %v6126, 2147483648
    %v6130 = vmul.f32 %v6129, 1.442695
    %v6131 = vpow.pop %v6130
    %v6132 = vadd.f32 %v6131, 1.0
    %v6133 = vrcp.pop %v6132
    %v6134 = vmul.f32 1.0, %v6133
    %v6135 = vtanh.pop %v6126
    %v6136 = vmul.f32 %v6134, %v6031
    %6138 = vrot.lane.b32.xlu0 %v6135, 32
    %v6139 = vpop.permute.xlu0 %6138
    %v6141 = vmul.f32 %v6134, %v6139
    %6143 = vrot.lane.b32.xlu0 %v6141, 32
    %v6144 = vpop.permute.xlu0 %6143
    %v6146 = vadd.f32 %v6136, %v6144
    %v6147 = vtanh.pop %v6146
    %6149 = vrot.lane.b32.xlu0 %v6147, 32
    %v6150 = vpop.permute.xlu0 %6149
    %v6152 = vmul.f32 %v6134, %v6150
    %6154 = vrot.lane.b32.xlu0 %v6152, 64
    %v6155 = vpop.permute.xlu0 %6154
    %6157 = vst.msk [vmem:[#allocation4 + $0x6] sm:$0x1] %vm5350, %v6155
    %6158 = vrot.lane.b32.xlu0 %v6152, 96
    %v6159 = vpop.permute.xlu0 %6158
    %v6161 = vsel %vm3382, %v6155, %v6159
    %v6162 = vld [vmem:[%s14] sm:$0xff]
    %v6163 = vld [vmem:[%s14 + $0x8] sm:$0xff]
    %v6164 = vld [vmem:[%s14 + $0x10] sm:$0xff]
    %v6165 = vld [vmem:[%s14 + $0x18] sm:$0xff]
    %v6166 = vld [vmem:[%s14 + $0x20] sm:$0xff]
    %v6167 = vld [vmem:[%s14 + $0x28] sm:$0xff]
    %v6168 = vld [vmem:[%s14 + $0x30] sm:$0xff]
    %v6169 = vld [vmem:[%s14 + $0x38] sm:$0xff]
    %v6170 = vld [vmem:[%s15] sm:$0x1]
    %v6172 = vsel %vm5276, %v6161, 0
    %6174 = vmatprep.subr.mxu0 0.0
    %6175 = vmatpush1.msra.mxu0 %v6162
    %6176 = vmatprep.subr.mxu0 0.0
    %6177 = vmatpush1.msra.mxu0 %v6163
    %6178 = vmatprep.subr.mxu0 0.0
    %6179 = vmatpush1.msra.mxu0 %v6164
    %6180 = vmatprep.subr.mxu0 0.0
    %6181 = vmatpush1.msra.mxu0 %v6165
    %6182 = vmatprep.subr.mxu0 0.0
    %6183 = vmatpush1.msra.mxu0 %v6166
    %6184 = vmatprep.subr.mxu0 0.0
    %6185 = vmatpush1.msra.mxu0 %v6167
    %6186 = vmatprep.subr.mxu0 0.0
    %6187 = vmatpush1.msra.mxu0 %v6168
    %6188 = vmatprep.subr.mxu0 0.0
    %6189 = vmatpush1.msra.mxu0 %v6169
    %6190 = vmatprep.subr.mxu0 0.0
    %6191 = vmatpush1.msra.mxu0 0.0
    %6192 = vmatprep.subr.mxu0 0.0
    %6193 = vmatpush1.msra.mxu0 0.0
    %6194 = vmatprep.subr.mxu0 0.0
    %6195 = vmatpush1.msra.mxu0 0.0
    %6196 = vmatprep.subr.mxu0 0.0
    %6197 = vmatpush1.msra.mxu0 0.0
    %6198 = vmatprep.subr.mxu0 0.0
    %6199 = vmatpush1.msra.mxu0 0.0
    %6200 = vmatprep.subr.mxu0 0.0
    %6201 = vmatpush1.msra.mxu0 0.0
    %6202 = vmatprep.subr.mxu0 0.0
    %6203 = vmatpush1.msra.mxu0 0.0
    %6204 = vmatprep.subr.mxu0 0.0
    %6205 = vmatpush1.msra.mxu0 0.0
    %6206 = vmatprep.subr.mxu0 0.0
    %6207 = vmatpush1.msra.mxu0 0.0
    %6208 = vmatprep.subr.mxu0 0.0
    %6209 = vmatpush1.msra.mxu0 0.0
    %6210 = vmatprep.subr.mxu0 0.0
    %6211 = vmatpush1.msra.mxu0 0.0
    %6212 = vmatprep.subr.mxu0 0.0
    %6213 = vmatpush1.msra.mxu0 0.0
    %6214 = vmatprep.subr.mxu0 0.0
    %6215 = vmatpush1.msra.mxu0 0.0
    %6216 = vmatprep.subr.mxu0 0.0
    %6217 = vmatpush1.msra.mxu0 0.0
    %6218 = vmatprep.subr.mxu0 0.0
    %6219 = vmatpush1.msra.mxu0 0.0
    %6220 = vmatprep.subr.mxu0 0.0
    %6221 = vmatpush1.msra.mxu0 0.0
    %6222 = vmatprep.subr.mxu0 0.0
    %6223 = vmatpush1.msra.mxu0 0.0
    %6224 = vmatprep.subr.mxu0 0.0
    %6225 = vmatpush1.msra.mxu0 0.0
    %6226 = vmatprep.subr.mxu0 0.0
    %6227 = vmatpush1.msra.mxu0 0.0
    %6228 = vmatprep.subr.mxu0 0.0
    %6229 = vmatpush1.msra.mxu0 0.0
    %6230 = vmatprep.subr.mxu0 0.0
    %6231 = vmatpush1.msra.mxu0 0.0
    %6232 = vmatprep.subr.mxu0 0.0
    %6233 = vmatpush1.msra.mxu0 0.0
    %6234 = vmatprep.subr.mxu0 0.0
    %6235 = vmatpush1.msra.mxu0 0.0
    %6236 = vmatprep.subr.mxu0 0.0
    %6237 = vmatpush1.msra.mxu0 0.0
    %6238 = vmatprep.mubr.f32.mxu0 0.0
    %6239 = vmatmul.mubr.f32.gmra.mrb[0].mxu0 %v6172
    %v6240 = vpop.f32.mrb[0].mxu0
    %v6241 = vadd.f32 %v6170, %v6240
    %v6242 = vpop.f32.mrb[0].mxu0
    %6243 = vdwg.mxu0
    %v6244 = vxor.u32 %v6241, 2147483648
    %v6245 = vmul.f32 %v6244, 1.442695
    %v6246 = vpow.pop %v6245
    %v6247 = vadd.f32 %v6246, 1.0
    %v6248 = vrcp.pop %v6247
    %v6249 = vmul.f32 1.0, %v6248
    %v6250 = vtanh.pop %v6241
    %v6251 = vmul.f32 %v6249, %v6146
    %6253 = vrot.lane.b32.xlu0 %v6250, 32
    %v6254 = vpop.permute.xlu0 %6253
    %v6256 = vmul.f32 %v6249, %v6254
    %6258 = vrot.lane.b32.xlu0 %v6256, 32
    %v6259 = vpop.permute.xlu0 %6258
    %v6261 = vadd.f32 %v6251, %v6259
    %v6262 = vtanh.pop %v6261
    %6264 = vrot.lane.b32.xlu0 %v6262, 32
    %v6265 = vpop.permute.xlu0 %6264
    %v6267 = vmul.f32 %v6249, %v6265
    %6269 = vrot.lane.b32.xlu0 %v6267, 64
    %v6270 = vpop.permute.xlu0 %6269
    %6272 = vst.msk [vmem:[#allocation4 + $0x7] sm:$0x1] %vm5350, %v6270
    %6273 = vrot.lane.b32.xlu0 %v6267, 96
    %v6274 = vpop.permute.xlu0 %6273
    %v6276 = vsel %vm3382, %v6270, %v6274
    %v6277 = vld [vmem:[%s14] sm:$0xff]
    %v6278 = vld [vmem:[%s14 + $0x8] sm:$0xff]
    %v6279 = vld [vmem:[%s14 + $0x10] sm:$0xff]
    %v6280 = vld [vmem:[%s14 + $0x18] sm:$0xff]
    %v6281 = vld [vmem:[%s14 + $0x20] sm:$0xff]
    %v6282 = vld [vmem:[%s14 + $0x28] sm:$0xff]
    %v6283 = vld [vmem:[%s14 + $0x30] sm:$0xff]
    %v6284 = vld [vmem:[%s14 + $0x38] sm:$0xff]
    %v6285 = vld [vmem:[%s15] sm:$0x1]
    %v6287 = vsel %vm5276, %v6276, 0
    %6289 = vmatprep.subr.mxu0 0.0
    %6290 = vmatpush1.msra.mxu0 %v6277
    %6291 = vmatprep.subr.mxu0 0.0
    %6292 = vmatpush1.msra.mxu0 %v6278
    %6293 = vmatprep.subr.mxu0 0.0
    %6294 = vmatpush1.msra.mxu0 %v6279
    %6295 = vmatprep.subr.mxu0 0.0
    %6296 = vmatpush1.msra.mxu0 %v6280
    %6297 = vmatprep.subr.mxu0 0.0
    %6298 = vmatpush1.msra.mxu0 %v6281
    %6299 = vmatprep.subr.mxu0 0.0
    %6300 = vmatpush1.msra.mxu0 %v6282
    %6301 = vmatprep.subr.mxu0 0.0
    %6302 = vmatpush1.msra.mxu0 %v6283
    %6303 = vmatprep.subr.mxu0 0.0
    %6304 = vmatpush1.msra.mxu0 %v6284
    %6305 = vmatprep.subr.mxu0 0.0
    %6306 = vmatpush1.msra.mxu0 0.0
    %6307 = vmatprep.subr.mxu0 0.0
    %6308 = vmatpush1.msra.mxu0 0.0
    %6309 = vmatprep.subr.mxu0 0.0
    %6310 = vmatpush1.msra.mxu0 0.0
    %6311 = vmatprep.subr.mxu0 0.0
    %6312 = vmatpush1.msra.mxu0 0.0
    %6313 = vmatprep.subr.mxu0 0.0
    %6314 = vmatpush1.msra.mxu0 0.0
    %6315 = vmatprep.subr.mxu0 0.0
    %6316 = vmatpush1.msra.mxu0 0.0
    %6317 = vmatprep.subr.mxu0 0.0
    %6318 = vmatpush1.msra.mxu0 0.0
    %6319 = vmatprep.subr.mxu0 0.0
    %6320 = vmatpush1.msra.mxu0 0.0
    %6321 = vmatprep.subr.mxu0 0.0
    %6322 = vmatpush1.msra.mxu0 0.0
    %6323 = vmatprep.subr.mxu0 0.0
    %6324 = vmatpush1.msra.mxu0 0.0
    %6325 = vmatprep.subr.mxu0 0.0
    %6326 = vmatpush1.msra.mxu0 0.0
    %6327 = vmatprep.subr.mxu0 0.0
    %6328 = vmatpush1.msra.mxu0 0.0
    %6329 = vmatprep.subr.mxu0 0.0
    %6330 = vmatpush1.msra.mxu0 0.0
    %6331 = vmatprep.subr.mxu0 0.0
    %6332 = vmatpush1.msra.mxu0 0.0
    %6333 = vmatprep.subr.mxu0 0.0
    %6334 = vmatpush1.msra.mxu0 0.0
    %6335 = vmatprep.subr.mxu0 0.0
    %6336 = vmatpush1.msra.mxu0 0.0
    %6337 = vmatprep.subr.mxu0 0.0
    %6338 = vmatpush1.msra.mxu0 0.0
    %6339 = vmatprep.subr.mxu0 0.0
    %6340 = vmatpush1.msra.mxu0 0.0
    %6341 = vmatprep.subr.mxu0 0.0
    %6342 = vmatpush1.msra.mxu0 0.0
    %6343 = vmatprep.subr.mxu0 0.0
    %6344 = vmatpush1.msra.mxu0 0.0
    %6345 = vmatprep.subr.mxu0 0.0
    %6346 = vmatpush1.msra.mxu0 0.0
    %6347 = vmatprep.subr.mxu0 0.0
    %6348 = vmatpush1.msra.mxu0 0.0
    %6349 = vmatprep.subr.mxu0 0.0
    %6350 = vmatpush1.msra.mxu0 0.0
    %6351 = vmatprep.subr.mxu0 0.0
    %6352 = vmatpush1.msra.mxu0 0.0
    %6353 = vmatprep.mubr.f32.mxu0 0.0
    %6354 = vmatmul.mubr.f32.gmra.mrb[0].mxu0 %v6287
    %v6355 = vpop.f32.mrb[0].mxu0
    %v6356 = vadd.f32 %v6285, %v6355
    %v6357 = vpop.f32.mrb[0].mxu0
    %6358 = vdwg.mxu0
    %v6359 = vxor.u32 %v6356, 2147483648
    %v6360 = vmul.f32 %v6359, 1.442695
    %v6361 = vpow.pop %v6360
    %v6362 = vadd.f32 %v6361, 1.0
    %v6363 = vrcp.pop %v6362
    %v6364 = vmul.f32 1.0, %v6363
    %v6365 = vtanh.pop %v6356
    %v6366 = vmul.f32 %v6364, %v6261
    %6368 = vrot.lane.b32.xlu0 %v6365, 32
    %v6369 = vpop.permute.xlu0 %6368
    %v6371 = vmul.f32 %v6364, %v6369
    %6373 = vrot.lane.b32.xlu0 %v6371, 32
    %v6374 = vpop.permute.xlu0 %6373
    %v6376 = vadd.f32 %v6366, %v6374
    %v6377 = vtanh.pop %v6376
    %6379 = vrot.lane.b32.xlu0 %v6377, 32
    %v6380 = vpop.permute.xlu0 %6379
    %v6382 = vmul.f32 %v6364, %v6380
    %6384 = vrot.lane.b32.xlu0 %v6382, 64
    %v6385 = vpop.permute.xlu0 %6384
    %6387 = vst.msk [vmem:[#allocation4 + $0x8] sm:$0x1] %vm5350, %v6385
    %6388 = vrot.lane.b32.xlu0 %v6382, 96
    %v6389 = vpop.permute.xlu0 %6388
    %v6391 = vsel %vm3382, %v6385, %v6389
    %v6392 = vld [vmem:[%s14] sm:$0xff]
    %v6393 = vld [vmem:[%s14 + $0x8] sm:$0xff]
    %v6394 = vld [vmem:[%s14 + $0x10] sm:$0xff]
    %v6395 = vld [vmem:[%s14 + $0x18] sm:$0xff]
    %v6396 = vld [vmem:[%s14 + $0x20] sm:$0xff]
    %v6397 = vld [vmem:[%s14 + $0x28] sm:$0xff]
    %v6398 = vld [vmem:[%s14 + $0x30] sm:$0xff]
    %v6399 = vld [vmem:[%s14 + $0x38] sm:$0xff]
    %v6400 = vld [vmem:[%s15] sm:$0x1]
    %v6402 = vsel %vm5276, %v6391, 0
    %6404 = vmatprep.subr.mxu0 0.0
    %6405 = vmatpush1.msra.mxu0 %v6392
    %6406 = vmatprep.subr.mxu0 0.0
    %6407 = vmatpush1.msra.mxu0 %v6393
    %6408 = vmatprep.subr.mxu0 0.0
    %6409 = vmatpush1.msra.mxu0 %v6394
    %6410 = vmatprep.subr.mxu0 0.0
    %6411 = vmatpush1.msra.mxu0 %v6395
    %6412 = vmatprep.subr.mxu0 0.0
    %6413 = vmatpush1.msra.mxu0 %v6396
    %6414 = vmatprep.subr.mxu0 0.0
    %6415 = vmatpush1.msra.mxu0 %v6397
    %6416 = vmatprep.subr.mxu0 0.0
    %6417 = vmatpush1.msra.mxu0 %v6398
    %6418 = vmatprep.subr.mxu0 0.0
    %6419 = vmatpush1.msra.mxu0 %v6399
    %6420 = vmatprep.subr.mxu0 0.0
    %6421 = vmatpush1.msra.mxu0 0.0
    %6422 = vmatprep.subr.mxu0 0.0
    %6423 = vmatpush1.msra.mxu0 0.0
    %6424 = vmatprep.subr.mxu0 0.0
    %6425 = vmatpush1.msra.mxu0 0.0
    %6426 = vmatprep.subr.mxu0 0.0
    %6427 = vmatpush1.msra.mxu0 0.0
    %6428 = vmatprep.subr.mxu0 0.0
    %6429 = vmatpush1.msra.mxu0 0.0
    %6430 = vmatprep.subr.mxu0 0.0
    %6431 = vmatpush1.msra.mxu0 0.0
    %6432 = vmatprep.subr.mxu0 0.0
    %6433 = vmatpush1.msra.mxu0 0.0
    %6434 = vmatprep.subr.mxu0 0.0
    %6435 = vmatpush1.msra.mxu0 0.0
    %6436 = vmatprep.subr.mxu0 0.0
    %6437 = vmatpush1.msra.mxu0 0.0
    %6438 = vmatprep.subr.mxu0 0.0
    %6439 = vmatpush1.msra.mxu0 0.0
    %6440 = vmatprep.subr.mxu0 0.0
    %6441 = vmatpush1.msra.mxu0 0.0
    %6442 = vmatprep.subr.mxu0 0.0
    %6443 = vmatpush1.msra.mxu0 0.0
    %6444 = vmatprep.subr.mxu0 0.0
    %6445 = vmatpush1.msra.mxu0 0.0
    %6446 = vmatprep.subr.mxu0 0.0
    %6447 = vmatpush1.msra.mxu0 0.0
    %6448 = vmatprep.subr.mxu0 0.0
    %6449 = vmatpush1.msra.mxu0 0.0
    %6450 = vmatprep.subr.mxu0 0.0
    %6451 = vmatpush1.msra.mxu0 0.0
    %6452 = vmatprep.subr.mxu0 0.0
    %6453 = vmatpush1.msra.mxu0 0.0
    %6454 = vmatprep.subr.mxu0 0.0
    %6455 = vmatpush1.msra.mxu0 0.0
    %6456 = vmatprep.subr.mxu0 0.0
    %6457 = vmatpush1.msra.mxu0 0.0
    %6458 = vmatprep.subr.mxu0 0.0
    %6459 = vmatpush1.msra.mxu0 0.0
    %6460 = vmatprep.subr.mxu0 0.0
    %6461 = vmatpush1.msra.mxu0 0.0
    %6462 = vmatprep.subr.mxu0 0.0
    %6463 = vmatpush1.msra.mxu0 0.0
    %6464 = vmatprep.subr.mxu0 0.0
    %6465 = vmatpush1.msra.mxu0 0.0
    %6466 = vmatprep.subr.mxu0 0.0
    %6467 = vmatpush1.msra.mxu0 0.0
    %6468 = vmatprep.mubr.f32.mxu0 0.0
    %6469 = vmatmul.mubr.f32.gmra.mrb[0].mxu0 %v6402
    %v6470 = vpop.f32.mrb[0].mxu0
    %v6471 = vadd.f32 %v6400, %v6470
    %v6472 = vpop.f32.mrb[0].mxu0
    %6473 = vdwg.mxu0
    %v6474 = vxor.u32 %v6471, 2147483648
    %v6475 = vmul.f32 %v6474, 1.442695
    %v6476 = vpow.pop %v6475
    %v6477 = vadd.f32 %v6476, 1.0
    %v6478 = vrcp.pop %v6477
    %v6479 = vmul.f32 1.0, %v6478
    %v6480 = vtanh.pop %v6471
    %v6481 = vmul.f32 %v6479, %v6376
    %6483 = vrot.lane.b32.xlu0 %v6480, 32
    %v6484 = vpop.permute.xlu0 %6483
    %v6486 = vmul.f32 %v6479, %v6484
    %6488 = vrot.lane.b32.xlu0 %v6486, 32
    %v6489 = vpop.permute.xlu0 %6488
    %v6491 = vadd.f32 %v6481, %v6489
    %v6492 = vtanh.pop %v6491
    %6494 = vrot.lane.b32.xlu0 %v6492, 32
    %v6495 = vpop.permute.xlu0 %6494
    %v6497 = vmul.f32 %v6479, %v6495
    %6499 = vrot.lane.b32.xlu0 %v6497, 64
    %v6500 = vpop.permute.xlu0 %6499
    %6502 = vst.msk [vmem:[#allocation4 + $0x9] sm:$0x1] %vm5350, %v6500
    %6503 = vrot.lane.b32.xlu0 %v6497, 96
    %v6504 = vpop.permute.xlu0 %6503
    %v6506 = vsel %vm3382, %v6500, %v6504
    %v6507 = vld [vmem:[%s14] sm:$0xff]
    %v6508 = vld [vmem:[%s14 + $0x8] sm:$0xff]
    %v6509 = vld [vmem:[%s14 + $0x10] sm:$0xff]
    %v6510 = vld [vmem:[%s14 + $0x18] sm:$0xff]
    %v6511 = vld [vmem:[%s14 + $0x20] sm:$0xff]
    %v6512 = vld [vmem:[%s14 + $0x28] sm:$0xff]
    %v6513 = vld [vmem:[%s14 + $0x30] sm:$0xff]
    %v6514 = vld [vmem:[%s14 + $0x38] sm:$0xff]
    %v6515 = vld [vmem:[%s15] sm:$0x1]
    %v6517 = vsel %vm5276, %v6506, 0
    %6519 = vmatprep.subr.mxu0 0.0
    %6520 = vmatpush1.msra.mxu0 %v6507
    %6521 = vmatprep.subr.mxu0 0.0
    %6522 = vmatpush1.msra.mxu0 %v6508
    %6523 = vmatprep.subr.mxu0 0.0
    %6524 = vmatpush1.msra.mxu0 %v6509
    %6525 = vmatprep.subr.mxu0 0.0
    %6526 = vmatpush1.msra.mxu0 %v6510
    %6527 = vmatprep.subr.mxu0 0.0
    %6528 = vmatpush1.msra.mxu0 %v6511
    %6529 = vmatprep.subr.mxu0 0.0
    %6530 = vmatpush1.msra.mxu0 %v6512
    %6531 = vmatprep.subr.mxu0 0.0
    %6532 = vmatpush1.msra.mxu0 %v6513
    %6533 = vmatprep.subr.mxu0 0.0
    %6534 = vmatpush1.msra.mxu0 %v6514
    %6535 = vmatprep.subr.mxu0 0.0
    %6536 = vmatpush1.msra.mxu0 0.0
    %6537 = vmatprep.subr.mxu0 0.0
    %6538 = vmatpush1.msra.mxu0 0.0
    %6539 = vmatprep.subr.mxu0 0.0
    %6540 = vmatpush1.msra.mxu0 0.0
    %6541 = vmatprep.subr.mxu0 0.0
    %6542 = vmatpush1.msra.mxu0 0.0
    %6543 = vmatprep.subr.mxu0 0.0
    %6544 = vmatpush1.msra.mxu0 0.0
    %6545 = vmatprep.subr.mxu0 0.0
    %6546 = vmatpush1.msra.mxu0 0.0
    %6547 = vmatprep.subr.mxu0 0.0
    %6548 = vmatpush1.msra.mxu0 0.0
    %6549 = vmatprep.subr.mxu0 0.0
    %6550 = vmatpush1.msra.mxu0 0.0
    %6551 = vmatprep.subr.mxu0 0.0
    %6552 = vmatpush1.msra.mxu0 0.0
    %6553 = vmatprep.subr.mxu0 0.0
    %6554 = vmatpush1.msra.mxu0 0.0
    %6555 = vmatprep.subr.mxu0 0.0
    %6556 = vmatpush1.msra.mxu0 0.0
    %6557 = vmatprep.subr.mxu0 0.0
    %6558 = vmatpush1.msra.mxu0 0.0
    %6559 = vmatprep.subr.mxu0 0.0
    %6560 = vmatpush1.msra.mxu0 0.0
    %6561 = vmatprep.subr.mxu0 0.0
    %6562 = vmatpush1.msra.mxu0 0.0
    %6563 = vmatprep.subr.mxu0 0.0
    %6564 = vmatpush1.msra.mxu0 0.0
    %6565 = vmatprep.subr.mxu0 0.0
    %6566 = vmatpush1.msra.mxu0 0.0
    %6567 = vmatprep.subr.mxu0 0.0
    %6568 = vmatpush1.msra.mxu0 0.0
    %6569 = vmatprep.subr.mxu0 0.0
    %6570 = vmatpush1.msra.mxu0 0.0
    %6571 = vmatprep.subr.mxu0 0.0
    %6572 = vmatpush1.msra.mxu0 0.0
    %6573 = vmatprep.subr.mxu0 0.0
    %6574 = vmatpush1.msra.mxu0 0.0
    %6575 = vmatprep.subr.mxu0 0.0
    %6576 = vmatpush1.msra.mxu0 0.0
    %6577 = vmatprep.subr.mxu0 0.0
    %6578 = vmatpush1.msra.mxu0 0.0
    %6579 = vmatprep.subr.mxu0 0.0
    %6580 = vmatpush1.msra.mxu0 0.0
    %6581 = vmatprep.subr.mxu0 0.0
    %6582 = vmatpush1.msra.mxu0 0.0
    %6583 = vmatprep.mubr.f32.mxu0 0.0
    %6584 = vmatmul.mubr.f32.gmra.mrb[0].mxu0 %v6517
    %v6585 = vpop.f32.mrb[0].mxu0
    %v6586 = vadd.f32 %v6515, %v6585
    %v6587 = vpop.f32.mrb[0].mxu0
    %6588 = vdwg.mxu0
    %v6589 = vxor.u32 %v6586, 2147483648
    %v6590 = vmul.f32 %v6589, 1.442695
    %v6591 = vpow.pop %v6590
    %v6592 = vadd.f32 %v6591, 1.0
    %v6593 = vrcp.pop %v6592
    %v6594 = vmul.f32 1.0, %v6593
    %v6595 = vtanh.pop %v6586
    %v6596 = vmul.f32 %v6594, %v6491
    %6598 = vrot.lane.b32.xlu0 %v6595, 32
    %v6599 = vpop.permute.xlu0 %6598
    %v6601 = vmul.f32 %v6594, %v6599
    %6603 = vrot.lane.b32.xlu0 %v6601, 32
    %v6604 = vpop.permute.xlu0 %6603
    %v6606 = vadd.f32 %v6596, %v6604
    %v6607 = vtanh.pop %v6606
    %6609 = vrot.lane.b32.xlu0 %v6607, 32
    %v6610 = vpop.permute.xlu0 %6609
    %v6612 = vmul.f32 %v6594, %v6610
    %6614 = vrot.lane.b32.xlu0 %v6612, 64
    %v6615 = vpop.permute.xlu0 %6614
    %6617 = vst.msk [vmem:[#allocation4 + $0xa] sm:$0x1] %vm5350, %v6615
    %6618 = vrot.lane.b32.xlu0 %v6612, 96
    %v6619 = vpop.permute.xlu0 %6618
    %v6621 = vsel %vm3382, %v6615, %v6619
    %v6622 = vld [vmem:[%s14] sm:$0xff]
    %v6623 = vld [vmem:[%s14 + $0x8] sm:$0xff]
    %v6624 = vld [vmem:[%s14 + $0x10] sm:$0xff]
    %v6625 = vld [vmem:[%s14 + $0x18] sm:$0xff]
    %v6626 = vld [vmem:[%s14 + $0x20] sm:$0xff]
    %v6627 = vld [vmem:[%s14 + $0x28] sm:$0xff]
    %v6628 = vld [vmem:[%s14 + $0x30] sm:$0xff]
    %v6629 = vld [vmem:[%s14 + $0x38] sm:$0xff]
    %v6630 = vld [vmem:[%s15] sm:$0x1]
    %v6632 = vsel %vm5276, %v6621, 0
    %6634 = vmatprep.subr.mxu0 0.0
    %6635 = vmatpush1.msra.mxu0 %v6622
    %6636 = vmatprep.subr.mxu0 0.0
    %6637 = vmatpush1.msra.mxu0 %v6623
    %6638 = vmatprep.subr.mxu0 0.0
    %6639 = vmatpush1.msra.mxu0 %v6624
    %6640 = vmatprep.subr.mxu0 0.0
    %6641 = vmatpush1.msra.mxu0 %v6625
    %6642 = vmatprep.subr.mxu0 0.0
    %6643 = vmatpush1.msra.mxu0 %v6626
    %6644 = vmatprep.subr.mxu0 0.0
    %6645 = vmatpush1.msra.mxu0 %v6627
    %6646 = vmatprep.subr.mxu0 0.0
    %6647 = vmatpush1.msra.mxu0 %v6628
    %6648 = vmatprep.subr.mxu0 0.0
    %6649 = vmatpush1.msra.mxu0 %v6629
    %6650 = vmatprep.subr.mxu0 0.0
    %6651 = vmatpush1.msra.mxu0 0.0
    %6652 = vmatprep.subr.mxu0 0.0
    %6653 = vmatpush1.msra.mxu0 0.0
    %6654 = vmatprep.subr.mxu0 0.0
    %6655 = vmatpush1.msra.mxu0 0.0
    %6656 = vmatprep.subr.mxu0 0.0
    %6657 = vmatpush1.msra.mxu0 0.0
    %6658 = vmatprep.subr.mxu0 0.0
    %6659 = vmatpush1.msra.mxu0 0.0
    %6660 = vmatprep.subr.mxu0 0.0
    %6661 = vmatpush1.msra.mxu0 0.0
    %6662 = vmatprep.subr.mxu0 0.0
    %6663 = vmatpush1.msra.mxu0 0.0
    %6664 = vmatprep.subr.mxu0 0.0
    %6665 = vmatpush1.msra.mxu0 0.0
    %6666 = vmatprep.subr.mxu0 0.0
    %6667 = vmatpush1.msra.mxu0 0.0
    %6668 = vmatprep.subr.mxu0 0.0
    %6669 = vmatpush1.msra.mxu0 0.0
    %6670 = vmatprep.subr.mxu0 0.0
    %6671 = vmatpush1.msra.mxu0 0.0
    %6672 = vmatprep.subr.mxu0 0.0
    %6673 = vmatpush1.msra.mxu0 0.0
    %6674 = vmatprep.subr.mxu0 0.0
    %6675 = vmatpush1.msra.mxu0 0.0
    %6676 = vmatprep.subr.mxu0 0.0
    %6677 = vmatpush1.msra.mxu0 0.0
    %6678 = vmatprep.subr.mxu0 0.0
    %6679 = vmatpush1.msra.mxu0 0.0
    %6680 = vmatprep.subr.mxu0 0.0
    %6681 = vmatpush1.msra.mxu0 0.0
    %6682 = vmatprep.subr.mxu0 0.0
    %6683 = vmatpush1.msra.mxu0 0.0
    %6684 = vmatprep.subr.mxu0 0.0
    %6685 = vmatpush1.msra.mxu0 0.0
    %6686 = vmatprep.subr.mxu0 0.0
    %6687 = vmatpush1.msra.mxu0 0.0
    %6688 = vmatprep.subr.mxu0 0.0
    %6689 = vmatpush1.msra.mxu0 0.0
    %6690 = vmatprep.subr.mxu0 0.0
    %6691 = vmatpush1.msra.mxu0 0.0
    %6692 = vmatprep.subr.mxu0 0.0
    %6693 = vmatpush1.msra.mxu0 0.0
    %6694 = vmatprep.subr.mxu0 0.0
    %6695 = vmatpush1.msra.mxu0 0.0
    %6696 = vmatprep.subr.mxu0 0.0
    %6697 = vmatpush1.msra.mxu0 0.0
    %6698 = vmatprep.mubr.f32.mxu0 0.0
    %6699 = vmatmul.mubr.f32.gmra.mrb[0].mxu0 %v6632
    %v6700 = vpop.f32.mrb[0].mxu0
    %v6701 = vadd.f32 %v6630, %v6700
    %v6702 = vpop.f32.mrb[0].mxu0
    %6703 = vdwg.mxu0
    %v6704 = vxor.u32 %v6701, 2147483648
    %v6705 = vmul.f32 %v6704, 1.442695
    %v6706 = vpow.pop %v6705
    %v6707 = vadd.f32 %v6706, 1.0
    %v6708 = vrcp.pop %v6707
    %v6709 = vmul.f32 1.0, %v6708
    %v6710 = vtanh.pop %v6701
    %v6711 = vmul.f32 %v6709, %v6606
    %6713 = vrot.lane.b32.xlu0 %v6710, 32
    %v6714 = vpop.permute.xlu0 %6713
    %v6716 = vmul.f32 %v6709, %v6714
    %6718 = vrot.lane.b32.xlu0 %v6716, 32
    %v6719 = vpop.permute.xlu0 %6718
    %v6721 = vadd.f32 %v6711, %v6719
    %v6722 = vtanh.pop %v6721
    %6724 = vrot.lane.b32.xlu0 %v6722, 32
    %v6725 = vpop.permute.xlu0 %6724
    %v6727 = vmul.f32 %v6709, %v6725
    %6729 = vrot.lane.b32.xlu0 %v6727, 64
    %v6730 = vpop.permute.xlu0 %6729
    %6732 = vst.msk [vmem:[#allocation4 + $0xb] sm:$0x1] %vm5350, %v6730
    %6733 = vrot.lane.b32.xlu0 %v6727, 96
    %v6734 = vpop.permute.xlu0 %6733
    %v6736 = vsel %vm3382, %v6730, %v6734
    %v6737 = vld [vmem:[%s14] sm:$0xff]
    %v6738 = vld [vmem:[%s14 + $0x8] sm:$0xff]
    %v6739 = vld [vmem:[%s14 + $0x10] sm:$0xff]
    %v6740 = vld [vmem:[%s14 + $0x18] sm:$0xff]
    %v6741 = vld [vmem:[%s14 + $0x20] sm:$0xff]
    %v6742 = vld [vmem:[%s14 + $0x28] sm:$0xff]
    %v6743 = vld [vmem:[%s14 + $0x30] sm:$0xff]
    %v6744 = vld [vmem:[%s14 + $0x38] sm:$0xff]
    %v6745 = vld [vmem:[%s15] sm:$0x1]
    %v6747 = vsel %vm5276, %v6736, 0
    %6749 = vmatprep.subr.mxu0 0.0
    %6750 = vmatpush1.msra.mxu0 %v6737
    %6751 = vmatprep.subr.mxu0 0.0
    %6752 = vmatpush1.msra.mxu0 %v6738
    %6753 = vmatprep.subr.mxu0 0.0
    %6754 = vmatpush1.msra.mxu0 %v6739
    %6755 = vmatprep.subr.mxu0 0.0
    %6756 = vmatpush1.msra.mxu0 %v6740
    %6757 = vmatprep.subr.mxu0 0.0
    %6758 = vmatpush1.msra.mxu0 %v6741
    %6759 = vmatprep.subr.mxu0 0.0
    %6760 = vmatpush1.msra.mxu0 %v6742
    %6761 = vmatprep.subr.mxu0 0.0
    %6762 = vmatpush1.msra.mxu0 %v6743
    %6763 = vmatprep.subr.mxu0 0.0
    %6764 = vmatpush1.msra.mxu0 %v6744
    %6765 = vmatprep.subr.mxu0 0.0
    %6766 = vmatpush1.msra.mxu0 0.0
    %6767 = vmatprep.subr.mxu0 0.0
    %6768 = vmatpush1.msra.mxu0 0.0
    %6769 = vmatprep.subr.mxu0 0.0
    %6770 = vmatpush1.msra.mxu0 0.0
    %6771 = vmatprep.subr.mxu0 0.0
    %6772 = vmatpush1.msra.mxu0 0.0
    %6773 = vmatprep.subr.mxu0 0.0
    %6774 = vmatpush1.msra.mxu0 0.0
    %6775 = vmatprep.subr.mxu0 0.0
    %6776 = vmatpush1.msra.mxu0 0.0
    %6777 = vmatprep.subr.mxu0 0.0
    %6778 = vmatpush1.msra.mxu0 0.0
    %6779 = vmatprep.subr.mxu0 0.0
    %6780 = vmatpush1.msra.mxu0 0.0
    %6781 = vmatprep.subr.mxu0 0.0
    %6782 = vmatpush1.msra.mxu0 0.0
    %6783 = vmatprep.subr.mxu0 0.0
    %6784 = vmatpush1.msra.mxu0 0.0
    %6785 = vmatprep.subr.mxu0 0.0
    %6786 = vmatpush1.msra.mxu0 0.0
    %6787 = vmatprep.subr.mxu0 0.0
    %6788 = vmatpush1.msra.mxu0 0.0
    %6789 = vmatprep.subr.mxu0 0.0
    %6790 = vmatpush1.msra.mxu0 0.0
    %6791 = vmatprep.subr.mxu0 0.0
    %6792 = vmatpush1.msra.mxu0 0.0
    %6793 = vmatprep.subr.mxu0 0.0
    %6794 = vmatpush1.msra.mxu0 0.0
    %6795 = vmatprep.subr.mxu0 0.0
    %6796 = vmatpush1.msra.mxu0 0.0
    %6797 = vmatprep.subr.mxu0 0.0
    %6798 = vmatpush1.msra.mxu0 0.0
    %6799 = vmatprep.subr.mxu0 0.0
    %6800 = vmatpush1.msra.mxu0 0.0
    %6801 = vmatprep.subr.mxu0 0.0
    %6802 = vmatpush1.msra.mxu0 0.0
    %6803 = vmatprep.subr.mxu0 0.0
    %6804 = vmatpush1.msra.mxu0 0.0
    %6805 = vmatprep.subr.mxu0 0.0
    %6806 = vmatpush1.msra.mxu0 0.0
    %6807 = vmatprep.subr.mxu0 0.0
    %6808 = vmatpush1.msra.mxu0 0.0
    %6809 = vmatprep.subr.mxu0 0.0
    %6810 = vmatpush1.msra.mxu0 0.0
    %6811 = vmatprep.subr.mxu0 0.0
    %6812 = vmatpush1.msra.mxu0 0.0
    %6813 = vmatprep.mubr.f32.mxu0 0.0
    %6814 = vmatmul.mubr.f32.gmra.mrb[0].mxu0 %v6747
    %v6815 = vpop.f32.mrb[0].mxu0
    %v6816 = vadd.f32 %v6745, %v6815
    %v6817 = vpop.f32.mrb[0].mxu0
    %6818 = vdwg.mxu0
    %v6819 = vxor.u32 %v6816, 2147483648
    %v6820 = vmul.f32 %v6819, 1.442695
    %v6821 = vpow.pop %v6820
    %v6822 = vadd.f32 %v6821, 1.0
    %v6823 = vrcp.pop %v6822
    %v6824 = vmul.f32 1.0, %v6823
    %v6825 = vtanh.pop %v6816
    %v6826 = vmul.f32 %v6824, %v6721
    %6828 = vrot.lane.b32.xlu0 %v6825, 32
    %v6829 = vpop.permute.xlu0 %6828
    %v6831 = vmul.f32 %v6824, %v6829
    %6833 = vrot.lane.b32.xlu0 %v6831, 32
    %v6834 = vpop.permute.xlu0 %6833
    %v6836 = vadd.f32 %v6826, %v6834
    %v6837 = vtanh.pop %v6836
    %6839 = vrot.lane.b32.xlu0 %v6837, 32
    %v6840 = vpop.permute.xlu0 %6839
    %v6842 = vmul.f32 %v6824, %v6840
    %6844 = vrot.lane.b32.xlu0 %v6842, 64
    %v6845 = vpop.permute.xlu0 %6844
    %6847 = vst.msk [vmem:[#allocation4 + $0xc] sm:$0x1] %vm5350, %v6845
    %6848 = vrot.lane.b32.xlu0 %v6842, 96
    %v6849 = vpop.permute.xlu0 %6848
    %v6851 = vsel %vm3382, %v6845, %v6849
    %v6852 = vld [vmem:[%s14] sm:$0xff]
    %v6853 = vld [vmem:[%s14 + $0x8] sm:$0xff]
    %v6854 = vld [vmem:[%s14 + $0x10] sm:$0xff]
    %v6855 = vld [vmem:[%s14 + $0x18] sm:$0xff]
    %v6856 = vld [vmem:[%s14 + $0x20] sm:$0xff]
    %v6857 = vld [vmem:[%s14 + $0x28] sm:$0xff]
    %v6858 = vld [vmem:[%s14 + $0x30] sm:$0xff]
    %v6859 = vld [vmem:[%s14 + $0x38] sm:$0xff]
    %v6860 = vld [vmem:[%s15] sm:$0x1]
    %v6862 = vsel %vm5276, %v6851, 0
    %6864 = vmatprep.subr.mxu0 0.0
    %6865 = vmatpush1.msra.mxu0 %v6852
    %6866 = vmatprep.subr.mxu0 0.0
    %6867 = vmatpush1.msra.mxu0 %v6853
    %6868 = vmatprep.subr.mxu0 0.0
    %6869 = vmatpush1.msra.mxu0 %v6854
    %6870 = vmatprep.subr.mxu0 0.0
    %6871 = vmatpush1.msra.mxu0 %v6855
    %6872 = vmatprep.subr.mxu0 0.0
    %6873 = vmatpush1.msra.mxu0 %v6856
    %6874 = vmatprep.subr.mxu0 0.0
    %6875 = vmatpush1.msra.mxu0 %v6857
    %6876 = vmatprep.subr.mxu0 0.0
    %6877 = vmatpush1.msra.mxu0 %v6858
    %6878 = vmatprep.subr.mxu0 0.0
    %6879 = vmatpush1.msra.mxu0 %v6859
    %6880 = vmatprep.subr.mxu0 0.0
    %6881 = vmatpush1.msra.mxu0 0.0
    %6882 = vmatprep.subr.mxu0 0.0
    %6883 = vmatpush1.msra.mxu0 0.0
    %6884 = vmatprep.subr.mxu0 0.0
    %6885 = vmatpush1.msra.mxu0 0.0
    %6886 = vmatprep.subr.mxu0 0.0
    %6887 = vmatpush1.msra.mxu0 0.0
    %6888 = vmatprep.subr.mxu0 0.0
    %6889 = vmatpush1.msra.mxu0 0.0
    %6890 = vmatprep.subr.mxu0 0.0
    %6891 = vmatpush1.msra.mxu0 0.0
    %6892 = vmatprep.subr.mxu0 0.0
    %6893 = vmatpush1.msra.mxu0 0.0
    %6894 = vmatprep.subr.mxu0 0.0
    %6895 = vmatpush1.msra.mxu0 0.0
    %6896 = vmatprep.subr.mxu0 0.0
    %6897 = vmatpush1.msra.mxu0 0.0
    %6898 = vmatprep.subr.mxu0 0.0
    %6899 = vmatpush1.msra.mxu0 0.0
    %6900 = vmatprep.subr.mxu0 0.0
    %6901 = vmatpush1.msra.mxu0 0.0
    %6902 = vmatprep.subr.mxu0 0.0
    %6903 = vmatpush1.msra.mxu0 0.0
    %6904 = vmatprep.subr.mxu0 0.0
    %6905 = vmatpush1.msra.mxu0 0.0
    %6906 = vmatprep.subr.mxu0 0.0
    %6907 = vmatpush1.msra.mxu0 0.0
    %6908 = vmatprep.subr.mxu0 0.0
    %6909 = vmatpush1.msra.mxu0 0.0
    %6910 = vmatprep.subr.mxu0 0.0
    %6911 = vmatpush1.msra.mxu0 0.0
    %6912 = vmatprep.subr.mxu0 0.0
    %6913 = vmatpush1.msra.mxu0 0.0
    %6914 = vmatprep.subr.mxu0 0.0
    %6915 = vmatpush1.msra.mxu0 0.0
    %6916 = vmatprep.subr.mxu0 0.0
    %6917 = vmatpush1.msra.mxu0 0.0
    %6918 = vmatprep.subr.mxu0 0.0
    %6919 = vmatpush1.msra.mxu0 0.0
    %6920 = vmatprep.subr.mxu0 0.0
    %6921 = vmatpush1.msra.mxu0 0.0
    %6922 = vmatprep.subr.mxu0 0.0
    %6923 = vmatpush1.msra.mxu0 0.0
    %6924 = vmatprep.subr.mxu0 0.0
    %6925 = vmatpush1.msra.mxu0 0.0
    %6926 = vmatprep.subr.mxu0 0.0
    %6927 = vmatpush1.msra.mxu0 0.0
    %6928 = vmatprep.mubr.f32.mxu0 0.0
    %6929 = vmatmul.mubr.f32.gmra.mrb[0].mxu0 %v6862
    %v6930 = vpop.f32.mrb[0].mxu0
    %v6931 = vadd.f32 %v6860, %v6930
    %v6932 = vpop.f32.mrb[0].mxu0
    %6933 = vdwg.mxu0
    %v6934 = vxor.u32 %v6931, 2147483648
    %v6935 = vmul.f32 %v6934, 1.442695
    %v6936 = vpow.pop %v6935
    %v6937 = vadd.f32 %v6936, 1.0
    %v6938 = vrcp.pop %v6937
    %v6939 = vmul.f32 1.0, %v6938
    %v6940 = vtanh.pop %v6931
    %v6941 = vmul.f32 %v6939, %v6836
    %6943 = vrot.lane.b32.xlu0 %v6940, 32
    %v6944 = vpop.permute.xlu0 %6943
    %v6946 = vmul.f32 %v6939, %v6944
    %6948 = vrot.lane.b32.xlu0 %v6946, 32
    %v6949 = vpop.permute.xlu0 %6948
    %v6951 = vadd.f32 %v6941, %v6949
    %v6952 = vtanh.pop %v6951
    %6954 = vrot.lane.b32.xlu0 %v6952, 32
    %v6955 = vpop.permute.xlu0 %6954
    %v6957 = vmul.f32 %v6939, %v6955
    %6959 = vrot.lane.b32.xlu0 %v6957, 64
    %v6960 = vpop.permute.xlu0 %6959
    %6962 = vst.msk [vmem:[#allocation4 + $0xd] sm:$0x1] %vm5350, %v6960
    %6963 = vrot.lane.b32.xlu0 %v6957, 96
    %v6964 = vpop.permute.xlu0 %6963
    %v6966 = vsel %vm3382, %v6960, %v6964
    %v6967 = vld [vmem:[%s14] sm:$0xff]
    %v6968 = vld [vmem:[%s14 + $0x8] sm:$0xff]
    %v6969 = vld [vmem:[%s14 + $0x10] sm:$0xff]
    %v6970 = vld [vmem:[%s14 + $0x18] sm:$0xff]
    %v6971 = vld [vmem:[%s14 + $0x20] sm:$0xff]
    %v6972 = vld [vmem:[%s14 + $0x28] sm:$0xff]
    %v6973 = vld [vmem:[%s14 + $0x30] sm:$0xff]
    %v6974 = vld [vmem:[%s14 + $0x38] sm:$0xff]
    %v6975 = vld [vmem:[%s15] sm:$0x1]
    %v6977 = vsel %vm5276, %v6966, 0
    %6979 = vmatprep.subr.mxu0 0.0
    %6980 = vmatpush1.msra.mxu0 %v6967
    %6981 = vmatprep.subr.mxu0 0.0
    %6982 = vmatpush1.msra.mxu0 %v6968
    %6983 = vmatprep.subr.mxu0 0.0
    %6984 = vmatpush1.msra.mxu0 %v6969
    %6985 = vmatprep.subr.mxu0 0.0
    %6986 = vmatpush1.msra.mxu0 %v6970
    %6987 = vmatprep.subr.mxu0 0.0
    %6988 = vmatpush1.msra.mxu0 %v6971
    %6989 = vmatprep.subr.mxu0 0.0
    %6990 = vmatpush1.msra.mxu0 %v6972
    %6991 = vmatprep.subr.mxu0 0.0
    %6992 = vmatpush1.msra.mxu0 %v6973
    %6993 = vmatprep.subr.mxu0 0.0
    %6994 = vmatpush1.msra.mxu0 %v6974
    %6995 = vmatprep.subr.mxu0 0.0
    %6996 = vmatpush1.msra.mxu0 0.0
    %6997 = vmatprep.subr.mxu0 0.0
    %6998 = vmatpush1.msra.mxu0 0.0
    %6999 = vmatprep.subr.mxu0 0.0
    %7000 = vmatpush1.msra.mxu0 0.0
    %7001 = vmatprep.subr.mxu0 0.0
    %7002 = vmatpush1.msra.mxu0 0.0
    %7003 = vmatprep.subr.mxu0 0.0
    %7004 = vmatpush1.msra.mxu0 0.0
    %7005 = vmatprep.subr.mxu0 0.0
    %7006 = vmatpush1.msra.mxu0 0.0
    %7007 = vmatprep.subr.mxu0 0.0
    %7008 = vmatpush1.msra.mxu0 0.0
    %7009 = vmatprep.subr.mxu0 0.0
    %7010 = vmatpush1.msra.mxu0 0.0
    %7011 = vmatprep.subr.mxu0 0.0
    %7012 = vmatpush1.msra.mxu0 0.0
    %7013 = vmatprep.subr.mxu0 0.0
    %7014 = vmatpush1.msra.mxu0 0.0
    %7015 = vmatprep.subr.mxu0 0.0
    %7016 = vmatpush1.msra.mxu0 0.0
    %7017 = vmatprep.subr.mxu0 0.0
    %7018 = vmatpush1.msra.mxu0 0.0
    %7019 = vmatprep.subr.mxu0 0.0
    %7020 = vmatpush1.msra.mxu0 0.0
    %7021 = vmatprep.subr.mxu0 0.0
    %7022 = vmatpush1.msra.mxu0 0.0
    %7023 = vmatprep.subr.mxu0 0.0
    %7024 = vmatpush1.msra.mxu0 0.0
    %7025 = vmatprep.subr.mxu0 0.0
    %7026 = vmatpush1.msra.mxu0 0.0
    %7027 = vmatprep.subr.mxu0 0.0
    %7028 = vmatpush1.msra.mxu0 0.0
    %7029 = vmatprep.subr.mxu0 0.0
    %7030 = vmatpush1.msra.mxu0 0.0
    %7031 = vmatprep.subr.mxu0 0.0
    %7032 = vmatpush1.msra.mxu0 0.0
    %7033 = vmatprep.subr.mxu0 0.0
    %7034 = vmatpush1.msra.mxu0 0.0
    %7035 = vmatprep.subr.mxu0 0.0
    %7036 = vmatpush1.msra.mxu0 0.0
    %7037 = vmatprep.subr.mxu0 0.0
    %7038 = vmatpush1.msra.mxu0 0.0
    %7039 = vmatprep.subr.mxu0 0.0
    %7040 = vmatpush1.msra.mxu0 0.0
    %7041 = vmatprep.subr.mxu0 0.0
    %7042 = vmatpush1.msra.mxu0 0.0
    %7043 = vmatprep.mubr.f32.mxu0 0.0
    %7044 = vmatmul.mubr.f32.gmra.mrb[0].mxu0 %v6977
    %v7045 = vpop.f32.mrb[0].mxu0
    %v7046 = vadd.f32 %v6975, %v7045
    %v7047 = vpop.f32.mrb[0].mxu0
    %7048 = vdwg.mxu0
    %v7049 = vxor.u32 %v7046, 2147483648
    %v7050 = vmul.f32 %v7049, 1.442695
    %v7051 = vpow.pop %v7050
    %v7052 = vadd.f32 %v7051, 1.0
    %v7053 = vrcp.pop %v7052
    %v7054 = vmul.f32 1.0, %v7053
    %v7055 = vtanh.pop %v7046
    %v7056 = vmul.f32 %v7054, %v6951
    %7058 = vrot.lane.b32.xlu0 %v7055, 32
    %v7059 = vpop.permute.xlu0 %7058
    %v7061 = vmul.f32 %v7054, %v7059
    %7063 = vrot.lane.b32.xlu0 %v7061, 32
    %v7064 = vpop.permute.xlu0 %7063
    %v7066 = vadd.f32 %v7056, %v7064
    %v7067 = vtanh.pop %v7066
    %7069 = vrot.lane.b32.xlu0 %v7067, 32
    %v7070 = vpop.permute.xlu0 %7069
    %v7072 = vmul.f32 %v7054, %v7070
    %7074 = vrot.lane.b32.xlu0 %v7072, 64
    %v7075 = vpop.permute.xlu0 %7074
    %7077 = vst.msk [vmem:[#allocation4 + $0xe] sm:$0x1] %vm5350, %v7075
    %7078 = vrot.lane.b32.xlu0 %v7072, 96
    %v7079 = vpop.permute.xlu0 %7078
    %v7081 = vsel %vm3382, %v7075, %v7079
    %v7082 = vld [vmem:[%s14] sm:$0xff]
    %v7083 = vld [vmem:[%s14 + $0x8] sm:$0xff]
    %v7084 = vld [vmem:[%s14 + $0x10] sm:$0xff]
    %v7085 = vld [vmem:[%s14 + $0x18] sm:$0xff]
    %v7086 = vld [vmem:[%s14 + $0x20] sm:$0xff]
    %v7087 = vld [vmem:[%s14 + $0x28] sm:$0xff]
    %v7088 = vld [vmem:[%s14 + $0x30] sm:$0xff]
    %v7089 = vld [vmem:[%s14 + $0x38] sm:$0xff]
    %v7090 = vld [vmem:[%s15] sm:$0x1]
    %v7092 = vsel %vm5276, %v7081, 0
    %7094 = vmatprep.subr.mxu0 0.0
    %7095 = vmatpush1.msra.mxu0 %v7082
    %7096 = vmatprep.subr.mxu0 0.0
    %7097 = vmatpush1.msra.mxu0 %v7083
    %7098 = vmatprep.subr.mxu0 0.0
    %7099 = vmatpush1.msra.mxu0 %v7084
    %7100 = vmatprep.subr.mxu0 0.0
    %7101 = vmatpush1.msra.mxu0 %v7085
    %7102 = vmatprep.subr.mxu0 0.0
    %7103 = vmatpush1.msra.mxu0 %v7086
    %7104 = vmatprep.subr.mxu0 0.0
    %7105 = vmatpush1.msra.mxu0 %v7087
    %7106 = vmatprep.subr.mxu0 0.0
    %7107 = vmatpush1.msra.mxu0 %v7088
    %7108 = vmatprep.subr.mxu0 0.0
    %7109 = vmatpush1.msra.mxu0 %v7089
    %7110 = vmatprep.subr.mxu0 0.0
    %7111 = vmatpush1.msra.mxu0 0.0
    %7112 = vmatprep.subr.mxu0 0.0
    %7113 = vmatpush1.msra.mxu0 0.0
    %7114 = vmatprep.subr.mxu0 0.0
    %7115 = vmatpush1.msra.mxu0 0.0
    %7116 = vmatprep.subr.mxu0 0.0
    %7117 = vmatpush1.msra.mxu0 0.0
    %7118 = vmatprep.subr.mxu0 0.0
    %7119 = vmatpush1.msra.mxu0 0.0
    %7120 = vmatprep.subr.mxu0 0.0
    %7121 = vmatpush1.msra.mxu0 0.0
    %7122 = vmatprep.subr.mxu0 0.0
    %7123 = vmatpush1.msra.mxu0 0.0
    %7124 = vmatprep.subr.mxu0 0.0
    %7125 = vmatpush1.msra.mxu0 0.0
    %7126 = vmatprep.subr.mxu0 0.0
    %7127 = vmatpush1.msra.mxu0 0.0
    %7128 = vmatprep.subr.mxu0 0.0
    %7129 = vmatpush1.msra.mxu0 0.0
    %7130 = vmatprep.subr.mxu0 0.0
    %7131 = vmatpush1.msra.mxu0 0.0
    %7132 = vmatprep.subr.mxu0 0.0
    %7133 = vmatpush1.msra.mxu0 0.0
    %7134 = vmatprep.subr.mxu0 0.0
    %7135 = vmatpush1.msra.mxu0 0.0
    %7136 = vmatprep.subr.mxu0 0.0
    %7137 = vmatpush1.msra.mxu0 0.0
    %7138 = vmatprep.subr.mxu0 0.0
    %7139 = vmatpush1.msra.mxu0 0.0
    %7140 = vmatprep.subr.mxu0 0.0
    %7141 = vmatpush1.msra.mxu0 0.0
    %7142 = vmatprep.subr.mxu0 0.0
    %7143 = vmatpush1.msra.mxu0 0.0
    %7144 = vmatprep.subr.mxu0 0.0
    %7145 = vmatpush1.msra.mxu0 0.0
    %7146 = vmatprep.subr.mxu0 0.0
    %7147 = vmatpush1.msra.mxu0 0.0
    %7148 = vmatprep.subr.mxu0 0.0
    %7149 = vmatpush1.msra.mxu0 0.0
    %7150 = vmatprep.subr.mxu0 0.0
    %7151 = vmatpush1.msra.mxu0 0.0
    %7152 = vmatprep.subr.mxu0 0.0
    %7153 = vmatpush1.msra.mxu0 0.0
    %7154 = vmatprep.subr.mxu0 0.0
    %7155 = vmatpush1.msra.mxu0 0.0
    %7156 = vmatprep.subr.mxu0 0.0
    %7157 = vmatpush1.msra.mxu0 0.0
    %7158 = vmatprep.mubr.f32.mxu0 0.0
    %7159 = vmatmul.mubr.f32.gmra.mrb[0].mxu0 %v7092
    %v7160 = vpop.f32.mrb[0].mxu0
    %v7161 = vadd.f32 %v7090, %v7160
    %v7162 = vpop.f32.mrb[0].mxu0
    %7163 = vdwg.mxu0
    %v7164 = vxor.u32 %v7161, 2147483648
    %v7165 = vmul.f32 %v7164, 1.442695
    %v7166 = vpow.pop %v7165
    %v7167 = vadd.f32 %v7166, 1.0
    %v7168 = vrcp.pop %v7167
    %v7169 = vmul.f32 1.0, %v7168
    %v7170 = vtanh.pop %v7161
    %v7171 = vmul.f32 %v7169, %v7066
    %7173 = vrot.lane.b32.xlu0 %v7170, 32
    %v7174 = vpop.permute.xlu0 %7173
    %v7176 = vmul.f32 %v7169, %v7174
    %7178 = vrot.lane.b32.xlu0 %v7176, 32
    %v7179 = vpop.permute.xlu0 %7178
    %v7181 = vadd.f32 %v7171, %v7179
    %v7182 = vtanh.pop %v7181
    %7184 = vrot.lane.b32.xlu0 %v7182, 32
    %v7185 = vpop.permute.xlu0 %7184
    %v7187 = vmul.f32 %v7169, %v7185
    %7189 = vrot.lane.b32.xlu0 %v7187, 64
    %v7190 = vpop.permute.xlu0 %7189
    %7192 = vst.msk [vmem:[#allocation4 + $0xf] sm:$0x1] %vm5350, %v7190
    %v7193 = vld [vmem:[#allocation4] sm:$0xff]
    %v7194 = vld [vmem:[#allocation4 + $0x8] sm:$0xff]
    %v7195 = vld [vmem:[%s16] sm:$0xff]
    %v7196 = vld [vmem:[%s16 + $0x8] sm:$0xff]
    %v7197 = vld [vmem:[%s16 + $0x10] sm:$0xff]
    %v7198 = vld [vmem:[%s16 + $0x18] sm:$0xff]
    %v7199 = vld [vmem:[%s17] sm:$0x1]
    %v7201 = vlaneseq
    %v7202 = vshrl.u32 %v7201, 7
    %v7203 = vsub.s32 0, %v7202
    %v7204 = vrot.slane %v7199, %v7203
    %v7207 = vsel %vm3382, %v7193, 0
    %v7210 = vsel %vm3382, %v7194, 0
    %7212 = vmatprep.subr.mxu0 0.0
    %7213 = vmatpush1.msra.mxu0 %v7195
    %7214 = vmatprep.subr.mxu0 0.0
    %7215 = vmatpush1.msra.mxu0 %v7196
    %7216 = vmatprep.subr.mxu0 0.0
    %7217 = vmatpush1.msra.mxu0 %v7197
    %7218 = vmatprep.subr.mxu0 0.0
    %7219 = vmatpush1.msra.mxu0 %v7198
    %7220 = vmatprep.subr.mxu0 0.0
    %7221 = vmatpush1.msra.mxu0 0.0
    %7222 = vmatprep.subr.mxu0 0.0
    %7223 = vmatpush1.msra.mxu0 0.0
    %7224 = vmatprep.subr.mxu0 0.0
    %7225 = vmatpush1.msra.mxu0 0.0
    %7226 = vmatprep.subr.mxu0 0.0
    %7227 = vmatpush1.msra.mxu0 0.0
    %7228 = vmatprep.subr.mxu0 0.0
    %7229 = vmatpush1.msra.mxu0 0.0
    %7230 = vmatprep.subr.mxu0 0.0
    %7231 = vmatpush1.msra.mxu0 0.0
    %7232 = vmatprep.subr.mxu0 0.0
    %7233 = vmatpush1.msra.mxu0 0.0
    %7234 = vmatprep.subr.mxu0 0.0
    %7235 = vmatpush1.msra.mxu0 0.0
    %7236 = vmatprep.subr.mxu0 0.0
    %7237 = vmatpush1.msra.mxu0 0.0
    %7238 = vmatprep.subr.mxu0 0.0
    %7239 = vmatpush1.msra.mxu0 0.0
    %7240 = vmatprep.subr.mxu0 0.0
    %7241 = vmatpush1.msra.mxu0 0.0
    %7242 = vmatprep.subr.mxu0 0.0
    %7243 = vmatpush1.msra.mxu0 0.0
    %7244 = vmatprep.subr.mxu0 0.0
    %7245 = vmatpush1.msra.mxu0 0.0
    %7246 = vmatprep.subr.mxu0 0.0
    %7247 = vmatpush1.msra.mxu0 0.0
    %7248 = vmatprep.subr.mxu0 0.0
    %7249 = vmatpush1.msra.mxu0 0.0
    %7250 = vmatprep.subr.mxu0 0.0
    %7251 = vmatpush1.msra.mxu0 0.0
    %7252 = vmatprep.subr.mxu0 0.0
    %7253 = vmatpush1.msra.mxu0 0.0
    %7254 = vmatprep.subr.mxu0 0.0
    %7255 = vmatpush1.msra.mxu0 0.0
    %7256 = vmatprep.subr.mxu0 0.0
    %7257 = vmatpush1.msra.mxu0 0.0
    %7258 = vmatprep.subr.mxu0 0.0
    %7259 = vmatpush1.msra.mxu0 0.0
    %7260 = vmatprep.subr.mxu0 0.0
    %7261 = vmatpush1.msra.mxu0 0.0
    %7262 = vmatprep.subr.mxu0 0.0
    %7263 = vmatpush1.msra.mxu0 0.0
    %7264 = vmatprep.subr.mxu0 0.0
    %7265 = vmatpush1.msra.mxu0 0.0
    %7266 = vmatprep.subr.mxu0 0.0
    %7267 = vmatpush1.msra.mxu0 0.0
    %7268 = vmatprep.subr.mxu0 0.0
    %7269 = vmatpush1.msra.mxu0 0.0
    %7270 = vmatprep.subr.mxu0 0.0
    %7271 = vmatpush1.msra.mxu0 0.0
    %7272 = vmatprep.subr.mxu0 0.0
    %7273 = vmatpush1.msra.mxu0 0.0
    %7274 = vmatprep.subr.mxu0 0.0
    %7275 = vmatpush1.msra.mxu0 0.0
    %7276 = vmatprep.mubr.f32.mxu0 0.0
    %7277 = vmatmul.mubr.f32.gmra.mrb[0].mxu0 %v7207
    %v7278 = vpop.f32.mrb[0].mxu0
    %v7279 = vadd.f32 %v7204, %v7278
    %v7280 = vpop.f32.mrb[0].mxu0
    %7281 = vmatprep.mubr.f32.mxu0 0.0
    %7282 = vmatmul.mubr.f32.gmra.mrb[0].mxu0 %v7210
    %v7283 = vpop.f32.mrb[0].mxu0
    %v7284 = vadd.f32 %v7204, %v7283
    %v7285 = vpop.f32.mrb[0].mxu0
    %7286 = vdwg.mxu0
    %v7287 = vxor.u32 %v7279, 2147483648
    %v7288 = vxor.u32 %v7284, 2147483648
    %v7289 = vmul.f32 %v7287, 1.442695
    %v7290 = vpow.pop %v7289
    %v7291 = vmul.f32 %v7288, 1.442695
    %v7292 = vpow.pop %v7291
    %v7293 = vadd.f32 %v7290, 1.0
    %v7294 = vadd.f32 %v7292, 1.0
    %v7295 = vrcp.pop %v7293
    %v7296 = vmul.f32 1.0, %v7295
    %v7297 = vrcp.pop %v7294
    %v7298 = vmul.f32 1.0, %v7297
    %v7299 = vmul.f32 %v7296, 40.0
    %v7300 = vmul.f32 %v7298, 40.0
    %v7301 = vadd.f32 %v7299, -40.0
    %v7302 = vadd.f32 %v7300, -40.0
    %7303 = vxpose.xlu0.b32.start [1/16] %v7301, 128
    %7304 = vxpose.xlu0.b32.cont [2/16] %v7302, 128
    %7305 = vxpose.xlu0.b32.cont [3/16] 0.0, 128
    %7306 = vxpose.xlu0.b32.cont [4/16] 0.0, 128
    %7307 = vxpose.xlu0.b32.cont [5/16] 0.0, 128
    %7308 = vxpose.xlu0.b32.cont [6/16] 0.0, 128
    %7309 = vxpose.xlu0.b32.cont [7/16] 0.0, 128
    %7310 = vxpose.xlu0.b32.cont [8/16] 0.0, 128
    %7311 = vxpose.xlu0.b32.cont [9/16] 0.0, 128
    %7312 = vxpose.xlu0.b32.cont [10/16] 0.0, 128
    %7313 = vxpose.xlu0.b32.cont [11/16] 0.0, 128
    %7314 = vxpose.xlu0.b32.cont [12/16] 0.0, 128
    %7315 = vxpose.xlu0.b32.cont [13/16] 0.0, 128
    %7316 = vxpose.xlu0.b32.cont [14/16] 0.0, 128
    %7317 = vxpose.xlu0.b32.cont [15/16] 0.0, 128
    %7318 = vxpose.xlu0.b32.end [16/16] 0.0, 128
    %v7319 = vpop.trf.xlu0
    %v7320 = vpop.trf.xlu0
    %v7321 = vpop.trf.xlu0
    %v7322 = vpop.trf.xlu0
    %v7323 = vpop.trf.xlu0
    %v7324 = vpop.trf.xlu0
    %v7325 = vpop.trf.xlu0
    %v7326 = vpop.trf.xlu0
    %v7327 = vpop.trf.xlu0
    %v7328 = vpop.trf.xlu0
    %v7329 = vpop.trf.xlu0
    %v7330 = vpop.trf.xlu0
    %v7331 = vpop.trf.xlu0
    %v7332 = vpop.trf.xlu0
    %v7333 = vpop.trf.xlu0
    %v7334 = vpop.trf.xlu0
    %7335 = vst.msk [vmem:[#allocation11] sm:$0xff] %vm462, %v7319
    // Predicated region
    $region86: #{_lambda_.1} parent=1 // pred_check
      _
    $region87: #{_lambda_.1} parent=1 // pred_check_branch
      %7337 = sbr.rel (0) target = $region89
    $region88: #{_lambda_.1} parent=1 // pred_region
      %s7339 = ssub.s32 128, 128
      %7340 = vsyncadd [#allocation7], %s7339
      %s7342 = sshll.u32 [#allocation11], 4
      %s7343 = int_to_ptr.vmem [resolvable:$true] %s7342
      %7345 = dma.vmem_to_hbm [thread:$0]  %s7343, 128, %s18, [#allocation7]
    $region89: #{_lambda_.1} parent=1 // pred_fallthru
      _
    // Predicated region
    $region90: #{_lambda_.1} parent=1 // pred_check
      _
    $region91: #{_lambda_.1} parent=1 // pred_check_branch
      %7347 = sbr.rel (0) target = $region93
    $region92: #{_lambda_.1} parent=1 // pred_region
      %s7349 = ssub.s32 16, 16
      %7350 = vsyncadd [#allocation13], %s7349
      %s7352 = sshll.u32 [#allocation12], 4
      %s7353 = int_to_ptr.vmem [resolvable:$true] %s7352
      %7355 = dma.vmem_to_hbm [thread:$0]  %s7353, 16, %s19, [#allocation13]
    $region93: #{_lambda_.1} parent=1 // pred_fallthru
      _
    // Predicated region
    $region94: #{_lambda_.1} parent=1 // pred_check
      _
    $region95: #{_lambda_.1} parent=1 // pred_check_branch
      %7357 = sbr.rel (0) target = $region97
    $region96: #{_lambda_.1} parent=1 // pred_region
      %7358 = dma.done [#allocation7], 128
    $region97: #{_lambda_.1} parent=1 // pred_fallthru
      _
    // Predicated region
    $region98: #{_lambda_.1} parent=1 // pred_check
      _
    $region99: #{_lambda_.1} parent=1 // pred_check_branch
      %7360 = sbr.rel (0) target = $region101
    $region100: #{_lambda_.1} parent=1 // pred_region
      %7361 = dma.done [#allocation13], 16
    $region101: #{_lambda_.1} parent=1 // pred_fallthru
      _
    %7362 = vsyncpa [#allocation6], 1
    %7363 = vsyncpa [#allocation9], 1
    %7364 = vsyncpa [#allocation7], 1
    %7365 = vsyncpa [#allocation13], 1

</llo_original>
